<compile_context>
chip_gen: v6e
topology: v6e:2x2x1
jax: 0.10.0
libtpu: 0.0.40
codegen_flags: <defaults>
</compile_context>

<pallas_src>
import functools

import jax
import jax.numpy as jnp
from jax.experimental import pallas as pl
from jax.experimental.pallas import tpu as pltpu


def _default_tanh_dtype():
    # bf16 VPU/EUP only on v6e / v7x; keep f32 on v5e and older generations.
    try:
        kind = jax.devices()[0].device_kind.lower()
    except Exception:
        return jnp.dtype(jnp.float32)
    if "v6" in kind or "v7" in kind or "tpu7" in kind:
        return jnp.dtype(jnp.bfloat16)
    return jnp.dtype(jnp.float32)


def _mlp_attn_kernel(q_ref, mem_ref, mpT_ref, wq_ref, bq_ref, v_ref, out_ref,
                     qp_sc, m_sc, l_sc, acc_sc, *,
                     tanh_dtype, mm_dtype, approx_recip):
    # q_ref  : (tq, Dq)      mem_ref: (tm, Dm)      mpT_ref: (H, tm) [tanh_dtype]
    # wq_ref : (Dq, H)       bq_ref : (1, H)        v_ref  : (1, H)
    # out_ref: (tq, Dm)
    # scratch: qp_sc (tq, H) [tanh_dtype], m_sc/l_sc (tq, 1) f32, acc_sc (tq, Dm) f32
    mi = pl.program_id(2)
    last_mi = pl.num_programs(2) - 1

    # ---- per (batch, Lq-tile) init: first Lm step only ---------------------
    @pl.when(mi == 0)
    def _():
        # linear_query(query): (tq, Dq) @ (Dq, H) + bias -> MXU, f32 accumulate.
        qp = (jnp.dot(q_ref[...], wq_ref[...],
                      preferred_element_type=jnp.float32) + bq_ref[...])
        qp_sc[...] = qp.astype(tanh_dtype)
        m_sc[...] = jnp.full(m_sc.shape, -jnp.inf, jnp.float32)
        l_sc[...] = jnp.zeros(l_sc.shape, jnp.float32)
        acc_sc[...] = jnp.zeros(acc_sc.shape, jnp.float32)

    qp = qp_sc[...]                      # (tq, H)  tanh_dtype (cached over Lm)
    mp_t = mpT_ref[...]                  # (H, tm)  tanh_dtype (pre-projected,
                                         #           pre-transposed on host)

    # hidden[q, h, m] = qp[q, h] + mp_T[h, m]; Lm tile in lanes (lane-dense).
    hidden = qp[:, :, None] + mp_t[None, :, :]           # (tq, H, tm)
    key = jnp.tanh(hidden)                               # EUP, tanh_dtype
    # TODO(synk): if bundle dumps show the vst slot binding (worst on v5e),
    # chunk this block over H with lax.fori_loop(unroll=True) accumulating s.

    # score s[q, m] = sum_h v[h] * key[q, h, m]  — batched (1,H)@(H,tm) on MXU.
    tq, H, tm = key.shape
    v_b = jnp.broadcast_to(v_ref[...].astype(tanh_dtype)[None], (tq, 1, H))
    s3 = jax.lax.dot_general(
        v_b, key,
        dimension_numbers=(((2,), (1,)), ((0,), (0,))),
        preferred_element_type=jnp.float32)              # (tq, 1, tm) f32
    s = s3[:, 0, :]                                      # (tq, tm)    f32

    # ---- online (flash-style) softmax over the Lm axis ---------------------
    m_prev = m_sc[...]
    m_new = jnp.maximum(m_prev, jnp.max(s, axis=-1, keepdims=True))
    alpha = jnp.exp(m_prev - m_new)
    p = jnp.exp(s - m_new)                               # (tq, tm)
    l_sc[...] = alpha * l_sc[...] + jnp.sum(p, axis=-1, keepdims=True)
    acc_sc[...] = alpha * acc_sc[...] + jnp.dot(
        p.astype(mm_dtype), mem_ref[...].astype(mm_dtype),
        preferred_element_type=jnp.float32)
    m_sc[...] = m_new

    # ---- finalize on the last Lm step --------------------------------------
    @pl.when(mi == last_mi)
    def _():
        inv_l = pl.reciprocal(l_sc[...], approx=approx_recip)
        out_ref[...] = (acc_sc[...] * inv_l).astype(out_ref.dtype)


def mlp_attention(query, memory, wq_t, bq, wm_t, v, *,
                  lq_tile=None, lm_tile=128, tanh_dtype=None):
    """query (B, Lq, Dq), memory (B, Lm, Dm); weights pre-transposed (in, out)."""
    B, Lq, Dq = query.shape
    _, Lm, Dm = memory.shape
    H = wq_t.shape[1]

    if tanh_dtype is None:
        tanh_dtype = _default_tanh_dtype()
    tanh_dtype = jnp.dtype(tanh_dtype)
    use_bf16 = tanh_dtype == jnp.dtype(jnp.bfloat16)
    mm_dtype = jnp.dtype(jnp.bfloat16) if use_bf16 else jnp.dtype(jnp.float32)

    # Tile defaults: bigger tq on the bf16 path (v6e/v7x, 128 MiB / 64 MiB
    # VMEM, bf16 3-D tile); smaller tq on the f32 path (v5e: 1 vst slot,
    # f32 intermediates 2x bigger).
    if lq_tile is None:
        lq_tile = 128 if use_bf16 else 64
    tq = min(lq_tile, Lq)
    tm = min(lm_tile, Lm)
    # Keep the parallel grid extent >= 2 so both v7x TensorCores stay busy.
    while B * (Lq // tq) < 2 and tq > 8 and tq % 2 == 0 and Lq % (tq // 2) == 0:
        tq //= 2
    assert Lq % tq == 0 and Lm % tm == 0, "Lq/Lm must divide the tile sizes"
    # TODO(synk): add ragged-edge masking for Lq/Lm not divisible by the tiles.
    # TODO(synk): pad H/Dq/Dm to multiples of 128 for non-lane-dense configs.

    # Hoist linear_memory(memory) and its transpose out of the kernel: one XLA
    # matmul producing (B, H, Lm), streamed tile-by-tile already lane-dense.
    mp_T = jnp.einsum("bmd,dh->bhm", memory, wm_t,
                      precision=jax.lax.Precision.HIGHEST).astype(tanh_dtype)

    bq2 = bq.reshape(1, H).astype(jnp.float32)
    v2 = v.reshape(1, H).astype(jnp.float32)

    kernel = functools.partial(
        _mlp_attn_kernel,
        tanh_dtype=tanh_dtype,
        mm_dtype=mm_dtype,
        approx_recip=use_bf16,   # exact reciprocal on the high-accuracy path
    )

    grid = (B, Lq // tq, Lm // tm)
    return pl.pallas_call(
        kernel,
        out_shape=jax.ShapeDtypeStruct((B, Lq, Dm), query.dtype),
        grid_spec=pltpu.PrefetchScalarGridSpec(
            num_scalar_prefetch=0,
            grid=grid,
            in_specs=[
                pl.BlockSpec((pl.Squeezed(), tq, Dq),
                             lambda b, qi, mi: (b, qi, 0)),
                # raw memory tile, for weights @ memory (reduction axis last)
                pl.BlockSpec((pl.Squeezed(), tm, Dm),
                             lambda b, qi, mi: (b, mi, 0)),
                # pre-projected, pre-transposed memory: (H, tm) per step
                pl.BlockSpec((pl.Squeezed(), H, tm),
                             lambda b, qi, mi: (b, 0, mi)),
                pl.BlockSpec((Dq, H), lambda b, qi, mi: (0, 0)),
                pl.BlockSpec((1, H), lambda b, qi, mi: (0, 0)),
                pl.BlockSpec((1, H), lambda b, qi, mi: (0, 0)),
            ],
            out_specs=pl.BlockSpec((pl.Squeezed(), tq, Dm),
                                   lambda b, qi, mi: (b, qi, 0)),
            scratch_shapes=[
                pltpu.VMEM((tq, H), tanh_dtype),    # cached query projection
                pltpu.VMEM((tq, 1), jnp.float32),   # running max
                pltpu.VMEM((tq, 1), jnp.float32),   # running denom
                pltpu.VMEM((tq, Dm), jnp.float32),  # output accumulator
            ],
        ),
        compiler_params=pltpu.CompilerParams(
            dimension_semantics=("parallel", "parallel", "arbitrary"),
            vmem_limit_bytes=32 * 1024 * 1024,
        ),
    )(query, memory, mp_T, wq_t, bq2, v2)


def reference(query, memory, wq_t, bq, wm_t, v):
    hi = jax.lax.Precision.HIGHEST
    qp = jnp.einsum("bqd,dh->bqh", query, wq_t, precision=hi) + bq[None, None, :]
    mp = jnp.einsum("bmd,dh->bmh", memory, wm_t, precision=hi)
    key = jnp.tanh(qp[:, :, None, :] + mp[:, None, :, :])
    attn = jnp.einsum("bqmh,h->bqm", key, v, precision=hi)
    w = jax.nn.softmax(attn, axis=-1)
    return jnp.einsum("bqm,bmd->bqd", w, memory, precision=hi)


if __name__ == "__main__":
    # Small but lane-dense shapes (feature dims multiples of 128, seq a
    # multiple of the 64/128 tiles) so every vreg / MXU pass is fully used.
    B, Lq, Lm = 2, 256, 256
    query_size = memory_size = hidden_size = 128

    key = jax.random.PRNGKey(0)
    k1, k2, k3, k4, k5, k6 = jax.random.split(key, 6)

    query = jax.random.normal(k1, (B, Lq, query_size), dtype=jnp.float32)
    memory = jax.random.normal(k2, (B, Lm, memory_size), dtype=jnp.float32)

    # PyTorch nn.Linear parameters, passed pre-transposed as (in, out).
    wq_t = jax.random.normal(k3, (query_size, hidden_size), dtype=jnp.float32) * 0.1
    bq = jax.random.normal(k4, (hidden_size,), dtype=jnp.float32) * 0.1
    wm_t = jax.random.normal(k5, (memory_size, hidden_size), dtype=jnp.float32) * 0.1
    v = jax.random.normal(k6, (hidden_size,), dtype=jnp.float32) * 0.1

    ref = reference(query, memory, wq_t, bq, wm_t, v)

    # f32 path (works on all generations, incl. v5e).
    out_f32 = jax.block_until_ready(
        mlp_attention(query, memory, wq_t, bq, wm_t, v, tanh_dtype=jnp.float32))
    assert out_f32.shape == (B, Lq, memory_size)
    assert jnp.allclose(out_f32, ref, atol=2e-3, rtol=2e-3), \
        "f32 path mismatch vs reference"

    # Default path: bf16 broadcast+tanh on v6e/v7x (fast path), f32 elsewhere.
    out_auto = jax.block_until_ready(
        mlp_attention(query, memory, wq_t, bq, wm_t, v))
    assert out_auto.shape == (B, Lq, memory_size)
    assert jnp.allclose(out_auto, ref, atol=5e-2, rtol=5e-2), \
        "auto-dtype path mismatch vs reference"

    print("KERNEL_OK")
</pallas_src>

<mosaic_0001>
module attributes {stable_mosaic.version = 11 : i64} {
  func.func @_mlp_attn_kernel(%arg0: i32, %arg1: i32, %arg2: i32, %arg3: memref<1x64x128xf32, #tpu.memory_space<vmem>>, %arg4: memref<1x128x128xf32, #tpu.memory_space<vmem>>, %arg5: memref<1x128x128xf32, #tpu.memory_space<vmem>>, %arg6: memref<128x128xf32, #tpu.memory_space<vmem>>, %arg7: memref<1x128xf32, #tpu.memory_space<vmem>>, %arg8: memref<1x128xf32, #tpu.memory_space<vmem>>, %arg9: memref<1x64x128xf32, #tpu.memory_space<vmem>>, %arg10: memref<64x128xf32, #tpu.memory_space<vmem>>, %arg11: memref<64x1xf32, #tpu.memory_space<vmem>>, %arg12: memref<64x1xf32, #tpu.memory_space<vmem>>, %arg13: memref<64x128xf32, #tpu.memory_space<vmem>>) attributes {dimension_semantics = [#tpu.dimension_semantics<parallel>, #tpu.dimension_semantics<parallel>, #tpu.dimension_semantics<arbitrary>], iteration_bounds = array<i64: 2, 4, 2>, scalar_prefetch = 0 : i64, scratch_operands = 4 : i64, tpu.core_type = #tpu.core_type<tc>, window_params = [{transform_indices = @transform_0, window_bounds = array<i64: 1, 64, 128>}, {transform_indices = @transform_1, window_bounds = array<i64: 1, 128, 128>}, {transform_indices = @transform_2, window_bounds = array<i64: 1, 128, 128>}, {pipeline_mode = #tpu.pipeline_mode<synchronous>, transform_indices = @transform_3, window_bounds = array<i64: 128, 128>}, {pipeline_mode = #tpu.pipeline_mode<synchronous>, transform_indices = @transform_4, window_bounds = array<i64: 1, 128>}, {pipeline_mode = #tpu.pipeline_mode<synchronous>, transform_indices = @transform_5, window_bounds = array<i64: 1, 128>}, {transform_indices = @transform_6, window_bounds = array<i64: 1, 64, 128>}]} {
    %c0_i32 = arith.constant 0 : i32
    %0 = arith.cmpi eq, %arg2, %c0_i32 : i32
    %1 = arith.extui %0 : i1 to i32
    %c0_i32_0 = arith.constant 0 : i32
    %2 = arith.cmpi ne, %1, %c0_i32_0 : i32
    scf.if %2 {
      %c0_26 = arith.constant 0 : index
      %c0_27 = arith.constant 0 : index
      %c0_28 = arith.constant 0 : index
      %45 = vector.load %arg3[%c0_26, %c0_27, %c0_28] : memref<1x64x128xf32, #tpu.memory_space<vmem>>, vector<1x64x128xf32>
      %46 = vector.shape_cast %45 : vector<1x64x128xf32> to vector<64x128xf32>
      %c0_29 = arith.constant 0 : index
      %c0_30 = arith.constant 0 : index
      %47 = vector.load %arg6[%c0_29, %c0_30] : memref<128x128xf32, #tpu.memory_space<vmem>>, vector<128x128xf32>
      %cst_31 = arith.constant dense<0.000000e+00> : vector<64x128xf32>
      %48 = tpu.matmul %46, %47, %cst_31 {dimension_numbers = #tpu.dot_dimension_numbers<[1], [0], [0], [1], [0, 0, 1, 1], [], []>} : vector<64x128xf32>, vector<128x128xf32>, vector<64x128xf32> -> vector<64x128xf32>
      %c0_32 = arith.constant 0 : index
      %c0_33 = arith.constant 0 : index
      %49 = vector.load %arg7[%c0_32, %c0_33] : memref<1x128xf32, #tpu.memory_space<vmem>>, vector<1x128xf32>
      %50 = vector.broadcast %49 : vector<1x128xf32> to vector<64x128xf32>
      %51 = arith.addf %48, %50 : vector<64x128xf32>
      %c0_34 = arith.constant 0 : index
      %c0_35 = arith.constant 0 : index
      %52 = vector.load %arg10[%c0_34, %c0_35] : memref<64x128xf32, #tpu.memory_space<vmem>>, vector<64x128xf32>
      tpu.vector_store %arg10[%c0_34, %c0_35], %51 {strides = array<i32>} : memref<64x128xf32, #tpu.memory_space<vmem>>, vector<64x128xf32>,
      %cst_36 = arith.constant 0xFF800000 : f32
      %53 = vector.broadcast %cst_36 : f32 to vector<64x1xf32>
      %c0_37 = arith.constant 0 : index
      %c0_38 = arith.constant 0 : index
      %54 = vector.load %arg11[%c0_37, %c0_38] : memref<64x1xf32, #tpu.memory_space<vmem>>, vector<64x1xf32>
      tpu.vector_store %arg11[%c0_37, %c0_38], %53 {strides = array<i32>} : memref<64x1xf32, #tpu.memory_space<vmem>>, vector<64x1xf32>,
      %cst_39 = arith.constant 0.000000e+00 : f32
      %55 = vector.broadcast %cst_39 : f32 to vector<64x1xf32>
      %c0_40 = arith.constant 0 : index
      %c0_41 = arith.constant 0 : index
      %56 = vector.load %arg12[%c0_40, %c0_41] : memref<64x1xf32, #tpu.memory_space<vmem>>, vector<64x1xf32>
      tpu.vector_store %arg12[%c0_40, %c0_41], %55 {strides = array<i32>} : memref<64x1xf32, #tpu.memory_space<vmem>>, vector<64x1xf32>,
      %cst_42 = arith.constant 0.000000e+00 : f32
      %57 = vector.broadcast %cst_42 : f32 to vector<64x128xf32>
      %c0_43 = arith.constant 0 : index
      %c0_44 = arith.constant 0 : index
      %58 = vector.load %arg13[%c0_43, %c0_44] : memref<64x128xf32, #tpu.memory_space<vmem>>, vector<64x128xf32>
      tpu.vector_store %arg13[%c0_43, %c0_44], %57 {strides = array<i32>} : memref<64x128xf32, #tpu.memory_space<vmem>>, vector<64x128xf32>,
    } else {
    }
    %c0 = arith.constant 0 : index
    %c0_1 = arith.constant 0 : index
    %3 = vector.load %arg10[%c0, %c0_1] : memref<64x128xf32, #tpu.memory_space<vmem>>, vector<64x128xf32>
    %c0_2 = arith.constant 0 : index
    %c0_3 = arith.constant 0 : index
    %c0_4 = arith.constant 0 : index
    %4 = vector.load %arg5[%c0_2, %c0_3, %c0_4] : memref<1x128x128xf32, #tpu.memory_space<vmem>>, vector<1x128x128xf32>
    %5 = vector.shape_cast %4 : vector<1x128x128xf32> to vector<128x128xf32>
    %6 = vector.shape_cast %3 : vector<64x128xf32> to vector<64x128x1xf32>
    %7 = vector.shape_cast %5 : vector<128x128xf32> to vector<1x128x128xf32>
    %8 = vector.broadcast %6 : vector<64x128x1xf32> to vector<64x128x128xf32>
    %9 = vector.broadcast %7 : vector<1x128x128xf32> to vector<64x128x128xf32>
    %10 = arith.addf %8, %9 : vector<64x128x128xf32>
    %11 = math.tanh %10 : vector<64x128x128xf32>
    %c0_5 = arith.constant 0 : index
    %c0_6 = arith.constant 0 : index
    %12 = vector.load %arg8[%c0_5, %c0_6] : memref<1x128xf32, #tpu.memory_space<vmem>>, vector<1x128xf32>
    %13 = vector.shape_cast %12 : vector<1x128xf32> to vector<1x1x128xf32>
    %14 = vector.shape_cast %13 : vector<1x1x128xf32> to vector<1x1x128xf32>
    %15 = vector.broadcast %14 : vector<1x1x128xf32> to vector<64x1x128xf32>
    %cst = arith.constant dense<0.000000e+00> : vector<64x1x128xf32>
    %16 = tpu.matmul %15, %11, %cst {dimension_numbers = #tpu.dot_dimension_numbers<[2], [1], [1], [2], [0, 0, 0, 1, 1, 2], [0], [0]>} : vector<64x1x128xf32>, vector<64x128x128xf32>, vector<64x1x128xf32> -> vector<64x1x128xf32>
    %17 = vector.shape_cast %16 : vector<64x1x128xf32> to vector<64x128xf32>
    %c0_7 = arith.constant 0 : index
    %c0_8 = arith.constant 0 : index
    %18 = vector.load %arg11[%c0_7, %c0_8] : memref<64x1xf32, #tpu.memory_space<vmem>>, vector<64x1xf32>
    %cst_9 = arith.constant dense<0xFF800000> : vector<64xf32>
    %19 = vector.multi_reduction <maximumf>, %17, %cst_9 [1] : vector<64x128xf32> to vector<64xf32>
    %20 = vector.shape_cast %19 : vector<64xf32> to vector<64x1xf32>
    %21 = arith.maximumf %18, %20 : vector<64x1xf32>
    %22 = arith.subf %18, %21 : vector<64x1xf32>
    %23 = math.exp %22 : vector<64x1xf32>
    %24 = vector.broadcast %21 : vector<64x1xf32> to vector<64x128xf32>
    %25 = arith.subf %17, %24 : vector<64x128xf32>
    %26 = math.exp %25 : vector<64x128xf32>
    %c0_10 = arith.constant 0 : index
    %c0_11 = arith.constant 0 : index
    %27 = vector.load %arg12[%c0_10, %c0_11] : memref<64x1xf32, #tpu.memory_space<vmem>>, vector<64x1xf32>
    %28 = arith.mulf %23, %27 : vector<64x1xf32>
    %cst_12 = arith.constant dense<0.000000e+00> : vector<64xf32>
    %29 = vector.multi_reduction <add>, %26, %cst_12 [1] : vector<64x128xf32> to vector<64xf32>
    %30 = vector.shape_cast %29 : vector<64xf32> to vector<64x1xf32>
    %31 = arith.addf %28, %30 : vector<64x1xf32>
    %c0_13 = arith.constant 0 : index
    %c0_14 = arith.constant 0 : index
    %32 = vector.load %arg12[%c0_13, %c0_14] : memref<64x1xf32, #tpu.memory_space<vmem>>, vector<64x1xf32>
    tpu.vector_store %arg12[%c0_13, %c0_14], %31 {strides = array<i32>} : memref<64x1xf32, #tpu.memory_space<vmem>>, vector<64x1xf32>,
    %c0_15 = arith.constant 0 : index
    %c0_16 = arith.constant 0 : index
    %33 = vector.load %arg13[%c0_15, %c0_16] : memref<64x128xf32, #tpu.memory_space<vmem>>, vector<64x128xf32>
    %34 = vector.broadcast %23 : vector<64x1xf32> to vector<64x128xf32>
    %35 = arith.mulf %34, %33 : vector<64x128xf32>
    %c0_17 = arith.constant 0 : index
    %c0_18 = arith.constant 0 : index
    %c0_19 = arith.constant 0 : index
    %36 = vector.load %arg4[%c0_17, %c0_18, %c0_19] : memref<1x128x128xf32, #tpu.memory_space<vmem>>, vector<1x128x128xf32>
    %37 = vector.shape_cast %36 : vector<1x128x128xf32> to vector<128x128xf32>
    %cst_20 = arith.constant dense<0.000000e+00> : vector<64x128xf32>
    %38 = tpu.matmul %26, %37, %cst_20 {dimension_numbers = #tpu.dot_dimension_numbers<[1], [0], [0], [1], [0, 0, 1, 1], [], []>} : vector<64x128xf32>, vector<128x128xf32>, vector<64x128xf32> -> vector<64x128xf32>
    %39 = arith.addf %35, %38 : vector<64x128xf32>
    %c0_21 = arith.constant 0 : index
    %c0_22 = arith.constant 0 : index
    %40 = vector.load %arg13[%c0_21, %c0_22] : memref<64x128xf32, #tpu.memory_space<vmem>>, vector<64x128xf32>
    tpu.vector_store %arg13[%c0_21, %c0_22], %39 {strides = array<i32>} : memref<64x128xf32, #tpu.memory_space<vmem>>, vector<64x128xf32>,
    %c0_23 = arith.constant 0 : index
    %c0_24 = arith.constant 0 : index
    %41 = vector.load %arg11[%c0_23, %c0_24] : memref<64x1xf32, #tpu.memory_space<vmem>>, vector<64x1xf32>
    tpu.vector_store %arg11[%c0_23, %c0_24], %21 {strides = array<i32>} : memref<64x1xf32, #tpu.memory_space<vmem>>, vector<64x1xf32>,
    %c1_i32 = arith.constant 1 : i32
    %42 = arith.cmpi eq, %arg2, %c1_i32 : i32
    %43 = arith.extui %42 : i1 to i32
    %c0_i32_25 = arith.constant 0 : i32
    %44 = arith.cmpi ne, %43, %c0_i32_25 : i32
    scf.if %44 {
      %c0_26 = arith.constant 0 : index
      %c0_27 = arith.constant 0 : index
      %45 = vector.load %arg12[%c0_26, %c0_27] : memref<64x1xf32, #tpu.memory_space<vmem>>, vector<64x1xf32>
      %46 = tpu.reciprocal %45 : vector<64x1xf32> -> vector<64x1xf32>
      %c0_28 = arith.constant 0 : index
      %c0_29 = arith.constant 0 : index
      %47 = vector.load %arg13[%c0_28, %c0_29] : memref<64x128xf32, #tpu.memory_space<vmem>>, vector<64x128xf32>
      %48 = vector.broadcast %46 : vector<64x1xf32> to vector<64x128xf32>
      %49 = arith.mulf %47, %48 : vector<64x128xf32>
      %c0_30 = arith.constant 0 : index
      %c0_31 = arith.constant 0 : index
      %c0_32 = arith.constant 0 : index
      %50 = vector.load %arg9[%c0_30, %c0_31, %c0_32] : memref<1x64x128xf32, #tpu.memory_space<vmem>>, vector<1x64x128xf32>
      %51 = vector.shape_cast %50 : vector<1x64x128xf32> to vector<64x128xf32>
      %52 = vector.shape_cast %49 : vector<64x128xf32> to vector<1x64x128xf32>
      tpu.vector_store %arg9[%c0_30, %c0_31, %c0_32], %52 {strides = array<i32>} : memref<1x64x128xf32, #tpu.memory_space<vmem>>, vector<1x64x128xf32>,
    } else {
    }
    return
  }
  func.func @transform_0(%arg0: i32, %arg1: i32, %arg2: i32) -> (i32, i32, i32) {
    %c0_i32 = arith.constant 0 : i32
    %c0_i32_0 = arith.constant 0 : i32
    return %arg0, %arg1, %c0_i32 : i32, i32, i32
  }
  func.func @transform_1(%arg0: i32, %arg1: i32, %arg2: i32) -> (i32, i32, i32) {
    %c0_i32 = arith.constant 0 : i32
    %c0_i32_0 = arith.constant 0 : i32
    return %arg0, %arg2, %c0_i32 : i32, i32, i32
  }
  func.func @transform_2(%arg0: i32, %arg1: i32, %arg2: i32) -> (i32, i32, i32) {
    %c0_i32 = arith.constant 0 : i32
    %c0_i32_0 = arith.constant 0 : i32
    return %arg0, %c0_i32, %arg2 : i32, i32, i32
  }
  func.func @transform_3(%arg0: i32, %arg1: i32, %arg2: i32) -> (i32, i32) {
    %c0_i32 = arith.constant 0 : i32
    %c0_i32_0 = arith.constant 0 : i32
    %c0_i32_1 = arith.constant 0 : i32
    return %c0_i32, %c0_i32_0 : i32, i32
  }
  func.func @transform_4(%arg0: i32, %arg1: i32, %arg2: i32) -> (i32, i32) {
    %c0_i32 = arith.constant 0 : i32
    %c0_i32_0 = arith.constant 0 : i32
    %c0_i32_1 = arith.constant 0 : i32
    return %c0_i32, %c0_i32_0 : i32, i32
  }
  func.func @transform_5(%arg0: i32, %arg1: i32, %arg2: i32) -> (i32, i32) {
    %c0_i32 = arith.constant 0 : i32
    %c0_i32_0 = arith.constant 0 : i32
    %c0_i32_1 = arith.constant 0 : i32
    return %c0_i32, %c0_i32_0 : i32, i32
  }
  func.func @transform_6(%arg0: i32, %arg1: i32, %arg2: i32) -> (i32, i32, i32) {
    %c0_i32 = arith.constant 0 : i32
    %c0_i32_0 = arith.constant 0 : i32
    return %arg0, %arg1, %c0_i32 : i32, i32, i32
  }
}

</mosaic_0001>

<llo_original>
// kernel: tpu_custom_call.1
$region0: #{tpu_custom_call.1}
  #allocation0 [shape = 'u32[]', space=smem, size = 0x4, offset = 0x4, fixed_abs, tag = 'smem constant byte address 0x4 - core index']
  #allocation1 [shape = 'u32[144,128]{1,0:T(1,128)}', space=vmem, size = 0x12000, scoped, tag = 'internal scratch']
  #allocation2 [shape = 'f32[64,128]{1,0:T(8,128)}', space=vmem, size = 0x8000, scoped, tag = 'scratch operand']
  #allocation3 [shape = 'f32[64,1]{1,0:T(8,128)}', space=vmem, size = 0x8000, scoped, tag = 'scratch operand']
  #allocation4 [shape = 'f32[64,1]{1,0:T(8,128)}', space=vmem, size = 0x8000, scoped, tag = 'scratch operand']
  #allocation5 [shape = 'f32[64,128]{1,0:T(8,128)}', space=vmem, size = 0x8000, scoped, tag = 'scratch operand']
  %s0 = inlined_call_operand.hbm [shape: f32[2,256,128], index: 0, kind: input, shape index: {}]
  %s1 = inlined_call_operand.hbm [shape: f32[2,256,128], index: 1, kind: input, shape index: {}]
  %s2 = inlined_call_operand.hbm [shape: f32[2,128,256], index: 2, kind: input, shape index: {}]
  %s3 = inlined_call_operand.hbm [shape: f32[128,128], index: 3, kind: input, shape index: {}]
  %s4 = inlined_call_operand.vmem [shape: f32[1,128], index: 4, kind: input, shape index: {}]
  %s5 = inlined_call_operand.vmem [shape: f32[1,128], index: 5, kind: input, shape index: {}]
  %s6 = inlined_call_operand.hbm [shape: f32[2,256,128], index: 6, kind: output, shape index: {}]
  %s7 = sld [smem:[#allocation0]]
  $region81: #{tpu_custom_call.1} parent=0
    _
  %s9 = ssub.s32 1, %s7
  %s10 = scalar_select 0, %s9, %s7
  $region1: #{tpu_custom_call.1} parent=0
    #allocation6 [shape = 'u8[65536]{0}', space=vmem, size = 0x10000, scoped, tag = 'input window, operand 0']
    #allocation7 [shape = 's32[2]{0}', space=sflag, size = 0x8, scoped, tag = 'scoped memory for tpu_custom_call.1']
    #allocation8 [shape = 's32[2]{0}', space=sflag, size = 0x8, scoped, tag = 'scoped memory for tpu_custom_call.1']
    #allocation9 [shape = 'u8[131072]{0}', space=vmem, size = 0x20000, scoped, tag = 'input window, operand 1']
    #allocation10 [shape = 's32[2]{0}', space=sflag, size = 0x8, scoped, tag = 'scoped memory for tpu_custom_call.1']
    #allocation11 [shape = 'u8[131072]{0}', space=vmem, size = 0x20000, scoped, tag = 'input window, operand 2']
    #allocation12 [shape = 'u8[65536]{0}', space=vmem, size = 0x10000, scoped, tag = 'input window, operand 3, single buffered']
    #allocation13 [shape = 's32[1]{0}', space=sflag, size = 0x4, scoped, tag = 'scoped memory for tpu_custom_call.1']
    #allocation14 [shape = 'u8[65536]{0}', space=vmem, size = 0x10000, scoped, tag = 'output window, operand 0']
    %11 = vsyncpa [#allocation7], 0
    %s12 = scalar_lea.sflag [#allocation7], 1
    %13 = vsyncpa %s12, 0
    %14 = vsyncpa [#allocation10], 0
    %s15 = scalar_lea.sflag [#allocation10], 1
    %16 = vsyncpa %s15, 0
    %17 = vsyncpa [#allocation13], 0
    %18 = vsyncpa [#allocation8], 0
    %s19 = scalar_lea.sflag [#allocation8], 1
    %20 = vsyncpa %s19, 0
    loop: start=0, step=1, limit=18
    $region2: #{tpu_custom_call.1} parent=1 // loop_pre_header
      _
    $region3: #{tpu_custom_call.1} parent=1 // loop_header
      %s22 = sphi 0, %s26
      %p23 = scmp.ge.s32.totalorder %s22, 18
      %s29 = sphi 0, %s48
      %s30 = sphi 0, %s44
      %s31 = sphi 0, %s40
      %s32 = sphi 0, %s29
      %s33 = sphi 0, %s30
      %s34 = sphi 0, %s31
      %s35 = sphi 0, %s32
      %s36 = sphi 0, %s33
      %s37 = sphi 0, %s34
      %s53 = sphi 0, %s55
      %s56 = sphi 0, %s53
      %s57 = sphi 0, %s56
      %s73 = sphi 0, %s57
      %s81 = sphi 0, %s83
      %s84 = sphi 0, %s81
      %s85 = sphi 0, %s84
      %s101 = sphi 0, %s85
      %s109 = sphi 0, %s111
      %s112 = sphi 0, %s109
      %s113 = sphi 0, %s112
      %s129 = sphi 0, %s113
      %s133 = sphi 0, %s133
      %s135 = sphi 0, %s133
      %s136 = sphi 0, %s135
      %s150 = sphi 0, %s136
      %s154 = sphi 0, %s154
      %s156 = sphi 0, %s154
      %s157 = sphi 0, %s156
      %s171 = sphi 0, %s157
      %s175 = sphi 0, %s175
      %s177 = sphi 0, %s175
      %s178 = sphi 0, %s177
      %s192 = sphi 0, %s178
      %s200 = sphi 0, %s202
      %s203 = sphi 0, %s200
      %s204 = sphi 0, %s203
      %s220 = sphi 0, %s204
    $region4: #{tpu_custom_call.1} parent=1 // loop_header_branch
      %25 = sbr.rel (%p23) target = $region8
    $region5: #{tpu_custom_call.1} parent=1 // loop_body
      %s27 = ssub.s32 %s22, 1
      %s28 = ssub.s32 %s22, 2
      %s38 = sadd.s32 1, %s31
      %p39 = scmp.ge.s32.totalorder %s38, 2
      %s40 = scalar_select %p39, 0, %s38
      %s41 = sadd.s32 1, %s30
      %s42 = scalar_select %p39, %s41, %s30
      %p43 = scmp.ge.s32.totalorder %s42, 4
      %s44 = scalar_select %p43, 0, %s42
      %s45 = sadd.s32 1, %s29
      %s46 = scalar_select %p43, %s45, %s29
      %p47 = scmp.ge.s32.totalorder %s46, 2
      %s48 = scalar_select %p47, 0, %s46
      %s49 = ssub.s32 %s29, %s48
      %s50 = ssub.s32 %s30, %s44
      %s51 = sor.u32 %s49, %s50
      %p52 = scmp.eq.s32.totalorder %s51, 0
      %s54 = sadd.s32 %s53, 1
      %s55 = scalar_select %p52, %s53, %s54
      %p58 = pneg %p52
      %p59 = scmp.eq.s32.totalorder %s22, 15
      %p60 = por %p58, %p59
      %p61 = scmp.ne.s32.totalorder %s53, %s56
      %p62 = scmp.eq.s32.totalorder %s22, 0
      %p63 = por %p61, %p62
      %p64 = scmp.ne.s32.totalorder %s53, %s56
      %p65 = scmp.eq.s32.totalorder %s27, 15
      %p66 = por %p64, %p65
      %p67 = scmp.ne.s32.totalorder %s56, %s57
      %p68 = scmp.eq.s32.totalorder %s27, 0
      %p69 = por %p67, %p68
      %p70 = scmp.ne.s32.totalorder %s56, %s57
      %p71 = scmp.eq.s32.totalorder %s28, 15
      %p72 = por %p70, %p71
      %p74 = scmp.ne.s32.totalorder %s57, %s73
      %p75 = scmp.eq.s32.totalorder %s28, 0
      %p76 = por %p74, %p75
      %s77 = ssub.s32 %s29, %s48
      %s78 = ssub.s32 %s31, %s40
      %s79 = sor.u32 %s77, %s78
      %p80 = scmp.eq.s32.totalorder %s79, 0
      %s82 = sadd.s32 %s81, 1
      %s83 = scalar_select %p80, %s81, %s82
      %p86 = pneg %p80
      %p87 = scmp.eq.s32.totalorder %s22, 15
      %p88 = por %p86, %p87
      %p89 = scmp.ne.s32.totalorder %s81, %s84
      %p90 = scmp.eq.s32.totalorder %s22, 0
      %p91 = por %p89, %p90
      %p92 = scmp.ne.s32.totalorder %s81, %s84
      %p93 = scmp.eq.s32.totalorder %s27, 15
      %p94 = por %p92, %p93
      %p95 = scmp.ne.s32.totalorder %s84, %s85
      %p96 = scmp.eq.s32.totalorder %s27, 0
      %p97 = por %p95, %p96
      %p98 = scmp.ne.s32.totalorder %s84, %s85
      %p99 = scmp.eq.s32.totalorder %s28, 15
      %p100 = por %p98, %p99
      %p102 = scmp.ne.s32.totalorder %s85, %s101
      %p103 = scmp.eq.s32.totalorder %s28, 0
      %p104 = por %p102, %p103
      %s105 = ssub.s32 %s29, %s48
      %s106 = ssub.s32 %s31, %s40
      %s107 = sor.u32 %s105, %s106
      %p108 = scmp.eq.s32.totalorder %s107, 0
      %s110 = sadd.s32 %s109, 1
      %s111 = scalar_select %p108, %s109, %s110
      %p114 = pneg %p108
      %p115 = scmp.eq.s32.totalorder %s22, 15
      %p116 = por %p114, %p115
      %p117 = scmp.ne.s32.totalorder %s109, %s112
      %p118 = scmp.eq.s32.totalorder %s22, 0
      %p119 = por %p117, %p118
      %p120 = scmp.ne.s32.totalorder %s109, %s112
      %p121 = scmp.eq.s32.totalorder %s27, 15
      %p122 = por %p120, %p121
      %p123 = scmp.ne.s32.totalorder %s112, %s113
      %p124 = scmp.eq.s32.totalorder %s27, 0
      %p125 = por %p123, %p124
      %p126 = scmp.ne.s32.totalorder %s112, %s113
      %p127 = scmp.eq.s32.totalorder %s28, 15
      %p128 = por %p126, %p127
      %p130 = scmp.ne.s32.totalorder %s113, %s129
      %p131 = scmp.eq.s32.totalorder %s28, 0
      %p132 = por %p130, %p131
      %s134 = sadd.s32 %s133, 1
      %p137 = scmp.eq.s32.totalorder %s22, 15
      %p138 = scmp.ne.s32.totalorder %s133, %s135
      %p139 = scmp.eq.s32.totalorder %s22, 0
      %p140 = por %p138, %p139
      %p141 = scmp.ne.s32.totalorder %s133, %s135
      %p142 = scmp.eq.s32.totalorder %s27, 15
      %p143 = por %p141, %p142
      %p144 = scmp.ne.s32.totalorder %s135, %s136
      %p145 = scmp.eq.s32.totalorder %s27, 0
      %p146 = por %p144, %p145
      %p147 = scmp.ne.s32.totalorder %s135, %s136
      %p148 = scmp.eq.s32.totalorder %s28, 15
      %p149 = por %p147, %p148
      %p151 = scmp.ne.s32.totalorder %s136, %s150
      %p152 = scmp.eq.s32.totalorder %s28, 0
      %p153 = por %p151, %p152
      %s155 = sadd.s32 %s154, 1
      %p158 = scmp.eq.s32.totalorder %s22, 15
      %p159 = scmp.ne.s32.totalorder %s154, %s156
      %p160 = scmp.eq.s32.totalorder %s22, 0
      %p161 = por %p159, %p160
      %p162 = scmp.ne.s32.totalorder %s154, %s156
      %p163 = scmp.eq.s32.totalorder %s27, 15
      %p164 = por %p162, %p163
      %p165 = scmp.ne.s32.totalorder %s156, %s157
      %p166 = scmp.eq.s32.totalorder %s27, 0
      %p167 = por %p165, %p166
      %p168 = scmp.ne.s32.totalorder %s156, %s157
      %p169 = scmp.eq.s32.totalorder %s28, 15
      %p170 = por %p168, %p169
      %p172 = scmp.ne.s32.totalorder %s157, %s171
      %p173 = scmp.eq.s32.totalorder %s28, 0
      %p174 = por %p172, %p173
      %s176 = sadd.s32 %s175, 1
      %p179 = scmp.eq.s32.totalorder %s22, 15
      %p180 = scmp.ne.s32.totalorder %s175, %s177
      %p181 = scmp.eq.s32.totalorder %s22, 0
      %p182 = por %p180, %p181
      %p183 = scmp.ne.s32.totalorder %s175, %s177
      %p184 = scmp.eq.s32.totalorder %s27, 15
      %p185 = por %p183, %p184
      %p186 = scmp.ne.s32.totalorder %s177, %s178
      %p187 = scmp.eq.s32.totalorder %s27, 0
      %p188 = por %p186, %p187
      %p189 = scmp.ne.s32.totalorder %s177, %s178
      %p190 = scmp.eq.s32.totalorder %s28, 15
      %p191 = por %p189, %p190
      %p193 = scmp.ne.s32.totalorder %s178, %s192
      %p194 = scmp.eq.s32.totalorder %s28, 0
      %p195 = por %p193, %p194
      %s196 = ssub.s32 %s29, %s48
      %s197 = ssub.s32 %s30, %s44
      %s198 = sor.u32 %s196, %s197
      %p199 = scmp.eq.s32.totalorder %s198, 0
      %s201 = sadd.s32 %s200, 1
      %s202 = scalar_select %p199, %s200, %s201
      %p205 = pneg %p199
      %p206 = scmp.eq.s32.totalorder %s22, 15
      %p207 = por %p205, %p206
      %p208 = scmp.ne.s32.totalorder %s200, %s203
      %p209 = scmp.eq.s32.totalorder %s22, 0
      %p210 = por %p208, %p209
      %p211 = scmp.ne.s32.totalorder %s200, %s203
      %p212 = scmp.eq.s32.totalorder %s27, 15
      %p213 = por %p211, %p212
      %p214 = scmp.ne.s32.totalorder %s203, %s204
      %p215 = scmp.eq.s32.totalorder %s27, 0
      %p216 = por %p214, %p215
      %p217 = scmp.ne.s32.totalorder %s203, %s204
      %p218 = scmp.eq.s32.totalorder %s28, 15
      %p219 = por %p217, %p218
      %p221 = scmp.ne.s32.totalorder %s204, %s220
      %p222 = scmp.eq.s32.totalorder %s28, 0
      %p223 = por %p221, %p222
      %p224 = scmp.le.s32.totalorder 1, %s22
      %p225 = scmp.lt.s32.totalorder %s22, 17
      %p226 = pnand %p224, %p225
      %p227 = pneg %p226
      // Predicated region
      $region9: #{tpu_custom_call.1} parent=5 // pred_check
        _
      $region10: #{tpu_custom_call.1} parent=5 // pred_check_branch
        %229 = sbr.rel (%p226) target = $region12
      $region11: #{tpu_custom_call.1} parent=5 // pred_region
        %s230 = ssub.s32 %s22, 1
        // Predicated region
        $region13: #{tpu_custom_call.1} parent=11 // pred_check
          %p231 = pneg %p146
        $region14: #{tpu_custom_call.1} parent=11 // pred_check_branch
          %233 = sbr.rel (%p231) target = $region16
        $region15: #{tpu_custom_call.1} parent=11 // pred_region
          %s235 = ssub.s32 2048, 2048
          %236 = vsyncadd [#allocation13], %s235
          %s237 = sshll.u32 [#allocation12], 4
          %s238 = int_to_ptr.vmem [resolvable:$true] %s237
          %243 = dma.hbm_to_vmem [thread:$0]  %s3, 2048, %s238, [#allocation13], 128, 128, 8
        $region16: #{tpu_custom_call.1} parent=11 // pred_fallthru
          _
        // Predicated region
        $region17: #{tpu_custom_call.1} parent=11 // pred_check
          %p244 = pneg %p167
        $region18: #{tpu_custom_call.1} parent=11 // pred_check_branch
          %246 = sbr.rel (%p244) target = $region20
        $region19: #{tpu_custom_call.1} parent=11 // pred_region
          _
        $region20: #{tpu_custom_call.1} parent=11 // pred_fallthru
          _
        // Predicated region
        $region21: #{tpu_custom_call.1} parent=11 // pred_check
          %p247 = pneg %p188
        $region22: #{tpu_custom_call.1} parent=11 // pred_check_branch
          %249 = sbr.rel (%p247) target = $region24
        $region23: #{tpu_custom_call.1} parent=11 // pred_region
          _
        $region24: #{tpu_custom_call.1} parent=11 // pred_fallthru
          _
      $region12: #{tpu_custom_call.1} parent=5 // pred_fallthru
        _
      %p250 = scmp.lt.s32.totalorder %s22, 16
      // Predicated region
      $region25: #{tpu_custom_call.1} parent=5 // pred_check
        %p251 = pneg %p250
      $region26: #{tpu_custom_call.1} parent=5 // pred_check_branch
        %253 = sbr.rel (%p251) target = $region28
      $region27: #{tpu_custom_call.1} parent=5 // pred_region
        // Predicated region
        $region29: #{tpu_custom_call.1} parent=27 // pred_check
          %p254 = pneg %p63
        $region30: #{tpu_custom_call.1} parent=27 // pred_check_branch
          %256 = sbr.rel (%p254) target = $region32
        $region31: #{tpu_custom_call.1} parent=27 // pred_region
          %s257 = sand.u32 %s53, 1
          %s258 = scalar_lea.sflag [#allocation7], %s257
          %s259 = sand.u32 %s53, 1
          %s260 = smul.addr %s259, 64
          %s261 = scalar_lea.vmem [#allocation6], %s260
          %s262 = smul.u32 8, %s30
          %s264 = ssub.s32 1024, 1024
          %265 = vsyncadd %s258, %s264
          %s266 = smul.addr %s29, 32
          %s267 = sadd.s32 %s262, %s266
          %s268 = smul.addr %s267, 128
          %s269 = scalar_lea.hbm %s0, %s268
          %s270 = sshll.u32 %s261, 4
          %s271 = int_to_ptr.vmem [resolvable:$true] %s270
          %276 = dma.hbm_to_vmem [thread:$0]  %s269, 1024, %s271, %s258, 128, 128, 8
        $region32: #{tpu_custom_call.1} parent=27 // pred_fallthru
          _
        // Predicated region
        $region33: #{tpu_custom_call.1} parent=27 // pred_check
          %p277 = pneg %p91
        $region34: #{tpu_custom_call.1} parent=27 // pred_check_branch
          %279 = sbr.rel (%p277) target = $region36
        $region35: #{tpu_custom_call.1} parent=27 // pred_region
          %s280 = sand.u32 %s22, 1
          %s281 = scalar_lea.sflag [#allocation10], %s280
          %s282 = sand.u32 %s81, 1
          %s283 = smul.addr %s282, 128
          %s284 = scalar_lea.vmem [#allocation9], %s283
          %s285 = smul.u32 16, %s31
          %s287 = ssub.s32 2048, 2048
          %288 = vsyncadd %s281, %s287
          %s289 = smul.addr %s29, 32
          %s290 = sadd.s32 %s285, %s289
          %s291 = smul.addr %s290, 128
          %s292 = scalar_lea.hbm %s1, %s291
          %s293 = sshll.u32 %s284, 4
          %s294 = int_to_ptr.vmem [resolvable:$true] %s293
          %299 = dma.hbm_to_vmem [thread:$0]  %s292, 2048, %s294, %s281, 128, 128, 8
        $region36: #{tpu_custom_call.1} parent=27 // pred_fallthru
          _
        // Predicated region
        $region37: #{tpu_custom_call.1} parent=27 // pred_check
          %p300 = pneg %p119
        $region38: #{tpu_custom_call.1} parent=27 // pred_check_branch
          %302 = sbr.rel (%p300) target = $region40
        $region39: #{tpu_custom_call.1} parent=27 // pred_region
          %s303 = sand.u32 %s22, 1
          %s304 = scalar_lea.sflag [#allocation10], %s303
          %s305 = sand.u32 %s109, 1
          %s306 = smul.addr %s305, 128
          %s307 = scalar_lea.vmem [#allocation11], %s306
          %s309 = ssub.s32 2048, 2048
          %310 = vsyncadd %s304, %s309
          %s311 = smul.addr %s29, 32
          %s312 = sadd.s32 %s31, %s311
          %s313 = smul.addr %s312, 128
          %s314 = scalar_lea.hbm %s2, %s313
          %s315 = sshll.u32 %s307, 4
          %s316 = int_to_ptr.vmem [resolvable:$true] %s315
          %321 = dma.hbm_to_vmem [thread:$0]  %s314, 2048, %s316, %s304, 256, 128, 8
        $region40: #{tpu_custom_call.1} parent=27 // pred_fallthru
          _
      $region28: #{tpu_custom_call.1} parent=5 // pred_fallthru
        _
      %p322 = scmp.le.s32.totalorder 1, %s22
      %p323 = scmp.lt.s32.totalorder %s22, 17
      %p324 = pnand %p322, %p323
      %p325 = pneg %p324
      // Predicated region
      $region41: #{tpu_custom_call.1} parent=5 // pred_check
        _
      $region42: #{tpu_custom_call.1} parent=5 // pred_check_branch
        %327 = sbr.rel (%p324) target = $region44
      $region43: #{tpu_custom_call.1} parent=5 // pred_region
        %s328 = ssub.s32 %s22, 1
        %s329 = sand.u32 %s56, 1
        %s330 = scalar_lea.sflag [#allocation7], %s329
        %s331 = sand.u32 %s56, 1
        %s332 = smul.addr %s331, 64
        %s333 = scalar_lea.vmem [#allocation6], %s332
        // Predicated region
        $region45: #{tpu_custom_call.1} parent=43 // pred_check
          %p334 = pneg %p69
        $region46: #{tpu_custom_call.1} parent=43 // pred_check_branch
          %336 = sbr.rel (%p334) target = $region48
        $region47: #{tpu_custom_call.1} parent=43 // pred_region
          %337 = dma.done %s330, 1024
        $region48: #{tpu_custom_call.1} parent=43 // pred_fallthru
          _
        %s338 = sand.u32 %s27, 1
        %s339 = scalar_lea.sflag [#allocation10], %s338
        %s340 = sand.u32 %s84, 1
        %s341 = smul.addr %s340, 128
        %s342 = scalar_lea.vmem [#allocation9], %s341
        // Predicated region
        $region49: #{tpu_custom_call.1} parent=43 // pred_check
          %p343 = pneg %p97
        $region50: #{tpu_custom_call.1} parent=43 // pred_check_branch
          %345 = sbr.rel (%p343) target = $region52
        $region51: #{tpu_custom_call.1} parent=43 // pred_region
          %346 = dma.done %s339, 2048
        $region52: #{tpu_custom_call.1} parent=43 // pred_fallthru
          _
        %s347 = sand.u32 %s27, 1
        %s348 = scalar_lea.sflag [#allocation10], %s347
        %s349 = sand.u32 %s112, 1
        %s350 = smul.addr %s349, 128
        %s351 = scalar_lea.vmem [#allocation11], %s350
        // Predicated region
        $region53: #{tpu_custom_call.1} parent=43 // pred_check
          %p352 = pneg %p125
        $region54: #{tpu_custom_call.1} parent=43 // pred_check_branch
          %354 = sbr.rel (%p352) target = $region56
        $region55: #{tpu_custom_call.1} parent=43 // pred_region
          %355 = dma.done %s348, 2048
        $region56: #{tpu_custom_call.1} parent=43 // pred_fallthru
          _
        // Predicated region
        $region57: #{tpu_custom_call.1} parent=43 // pred_check
          %p356 = pneg %p146
        $region58: #{tpu_custom_call.1} parent=43 // pred_check_branch
          %358 = sbr.rel (%p356) target = $region60
        $region59: #{tpu_custom_call.1} parent=43 // pred_region
          %359 = dma.done [#allocation13], 2048
        $region60: #{tpu_custom_call.1} parent=43 // pred_fallthru
          _
        %s360 = sand.u32 %s56, 1
        %s361 = scalar_lea.sflag [#allocation7], %s360
        %s362 = sand.u32 %s56, 1
        %s363 = smul.addr %s362, 64
        %s364 = scalar_lea.vmem [#allocation6], %s363
        %p365 = pneg %p69
        %p366 = pneg %p66
        %s367 = sand.u32 %s27, 1
        %s368 = scalar_lea.sflag [#allocation10], %s367
        %s369 = sand.u32 %s84, 1
        %s370 = smul.addr %s369, 128
        %s371 = scalar_lea.vmem [#allocation9], %s370
        %p372 = pneg %p97
        %p373 = pneg %p94
        %s374 = sand.u32 %s27, 1
        %s375 = scalar_lea.sflag [#allocation10], %s374
        %s376 = sand.u32 %s112, 1
        %s377 = smul.addr %s376, 128
        %s378 = scalar_lea.vmem [#allocation11], %s377
        %p379 = pneg %p125
        %p380 = pneg %p122
        %p381 = pneg %p146
        %p382 = pneg %p143
        %p383 = pneg %p167
        %p384 = pneg %p164
        %p385 = pneg %p188
        %p386 = pneg %p185
        %p387 = pneg %p216
        %p388 = pneg %p213
        %s389 = sand.u32 %s203, 1
        %s390 = scalar_lea.sflag [#allocation8], %s389
        %s391 = sand.u32 %s203, 1
        %s392 = smul.addr %s391, 64
        %s393 = scalar_lea.vmem [#allocation14], %s392
        %s394 = smul.u32 8, %s33
        %s395 = smul.u32 16, %s34
        %s396 = smul.u32 8, %s33
        %p397 = scmp.eq.s32.totalorder %s34, 0
        // Predicated region
        $region61: #{tpu_custom_call.1} parent=43 // pred_check
          %p398 = pneg %p397
        $region62: #{tpu_custom_call.1} parent=43 // pred_check_branch
          %400 = sbr.rel (%p398) target = $region64
        $region63: #{tpu_custom_call.1} parent=43 // pred_region
          %v401 = vld [vmem:[%s333] sm:$0xff]
          %v402 = vld [vmem:[%s333 + $0x8] sm:$0xff]
          %v403 = vld [vmem:[%s333 + $0x10] sm:$0xff]
          %v404 = vld [vmem:[%s333 + $0x18] sm:$0xff]
          %v405 = vld [vmem:[%s333 + $0x20] sm:$0xff]
          %v406 = vld [vmem:[%s333 + $0x28] sm:$0xff]
          %v407 = vld [vmem:[%s333 + $0x30] sm:$0xff]
          %v408 = vld [vmem:[%s333 + $0x38] sm:$0xff]
          %v409 = vld [vmem:[#allocation12] sm:$0xff]
          %v410 = vld [vmem:[#allocation12 + $0x8] sm:$0xff]
          %v411 = vld [vmem:[#allocation12 + $0x10] sm:$0xff]
          %v412 = vld [vmem:[#allocation12 + $0x18] sm:$0xff]
          %v413 = vld [vmem:[#allocation12 + $0x20] sm:$0xff]
          %v414 = vld [vmem:[#allocation12 + $0x28] sm:$0xff]
          %v415 = vld [vmem:[#allocation12 + $0x30] sm:$0xff]
          %v416 = vld [vmem:[#allocation12 + $0x38] sm:$0xff]
          %v417 = vld [vmem:[#allocation12 + $0x40] sm:$0xff]
          %v418 = vld [vmem:[#allocation12 + $0x48] sm:$0xff]
          %v419 = vld [vmem:[#allocation12 + $0x50] sm:$0xff]
          %v420 = vld [vmem:[#allocation12 + $0x58] sm:$0xff]
          %v421 = vld [vmem:[#allocation12 + $0x60] sm:$0xff]
          %v422 = vld [vmem:[#allocation12 + $0x68] sm:$0xff]
          %v423 = vld [vmem:[#allocation12 + $0x70] sm:$0xff]
          %v424 = vld [vmem:[#allocation12 + $0x78] sm:$0xff]
          %v425 = vld [vmem:[%s4] sm:$0x1]
          %v427 = vlaneseq
          %v428 = vshrl.u32 %v427, 7
          %v429 = vsub.s32 0, %v428
          %v430 = vrot.slane %v425, %v429
          %432 = vmatprep.subr.mxu0 0.0
          %433 = vmatpush1.msra.mxu0 %v424
          %434 = vmatprep.subr.mxu0 0.0
          %435 = vmatpush1.msra.mxu0 %v423
          %436 = vmatprep.subr.mxu0 0.0
          %437 = vmatpush1.msra.mxu0 %v422
          %438 = vmatprep.subr.mxu0 0.0
          %439 = vmatpush1.msra.mxu0 %v421
          %440 = vmatprep.subr.mxu0 0.0
          %441 = vmatpush1.msra.mxu0 %v420
          %442 = vmatprep.subr.mxu0 0.0
          %443 = vmatpush1.msra.mxu0 %v419
          %444 = vmatprep.subr.mxu0 0.0
          %445 = vmatpush1.msra.mxu0 %v418
          %446 = vmatprep.subr.mxu0 0.0
          %447 = vmatpush1.msra.mxu0 %v417
          %448 = vmatprep.subr.mxu0 0.0
          %449 = vmatpush1.msra.mxu0 %v416
          %450 = vmatprep.subr.mxu0 0.0
          %451 = vmatpush1.msra.mxu0 %v415
          %452 = vmatprep.subr.mxu0 0.0
          %453 = vmatpush1.msra.mxu0 %v414
          %454 = vmatprep.subr.mxu0 0.0
          %455 = vmatpush1.msra.mxu0 %v413
          %456 = vmatprep.subr.mxu0 0.0
          %457 = vmatpush1.msra.mxu0 %v412
          %458 = vmatprep.subr.mxu0 0.0
          %459 = vmatpush1.msra.mxu0 %v411
          %460 = vmatprep.subr.mxu0 0.0
          %461 = vmatpush1.msra.mxu0 %v410
          %462 = vmatprep.subr.mxu0 0.0
          %463 = vmatpush1.msra.mxu0 %v409
          %464 = vmatprep.subr.mxu0 0.0
          %465 = vmatpush2.msra.mxu0 0.0
          %466 = vmatprep.subr.mxu0 0.0
          %467 = vmatpush2.msra.mxu0 0.0
          %468 = vmatprep.subr.mxu0 0.0
          %469 = vmatpush2.msra.mxu0 0.0
          %470 = vmatprep.subr.mxu0 0.0
          %471 = vmatpush2.msra.mxu0 0.0
          %472 = vmatprep.subr.mxu0 0.0
          %473 = vmatpush2.msra.mxu0 0.0
          %474 = vmatprep.subr.mxu0 0.0
          %475 = vmatpush2.msra.mxu0 0.0
          %476 = vmatprep.subr.mxu0 0.0
          %477 = vmatpush2.msra.mxu0 0.0
          %478 = vmatprep.subr.mxu0 0.0
          %479 = vmatpush2.msra.mxu0 0.0
          %480 = vmatprep.subr.mxu0 0.0
          %481 = vmatpush2.msra.mxu0 0.0
          %482 = vmatprep.subr.mxu0 0.0
          %483 = vmatpush2.msra.mxu0 0.0
          %484 = vmatprep.subr.mxu0 0.0
          %485 = vmatpush2.msra.mxu0 0.0
          %486 = vmatprep.subr.mxu0 0.0
          %487 = vmatpush2.msra.mxu0 0.0
          %488 = vmatprep.subr.mxu0 0.0
          %489 = vmatpush2.msra.mxu0 0.0
          %490 = vmatprep.subr.mxu0 0.0
          %491 = vmatpush2.msra.mxu0 0.0
          %492 = vmatprep.subr.mxu0 0.0
          %493 = vmatpush2.msra.mxu0 0.0
          %494 = vmatprep.subr.mxu0 0.0
          %495 = vmatpush2.msra.mxu0 0.0
          %496 = vmatprep.mubr.f32.mxu0 0.0
          %497 = vmatmul.mubr.f32.gmra.mxu0 %v401
          %v498 = vpop.f32.mrf.mxu0
          %v499 = vadd.f32 %v430, %v498
          %v500 = vpop.f32.mrf.mxu0
          %501 = vmatprep.mubr.f32.mxu0 0.0
          %502 = vmatmul.mubr.f32.gmra.mxu0 %v402
          %v503 = vpop.f32.mrf.mxu0
          %v504 = vadd.f32 %v430, %v503
          %v505 = vpop.f32.mrf.mxu0
          %506 = vmatprep.mubr.f32.mxu0 0.0
          %507 = vmatmul.mubr.f32.gmra.mxu0 %v403
          %v508 = vpop.f32.mrf.mxu0
          %v509 = vadd.f32 %v430, %v508
          %v510 = vpop.f32.mrf.mxu0
          %511 = vmatprep.mubr.f32.mxu0 0.0
          %512 = vmatmul.mubr.f32.gmra.mxu0 %v404
          %v513 = vpop.f32.mrf.mxu0
          %v514 = vadd.f32 %v430, %v513
          %v515 = vpop.f32.mrf.mxu0
          %516 = vmatprep.mubr.f32.mxu0 0.0
          %517 = vmatmul.mubr.f32.gmra.mxu0 %v405
          %v518 = vpop.f32.mrf.mxu0
          %v519 = vadd.f32 %v430, %v518
          %v520 = vpop.f32.mrf.mxu0
          %521 = vmatprep.mubr.f32.mxu0 0.0
          %522 = vmatmul.mubr.f32.gmra.mxu0 %v406
          %v523 = vpop.f32.mrf.mxu0
          %v524 = vadd.f32 %v430, %v523
          %v525 = vpop.f32.mrf.mxu0
          %526 = vmatprep.mubr.f32.mxu0 0.0
          %527 = vmatmul.mubr.f32.gmra.mxu0 %v407
          %v528 = vpop.f32.mrf.mxu0
          %v529 = vadd.f32 %v430, %v528
          %v530 = vpop.f32.mrf.mxu0
          %531 = vmatprep.mubr.f32.mxu0 0.0
          %532 = vmatmul.mubr.f32.gmra.mxu0 %v408
          %v533 = vpop.f32.mrf.mxu0
          %v534 = vadd.f32 %v430, %v533
          %v535 = vpop.f32.mrf.mxu0
          %536 = vdwg.mxu0
          %537 = vst [vmem:[#allocation2] sm:$0xff] %v499
          %538 = vst [vmem:[#allocation2 + $0x8] sm:$0xff] %v504
          %539 = vst [vmem:[#allocation2 + $0x10] sm:$0xff] %v509
          %540 = vst [vmem:[#allocation2 + $0x18] sm:$0xff] %v514
          %541 = vst [vmem:[#allocation2 + $0x20] sm:$0xff] %v519
          %542 = vst [vmem:[#allocation2 + $0x28] sm:$0xff] %v524
          %543 = vst [vmem:[#allocation2 + $0x30] sm:$0xff] %v529
          %544 = vst [vmem:[#allocation2 + $0x38] sm:$0xff] %v534
          %vm545 = vcmask 7168
          %546 = vst.msk [vmem:[#allocation3] sm:$0xff] %vm545, -inf
          %547 = vst.msk [vmem:[#allocation3 + $0x8] sm:$0xff] %vm545, -inf
          %548 = vst.msk [vmem:[#allocation3 + $0x10] sm:$0xff] %vm545, -inf
          %549 = vst.msk [vmem:[#allocation3 + $0x18] sm:$0xff] %vm545, -inf
          %550 = vst.msk [vmem:[#allocation3 + $0x20] sm:$0xff] %vm545, -inf
          %551 = vst.msk [vmem:[#allocation3 + $0x28] sm:$0xff] %vm545, -inf
          %552 = vst.msk [vmem:[#allocation3 + $0x30] sm:$0xff] %vm545, -inf
          %553 = vst.msk [vmem:[#allocation3 + $0x38] sm:$0xff] %vm545, -inf
          %554 = vst.msk [vmem:[#allocation4] sm:$0xff] %vm545, 0.0
          %555 = vst.msk [vmem:[#allocation4 + $0x8] sm:$0xff] %vm545, 0.0
          %556 = vst.msk [vmem:[#allocation4 + $0x10] sm:$0xff] %vm545, 0.0
          %557 = vst.msk [vmem:[#allocation4 + $0x18] sm:$0xff] %vm545, 0.0
          %558 = vst.msk [vmem:[#allocation4 + $0x20] sm:$0xff] %vm545, 0.0
          %559 = vst.msk [vmem:[#allocation4 + $0x28] sm:$0xff] %vm545, 0.0
          %560 = vst.msk [vmem:[#allocation4 + $0x30] sm:$0xff] %vm545, 0.0
          %561 = vst.msk [vmem:[#allocation4 + $0x38] sm:$0xff] %vm545, 0.0
          %562 = vst [vmem:[#allocation5] sm:$0xff] 0.0
          %563 = vst [vmem:[#allocation5 + $0x8] sm:$0xff] 0.0
          %564 = vst [vmem:[#allocation5 + $0x10] sm:$0xff] 0.0
          %565 = vst [vmem:[#allocation5 + $0x18] sm:$0xff] 0.0
          %566 = vst [vmem:[#allocation5 + $0x20] sm:$0xff] 0.0
          %567 = vst [vmem:[#allocation5 + $0x28] sm:$0xff] 0.0
          %568 = vst [vmem:[#allocation5 + $0x30] sm:$0xff] 0.0
          %569 = vst [vmem:[#allocation5 + $0x38] sm:$0xff] 0.0
        $region64: #{tpu_custom_call.1} parent=43 // pred_fallthru
          _
        %v570 = vld [vmem:[#allocation2] sm:$0xff]
        %v571 = vld [vmem:[#allocation2 + $0x8] sm:$0xff]
        %v572 = vld [vmem:[#allocation2 + $0x10] sm:$0xff]
        %v573 = vld [vmem:[#allocation2 + $0x18] sm:$0xff]
        %v574 = vld [vmem:[#allocation2 + $0x20] sm:$0xff]
        %v575 = vld [vmem:[#allocation2 + $0x28] sm:$0xff]
        %v576 = vld [vmem:[#allocation2 + $0x30] sm:$0xff]
        %v577 = vld [vmem:[#allocation2 + $0x38] sm:$0xff]
        %v578 = vld [vmem:[%s351] sm:$0xff]
        %v579 = vld [vmem:[%s351 + $0x8] sm:$0xff]
        %v580 = vld [vmem:[%s351 + $0x10] sm:$0xff]
        %v581 = vld [vmem:[%s351 + $0x18] sm:$0xff]
        %v582 = vld [vmem:[%s351 + $0x20] sm:$0xff]
        %v583 = vld [vmem:[%s351 + $0x28] sm:$0xff]
        %v584 = vld [vmem:[%s351 + $0x30] sm:$0xff]
        %v585 = vld [vmem:[%s351 + $0x38] sm:$0xff]
        %v586 = vld [vmem:[%s351 + $0x40] sm:$0xff]
        %v587 = vld [vmem:[%s351 + $0x48] sm:$0xff]
        %v588 = vld [vmem:[%s351 + $0x50] sm:$0xff]
        %v589 = vld [vmem:[%s351 + $0x58] sm:$0xff]
        %v590 = vld [vmem:[%s351 + $0x60] sm:$0xff]
        %v591 = vld [vmem:[%s351 + $0x68] sm:$0xff]
        %v592 = vld [vmem:[%s351 + $0x70] sm:$0xff]
        %v593 = vld [vmem:[%s351 + $0x78] sm:$0xff]
        %v594 = vlaneseq
        %v595 = vshrl.u32 %v594, 7
        %v596 = vsub.s32 0, %v595
        %v597 = vrot.slane %v570, %v596
        %599 = vbcast.lane.b32.xlu0 %v597, 256
        %v600 = vpop.permute.xlu0 %599
        %s602 = sor.u32 256, 8
        %603 = vbcast.lane.b32.xlu0 %v597, %s602
        %v604 = vpop.permute.xlu0 %603
        %s606 = sor.u32 256, 16
        %607 = vbcast.lane.b32.xlu0 %v597, %s606
        %v608 = vpop.permute.xlu0 %607
        %s610 = sor.u32 256, 24
        %611 = vbcast.lane.b32.xlu0 %v597, %s610
        %v612 = vpop.permute.xlu0 %611
        %s614 = sor.u32 256, 32
        %615 = vbcast.lane.b32.xlu0 %v597, %s614
        %v616 = vpop.permute.xlu0 %615
        %s618 = sor.u32 256, 40
        %619 = vbcast.lane.b32.xlu0 %v597, %s618
        %v620 = vpop.permute.xlu0 %619
        %s622 = sor.u32 256, 48
        %623 = vbcast.lane.b32.xlu0 %v597, %s622
        %v624 = vpop.permute.xlu0 %623
        %s626 = sor.u32 256, 56
        %627 = vbcast.lane.b32.xlu0 %v597, %s626
        %v628 = vpop.permute.xlu0 %627
        %s630 = sor.u32 256, 64
        %631 = vbcast.lane.b32.xlu0 %v597, %s630
        %v632 = vpop.permute.xlu0 %631
        %s634 = sor.u32 256, 72
        %635 = vbcast.lane.b32.xlu0 %v597, %s634
        %v636 = vpop.permute.xlu0 %635
        %s638 = sor.u32 256, 80
        %639 = vbcast.lane.b32.xlu0 %v597, %s638
        %v640 = vpop.permute.xlu0 %639
        %s642 = sor.u32 256, 88
        %643 = vbcast.lane.b32.xlu0 %v597, %s642
        %v644 = vpop.permute.xlu0 %643
        %s646 = sor.u32 256, 96
        %647 = vbcast.lane.b32.xlu0 %v597, %s646
        %v648 = vpop.permute.xlu0 %647
        %s650 = sor.u32 256, 104
        %651 = vbcast.lane.b32.xlu0 %v597, %s650
        %v652 = vpop.permute.xlu0 %651
        %s654 = sor.u32 256, 112
        %655 = vbcast.lane.b32.xlu0 %v597, %s654
        %v656 = vpop.permute.xlu0 %655
        %s658 = sor.u32 256, 120
        %659 = vbcast.lane.b32.xlu0 %v597, %s658
        %v660 = vpop.permute.xlu0 %659
        %v661 = vlaneseq
        %v662 = vshrl.u32 %v661, 7
        %v663 = vsub.s32 1, %v662
        %v664 = vrot.slane %v570, %v663
        %666 = vbcast.lane.b32.xlu0 %v664, 256
        %v667 = vpop.permute.xlu0 %666
        %s669 = sor.u32 256, 8
        %670 = vbcast.lane.b32.xlu0 %v664, %s669
        %v671 = vpop.permute.xlu0 %670
        %s673 = sor.u32 256, 16
        %674 = vbcast.lane.b32.xlu0 %v664, %s673
        %v675 = vpop.permute.xlu0 %674
        %s677 = sor.u32 256, 24
        %678 = vbcast.lane.b32.xlu0 %v664, %s677
        %v679 = vpop.permute.xlu0 %678
        %s681 = sor.u32 256, 32
        %682 = vbcast.lane.b32.xlu0 %v664, %s681
        %v683 = vpop.permute.xlu0 %682
        %s685 = sor.u32 256, 40
        %686 = vbcast.lane.b32.xlu0 %v664, %s685
        %v687 = vpop.permute.xlu0 %686
        %s689 = sor.u32 256, 48
        %690 = vbcast.lane.b32.xlu0 %v664, %s689
        %v691 = vpop.permute.xlu0 %690
        %s693 = sor.u32 256, 56
        %694 = vbcast.lane.b32.xlu0 %v664, %s693
        %v695 = vpop.permute.xlu0 %694
        %s697 = sor.u32 256, 64
        %698 = vbcast.lane.b32.xlu0 %v664, %s697
        %v699 = vpop.permute.xlu0 %698
        %s701 = sor.u32 256, 72
        %702 = vbcast.lane.b32.xlu0 %v664, %s701
        %v703 = vpop.permute.xlu0 %702
        %s705 = sor.u32 256, 80
        %706 = vbcast.lane.b32.xlu0 %v664, %s705
        %v707 = vpop.permute.xlu0 %706
        %s709 = sor.u32 256, 88
        %710 = vbcast.lane.b32.xlu0 %v664, %s709
        %v711 = vpop.permute.xlu0 %710
        %s713 = sor.u32 256, 96
        %714 = vbcast.lane.b32.xlu0 %v664, %s713
        %v715 = vpop.permute.xlu0 %714
        %s717 = sor.u32 256, 104
        %718 = vbcast.lane.b32.xlu0 %v664, %s717
        %v719 = vpop.permute.xlu0 %718
        %s721 = sor.u32 256, 112
        %722 = vbcast.lane.b32.xlu0 %v664, %s721
        %v723 = vpop.permute.xlu0 %722
        %s725 = sor.u32 256, 120
        %726 = vbcast.lane.b32.xlu0 %v664, %s725
        %v727 = vpop.permute.xlu0 %726
        %v728 = vlaneseq
        %v729 = vshrl.u32 %v728, 7
        %v730 = vsub.s32 2, %v729
        %v731 = vrot.slane %v570, %v730
        %733 = vbcast.lane.b32.xlu0 %v731, 256
        %v734 = vpop.permute.xlu0 %733
        %s736 = sor.u32 256, 8
        %737 = vbcast.lane.b32.xlu0 %v731, %s736
        %v738 = vpop.permute.xlu0 %737
        %s740 = sor.u32 256, 16
        %741 = vbcast.lane.b32.xlu0 %v731, %s740
        %v742 = vpop.permute.xlu0 %741
        %s744 = sor.u32 256, 24
        %745 = vbcast.lane.b32.xlu0 %v731, %s744
        %v746 = vpop.permute.xlu0 %745
        %s748 = sor.u32 256, 32
        %749 = vbcast.lane.b32.xlu0 %v731, %s748
        %v750 = vpop.permute.xlu0 %749
        %s752 = sor.u32 256, 40
        %753 = vbcast.lane.b32.xlu0 %v731, %s752
        %v754 = vpop.permute.xlu0 %753
        %s756 = sor.u32 256, 48
        %757 = vbcast.lane.b32.xlu0 %v731, %s756
        %v758 = vpop.permute.xlu0 %757
        %s760 = sor.u32 256, 56
        %761 = vbcast.lane.b32.xlu0 %v731, %s760
        %v762 = vpop.permute.xlu0 %761
        %s764 = sor.u32 256, 64
        %765 = vbcast.lane.b32.xlu0 %v731, %s764
        %v766 = vpop.permute.xlu0 %765
        %s768 = sor.u32 256, 72
        %769 = vbcast.lane.b32.xlu0 %v731, %s768
        %v770 = vpop.permute.xlu0 %769
        %s772 = sor.u32 256, 80
        %773 = vbcast.lane.b32.xlu0 %v731, %s772
        %v774 = vpop.permute.xlu0 %773
        %s776 = sor.u32 256, 88
        %777 = vbcast.lane.b32.xlu0 %v731, %s776
        %v778 = vpop.permute.xlu0 %777
        %s780 = sor.u32 256, 96
        %781 = vbcast.lane.b32.xlu0 %v731, %s780
        %v782 = vpop.permute.xlu0 %781
        %s784 = sor.u32 256, 104
        %785 = vbcast.lane.b32.xlu0 %v731, %s784
        %v786 = vpop.permute.xlu0 %785
        %s788 = sor.u32 256, 112
        %789 = vbcast.lane.b32.xlu0 %v731, %s788
        %v790 = vpop.permute.xlu0 %789
        %s792 = sor.u32 256, 120
        %793 = vbcast.lane.b32.xlu0 %v731, %s792
        %v794 = vpop.permute.xlu0 %793
        %v795 = vlaneseq
        %v796 = vshrl.u32 %v795, 7
        %v797 = vsub.s32 3, %v796
        %v798 = vrot.slane %v570, %v797
        %800 = vbcast.lane.b32.xlu0 %v798, 256
        %v801 = vpop.permute.xlu0 %800
        %s803 = sor.u32 256, 8
        %804 = vbcast.lane.b32.xlu0 %v798, %s803
        %v805 = vpop.permute.xlu0 %804
        %s807 = sor.u32 256, 16
        %808 = vbcast.lane.b32.xlu0 %v798, %s807
        %v809 = vpop.permute.xlu0 %808
        %s811 = sor.u32 256, 24
        %812 = vbcast.lane.b32.xlu0 %v798, %s811
        %v813 = vpop.permute.xlu0 %812
        %s815 = sor.u32 256, 32
        %816 = vbcast.lane.b32.xlu0 %v798, %s815
        %v817 = vpop.permute.xlu0 %816
        %s819 = sor.u32 256, 40
        %820 = vbcast.lane.b32.xlu0 %v798, %s819
        %v821 = vpop.permute.xlu0 %820
        %s823 = sor.u32 256, 48
        %824 = vbcast.lane.b32.xlu0 %v798, %s823
        %v825 = vpop.permute.xlu0 %824
        %s827 = sor.u32 256, 56
        %828 = vbcast.lane.b32.xlu0 %v798, %s827
        %v829 = vpop.permute.xlu0 %828
        %s831 = sor.u32 256, 64
        %832 = vbcast.lane.b32.xlu0 %v798, %s831
        %v833 = vpop.permute.xlu0 %832
        %s835 = sor.u32 256, 72
        %836 = vbcast.lane.b32.xlu0 %v798, %s835
        %v837 = vpop.permute.xlu0 %836
        %s839 = sor.u32 256, 80
        %840 = vbcast.lane.b32.xlu0 %v798, %s839
        %v841 = vpop.permute.xlu0 %840
        %s843 = sor.u32 256, 88
        %844 = vbcast.lane.b32.xlu0 %v798, %s843
        %v845 = vpop.permute.xlu0 %844
        %s847 = sor.u32 256, 96
        %848 = vbcast.lane.b32.xlu0 %v798, %s847
        %v849 = vpop.permute.xlu0 %848
        %s851 = sor.u32 256, 104
        %852 = vbcast.lane.b32.xlu0 %v798, %s851
        %v853 = vpop.permute.xlu0 %852
        %s855 = sor.u32 256, 112
        %856 = vbcast.lane.b32.xlu0 %v798, %s855
        %v857 = vpop.permute.xlu0 %856
        %s859 = sor.u32 256, 120
        %860 = vbcast.lane.b32.xlu0 %v798, %s859
        %v861 = vpop.permute.xlu0 %860
        %v862 = vlaneseq
        %v863 = vshrl.u32 %v862, 7
        %v864 = vsub.s32 4, %v863
        %v865 = vrot.slane %v570, %v864
        %867 = vbcast.lane.b32.xlu0 %v865, 256
        %v868 = vpop.permute.xlu0 %867
        %s870 = sor.u32 256, 8
        %871 = vbcast.lane.b32.xlu0 %v865, %s870
        %v872 = vpop.permute.xlu0 %871
        %s874 = sor.u32 256, 16
        %875 = vbcast.lane.b32.xlu0 %v865, %s874
        %v876 = vpop.permute.xlu0 %875
        %s878 = sor.u32 256, 24
        %879 = vbcast.lane.b32.xlu0 %v865, %s878
        %v880 = vpop.permute.xlu0 %879
        %s882 = sor.u32 256, 32
        %883 = vbcast.lane.b32.xlu0 %v865, %s882
        %v884 = vpop.permute.xlu0 %883
        %s886 = sor.u32 256, 40
        %887 = vbcast.lane.b32.xlu0 %v865, %s886
        %v888 = vpop.permute.xlu0 %887
        %s890 = sor.u32 256, 48
        %891 = vbcast.lane.b32.xlu0 %v865, %s890
        %v892 = vpop.permute.xlu0 %891
        %s894 = sor.u32 256, 56
        %895 = vbcast.lane.b32.xlu0 %v865, %s894
        %v896 = vpop.permute.xlu0 %895
        %s898 = sor.u32 256, 64
        %899 = vbcast.lane.b32.xlu0 %v865, %s898
        %v900 = vpop.permute.xlu0 %899
        %s902 = sor.u32 256, 72
        %903 = vbcast.lane.b32.xlu0 %v865, %s902
        %v904 = vpop.permute.xlu0 %903
        %s906 = sor.u32 256, 80
        %907 = vbcast.lane.b32.xlu0 %v865, %s906
        %v908 = vpop.permute.xlu0 %907
        %s910 = sor.u32 256, 88
        %911 = vbcast.lane.b32.xlu0 %v865, %s910
        %v912 = vpop.permute.xlu0 %911
        %s914 = sor.u32 256, 96
        %915 = vbcast.lane.b32.xlu0 %v865, %s914
        %v916 = vpop.permute.xlu0 %915
        %s918 = sor.u32 256, 104
        %919 = vbcast.lane.b32.xlu0 %v865, %s918
        %v920 = vpop.permute.xlu0 %919
        %s922 = sor.u32 256, 112
        %923 = vbcast.lane.b32.xlu0 %v865, %s922
        %v924 = vpop.permute.xlu0 %923
        %s926 = sor.u32 256, 120
        %927 = vbcast.lane.b32.xlu0 %v865, %s926
        %v928 = vpop.permute.xlu0 %927
        %v929 = vlaneseq
        %v930 = vshrl.u32 %v929, 7
        %v931 = vsub.s32 5, %v930
        %v932 = vrot.slane %v570, %v931
        %934 = vbcast.lane.b32.xlu0 %v932, 256
        %v935 = vpop.permute.xlu0 %934
        %s937 = sor.u32 256, 8
        %938 = vbcast.lane.b32.xlu0 %v932, %s937
        %v939 = vpop.permute.xlu0 %938
        %s941 = sor.u32 256, 16
        %942 = vbcast.lane.b32.xlu0 %v932, %s941
        %v943 = vpop.permute.xlu0 %942
        %s945 = sor.u32 256, 24
        %946 = vbcast.lane.b32.xlu0 %v932, %s945
        %v947 = vpop.permute.xlu0 %946
        %s949 = sor.u32 256, 32
        %950 = vbcast.lane.b32.xlu0 %v932, %s949
        %v951 = vpop.permute.xlu0 %950
        %s953 = sor.u32 256, 40
        %954 = vbcast.lane.b32.xlu0 %v932, %s953
        %v955 = vpop.permute.xlu0 %954
        %s957 = sor.u32 256, 48
        %958 = vbcast.lane.b32.xlu0 %v932, %s957
        %v959 = vpop.permute.xlu0 %958
        %s961 = sor.u32 256, 56
        %962 = vbcast.lane.b32.xlu0 %v932, %s961
        %v963 = vpop.permute.xlu0 %962
        %s965 = sor.u32 256, 64
        %966 = vbcast.lane.b32.xlu0 %v932, %s965
        %v967 = vpop.permute.xlu0 %966
        %s969 = sor.u32 256, 72
        %970 = vbcast.lane.b32.xlu0 %v932, %s969
        %v971 = vpop.permute.xlu0 %970
        %s973 = sor.u32 256, 80
        %974 = vbcast.lane.b32.xlu0 %v932, %s973
        %v975 = vpop.permute.xlu0 %974
        %s977 = sor.u32 256, 88
        %978 = vbcast.lane.b32.xlu0 %v932, %s977
        %v979 = vpop.permute.xlu0 %978
        %s981 = sor.u32 256, 96
        %982 = vbcast.lane.b32.xlu0 %v932, %s981
        %v983 = vpop.permute.xlu0 %982
        %s985 = sor.u32 256, 104
        %986 = vbcast.lane.b32.xlu0 %v932, %s985
        %v987 = vpop.permute.xlu0 %986
        %s989 = sor.u32 256, 112
        %990 = vbcast.lane.b32.xlu0 %v932, %s989
        %v991 = vpop.permute.xlu0 %990
        %s993 = sor.u32 256, 120
        %994 = vbcast.lane.b32.xlu0 %v932, %s993
        %v995 = vpop.permute.xlu0 %994
        %v996 = vlaneseq
        %v997 = vshrl.u32 %v996, 7
        %v998 = vsub.s32 6, %v997
        %v999 = vrot.slane %v570, %v998
        %1001 = vbcast.lane.b32.xlu0 %v999, 256
        %v1002 = vpop.permute.xlu0 %1001
        %s1004 = sor.u32 256, 8
        %1005 = vbcast.lane.b32.xlu0 %v999, %s1004
        %v1006 = vpop.permute.xlu0 %1005
        %s1008 = sor.u32 256, 16
        %1009 = vbcast.lane.b32.xlu0 %v999, %s1008
        %v1010 = vpop.permute.xlu0 %1009
        %s1012 = sor.u32 256, 24
        %1013 = vbcast.lane.b32.xlu0 %v999, %s1012
        %v1014 = vpop.permute.xlu0 %1013
        %s1016 = sor.u32 256, 32
        %1017 = vbcast.lane.b32.xlu0 %v999, %s1016
        %v1018 = vpop.permute.xlu0 %1017
        %s1020 = sor.u32 256, 40
        %1021 = vbcast.lane.b32.xlu0 %v999, %s1020
        %v1022 = vpop.permute.xlu0 %1021
        %s1024 = sor.u32 256, 48
        %1025 = vbcast.lane.b32.xlu0 %v999, %s1024
        %v1026 = vpop.permute.xlu0 %1025
        %s1028 = sor.u32 256, 56
        %1029 = vbcast.lane.b32.xlu0 %v999, %s1028
        %v1030 = vpop.permute.xlu0 %1029
        %s1032 = sor.u32 256, 64
        %1033 = vbcast.lane.b32.xlu0 %v999, %s1032
        %v1034 = vpop.permute.xlu0 %1033
        %s1036 = sor.u32 256, 72
        %1037 = vbcast.lane.b32.xlu0 %v999, %s1036
        %v1038 = vpop.permute.xlu0 %1037
        %s1040 = sor.u32 256, 80
        %1041 = vbcast.lane.b32.xlu0 %v999, %s1040
        %v1042 = vpop.permute.xlu0 %1041
        %s1044 = sor.u32 256, 88
        %1045 = vbcast.lane.b32.xlu0 %v999, %s1044
        %v1046 = vpop.permute.xlu0 %1045
        %s1048 = sor.u32 256, 96
        %1049 = vbcast.lane.b32.xlu0 %v999, %s1048
        %v1050 = vpop.permute.xlu0 %1049
        %s1052 = sor.u32 256, 104
        %1053 = vbcast.lane.b32.xlu0 %v999, %s1052
        %v1054 = vpop.permute.xlu0 %1053
        %s1056 = sor.u32 256, 112
        %1057 = vbcast.lane.b32.xlu0 %v999, %s1056
        %v1058 = vpop.permute.xlu0 %1057
        %s1060 = sor.u32 256, 120
        %1061 = vbcast.lane.b32.xlu0 %v999, %s1060
        %v1062 = vpop.permute.xlu0 %1061
        %v1063 = vlaneseq
        %v1064 = vshrl.u32 %v1063, 7
        %v1065 = vsub.s32 7, %v1064
        %v1066 = vrot.slane %v570, %v1065
        %1068 = vbcast.lane.b32.xlu0 %v1066, 256
        %v1069 = vpop.permute.xlu0 %1068
        %s1071 = sor.u32 256, 8
        %1072 = vbcast.lane.b32.xlu0 %v1066, %s1071
        %v1073 = vpop.permute.xlu0 %1072
        %s1075 = sor.u32 256, 16
        %1076 = vbcast.lane.b32.xlu0 %v1066, %s1075
        %v1077 = vpop.permute.xlu0 %1076
        %s1079 = sor.u32 256, 24
        %1080 = vbcast.lane.b32.xlu0 %v1066, %s1079
        %v1081 = vpop.permute.xlu0 %1080
        %s1083 = sor.u32 256, 32
        %1084 = vbcast.lane.b32.xlu0 %v1066, %s1083
        %v1085 = vpop.permute.xlu0 %1084
        %s1087 = sor.u32 256, 40
        %1088 = vbcast.lane.b32.xlu0 %v1066, %s1087
        %v1089 = vpop.permute.xlu0 %1088
        %s1091 = sor.u32 256, 48
        %1092 = vbcast.lane.b32.xlu0 %v1066, %s1091
        %v1093 = vpop.permute.xlu0 %1092
        %s1095 = sor.u32 256, 56
        %1096 = vbcast.lane.b32.xlu0 %v1066, %s1095
        %v1097 = vpop.permute.xlu0 %1096
        %s1099 = sor.u32 256, 64
        %1100 = vbcast.lane.b32.xlu0 %v1066, %s1099
        %v1101 = vpop.permute.xlu0 %1100
        %s1103 = sor.u32 256, 72
        %1104 = vbcast.lane.b32.xlu0 %v1066, %s1103
        %v1105 = vpop.permute.xlu0 %1104
        %s1107 = sor.u32 256, 80
        %1108 = vbcast.lane.b32.xlu0 %v1066, %s1107
        %v1109 = vpop.permute.xlu0 %1108
        %s1111 = sor.u32 256, 88
        %1112 = vbcast.lane.b32.xlu0 %v1066, %s1111
        %v1113 = vpop.permute.xlu0 %1112
        %s1115 = sor.u32 256, 96
        %1116 = vbcast.lane.b32.xlu0 %v1066, %s1115
        %v1117 = vpop.permute.xlu0 %1116
        %s1119 = sor.u32 256, 104
        %1120 = vbcast.lane.b32.xlu0 %v1066, %s1119
        %v1121 = vpop.permute.xlu0 %1120
        %s1123 = sor.u32 256, 112
        %1124 = vbcast.lane.b32.xlu0 %v1066, %s1123
        %v1125 = vpop.permute.xlu0 %1124
        %s1127 = sor.u32 256, 120
        %1128 = vbcast.lane.b32.xlu0 %v1066, %s1127
        %v1129 = vpop.permute.xlu0 %1128
        %v1130 = vlaneseq
        %v1131 = vshrl.u32 %v1130, 7
        %v1132 = vsub.s32 0, %v1131
        %v1133 = vrot.slane %v571, %v1132
        %1135 = vbcast.lane.b32.xlu0 %v1133, 256
        %v1136 = vpop.permute.xlu0 %1135
        %s1138 = sor.u32 256, 8
        %1139 = vbcast.lane.b32.xlu0 %v1133, %s1138
        %v1140 = vpop.permute.xlu0 %1139
        %s1142 = sor.u32 256, 16
        %1143 = vbcast.lane.b32.xlu0 %v1133, %s1142
        %v1144 = vpop.permute.xlu0 %1143
        %s1146 = sor.u32 256, 24
        %1147 = vbcast.lane.b32.xlu0 %v1133, %s1146
        %v1148 = vpop.permute.xlu0 %1147
        %s1150 = sor.u32 256, 32
        %1151 = vbcast.lane.b32.xlu0 %v1133, %s1150
        %v1152 = vpop.permute.xlu0 %1151
        %s1154 = sor.u32 256, 40
        %1155 = vbcast.lane.b32.xlu0 %v1133, %s1154
        %v1156 = vpop.permute.xlu0 %1155
        %s1158 = sor.u32 256, 48
        %1159 = vbcast.lane.b32.xlu0 %v1133, %s1158
        %v1160 = vpop.permute.xlu0 %1159
        %s1162 = sor.u32 256, 56
        %1163 = vbcast.lane.b32.xlu0 %v1133, %s1162
        %v1164 = vpop.permute.xlu0 %1163
        %s1166 = sor.u32 256, 64
        %1167 = vbcast.lane.b32.xlu0 %v1133, %s1166
        %v1168 = vpop.permute.xlu0 %1167
        %s1170 = sor.u32 256, 72
        %1171 = vbcast.lane.b32.xlu0 %v1133, %s1170
        %v1172 = vpop.permute.xlu0 %1171
        %s1174 = sor.u32 256, 80
        %1175 = vbcast.lane.b32.xlu0 %v1133, %s1174
        %v1176 = vpop.permute.xlu0 %1175
        %s1178 = sor.u32 256, 88
        %1179 = vbcast.lane.b32.xlu0 %v1133, %s1178
        %v1180 = vpop.permute.xlu0 %1179
        %s1182 = sor.u32 256, 96
        %1183 = vbcast.lane.b32.xlu0 %v1133, %s1182
        %v1184 = vpop.permute.xlu0 %1183
        %s1186 = sor.u32 256, 104
        %1187 = vbcast.lane.b32.xlu0 %v1133, %s1186
        %v1188 = vpop.permute.xlu0 %1187
        %s1190 = sor.u32 256, 112
        %1191 = vbcast.lane.b32.xlu0 %v1133, %s1190
        %v1192 = vpop.permute.xlu0 %1191
        %s1194 = sor.u32 256, 120
        %1195 = vbcast.lane.b32.xlu0 %v1133, %s1194
        %v1196 = vpop.permute.xlu0 %1195
        %v1197 = vlaneseq
        %v1198 = vshrl.u32 %v1197, 7
        %v1199 = vsub.s32 1, %v1198
        %v1200 = vrot.slane %v571, %v1199
        %1202 = vbcast.lane.b32.xlu0 %v1200, 256
        %v1203 = vpop.permute.xlu0 %1202
        %s1205 = sor.u32 256, 8
        %1206 = vbcast.lane.b32.xlu0 %v1200, %s1205
        %v1207 = vpop.permute.xlu0 %1206
        %s1209 = sor.u32 256, 16
        %1210 = vbcast.lane.b32.xlu0 %v1200, %s1209
        %v1211 = vpop.permute.xlu0 %1210
        %s1213 = sor.u32 256, 24
        %1214 = vbcast.lane.b32.xlu0 %v1200, %s1213
        %v1215 = vpop.permute.xlu0 %1214
        %s1217 = sor.u32 256, 32
        %1218 = vbcast.lane.b32.xlu0 %v1200, %s1217
        %v1219 = vpop.permute.xlu0 %1218
        %s1221 = sor.u32 256, 40
        %1222 = vbcast.lane.b32.xlu0 %v1200, %s1221
        %v1223 = vpop.permute.xlu0 %1222
        %s1225 = sor.u32 256, 48
        %1226 = vbcast.lane.b32.xlu0 %v1200, %s1225
        %v1227 = vpop.permute.xlu0 %1226
        %s1229 = sor.u32 256, 56
        %1230 = vbcast.lane.b32.xlu0 %v1200, %s1229
        %v1231 = vpop.permute.xlu0 %1230
        %s1233 = sor.u32 256, 64
        %1234 = vbcast.lane.b32.xlu0 %v1200, %s1233
        %v1235 = vpop.permute.xlu0 %1234
        %s1237 = sor.u32 256, 72
        %1238 = vbcast.lane.b32.xlu0 %v1200, %s1237
        %v1239 = vpop.permute.xlu0 %1238
        %s1241 = sor.u32 256, 80
        %1242 = vbcast.lane.b32.xlu0 %v1200, %s1241
        %v1243 = vpop.permute.xlu0 %1242
        %s1245 = sor.u32 256, 88
        %1246 = vbcast.lane.b32.xlu0 %v1200, %s1245
        %v1247 = vpop.permute.xlu0 %1246
        %s1249 = sor.u32 256, 96
        %1250 = vbcast.lane.b32.xlu0 %v1200, %s1249
        %v1251 = vpop.permute.xlu0 %1250
        %s1253 = sor.u32 256, 104
        %1254 = vbcast.lane.b32.xlu0 %v1200, %s1253
        %v1255 = vpop.permute.xlu0 %1254
        %s1257 = sor.u32 256, 112
        %1258 = vbcast.lane.b32.xlu0 %v1200, %s1257
        %v1259 = vpop.permute.xlu0 %1258
        %s1261 = sor.u32 256, 120
        %1262 = vbcast.lane.b32.xlu0 %v1200, %s1261
        %v1263 = vpop.permute.xlu0 %1262
        %v1264 = vlaneseq
        %v1265 = vshrl.u32 %v1264, 7
        %v1266 = vsub.s32 2, %v1265
        %v1267 = vrot.slane %v571, %v1266
        %1269 = vbcast.lane.b32.xlu0 %v1267, 256
        %v1270 = vpop.permute.xlu0 %1269
        %s1272 = sor.u32 256, 8
        %1273 = vbcast.lane.b32.xlu0 %v1267, %s1272
        %v1274 = vpop.permute.xlu0 %1273
        %s1276 = sor.u32 256, 16
        %1277 = vbcast.lane.b32.xlu0 %v1267, %s1276
        %v1278 = vpop.permute.xlu0 %1277
        %s1280 = sor.u32 256, 24
        %1281 = vbcast.lane.b32.xlu0 %v1267, %s1280
        %v1282 = vpop.permute.xlu0 %1281
        %s1284 = sor.u32 256, 32
        %1285 = vbcast.lane.b32.xlu0 %v1267, %s1284
        %v1286 = vpop.permute.xlu0 %1285
        %s1288 = sor.u32 256, 40
        %1289 = vbcast.lane.b32.xlu0 %v1267, %s1288
        %v1290 = vpop.permute.xlu0 %1289
        %s1292 = sor.u32 256, 48
        %1293 = vbcast.lane.b32.xlu0 %v1267, %s1292
        %v1294 = vpop.permute.xlu0 %1293
        %s1296 = sor.u32 256, 56
        %1297 = vbcast.lane.b32.xlu0 %v1267, %s1296
        %v1298 = vpop.permute.xlu0 %1297
        %s1300 = sor.u32 256, 64
        %1301 = vbcast.lane.b32.xlu0 %v1267, %s1300
        %v1302 = vpop.permute.xlu0 %1301
        %s1304 = sor.u32 256, 72
        %1305 = vbcast.lane.b32.xlu0 %v1267, %s1304
        %v1306 = vpop.permute.xlu0 %1305
        %s1308 = sor.u32 256, 80
        %1309 = vbcast.lane.b32.xlu0 %v1267, %s1308
        %v1310 = vpop.permute.xlu0 %1309
        %s1312 = sor.u32 256, 88
        %1313 = vbcast.lane.b32.xlu0 %v1267, %s1312
        %v1314 = vpop.permute.xlu0 %1313
        %s1316 = sor.u32 256, 96
        %1317 = vbcast.lane.b32.xlu0 %v1267, %s1316
        %v1318 = vpop.permute.xlu0 %1317
        %s1320 = sor.u32 256, 104
        %1321 = vbcast.lane.b32.xlu0 %v1267, %s1320
        %v1322 = vpop.permute.xlu0 %1321
        %s1324 = sor.u32 256, 112
        %1325 = vbcast.lane.b32.xlu0 %v1267, %s1324
        %v1326 = vpop.permute.xlu0 %1325
        %s1328 = sor.u32 256, 120
        %1329 = vbcast.lane.b32.xlu0 %v1267, %s1328
        %v1330 = vpop.permute.xlu0 %1329
        %v1331 = vlaneseq
        %v1332 = vshrl.u32 %v1331, 7
        %v1333 = vsub.s32 3, %v1332
        %v1334 = vrot.slane %v571, %v1333
        %1336 = vbcast.lane.b32.xlu0 %v1334, 256
        %v1337 = vpop.permute.xlu0 %1336
        %s1339 = sor.u32 256, 8
        %1340 = vbcast.lane.b32.xlu0 %v1334, %s1339
        %v1341 = vpop.permute.xlu0 %1340
        %s1343 = sor.u32 256, 16
        %1344 = vbcast.lane.b32.xlu0 %v1334, %s1343
        %v1345 = vpop.permute.xlu0 %1344
        %s1347 = sor.u32 256, 24
        %1348 = vbcast.lane.b32.xlu0 %v1334, %s1347
        %v1349 = vpop.permute.xlu0 %1348
        %s1351 = sor.u32 256, 32
        %1352 = vbcast.lane.b32.xlu0 %v1334, %s1351
        %v1353 = vpop.permute.xlu0 %1352
        %s1355 = sor.u32 256, 40
        %1356 = vbcast.lane.b32.xlu0 %v1334, %s1355
        %v1357 = vpop.permute.xlu0 %1356
        %s1359 = sor.u32 256, 48
        %1360 = vbcast.lane.b32.xlu0 %v1334, %s1359
        %v1361 = vpop.permute.xlu0 %1360
        %s1363 = sor.u32 256, 56
        %1364 = vbcast.lane.b32.xlu0 %v1334, %s1363
        %v1365 = vpop.permute.xlu0 %1364
        %s1367 = sor.u32 256, 64
        %1368 = vbcast.lane.b32.xlu0 %v1334, %s1367
        %v1369 = vpop.permute.xlu0 %1368
        %s1371 = sor.u32 256, 72
        %1372 = vbcast.lane.b32.xlu0 %v1334, %s1371
        %v1373 = vpop.permute.xlu0 %1372
        %s1375 = sor.u32 256, 80
        %1376 = vbcast.lane.b32.xlu0 %v1334, %s1375
        %v1377 = vpop.permute.xlu0 %1376
        %s1379 = sor.u32 256, 88
        %1380 = vbcast.lane.b32.xlu0 %v1334, %s1379
        %v1381 = vpop.permute.xlu0 %1380
        %s1383 = sor.u32 256, 96
        %1384 = vbcast.lane.b32.xlu0 %v1334, %s1383
        %v1385 = vpop.permute.xlu0 %1384
        %s1387 = sor.u32 256, 104
        %1388 = vbcast.lane.b32.xlu0 %v1334, %s1387
        %v1389 = vpop.permute.xlu0 %1388
        %s1391 = sor.u32 256, 112
        %1392 = vbcast.lane.b32.xlu0 %v1334, %s1391
        %v1393 = vpop.permute.xlu0 %1392
        %s1395 = sor.u32 256, 120
        %1396 = vbcast.lane.b32.xlu0 %v1334, %s1395
        %v1397 = vpop.permute.xlu0 %1396
        %v1398 = vlaneseq
        %v1399 = vshrl.u32 %v1398, 7
        %v1400 = vsub.s32 4, %v1399
        %v1401 = vrot.slane %v571, %v1400
        %1403 = vbcast.lane.b32.xlu0 %v1401, 256
        %v1404 = vpop.permute.xlu0 %1403
        %s1406 = sor.u32 256, 8
        %1407 = vbcast.lane.b32.xlu0 %v1401, %s1406
        %v1408 = vpop.permute.xlu0 %1407
        %s1410 = sor.u32 256, 16
        %1411 = vbcast.lane.b32.xlu0 %v1401, %s1410
        %v1412 = vpop.permute.xlu0 %1411
        %s1414 = sor.u32 256, 24
        %1415 = vbcast.lane.b32.xlu0 %v1401, %s1414
        %v1416 = vpop.permute.xlu0 %1415
        %s1418 = sor.u32 256, 32
        %1419 = vbcast.lane.b32.xlu0 %v1401, %s1418
        %v1420 = vpop.permute.xlu0 %1419
        %s1422 = sor.u32 256, 40
        %1423 = vbcast.lane.b32.xlu0 %v1401, %s1422
        %v1424 = vpop.permute.xlu0 %1423
        %s1426 = sor.u32 256, 48
        %1427 = vbcast.lane.b32.xlu0 %v1401, %s1426
        %v1428 = vpop.permute.xlu0 %1427
        %s1430 = sor.u32 256, 56
        %1431 = vbcast.lane.b32.xlu0 %v1401, %s1430
        %v1432 = vpop.permute.xlu0 %1431
        %s1434 = sor.u32 256, 64
        %1435 = vbcast.lane.b32.xlu0 %v1401, %s1434
        %v1436 = vpop.permute.xlu0 %1435
        %s1438 = sor.u32 256, 72
        %1439 = vbcast.lane.b32.xlu0 %v1401, %s1438
        %v1440 = vpop.permute.xlu0 %1439
        %s1442 = sor.u32 256, 80
        %1443 = vbcast.lane.b32.xlu0 %v1401, %s1442
        %v1444 = vpop.permute.xlu0 %1443
        %s1446 = sor.u32 256, 88
        %1447 = vbcast.lane.b32.xlu0 %v1401, %s1446
        %v1448 = vpop.permute.xlu0 %1447
        %s1450 = sor.u32 256, 96
        %1451 = vbcast.lane.b32.xlu0 %v1401, %s1450
        %v1452 = vpop.permute.xlu0 %1451
        %s1454 = sor.u32 256, 104
        %1455 = vbcast.lane.b32.xlu0 %v1401, %s1454
        %v1456 = vpop.permute.xlu0 %1455
        %s1458 = sor.u32 256, 112
        %1459 = vbcast.lane.b32.xlu0 %v1401, %s1458
        %v1460 = vpop.permute.xlu0 %1459
        %s1462 = sor.u32 256, 120
        %1463 = vbcast.lane.b32.xlu0 %v1401, %s1462
        %v1464 = vpop.permute.xlu0 %1463
        %v1465 = vlaneseq
        %v1466 = vshrl.u32 %v1465, 7
        %v1467 = vsub.s32 5, %v1466
        %v1468 = vrot.slane %v571, %v1467
        %1470 = vbcast.lane.b32.xlu0 %v1468, 256
        %v1471 = vpop.permute.xlu0 %1470
        %s1473 = sor.u32 256, 8
        %1474 = vbcast.lane.b32.xlu0 %v1468, %s1473
        %v1475 = vpop.permute.xlu0 %1474
        %s1477 = sor.u32 256, 16
        %1478 = vbcast.lane.b32.xlu0 %v1468, %s1477
        %v1479 = vpop.permute.xlu0 %1478
        %s1481 = sor.u32 256, 24
        %1482 = vbcast.lane.b32.xlu0 %v1468, %s1481
        %v1483 = vpop.permute.xlu0 %1482
        %s1485 = sor.u32 256, 32
        %1486 = vbcast.lane.b32.xlu0 %v1468, %s1485
        %v1487 = vpop.permute.xlu0 %1486
        %s1489 = sor.u32 256, 40
        %1490 = vbcast.lane.b32.xlu0 %v1468, %s1489
        %v1491 = vpop.permute.xlu0 %1490
        %s1493 = sor.u32 256, 48
        %1494 = vbcast.lane.b32.xlu0 %v1468, %s1493
        %v1495 = vpop.permute.xlu0 %1494
        %s1497 = sor.u32 256, 56
        %1498 = vbcast.lane.b32.xlu0 %v1468, %s1497
        %v1499 = vpop.permute.xlu0 %1498
        %s1501 = sor.u32 256, 64
        %1502 = vbcast.lane.b32.xlu0 %v1468, %s1501
        %v1503 = vpop.permute.xlu0 %1502
        %s1505 = sor.u32 256, 72
        %1506 = vbcast.lane.b32.xlu0 %v1468, %s1505
        %v1507 = vpop.permute.xlu0 %1506
        %s1509 = sor.u32 256, 80
        %1510 = vbcast.lane.b32.xlu0 %v1468, %s1509
        %v1511 = vpop.permute.xlu0 %1510
        %s1513 = sor.u32 256, 88
        %1514 = vbcast.lane.b32.xlu0 %v1468, %s1513
        %v1515 = vpop.permute.xlu0 %1514
        %s1517 = sor.u32 256, 96
        %1518 = vbcast.lane.b32.xlu0 %v1468, %s1517
        %v1519 = vpop.permute.xlu0 %1518
        %s1521 = sor.u32 256, 104
        %1522 = vbcast.lane.b32.xlu0 %v1468, %s1521
        %v1523 = vpop.permute.xlu0 %1522
        %s1525 = sor.u32 256, 112
        %1526 = vbcast.lane.b32.xlu0 %v1468, %s1525
        %v1527 = vpop.permute.xlu0 %1526
        %s1529 = sor.u32 256, 120
        %1530 = vbcast.lane.b32.xlu0 %v1468, %s1529
        %v1531 = vpop.permute.xlu0 %1530
        %v1532 = vlaneseq
        %v1533 = vshrl.u32 %v1532, 7
        %v1534 = vsub.s32 6, %v1533
        %v1535 = vrot.slane %v571, %v1534
        %1537 = vbcast.lane.b32.xlu0 %v1535, 256
        %v1538 = vpop.permute.xlu0 %1537
        %s1540 = sor.u32 256, 8
        %1541 = vbcast.lane.b32.xlu0 %v1535, %s1540
        %v1542 = vpop.permute.xlu0 %1541
        %s1544 = sor.u32 256, 16
        %1545 = vbcast.lane.b32.xlu0 %v1535, %s1544
        %v1546 = vpop.permute.xlu0 %1545
        %s1548 = sor.u32 256, 24
        %1549 = vbcast.lane.b32.xlu0 %v1535, %s1548
        %v1550 = vpop.permute.xlu0 %1549
        %s1552 = sor.u32 256, 32
        %1553 = vbcast.lane.b32.xlu0 %v1535, %s1552
        %v1554 = vpop.permute.xlu0 %1553
        %s1556 = sor.u32 256, 40
        %1557 = vbcast.lane.b32.xlu0 %v1535, %s1556
        %v1558 = vpop.permute.xlu0 %1557
        %s1560 = sor.u32 256, 48
        %1561 = vbcast.lane.b32.xlu0 %v1535, %s1560
        %v1562 = vpop.permute.xlu0 %1561
        %s1564 = sor.u32 256, 56
        %1565 = vbcast.lane.b32.xlu0 %v1535, %s1564
        %v1566 = vpop.permute.xlu0 %1565
        %s1568 = sor.u32 256, 64
        %1569 = vbcast.lane.b32.xlu0 %v1535, %s1568
        %v1570 = vpop.permute.xlu0 %1569
        %s1572 = sor.u32 256, 72
        %1573 = vbcast.lane.b32.xlu0 %v1535, %s1572
        %v1574 = vpop.permute.xlu0 %1573
        %s1576 = sor.u32 256, 80
        %1577 = vbcast.lane.b32.xlu0 %v1535, %s1576
        %v1578 = vpop.permute.xlu0 %1577
        %s1580 = sor.u32 256, 88
        %1581 = vbcast.lane.b32.xlu0 %v1535, %s1580
        %v1582 = vpop.permute.xlu0 %1581
        %s1584 = sor.u32 256, 96
        %1585 = vbcast.lane.b32.xlu0 %v1535, %s1584
        %v1586 = vpop.permute.xlu0 %1585
        %s1588 = sor.u32 256, 104
        %1589 = vbcast.lane.b32.xlu0 %v1535, %s1588
        %v1590 = vpop.permute.xlu0 %1589
        %s1592 = sor.u32 256, 112
        %1593 = vbcast.lane.b32.xlu0 %v1535, %s1592
        %v1594 = vpop.permute.xlu0 %1593
        %s1596 = sor.u32 256, 120
        %1597 = vbcast.lane.b32.xlu0 %v1535, %s1596
        %v1598 = vpop.permute.xlu0 %1597
        %v1599 = vlaneseq
        %v1600 = vshrl.u32 %v1599, 7
        %v1601 = vsub.s32 7, %v1600
        %v1602 = vrot.slane %v571, %v1601
        %1604 = vbcast.lane.b32.xlu0 %v1602, 256
        %v1605 = vpop.permute.xlu0 %1604
        %s1607 = sor.u32 256, 8
        %1608 = vbcast.lane.b32.xlu0 %v1602, %s1607
        %v1609 = vpop.permute.xlu0 %1608
        %s1611 = sor.u32 256, 16
        %1612 = vbcast.lane.b32.xlu0 %v1602, %s1611
        %v1613 = vpop.permute.xlu0 %1612
        %s1615 = sor.u32 256, 24
        %1616 = vbcast.lane.b32.xlu0 %v1602, %s1615
        %v1617 = vpop.permute.xlu0 %1616
        %s1619 = sor.u32 256, 32
        %1620 = vbcast.lane.b32.xlu0 %v1602, %s1619
        %v1621 = vpop.permute.xlu0 %1620
        %s1623 = sor.u32 256, 40
        %1624 = vbcast.lane.b32.xlu0 %v1602, %s1623
        %v1625 = vpop.permute.xlu0 %1624
        %s1627 = sor.u32 256, 48
        %1628 = vbcast.lane.b32.xlu0 %v1602, %s1627
        %v1629 = vpop.permute.xlu0 %1628
        %s1631 = sor.u32 256, 56
        %1632 = vbcast.lane.b32.xlu0 %v1602, %s1631
        %v1633 = vpop.permute.xlu0 %1632
        %s1635 = sor.u32 256, 64
        %1636 = vbcast.lane.b32.xlu0 %v1602, %s1635
        %v1637 = vpop.permute.xlu0 %1636
        %s1639 = sor.u32 256, 72
        %1640 = vbcast.lane.b32.xlu0 %v1602, %s1639
        %v1641 = vpop.permute.xlu0 %1640
        %s1643 = sor.u32 256, 80
        %1644 = vbcast.lane.b32.xlu0 %v1602, %s1643
        %v1645 = vpop.permute.xlu0 %1644
        %s1647 = sor.u32 256, 88
        %1648 = vbcast.lane.b32.xlu0 %v1602, %s1647
        %v1649 = vpop.permute.xlu0 %1648
        %s1651 = sor.u32 256, 96
        %1652 = vbcast.lane.b32.xlu0 %v1602, %s1651
        %v1653 = vpop.permute.xlu0 %1652
        %s1655 = sor.u32 256, 104
        %1656 = vbcast.lane.b32.xlu0 %v1602, %s1655
        %v1657 = vpop.permute.xlu0 %1656
        %s1659 = sor.u32 256, 112
        %1660 = vbcast.lane.b32.xlu0 %v1602, %s1659
        %v1661 = vpop.permute.xlu0 %1660
        %s1663 = sor.u32 256, 120
        %1664 = vbcast.lane.b32.xlu0 %v1602, %s1663
        %v1665 = vpop.permute.xlu0 %1664
        %v1666 = vlaneseq
        %v1667 = vshrl.u32 %v1666, 7
        %v1668 = vsub.s32 0, %v1667
        %v1669 = vrot.slane %v572, %v1668
        %1671 = vbcast.lane.b32.xlu0 %v1669, 256
        %v1672 = vpop.permute.xlu0 %1671
        %s1674 = sor.u32 256, 8
        %1675 = vbcast.lane.b32.xlu0 %v1669, %s1674
        %v1676 = vpop.permute.xlu0 %1675
        %s1678 = sor.u32 256, 16
        %1679 = vbcast.lane.b32.xlu0 %v1669, %s1678
        %v1680 = vpop.permute.xlu0 %1679
        %s1682 = sor.u32 256, 24
        %1683 = vbcast.lane.b32.xlu0 %v1669, %s1682
        %v1684 = vpop.permute.xlu0 %1683
        %s1686 = sor.u32 256, 32
        %1687 = vbcast.lane.b32.xlu0 %v1669, %s1686
        %v1688 = vpop.permute.xlu0 %1687
        %s1690 = sor.u32 256, 40
        %1691 = vbcast.lane.b32.xlu0 %v1669, %s1690
        %v1692 = vpop.permute.xlu0 %1691
        %s1694 = sor.u32 256, 48
        %1695 = vbcast.lane.b32.xlu0 %v1669, %s1694
        %v1696 = vpop.permute.xlu0 %1695
        %s1698 = sor.u32 256, 56
        %1699 = vbcast.lane.b32.xlu0 %v1669, %s1698
        %v1700 = vpop.permute.xlu0 %1699
        %s1702 = sor.u32 256, 64
        %1703 = vbcast.lane.b32.xlu0 %v1669, %s1702
        %v1704 = vpop.permute.xlu0 %1703
        %s1706 = sor.u32 256, 72
        %1707 = vbcast.lane.b32.xlu0 %v1669, %s1706
        %v1708 = vpop.permute.xlu0 %1707
        %s1710 = sor.u32 256, 80
        %1711 = vbcast.lane.b32.xlu0 %v1669, %s1710
        %v1712 = vpop.permute.xlu0 %1711
        %s1714 = sor.u32 256, 88
        %1715 = vbcast.lane.b32.xlu0 %v1669, %s1714
        %v1716 = vpop.permute.xlu0 %1715
        %s1718 = sor.u32 256, 96
        %1719 = vbcast.lane.b32.xlu0 %v1669, %s1718
        %v1720 = vpop.permute.xlu0 %1719
        %s1722 = sor.u32 256, 104
        %1723 = vbcast.lane.b32.xlu0 %v1669, %s1722
        %v1724 = vpop.permute.xlu0 %1723
        %s1726 = sor.u32 256, 112
        %1727 = vbcast.lane.b32.xlu0 %v1669, %s1726
        %v1728 = vpop.permute.xlu0 %1727
        %s1730 = sor.u32 256, 120
        %1731 = vbcast.lane.b32.xlu0 %v1669, %s1730
        %v1732 = vpop.permute.xlu0 %1731
        %v1733 = vlaneseq
        %v1734 = vshrl.u32 %v1733, 7
        %v1735 = vsub.s32 1, %v1734
        %v1736 = vrot.slane %v572, %v1735
        %1738 = vbcast.lane.b32.xlu0 %v1736, 256
        %v1739 = vpop.permute.xlu0 %1738
        %s1741 = sor.u32 256, 8
        %1742 = vbcast.lane.b32.xlu0 %v1736, %s1741
        %v1743 = vpop.permute.xlu0 %1742
        %s1745 = sor.u32 256, 16
        %1746 = vbcast.lane.b32.xlu0 %v1736, %s1745
        %v1747 = vpop.permute.xlu0 %1746
        %s1749 = sor.u32 256, 24
        %1750 = vbcast.lane.b32.xlu0 %v1736, %s1749
        %v1751 = vpop.permute.xlu0 %1750
        %s1753 = sor.u32 256, 32
        %1754 = vbcast.lane.b32.xlu0 %v1736, %s1753
        %v1755 = vpop.permute.xlu0 %1754
        %s1757 = sor.u32 256, 40
        %1758 = vbcast.lane.b32.xlu0 %v1736, %s1757
        %v1759 = vpop.permute.xlu0 %1758
        %s1761 = sor.u32 256, 48
        %1762 = vbcast.lane.b32.xlu0 %v1736, %s1761
        %v1763 = vpop.permute.xlu0 %1762
        %s1765 = sor.u32 256, 56
        %1766 = vbcast.lane.b32.xlu0 %v1736, %s1765
        %v1767 = vpop.permute.xlu0 %1766
        %s1769 = sor.u32 256, 64
        %1770 = vbcast.lane.b32.xlu0 %v1736, %s1769
        %v1771 = vpop.permute.xlu0 %1770
        %s1773 = sor.u32 256, 72
        %1774 = vbcast.lane.b32.xlu0 %v1736, %s1773
        %v1775 = vpop.permute.xlu0 %1774
        %s1777 = sor.u32 256, 80
        %1778 = vbcast.lane.b32.xlu0 %v1736, %s1777
        %v1779 = vpop.permute.xlu0 %1778
        %s1781 = sor.u32 256, 88
        %1782 = vbcast.lane.b32.xlu0 %v1736, %s1781
        %v1783 = vpop.permute.xlu0 %1782
        %s1785 = sor.u32 256, 96
        %1786 = vbcast.lane.b32.xlu0 %v1736, %s1785
        %v1787 = vpop.permute.xlu0 %1786
        %s1789 = sor.u32 256, 104
        %1790 = vbcast.lane.b32.xlu0 %v1736, %s1789
        %v1791 = vpop.permute.xlu0 %1790
        %s1793 = sor.u32 256, 112
        %1794 = vbcast.lane.b32.xlu0 %v1736, %s1793
        %v1795 = vpop.permute.xlu0 %1794
        %s1797 = sor.u32 256, 120
        %1798 = vbcast.lane.b32.xlu0 %v1736, %s1797
        %v1799 = vpop.permute.xlu0 %1798
        %v1800 = vlaneseq
        %v1801 = vshrl.u32 %v1800, 7
        %v1802 = vsub.s32 2, %v1801
        %v1803 = vrot.slane %v572, %v1802
        %1805 = vbcast.lane.b32.xlu0 %v1803, 256
        %v1806 = vpop.permute.xlu0 %1805
        %s1808 = sor.u32 256, 8
        %1809 = vbcast.lane.b32.xlu0 %v1803, %s1808
        %v1810 = vpop.permute.xlu0 %1809
        %s1812 = sor.u32 256, 16
        %1813 = vbcast.lane.b32.xlu0 %v1803, %s1812
        %v1814 = vpop.permute.xlu0 %1813
        %s1816 = sor.u32 256, 24
        %1817 = vbcast.lane.b32.xlu0 %v1803, %s1816
        %v1818 = vpop.permute.xlu0 %1817
        %s1820 = sor.u32 256, 32
        %1821 = vbcast.lane.b32.xlu0 %v1803, %s1820
        %v1822 = vpop.permute.xlu0 %1821
        %s1824 = sor.u32 256, 40
        %1825 = vbcast.lane.b32.xlu0 %v1803, %s1824
        %v1826 = vpop.permute.xlu0 %1825
        %s1828 = sor.u32 256, 48
        %1829 = vbcast.lane.b32.xlu0 %v1803, %s1828
        %v1830 = vpop.permute.xlu0 %1829
        %s1832 = sor.u32 256, 56
        %1833 = vbcast.lane.b32.xlu0 %v1803, %s1832
        %v1834 = vpop.permute.xlu0 %1833
        %s1836 = sor.u32 256, 64
        %1837 = vbcast.lane.b32.xlu0 %v1803, %s1836
        %v1838 = vpop.permute.xlu0 %1837
        %s1840 = sor.u32 256, 72
        %1841 = vbcast.lane.b32.xlu0 %v1803, %s1840
        %v1842 = vpop.permute.xlu0 %1841
        %s1844 = sor.u32 256, 80
        %1845 = vbcast.lane.b32.xlu0 %v1803, %s1844
        %v1846 = vpop.permute.xlu0 %1845
        %s1848 = sor.u32 256, 88
        %1849 = vbcast.lane.b32.xlu0 %v1803, %s1848
        %v1850 = vpop.permute.xlu0 %1849
        %s1852 = sor.u32 256, 96
        %1853 = vbcast.lane.b32.xlu0 %v1803, %s1852
        %v1854 = vpop.permute.xlu0 %1853
        %s1856 = sor.u32 256, 104
        %1857 = vbcast.lane.b32.xlu0 %v1803, %s1856
        %v1858 = vpop.permute.xlu0 %1857
        %s1860 = sor.u32 256, 112
        %1861 = vbcast.lane.b32.xlu0 %v1803, %s1860
        %v1862 = vpop.permute.xlu0 %1861
        %s1864 = sor.u32 256, 120
        %1865 = vbcast.lane.b32.xlu0 %v1803, %s1864
        %v1866 = vpop.permute.xlu0 %1865
        %v1867 = vlaneseq
        %v1868 = vshrl.u32 %v1867, 7
        %v1869 = vsub.s32 3, %v1868
        %v1870 = vrot.slane %v572, %v1869
        %1872 = vbcast.lane.b32.xlu0 %v1870, 256
        %v1873 = vpop.permute.xlu0 %1872
        %s1875 = sor.u32 256, 8
        %1876 = vbcast.lane.b32.xlu0 %v1870, %s1875
        %v1877 = vpop.permute.xlu0 %1876
        %s1879 = sor.u32 256, 16
        %1880 = vbcast.lane.b32.xlu0 %v1870, %s1879
        %v1881 = vpop.permute.xlu0 %1880
        %s1883 = sor.u32 256, 24
        %1884 = vbcast.lane.b32.xlu0 %v1870, %s1883
        %v1885 = vpop.permute.xlu0 %1884
        %s1887 = sor.u32 256, 32
        %1888 = vbcast.lane.b32.xlu0 %v1870, %s1887
        %v1889 = vpop.permute.xlu0 %1888
        %s1891 = sor.u32 256, 40
        %1892 = vbcast.lane.b32.xlu0 %v1870, %s1891
        %v1893 = vpop.permute.xlu0 %1892
        %s1895 = sor.u32 256, 48
        %1896 = vbcast.lane.b32.xlu0 %v1870, %s1895
        %v1897 = vpop.permute.xlu0 %1896
        %s1899 = sor.u32 256, 56
        %1900 = vbcast.lane.b32.xlu0 %v1870, %s1899
        %v1901 = vpop.permute.xlu0 %1900
        %s1903 = sor.u32 256, 64
        %1904 = vbcast.lane.b32.xlu0 %v1870, %s1903
        %v1905 = vpop.permute.xlu0 %1904
        %s1907 = sor.u32 256, 72
        %1908 = vbcast.lane.b32.xlu0 %v1870, %s1907
        %v1909 = vpop.permute.xlu0 %1908
        %s1911 = sor.u32 256, 80
        %1912 = vbcast.lane.b32.xlu0 %v1870, %s1911
        %v1913 = vpop.permute.xlu0 %1912
        %s1915 = sor.u32 256, 88
        %1916 = vbcast.lane.b32.xlu0 %v1870, %s1915
        %v1917 = vpop.permute.xlu0 %1916
        %s1919 = sor.u32 256, 96
        %1920 = vbcast.lane.b32.xlu0 %v1870, %s1919
        %v1921 = vpop.permute.xlu0 %1920
        %s1923 = sor.u32 256, 104
        %1924 = vbcast.lane.b32.xlu0 %v1870, %s1923
        %v1925 = vpop.permute.xlu0 %1924
        %s1927 = sor.u32 256, 112
        %1928 = vbcast.lane.b32.xlu0 %v1870, %s1927
        %v1929 = vpop.permute.xlu0 %1928
        %s1931 = sor.u32 256, 120
        %1932 = vbcast.lane.b32.xlu0 %v1870, %s1931
        %v1933 = vpop.permute.xlu0 %1932
        %v1934 = vlaneseq
        %v1935 = vshrl.u32 %v1934, 7
        %v1936 = vsub.s32 4, %v1935
        %v1937 = vrot.slane %v572, %v1936
        %1939 = vbcast.lane.b32.xlu0 %v1937, 256
        %v1940 = vpop.permute.xlu0 %1939
        %s1942 = sor.u32 256, 8
        %1943 = vbcast.lane.b32.xlu0 %v1937, %s1942
        %v1944 = vpop.permute.xlu0 %1943
        %s1946 = sor.u32 256, 16
        %1947 = vbcast.lane.b32.xlu0 %v1937, %s1946
        %v1948 = vpop.permute.xlu0 %1947
        %s1950 = sor.u32 256, 24
        %1951 = vbcast.lane.b32.xlu0 %v1937, %s1950
        %v1952 = vpop.permute.xlu0 %1951
        %s1954 = sor.u32 256, 32
        %1955 = vbcast.lane.b32.xlu0 %v1937, %s1954
        %v1956 = vpop.permute.xlu0 %1955
        %s1958 = sor.u32 256, 40
        %1959 = vbcast.lane.b32.xlu0 %v1937, %s1958
        %v1960 = vpop.permute.xlu0 %1959
        %s1962 = sor.u32 256, 48
        %1963 = vbcast.lane.b32.xlu0 %v1937, %s1962
        %v1964 = vpop.permute.xlu0 %1963
        %s1966 = sor.u32 256, 56
        %1967 = vbcast.lane.b32.xlu0 %v1937, %s1966
        %v1968 = vpop.permute.xlu0 %1967
        %s1970 = sor.u32 256, 64
        %1971 = vbcast.lane.b32.xlu0 %v1937, %s1970
        %v1972 = vpop.permute.xlu0 %1971
        %s1974 = sor.u32 256, 72
        %1975 = vbcast.lane.b32.xlu0 %v1937, %s1974
        %v1976 = vpop.permute.xlu0 %1975
        %s1978 = sor.u32 256, 80
        %1979 = vbcast.lane.b32.xlu0 %v1937, %s1978
        %v1980 = vpop.permute.xlu0 %1979
        %s1982 = sor.u32 256, 88
        %1983 = vbcast.lane.b32.xlu0 %v1937, %s1982
        %v1984 = vpop.permute.xlu0 %1983
        %s1986 = sor.u32 256, 96
        %1987 = vbcast.lane.b32.xlu0 %v1937, %s1986
        %v1988 = vpop.permute.xlu0 %1987
        %s1990 = sor.u32 256, 104
        %1991 = vbcast.lane.b32.xlu0 %v1937, %s1990
        %v1992 = vpop.permute.xlu0 %1991
        %s1994 = sor.u32 256, 112
        %1995 = vbcast.lane.b32.xlu0 %v1937, %s1994
        %v1996 = vpop.permute.xlu0 %1995
        %s1998 = sor.u32 256, 120
        %1999 = vbcast.lane.b32.xlu0 %v1937, %s1998
        %v2000 = vpop.permute.xlu0 %1999
        %v2001 = vlaneseq
        %v2002 = vshrl.u32 %v2001, 7
        %v2003 = vsub.s32 5, %v2002
        %v2004 = vrot.slane %v572, %v2003
        %2006 = vbcast.lane.b32.xlu0 %v2004, 256
        %v2007 = vpop.permute.xlu0 %2006
        %s2009 = sor.u32 256, 8
        %2010 = vbcast.lane.b32.xlu0 %v2004, %s2009
        %v2011 = vpop.permute.xlu0 %2010
        %s2013 = sor.u32 256, 16
        %2014 = vbcast.lane.b32.xlu0 %v2004, %s2013
        %v2015 = vpop.permute.xlu0 %2014
        %s2017 = sor.u32 256, 24
        %2018 = vbcast.lane.b32.xlu0 %v2004, %s2017
        %v2019 = vpop.permute.xlu0 %2018
        %s2021 = sor.u32 256, 32
        %2022 = vbcast.lane.b32.xlu0 %v2004, %s2021
        %v2023 = vpop.permute.xlu0 %2022
        %s2025 = sor.u32 256, 40
        %2026 = vbcast.lane.b32.xlu0 %v2004, %s2025
        %v2027 = vpop.permute.xlu0 %2026
        %s2029 = sor.u32 256, 48
        %2030 = vbcast.lane.b32.xlu0 %v2004, %s2029
        %v2031 = vpop.permute.xlu0 %2030
        %s2033 = sor.u32 256, 56
        %2034 = vbcast.lane.b32.xlu0 %v2004, %s2033
        %v2035 = vpop.permute.xlu0 %2034
        %s2037 = sor.u32 256, 64
        %2038 = vbcast.lane.b32.xlu0 %v2004, %s2037
        %v2039 = vpop.permute.xlu0 %2038
        %s2041 = sor.u32 256, 72
        %2042 = vbcast.lane.b32.xlu0 %v2004, %s2041
        %v2043 = vpop.permute.xlu0 %2042
        %s2045 = sor.u32 256, 80
        %2046 = vbcast.lane.b32.xlu0 %v2004, %s2045
        %v2047 = vpop.permute.xlu0 %2046
        %s2049 = sor.u32 256, 88
        %2050 = vbcast.lane.b32.xlu0 %v2004, %s2049
        %v2051 = vpop.permute.xlu0 %2050
        %s2053 = sor.u32 256, 96
        %2054 = vbcast.lane.b32.xlu0 %v2004, %s2053
        %v2055 = vpop.permute.xlu0 %2054
        %s2057 = sor.u32 256, 104
        %2058 = vbcast.lane.b32.xlu0 %v2004, %s2057
        %v2059 = vpop.permute.xlu0 %2058
        %s2061 = sor.u32 256, 112
        %2062 = vbcast.lane.b32.xlu0 %v2004, %s2061
        %v2063 = vpop.permute.xlu0 %2062
        %s2065 = sor.u32 256, 120
        %2066 = vbcast.lane.b32.xlu0 %v2004, %s2065
        %v2067 = vpop.permute.xlu0 %2066
        %v2068 = vlaneseq
        %v2069 = vshrl.u32 %v2068, 7
        %v2070 = vsub.s32 6, %v2069
        %v2071 = vrot.slane %v572, %v2070
        %2073 = vbcast.lane.b32.xlu0 %v2071, 256
        %v2074 = vpop.permute.xlu0 %2073
        %s2076 = sor.u32 256, 8
        %2077 = vbcast.lane.b32.xlu0 %v2071, %s2076
        %v2078 = vpop.permute.xlu0 %2077
        %s2080 = sor.u32 256, 16
        %2081 = vbcast.lane.b32.xlu0 %v2071, %s2080
        %v2082 = vpop.permute.xlu0 %2081
        %s2084 = sor.u32 256, 24
        %2085 = vbcast.lane.b32.xlu0 %v2071, %s2084
        %v2086 = vpop.permute.xlu0 %2085
        %s2088 = sor.u32 256, 32
        %2089 = vbcast.lane.b32.xlu0 %v2071, %s2088
        %v2090 = vpop.permute.xlu0 %2089
        %s2092 = sor.u32 256, 40
        %2093 = vbcast.lane.b32.xlu0 %v2071, %s2092
        %v2094 = vpop.permute.xlu0 %2093
        %s2096 = sor.u32 256, 48
        %2097 = vbcast.lane.b32.xlu0 %v2071, %s2096
        %v2098 = vpop.permute.xlu0 %2097
        %s2100 = sor.u32 256, 56
        %2101 = vbcast.lane.b32.xlu0 %v2071, %s2100
        %v2102 = vpop.permute.xlu0 %2101
        %s2104 = sor.u32 256, 64
        %2105 = vbcast.lane.b32.xlu0 %v2071, %s2104
        %v2106 = vpop.permute.xlu0 %2105
        %s2108 = sor.u32 256, 72
        %2109 = vbcast.lane.b32.xlu0 %v2071, %s2108
        %v2110 = vpop.permute.xlu0 %2109
        %s2112 = sor.u32 256, 80
        %2113 = vbcast.lane.b32.xlu0 %v2071, %s2112
        %v2114 = vpop.permute.xlu0 %2113
        %s2116 = sor.u32 256, 88
        %2117 = vbcast.lane.b32.xlu0 %v2071, %s2116
        %v2118 = vpop.permute.xlu0 %2117
        %s2120 = sor.u32 256, 96
        %2121 = vbcast.lane.b32.xlu0 %v2071, %s2120
        %v2122 = vpop.permute.xlu0 %2121
        %s2124 = sor.u32 256, 104
        %2125 = vbcast.lane.b32.xlu0 %v2071, %s2124
        %v2126 = vpop.permute.xlu0 %2125
        %s2128 = sor.u32 256, 112
        %2129 = vbcast.lane.b32.xlu0 %v2071, %s2128
        %v2130 = vpop.permute.xlu0 %2129
        %s2132 = sor.u32 256, 120
        %2133 = vbcast.lane.b32.xlu0 %v2071, %s2132
        %v2134 = vpop.permute.xlu0 %2133
        %v2135 = vlaneseq
        %v2136 = vshrl.u32 %v2135, 7
        %v2137 = vsub.s32 7, %v2136
        %v2138 = vrot.slane %v572, %v2137
        %2140 = vbcast.lane.b32.xlu0 %v2138, 256
        %v2141 = vpop.permute.xlu0 %2140
        %s2143 = sor.u32 256, 8
        %2144 = vbcast.lane.b32.xlu0 %v2138, %s2143
        %v2145 = vpop.permute.xlu0 %2144
        %s2147 = sor.u32 256, 16
        %2148 = vbcast.lane.b32.xlu0 %v2138, %s2147
        %v2149 = vpop.permute.xlu0 %2148
        %s2151 = sor.u32 256, 24
        %2152 = vbcast.lane.b32.xlu0 %v2138, %s2151
        %v2153 = vpop.permute.xlu0 %2152
        %s2155 = sor.u32 256, 32
        %2156 = vbcast.lane.b32.xlu0 %v2138, %s2155
        %v2157 = vpop.permute.xlu0 %2156
        %s2159 = sor.u32 256, 40
        %2160 = vbcast.lane.b32.xlu0 %v2138, %s2159
        %v2161 = vpop.permute.xlu0 %2160
        %s2163 = sor.u32 256, 48
        %2164 = vbcast.lane.b32.xlu0 %v2138, %s2163
        %v2165 = vpop.permute.xlu0 %2164
        %s2167 = sor.u32 256, 56
        %2168 = vbcast.lane.b32.xlu0 %v2138, %s2167
        %v2169 = vpop.permute.xlu0 %2168
        %s2171 = sor.u32 256, 64
        %2172 = vbcast.lane.b32.xlu0 %v2138, %s2171
        %v2173 = vpop.permute.xlu0 %2172
        %s2175 = sor.u32 256, 72
        %2176 = vbcast.lane.b32.xlu0 %v2138, %s2175
        %v2177 = vpop.permute.xlu0 %2176
        %s2179 = sor.u32 256, 80
        %2180 = vbcast.lane.b32.xlu0 %v2138, %s2179
        %v2181 = vpop.permute.xlu0 %2180
        %s2183 = sor.u32 256, 88
        %2184 = vbcast.lane.b32.xlu0 %v2138, %s2183
        %v2185 = vpop.permute.xlu0 %2184
        %s2187 = sor.u32 256, 96
        %2188 = vbcast.lane.b32.xlu0 %v2138, %s2187
        %v2189 = vpop.permute.xlu0 %2188
        %s2191 = sor.u32 256, 104
        %2192 = vbcast.lane.b32.xlu0 %v2138, %s2191
        %v2193 = vpop.permute.xlu0 %2192
        %s2195 = sor.u32 256, 112
        %2196 = vbcast.lane.b32.xlu0 %v2138, %s2195
        %v2197 = vpop.permute.xlu0 %2196
        %s2199 = sor.u32 256, 120
        %2200 = vbcast.lane.b32.xlu0 %v2138, %s2199
        %v2201 = vpop.permute.xlu0 %2200
        %v2202 = vlaneseq
        %v2203 = vshrl.u32 %v2202, 7
        %v2204 = vsub.s32 0, %v2203
        %v2205 = vrot.slane %v573, %v2204
        %2207 = vbcast.lane.b32.xlu0 %v2205, 256
        %v2208 = vpop.permute.xlu0 %2207
        %s2210 = sor.u32 256, 8
        %2211 = vbcast.lane.b32.xlu0 %v2205, %s2210
        %v2212 = vpop.permute.xlu0 %2211
        %s2214 = sor.u32 256, 16
        %2215 = vbcast.lane.b32.xlu0 %v2205, %s2214
        %v2216 = vpop.permute.xlu0 %2215
        %s2218 = sor.u32 256, 24
        %2219 = vbcast.lane.b32.xlu0 %v2205, %s2218
        %v2220 = vpop.permute.xlu0 %2219
        %s2222 = sor.u32 256, 32
        %2223 = vbcast.lane.b32.xlu0 %v2205, %s2222
        %v2224 = vpop.permute.xlu0 %2223
        %s2226 = sor.u32 256, 40
        %2227 = vbcast.lane.b32.xlu0 %v2205, %s2226
        %v2228 = vpop.permute.xlu0 %2227
        %s2230 = sor.u32 256, 48
        %2231 = vbcast.lane.b32.xlu0 %v2205, %s2230
        %v2232 = vpop.permute.xlu0 %2231
        %s2234 = sor.u32 256, 56
        %2235 = vbcast.lane.b32.xlu0 %v2205, %s2234
        %v2236 = vpop.permute.xlu0 %2235
        %s2238 = sor.u32 256, 64
        %2239 = vbcast.lane.b32.xlu0 %v2205, %s2238
        %v2240 = vpop.permute.xlu0 %2239
        %s2242 = sor.u32 256, 72
        %2243 = vbcast.lane.b32.xlu0 %v2205, %s2242
        %v2244 = vpop.permute.xlu0 %2243
        %s2246 = sor.u32 256, 80
        %2247 = vbcast.lane.b32.xlu0 %v2205, %s2246
        %v2248 = vpop.permute.xlu0 %2247
        %s2250 = sor.u32 256, 88
        %2251 = vbcast.lane.b32.xlu0 %v2205, %s2250
        %v2252 = vpop.permute.xlu0 %2251
        %s2254 = sor.u32 256, 96
        %2255 = vbcast.lane.b32.xlu0 %v2205, %s2254
        %v2256 = vpop.permute.xlu0 %2255
        %s2258 = sor.u32 256, 104
        %2259 = vbcast.lane.b32.xlu0 %v2205, %s2258
        %v2260 = vpop.permute.xlu0 %2259
        %s2262 = sor.u32 256, 112
        %2263 = vbcast.lane.b32.xlu0 %v2205, %s2262
        %v2264 = vpop.permute.xlu0 %2263
        %s2266 = sor.u32 256, 120
        %2267 = vbcast.lane.b32.xlu0 %v2205, %s2266
        %v2268 = vpop.permute.xlu0 %2267
        %v2269 = vlaneseq
        %v2270 = vshrl.u32 %v2269, 7
        %v2271 = vsub.s32 1, %v2270
        %v2272 = vrot.slane %v573, %v2271
        %2274 = vbcast.lane.b32.xlu0 %v2272, 256
        %v2275 = vpop.permute.xlu0 %2274
        %s2277 = sor.u32 256, 8
        %2278 = vbcast.lane.b32.xlu0 %v2272, %s2277
        %v2279 = vpop.permute.xlu0 %2278
        %s2281 = sor.u32 256, 16
        %2282 = vbcast.lane.b32.xlu0 %v2272, %s2281
        %v2283 = vpop.permute.xlu0 %2282
        %s2285 = sor.u32 256, 24
        %2286 = vbcast.lane.b32.xlu0 %v2272, %s2285
        %v2287 = vpop.permute.xlu0 %2286
        %s2289 = sor.u32 256, 32
        %2290 = vbcast.lane.b32.xlu0 %v2272, %s2289
        %v2291 = vpop.permute.xlu0 %2290
        %s2293 = sor.u32 256, 40
        %2294 = vbcast.lane.b32.xlu0 %v2272, %s2293
        %v2295 = vpop.permute.xlu0 %2294
        %s2297 = sor.u32 256, 48
        %2298 = vbcast.lane.b32.xlu0 %v2272, %s2297
        %v2299 = vpop.permute.xlu0 %2298
        %s2301 = sor.u32 256, 56
        %2302 = vbcast.lane.b32.xlu0 %v2272, %s2301
        %v2303 = vpop.permute.xlu0 %2302
        %s2305 = sor.u32 256, 64
        %2306 = vbcast.lane.b32.xlu0 %v2272, %s2305
        %v2307 = vpop.permute.xlu0 %2306
        %s2309 = sor.u32 256, 72
        %2310 = vbcast.lane.b32.xlu0 %v2272, %s2309
        %v2311 = vpop.permute.xlu0 %2310
        %s2313 = sor.u32 256, 80
        %2314 = vbcast.lane.b32.xlu0 %v2272, %s2313
        %v2315 = vpop.permute.xlu0 %2314
        %s2317 = sor.u32 256, 88
        %2318 = vbcast.lane.b32.xlu0 %v2272, %s2317
        %v2319 = vpop.permute.xlu0 %2318
        %s2321 = sor.u32 256, 96
        %2322 = vbcast.lane.b32.xlu0 %v2272, %s2321
        %v2323 = vpop.permute.xlu0 %2322
        %s2325 = sor.u32 256, 104
        %2326 = vbcast.lane.b32.xlu0 %v2272, %s2325
        %v2327 = vpop.permute.xlu0 %2326
        %s2329 = sor.u32 256, 112
        %2330 = vbcast.lane.b32.xlu0 %v2272, %s2329
        %v2331 = vpop.permute.xlu0 %2330
        %s2333 = sor.u32 256, 120
        %2334 = vbcast.lane.b32.xlu0 %v2272, %s2333
        %v2335 = vpop.permute.xlu0 %2334
        %v2336 = vlaneseq
        %v2337 = vshrl.u32 %v2336, 7
        %v2338 = vsub.s32 2, %v2337
        %v2339 = vrot.slane %v573, %v2338
        %2341 = vbcast.lane.b32.xlu0 %v2339, 256
        %v2342 = vpop.permute.xlu0 %2341
        %s2344 = sor.u32 256, 8
        %2345 = vbcast.lane.b32.xlu0 %v2339, %s2344
        %v2346 = vpop.permute.xlu0 %2345
        %s2348 = sor.u32 256, 16
        %2349 = vbcast.lane.b32.xlu0 %v2339, %s2348
        %v2350 = vpop.permute.xlu0 %2349
        %s2352 = sor.u32 256, 24
        %2353 = vbcast.lane.b32.xlu0 %v2339, %s2352
        %v2354 = vpop.permute.xlu0 %2353
        %s2356 = sor.u32 256, 32
        %2357 = vbcast.lane.b32.xlu0 %v2339, %s2356
        %v2358 = vpop.permute.xlu0 %2357
        %s2360 = sor.u32 256, 40
        %2361 = vbcast.lane.b32.xlu0 %v2339, %s2360
        %v2362 = vpop.permute.xlu0 %2361
        %s2364 = sor.u32 256, 48
        %2365 = vbcast.lane.b32.xlu0 %v2339, %s2364
        %v2366 = vpop.permute.xlu0 %2365
        %s2368 = sor.u32 256, 56
        %2369 = vbcast.lane.b32.xlu0 %v2339, %s2368
        %v2370 = vpop.permute.xlu0 %2369
        %s2372 = sor.u32 256, 64
        %2373 = vbcast.lane.b32.xlu0 %v2339, %s2372
        %v2374 = vpop.permute.xlu0 %2373
        %s2376 = sor.u32 256, 72
        %2377 = vbcast.lane.b32.xlu0 %v2339, %s2376
        %v2378 = vpop.permute.xlu0 %2377
        %s2380 = sor.u32 256, 80
        %2381 = vbcast.lane.b32.xlu0 %v2339, %s2380
        %v2382 = vpop.permute.xlu0 %2381
        %s2384 = sor.u32 256, 88
        %2385 = vbcast.lane.b32.xlu0 %v2339, %s2384
        %v2386 = vpop.permute.xlu0 %2385
        %s2388 = sor.u32 256, 96
        %2389 = vbcast.lane.b32.xlu0 %v2339, %s2388
        %v2390 = vpop.permute.xlu0 %2389
        %s2392 = sor.u32 256, 104
        %2393 = vbcast.lane.b32.xlu0 %v2339, %s2392
        %v2394 = vpop.permute.xlu0 %2393
        %s2396 = sor.u32 256, 112
        %2397 = vbcast.lane.b32.xlu0 %v2339, %s2396
        %v2398 = vpop.permute.xlu0 %2397
        %s2400 = sor.u32 256, 120
        %2401 = vbcast.lane.b32.xlu0 %v2339, %s2400
        %v2402 = vpop.permute.xlu0 %2401
        %v2403 = vlaneseq
        %v2404 = vshrl.u32 %v2403, 7
        %v2405 = vsub.s32 3, %v2404
        %v2406 = vrot.slane %v573, %v2405
        %2408 = vbcast.lane.b32.xlu0 %v2406, 256
        %v2409 = vpop.permute.xlu0 %2408
        %s2411 = sor.u32 256, 8
        %2412 = vbcast.lane.b32.xlu0 %v2406, %s2411
        %v2413 = vpop.permute.xlu0 %2412
        %s2415 = sor.u32 256, 16
        %2416 = vbcast.lane.b32.xlu0 %v2406, %s2415
        %v2417 = vpop.permute.xlu0 %2416
        %s2419 = sor.u32 256, 24
        %2420 = vbcast.lane.b32.xlu0 %v2406, %s2419
        %v2421 = vpop.permute.xlu0 %2420
        %s2423 = sor.u32 256, 32
        %2424 = vbcast.lane.b32.xlu0 %v2406, %s2423
        %v2425 = vpop.permute.xlu0 %2424
        %s2427 = sor.u32 256, 40
        %2428 = vbcast.lane.b32.xlu0 %v2406, %s2427
        %v2429 = vpop.permute.xlu0 %2428
        %s2431 = sor.u32 256, 48
        %2432 = vbcast.lane.b32.xlu0 %v2406, %s2431
        %v2433 = vpop.permute.xlu0 %2432
        %s2435 = sor.u32 256, 56
        %2436 = vbcast.lane.b32.xlu0 %v2406, %s2435
        %v2437 = vpop.permute.xlu0 %2436
        %s2439 = sor.u32 256, 64
        %2440 = vbcast.lane.b32.xlu0 %v2406, %s2439
        %v2441 = vpop.permute.xlu0 %2440
        %s2443 = sor.u32 256, 72
        %2444 = vbcast.lane.b32.xlu0 %v2406, %s2443
        %v2445 = vpop.permute.xlu0 %2444
        %s2447 = sor.u32 256, 80
        %2448 = vbcast.lane.b32.xlu0 %v2406, %s2447
        %v2449 = vpop.permute.xlu0 %2448
        %s2451 = sor.u32 256, 88
        %2452 = vbcast.lane.b32.xlu0 %v2406, %s2451
        %v2453 = vpop.permute.xlu0 %2452
        %s2455 = sor.u32 256, 96
        %2456 = vbcast.lane.b32.xlu0 %v2406, %s2455
        %v2457 = vpop.permute.xlu0 %2456
        %s2459 = sor.u32 256, 104
        %2460 = vbcast.lane.b32.xlu0 %v2406, %s2459
        %v2461 = vpop.permute.xlu0 %2460
        %s2463 = sor.u32 256, 112
        %2464 = vbcast.lane.b32.xlu0 %v2406, %s2463
        %v2465 = vpop.permute.xlu0 %2464
        %s2467 = sor.u32 256, 120
        %2468 = vbcast.lane.b32.xlu0 %v2406, %s2467
        %v2469 = vpop.permute.xlu0 %2468
        %v2470 = vlaneseq
        %v2471 = vshrl.u32 %v2470, 7
        %v2472 = vsub.s32 4, %v2471
        %v2473 = vrot.slane %v573, %v2472
        %2475 = vbcast.lane.b32.xlu0 %v2473, 256
        %v2476 = vpop.permute.xlu0 %2475
        %s2478 = sor.u32 256, 8
        %2479 = vbcast.lane.b32.xlu0 %v2473, %s2478
        %v2480 = vpop.permute.xlu0 %2479
        %s2482 = sor.u32 256, 16
        %2483 = vbcast.lane.b32.xlu0 %v2473, %s2482
        %v2484 = vpop.permute.xlu0 %2483
        %s2486 = sor.u32 256, 24
        %2487 = vbcast.lane.b32.xlu0 %v2473, %s2486
        %v2488 = vpop.permute.xlu0 %2487
        %s2490 = sor.u32 256, 32
        %2491 = vbcast.lane.b32.xlu0 %v2473, %s2490
        %v2492 = vpop.permute.xlu0 %2491
        %s2494 = sor.u32 256, 40
        %2495 = vbcast.lane.b32.xlu0 %v2473, %s2494
        %v2496 = vpop.permute.xlu0 %2495
        %s2498 = sor.u32 256, 48
        %2499 = vbcast.lane.b32.xlu0 %v2473, %s2498
        %v2500 = vpop.permute.xlu0 %2499
        %s2502 = sor.u32 256, 56
        %2503 = vbcast.lane.b32.xlu0 %v2473, %s2502
        %v2504 = vpop.permute.xlu0 %2503
        %s2506 = sor.u32 256, 64
        %2507 = vbcast.lane.b32.xlu0 %v2473, %s2506
        %v2508 = vpop.permute.xlu0 %2507
        %s2510 = sor.u32 256, 72
        %2511 = vbcast.lane.b32.xlu0 %v2473, %s2510
        %v2512 = vpop.permute.xlu0 %2511
        %s2514 = sor.u32 256, 80
        %2515 = vbcast.lane.b32.xlu0 %v2473, %s2514
        %v2516 = vpop.permute.xlu0 %2515
        %s2518 = sor.u32 256, 88
        %2519 = vbcast.lane.b32.xlu0 %v2473, %s2518
        %v2520 = vpop.permute.xlu0 %2519
        %s2522 = sor.u32 256, 96
        %2523 = vbcast.lane.b32.xlu0 %v2473, %s2522
        %v2524 = vpop.permute.xlu0 %2523
        %s2526 = sor.u32 256, 104
        %2527 = vbcast.lane.b32.xlu0 %v2473, %s2526
        %v2528 = vpop.permute.xlu0 %2527
        %s2530 = sor.u32 256, 112
        %2531 = vbcast.lane.b32.xlu0 %v2473, %s2530
        %v2532 = vpop.permute.xlu0 %2531
        %s2534 = sor.u32 256, 120
        %2535 = vbcast.lane.b32.xlu0 %v2473, %s2534
        %v2536 = vpop.permute.xlu0 %2535
        %v2537 = vlaneseq
        %v2538 = vshrl.u32 %v2537, 7
        %v2539 = vsub.s32 5, %v2538
        %v2540 = vrot.slane %v573, %v2539
        %2542 = vbcast.lane.b32.xlu0 %v2540, 256
        %v2543 = vpop.permute.xlu0 %2542
        %s2545 = sor.u32 256, 8
        %2546 = vbcast.lane.b32.xlu0 %v2540, %s2545
        %v2547 = vpop.permute.xlu0 %2546
        %s2549 = sor.u32 256, 16
        %2550 = vbcast.lane.b32.xlu0 %v2540, %s2549
        %v2551 = vpop.permute.xlu0 %2550
        %s2553 = sor.u32 256, 24
        %2554 = vbcast.lane.b32.xlu0 %v2540, %s2553
        %v2555 = vpop.permute.xlu0 %2554
        %s2557 = sor.u32 256, 32
        %2558 = vbcast.lane.b32.xlu0 %v2540, %s2557
        %v2559 = vpop.permute.xlu0 %2558
        %s2561 = sor.u32 256, 40
        %2562 = vbcast.lane.b32.xlu0 %v2540, %s2561
        %v2563 = vpop.permute.xlu0 %2562
        %s2565 = sor.u32 256, 48
        %2566 = vbcast.lane.b32.xlu0 %v2540, %s2565
        %v2567 = vpop.permute.xlu0 %2566
        %s2569 = sor.u32 256, 56
        %2570 = vbcast.lane.b32.xlu0 %v2540, %s2569
        %v2571 = vpop.permute.xlu0 %2570
        %s2573 = sor.u32 256, 64
        %2574 = vbcast.lane.b32.xlu0 %v2540, %s2573
        %v2575 = vpop.permute.xlu0 %2574
        %s2577 = sor.u32 256, 72
        %2578 = vbcast.lane.b32.xlu0 %v2540, %s2577
        %v2579 = vpop.permute.xlu0 %2578
        %s2581 = sor.u32 256, 80
        %2582 = vbcast.lane.b32.xlu0 %v2540, %s2581
        %v2583 = vpop.permute.xlu0 %2582
        %s2585 = sor.u32 256, 88
        %2586 = vbcast.lane.b32.xlu0 %v2540, %s2585
        %v2587 = vpop.permute.xlu0 %2586
        %s2589 = sor.u32 256, 96
        %2590 = vbcast.lane.b32.xlu0 %v2540, %s2589
        %v2591 = vpop.permute.xlu0 %2590
        %s2593 = sor.u32 256, 104
        %2594 = vbcast.lane.b32.xlu0 %v2540, %s2593
        %v2595 = vpop.permute.xlu0 %2594
        %s2597 = sor.u32 256, 112
        %2598 = vbcast.lane.b32.xlu0 %v2540, %s2597
        %v2599 = vpop.permute.xlu0 %2598
        %s2601 = sor.u32 256, 120
        %2602 = vbcast.lane.b32.xlu0 %v2540, %s2601
        %v2603 = vpop.permute.xlu0 %2602
        %v2604 = vlaneseq
        %v2605 = vshrl.u32 %v2604, 7
        %v2606 = vsub.s32 6, %v2605
        %v2607 = vrot.slane %v573, %v2606
        %2609 = vbcast.lane.b32.xlu0 %v2607, 256
        %v2610 = vpop.permute.xlu0 %2609
        %s2612 = sor.u32 256, 8
        %2613 = vbcast.lane.b32.xlu0 %v2607, %s2612
        %v2614 = vpop.permute.xlu0 %2613
        %s2616 = sor.u32 256, 16
        %2617 = vbcast.lane.b32.xlu0 %v2607, %s2616
        %v2618 = vpop.permute.xlu0 %2617
        %s2620 = sor.u32 256, 24
        %2621 = vbcast.lane.b32.xlu0 %v2607, %s2620
        %v2622 = vpop.permute.xlu0 %2621
        %s2624 = sor.u32 256, 32
        %2625 = vbcast.lane.b32.xlu0 %v2607, %s2624
        %v2626 = vpop.permute.xlu0 %2625
        %s2628 = sor.u32 256, 40
        %2629 = vbcast.lane.b32.xlu0 %v2607, %s2628
        %v2630 = vpop.permute.xlu0 %2629
        %s2632 = sor.u32 256, 48
        %2633 = vbcast.lane.b32.xlu0 %v2607, %s2632
        %v2634 = vpop.permute.xlu0 %2633
        %s2636 = sor.u32 256, 56
        %2637 = vbcast.lane.b32.xlu0 %v2607, %s2636
        %v2638 = vpop.permute.xlu0 %2637
        %s2640 = sor.u32 256, 64
        %2641 = vbcast.lane.b32.xlu0 %v2607, %s2640
        %v2642 = vpop.permute.xlu0 %2641
        %s2644 = sor.u32 256, 72
        %2645 = vbcast.lane.b32.xlu0 %v2607, %s2644
        %v2646 = vpop.permute.xlu0 %2645
        %s2648 = sor.u32 256, 80
        %2649 = vbcast.lane.b32.xlu0 %v2607, %s2648
        %v2650 = vpop.permute.xlu0 %2649
        %s2652 = sor.u32 256, 88
        %2653 = vbcast.lane.b32.xlu0 %v2607, %s2652
        %v2654 = vpop.permute.xlu0 %2653
        %s2656 = sor.u32 256, 96
        %2657 = vbcast.lane.b32.xlu0 %v2607, %s2656
        %v2658 = vpop.permute.xlu0 %2657
        %s2660 = sor.u32 256, 104
        %2661 = vbcast.lane.b32.xlu0 %v2607, %s2660
        %v2662 = vpop.permute.xlu0 %2661
        %s2664 = sor.u32 256, 112
        %2665 = vbcast.lane.b32.xlu0 %v2607, %s2664
        %v2666 = vpop.permute.xlu0 %2665
        %s2668 = sor.u32 256, 120
        %2669 = vbcast.lane.b32.xlu0 %v2607, %s2668
        %v2670 = vpop.permute.xlu0 %2669
        %v2671 = vlaneseq
        %v2672 = vshrl.u32 %v2671, 7
        %v2673 = vsub.s32 7, %v2672
        %v2674 = vrot.slane %v573, %v2673
        %2676 = vbcast.lane.b32.xlu0 %v2674, 256
        %v2677 = vpop.permute.xlu0 %2676
        %s2679 = sor.u32 256, 8
        %2680 = vbcast.lane.b32.xlu0 %v2674, %s2679
        %v2681 = vpop.permute.xlu0 %2680
        %s2683 = sor.u32 256, 16
        %2684 = vbcast.lane.b32.xlu0 %v2674, %s2683
        %v2685 = vpop.permute.xlu0 %2684
        %s2687 = sor.u32 256, 24
        %2688 = vbcast.lane.b32.xlu0 %v2674, %s2687
        %v2689 = vpop.permute.xlu0 %2688
        %s2691 = sor.u32 256, 32
        %2692 = vbcast.lane.b32.xlu0 %v2674, %s2691
        %v2693 = vpop.permute.xlu0 %2692
        %s2695 = sor.u32 256, 40
        %2696 = vbcast.lane.b32.xlu0 %v2674, %s2695
        %v2697 = vpop.permute.xlu0 %2696
        %s2699 = sor.u32 256, 48
        %2700 = vbcast.lane.b32.xlu0 %v2674, %s2699
        %v2701 = vpop.permute.xlu0 %2700
        %s2703 = sor.u32 256, 56
        %2704 = vbcast.lane.b32.xlu0 %v2674, %s2703
        %v2705 = vpop.permute.xlu0 %2704
        %s2707 = sor.u32 256, 64
        %2708 = vbcast.lane.b32.xlu0 %v2674, %s2707
        %v2709 = vpop.permute.xlu0 %2708
        %s2711 = sor.u32 256, 72
        %2712 = vbcast.lane.b32.xlu0 %v2674, %s2711
        %v2713 = vpop.permute.xlu0 %2712
        %s2715 = sor.u32 256, 80
        %2716 = vbcast.lane.b32.xlu0 %v2674, %s2715
        %v2717 = vpop.permute.xlu0 %2716
        %s2719 = sor.u32 256, 88
        %2720 = vbcast.lane.b32.xlu0 %v2674, %s2719
        %v2721 = vpop.permute.xlu0 %2720
        %s2723 = sor.u32 256, 96
        %2724 = vbcast.lane.b32.xlu0 %v2674, %s2723
        %v2725 = vpop.permute.xlu0 %2724
        %s2727 = sor.u32 256, 104
        %2728 = vbcast.lane.b32.xlu0 %v2674, %s2727
        %v2729 = vpop.permute.xlu0 %2728
        %s2731 = sor.u32 256, 112
        %2732 = vbcast.lane.b32.xlu0 %v2674, %s2731
        %v2733 = vpop.permute.xlu0 %2732
        %s2735 = sor.u32 256, 120
        %2736 = vbcast.lane.b32.xlu0 %v2674, %s2735
        %v2737 = vpop.permute.xlu0 %2736
        %v2738 = vlaneseq
        %v2739 = vshrl.u32 %v2738, 7
        %v2740 = vsub.s32 0, %v2739
        %v2741 = vrot.slane %v574, %v2740
        %2743 = vbcast.lane.b32.xlu0 %v2741, 256
        %v2744 = vpop.permute.xlu0 %2743
        %s2746 = sor.u32 256, 8
        %2747 = vbcast.lane.b32.xlu0 %v2741, %s2746
        %v2748 = vpop.permute.xlu0 %2747
        %s2750 = sor.u32 256, 16
        %2751 = vbcast.lane.b32.xlu0 %v2741, %s2750
        %v2752 = vpop.permute.xlu0 %2751
        %s2754 = sor.u32 256, 24
        %2755 = vbcast.lane.b32.xlu0 %v2741, %s2754
        %v2756 = vpop.permute.xlu0 %2755
        %s2758 = sor.u32 256, 32
        %2759 = vbcast.lane.b32.xlu0 %v2741, %s2758
        %v2760 = vpop.permute.xlu0 %2759
        %s2762 = sor.u32 256, 40
        %2763 = vbcast.lane.b32.xlu0 %v2741, %s2762
        %v2764 = vpop.permute.xlu0 %2763
        %s2766 = sor.u32 256, 48
        %2767 = vbcast.lane.b32.xlu0 %v2741, %s2766
        %v2768 = vpop.permute.xlu0 %2767
        %s2770 = sor.u32 256, 56
        %2771 = vbcast.lane.b32.xlu0 %v2741, %s2770
        %v2772 = vpop.permute.xlu0 %2771
        %s2774 = sor.u32 256, 64
        %2775 = vbcast.lane.b32.xlu0 %v2741, %s2774
        %v2776 = vpop.permute.xlu0 %2775
        %s2778 = sor.u32 256, 72
        %2779 = vbcast.lane.b32.xlu0 %v2741, %s2778
        %v2780 = vpop.permute.xlu0 %2779
        %s2782 = sor.u32 256, 80
        %2783 = vbcast.lane.b32.xlu0 %v2741, %s2782
        %v2784 = vpop.permute.xlu0 %2783
        %s2786 = sor.u32 256, 88
        %2787 = vbcast.lane.b32.xlu0 %v2741, %s2786
        %v2788 = vpop.permute.xlu0 %2787
        %s2790 = sor.u32 256, 96
        %2791 = vbcast.lane.b32.xlu0 %v2741, %s2790
        %v2792 = vpop.permute.xlu0 %2791
        %s2794 = sor.u32 256, 104
        %2795 = vbcast.lane.b32.xlu0 %v2741, %s2794
        %v2796 = vpop.permute.xlu0 %2795
        %s2798 = sor.u32 256, 112
        %2799 = vbcast.lane.b32.xlu0 %v2741, %s2798
        %v2800 = vpop.permute.xlu0 %2799
        %s2802 = sor.u32 256, 120
        %2803 = vbcast.lane.b32.xlu0 %v2741, %s2802
        %v2804 = vpop.permute.xlu0 %2803
        %v2805 = vlaneseq
        %v2806 = vshrl.u32 %v2805, 7
        %v2807 = vsub.s32 1, %v2806
        %v2808 = vrot.slane %v574, %v2807
        %2810 = vbcast.lane.b32.xlu0 %v2808, 256
        %v2811 = vpop.permute.xlu0 %2810
        %s2813 = sor.u32 256, 8
        %2814 = vbcast.lane.b32.xlu0 %v2808, %s2813
        %v2815 = vpop.permute.xlu0 %2814
        %s2817 = sor.u32 256, 16
        %2818 = vbcast.lane.b32.xlu0 %v2808, %s2817
        %v2819 = vpop.permute.xlu0 %2818
        %s2821 = sor.u32 256, 24
        %2822 = vbcast.lane.b32.xlu0 %v2808, %s2821
        %v2823 = vpop.permute.xlu0 %2822
        %s2825 = sor.u32 256, 32
        %2826 = vbcast.lane.b32.xlu0 %v2808, %s2825
        %v2827 = vpop.permute.xlu0 %2826
        %s2829 = sor.u32 256, 40
        %2830 = vbcast.lane.b32.xlu0 %v2808, %s2829
        %v2831 = vpop.permute.xlu0 %2830
        %s2833 = sor.u32 256, 48
        %2834 = vbcast.lane.b32.xlu0 %v2808, %s2833
        %v2835 = vpop.permute.xlu0 %2834
        %s2837 = sor.u32 256, 56
        %2838 = vbcast.lane.b32.xlu0 %v2808, %s2837
        %v2839 = vpop.permute.xlu0 %2838
        %s2841 = sor.u32 256, 64
        %2842 = vbcast.lane.b32.xlu0 %v2808, %s2841
        %v2843 = vpop.permute.xlu0 %2842
        %s2845 = sor.u32 256, 72
        %2846 = vbcast.lane.b32.xlu0 %v2808, %s2845
        %v2847 = vpop.permute.xlu0 %2846
        %s2849 = sor.u32 256, 80
        %2850 = vbcast.lane.b32.xlu0 %v2808, %s2849
        %v2851 = vpop.permute.xlu0 %2850
        %s2853 = sor.u32 256, 88
        %2854 = vbcast.lane.b32.xlu0 %v2808, %s2853
        %v2855 = vpop.permute.xlu0 %2854
        %s2857 = sor.u32 256, 96
        %2858 = vbcast.lane.b32.xlu0 %v2808, %s2857
        %v2859 = vpop.permute.xlu0 %2858
        %s2861 = sor.u32 256, 104
        %2862 = vbcast.lane.b32.xlu0 %v2808, %s2861
        %v2863 = vpop.permute.xlu0 %2862
        %s2865 = sor.u32 256, 112
        %2866 = vbcast.lane.b32.xlu0 %v2808, %s2865
        %v2867 = vpop.permute.xlu0 %2866
        %s2869 = sor.u32 256, 120
        %2870 = vbcast.lane.b32.xlu0 %v2808, %s2869
        %v2871 = vpop.permute.xlu0 %2870
        %v2872 = vlaneseq
        %v2873 = vshrl.u32 %v2872, 7
        %v2874 = vsub.s32 2, %v2873
        %v2875 = vrot.slane %v574, %v2874
        %2877 = vbcast.lane.b32.xlu0 %v2875, 256
        %v2878 = vpop.permute.xlu0 %2877
        %s2880 = sor.u32 256, 8
        %2881 = vbcast.lane.b32.xlu0 %v2875, %s2880
        %v2882 = vpop.permute.xlu0 %2881
        %s2884 = sor.u32 256, 16
        %2885 = vbcast.lane.b32.xlu0 %v2875, %s2884
        %v2886 = vpop.permute.xlu0 %2885
        %s2888 = sor.u32 256, 24
        %2889 = vbcast.lane.b32.xlu0 %v2875, %s2888
        %v2890 = vpop.permute.xlu0 %2889
        %s2892 = sor.u32 256, 32
        %2893 = vbcast.lane.b32.xlu0 %v2875, %s2892
        %v2894 = vpop.permute.xlu0 %2893
        %s2896 = sor.u32 256, 40
        %2897 = vbcast.lane.b32.xlu0 %v2875, %s2896
        %v2898 = vpop.permute.xlu0 %2897
        %s2900 = sor.u32 256, 48
        %2901 = vbcast.lane.b32.xlu0 %v2875, %s2900
        %v2902 = vpop.permute.xlu0 %2901
        %s2904 = sor.u32 256, 56
        %2905 = vbcast.lane.b32.xlu0 %v2875, %s2904
        %v2906 = vpop.permute.xlu0 %2905
        %s2908 = sor.u32 256, 64
        %2909 = vbcast.lane.b32.xlu0 %v2875, %s2908
        %v2910 = vpop.permute.xlu0 %2909
        %s2912 = sor.u32 256, 72
        %2913 = vbcast.lane.b32.xlu0 %v2875, %s2912
        %v2914 = vpop.permute.xlu0 %2913
        %s2916 = sor.u32 256, 80
        %2917 = vbcast.lane.b32.xlu0 %v2875, %s2916
        %v2918 = vpop.permute.xlu0 %2917
        %s2920 = sor.u32 256, 88
        %2921 = vbcast.lane.b32.xlu0 %v2875, %s2920
        %v2922 = vpop.permute.xlu0 %2921
        %s2924 = sor.u32 256, 96
        %2925 = vbcast.lane.b32.xlu0 %v2875, %s2924
        %v2926 = vpop.permute.xlu0 %2925
        %s2928 = sor.u32 256, 104
        %2929 = vbcast.lane.b32.xlu0 %v2875, %s2928
        %v2930 = vpop.permute.xlu0 %2929
        %s2932 = sor.u32 256, 112
        %2933 = vbcast.lane.b32.xlu0 %v2875, %s2932
        %v2934 = vpop.permute.xlu0 %2933
        %s2936 = sor.u32 256, 120
        %2937 = vbcast.lane.b32.xlu0 %v2875, %s2936
        %v2938 = vpop.permute.xlu0 %2937
        %v2939 = vlaneseq
        %v2940 = vshrl.u32 %v2939, 7
        %v2941 = vsub.s32 3, %v2940
        %v2942 = vrot.slane %v574, %v2941
        %2944 = vbcast.lane.b32.xlu0 %v2942, 256
        %v2945 = vpop.permute.xlu0 %2944
        %s2947 = sor.u32 256, 8
        %2948 = vbcast.lane.b32.xlu0 %v2942, %s2947
        %v2949 = vpop.permute.xlu0 %2948
        %s2951 = sor.u32 256, 16
        %2952 = vbcast.lane.b32.xlu0 %v2942, %s2951
        %v2953 = vpop.permute.xlu0 %2952
        %s2955 = sor.u32 256, 24
        %2956 = vbcast.lane.b32.xlu0 %v2942, %s2955
        %v2957 = vpop.permute.xlu0 %2956
        %s2959 = sor.u32 256, 32
        %2960 = vbcast.lane.b32.xlu0 %v2942, %s2959
        %v2961 = vpop.permute.xlu0 %2960
        %s2963 = sor.u32 256, 40
        %2964 = vbcast.lane.b32.xlu0 %v2942, %s2963
        %v2965 = vpop.permute.xlu0 %2964
        %s2967 = sor.u32 256, 48
        %2968 = vbcast.lane.b32.xlu0 %v2942, %s2967
        %v2969 = vpop.permute.xlu0 %2968
        %s2971 = sor.u32 256, 56
        %2972 = vbcast.lane.b32.xlu0 %v2942, %s2971
        %v2973 = vpop.permute.xlu0 %2972
        %s2975 = sor.u32 256, 64
        %2976 = vbcast.lane.b32.xlu0 %v2942, %s2975
        %v2977 = vpop.permute.xlu0 %2976
        %s2979 = sor.u32 256, 72
        %2980 = vbcast.lane.b32.xlu0 %v2942, %s2979
        %v2981 = vpop.permute.xlu0 %2980
        %s2983 = sor.u32 256, 80
        %2984 = vbcast.lane.b32.xlu0 %v2942, %s2983
        %v2985 = vpop.permute.xlu0 %2984
        %s2987 = sor.u32 256, 88
        %2988 = vbcast.lane.b32.xlu0 %v2942, %s2987
        %v2989 = vpop.permute.xlu0 %2988
        %s2991 = sor.u32 256, 96
        %2992 = vbcast.lane.b32.xlu0 %v2942, %s2991
        %v2993 = vpop.permute.xlu0 %2992
        %s2995 = sor.u32 256, 104
        %2996 = vbcast.lane.b32.xlu0 %v2942, %s2995
        %v2997 = vpop.permute.xlu0 %2996
        %s2999 = sor.u32 256, 112
        %3000 = vbcast.lane.b32.xlu0 %v2942, %s2999
        %v3001 = vpop.permute.xlu0 %3000
        %s3003 = sor.u32 256, 120
        %3004 = vbcast.lane.b32.xlu0 %v2942, %s3003
        %v3005 = vpop.permute.xlu0 %3004
        %v3006 = vlaneseq
        %v3007 = vshrl.u32 %v3006, 7
        %v3008 = vsub.s32 4, %v3007
        %v3009 = vrot.slane %v574, %v3008
        %3011 = vbcast.lane.b32.xlu0 %v3009, 256
        %v3012 = vpop.permute.xlu0 %3011
        %s3014 = sor.u32 256, 8
        %3015 = vbcast.lane.b32.xlu0 %v3009, %s3014
        %v3016 = vpop.permute.xlu0 %3015
        %s3018 = sor.u32 256, 16
        %3019 = vbcast.lane.b32.xlu0 %v3009, %s3018
        %v3020 = vpop.permute.xlu0 %3019
        %s3022 = sor.u32 256, 24
        %3023 = vbcast.lane.b32.xlu0 %v3009, %s3022
        %v3024 = vpop.permute.xlu0 %3023
        %s3026 = sor.u32 256, 32
        %3027 = vbcast.lane.b32.xlu0 %v3009, %s3026
        %v3028 = vpop.permute.xlu0 %3027
        %s3030 = sor.u32 256, 40
        %3031 = vbcast.lane.b32.xlu0 %v3009, %s3030
        %v3032 = vpop.permute.xlu0 %3031
        %s3034 = sor.u32 256, 48
        %3035 = vbcast.lane.b32.xlu0 %v3009, %s3034
        %v3036 = vpop.permute.xlu0 %3035
        %s3038 = sor.u32 256, 56
        %3039 = vbcast.lane.b32.xlu0 %v3009, %s3038
        %v3040 = vpop.permute.xlu0 %3039
        %s3042 = sor.u32 256, 64
        %3043 = vbcast.lane.b32.xlu0 %v3009, %s3042
        %v3044 = vpop.permute.xlu0 %3043
        %s3046 = sor.u32 256, 72
        %3047 = vbcast.lane.b32.xlu0 %v3009, %s3046
        %v3048 = vpop.permute.xlu0 %3047
        %s3050 = sor.u32 256, 80
        %3051 = vbcast.lane.b32.xlu0 %v3009, %s3050
        %v3052 = vpop.permute.xlu0 %3051
        %s3054 = sor.u32 256, 88
        %3055 = vbcast.lane.b32.xlu0 %v3009, %s3054
        %v3056 = vpop.permute.xlu0 %3055
        %s3058 = sor.u32 256, 96
        %3059 = vbcast.lane.b32.xlu0 %v3009, %s3058
        %v3060 = vpop.permute.xlu0 %3059
        %s3062 = sor.u32 256, 104
        %3063 = vbcast.lane.b32.xlu0 %v3009, %s3062
        %v3064 = vpop.permute.xlu0 %3063
        %s3066 = sor.u32 256, 112
        %3067 = vbcast.lane.b32.xlu0 %v3009, %s3066
        %v3068 = vpop.permute.xlu0 %3067
        %s3070 = sor.u32 256, 120
        %3071 = vbcast.lane.b32.xlu0 %v3009, %s3070
        %v3072 = vpop.permute.xlu0 %3071
        %v3073 = vlaneseq
        %v3074 = vshrl.u32 %v3073, 7
        %v3075 = vsub.s32 5, %v3074
        %v3076 = vrot.slane %v574, %v3075
        %3078 = vbcast.lane.b32.xlu0 %v3076, 256
        %v3079 = vpop.permute.xlu0 %3078
        %s3081 = sor.u32 256, 8
        %3082 = vbcast.lane.b32.xlu0 %v3076, %s3081
        %v3083 = vpop.permute.xlu0 %3082
        %s3085 = sor.u32 256, 16
        %3086 = vbcast.lane.b32.xlu0 %v3076, %s3085
        %v3087 = vpop.permute.xlu0 %3086
        %s3089 = sor.u32 256, 24
        %3090 = vbcast.lane.b32.xlu0 %v3076, %s3089
        %v3091 = vpop.permute.xlu0 %3090
        %s3093 = sor.u32 256, 32
        %3094 = vbcast.lane.b32.xlu0 %v3076, %s3093
        %v3095 = vpop.permute.xlu0 %3094
        %s3097 = sor.u32 256, 40
        %3098 = vbcast.lane.b32.xlu0 %v3076, %s3097
        %v3099 = vpop.permute.xlu0 %3098
        %s3101 = sor.u32 256, 48
        %3102 = vbcast.lane.b32.xlu0 %v3076, %s3101
        %v3103 = vpop.permute.xlu0 %3102
        %s3105 = sor.u32 256, 56
        %3106 = vbcast.lane.b32.xlu0 %v3076, %s3105
        %v3107 = vpop.permute.xlu0 %3106
        %s3109 = sor.u32 256, 64
        %3110 = vbcast.lane.b32.xlu0 %v3076, %s3109
        %v3111 = vpop.permute.xlu0 %3110
        %s3113 = sor.u32 256, 72
        %3114 = vbcast.lane.b32.xlu0 %v3076, %s3113
        %v3115 = vpop.permute.xlu0 %3114
        %s3117 = sor.u32 256, 80
        %3118 = vbcast.lane.b32.xlu0 %v3076, %s3117
        %v3119 = vpop.permute.xlu0 %3118
        %s3121 = sor.u32 256, 88
        %3122 = vbcast.lane.b32.xlu0 %v3076, %s3121
        %v3123 = vpop.permute.xlu0 %3122
        %s3125 = sor.u32 256, 96
        %3126 = vbcast.lane.b32.xlu0 %v3076, %s3125
        %v3127 = vpop.permute.xlu0 %3126
        %s3129 = sor.u32 256, 104
        %3130 = vbcast.lane.b32.xlu0 %v3076, %s3129
        %v3131 = vpop.permute.xlu0 %3130
        %s3133 = sor.u32 256, 112
        %3134 = vbcast.lane.b32.xlu0 %v3076, %s3133
        %v3135 = vpop.permute.xlu0 %3134
        %s3137 = sor.u32 256, 120
        %3138 = vbcast.lane.b32.xlu0 %v3076, %s3137
        %v3139 = vpop.permute.xlu0 %3138
        %v3140 = vlaneseq
        %v3141 = vshrl.u32 %v3140, 7
        %v3142 = vsub.s32 6, %v3141
        %v3143 = vrot.slane %v574, %v3142
        %3145 = vbcast.lane.b32.xlu0 %v3143, 256
        %v3146 = vpop.permute.xlu0 %3145
        %s3148 = sor.u32 256, 8
        %3149 = vbcast.lane.b32.xlu0 %v3143, %s3148
        %v3150 = vpop.permute.xlu0 %3149
        %s3152 = sor.u32 256, 16
        %3153 = vbcast.lane.b32.xlu0 %v3143, %s3152
        %v3154 = vpop.permute.xlu0 %3153
        %s3156 = sor.u32 256, 24
        %3157 = vbcast.lane.b32.xlu0 %v3143, %s3156
        %v3158 = vpop.permute.xlu0 %3157
        %s3160 = sor.u32 256, 32
        %3161 = vbcast.lane.b32.xlu0 %v3143, %s3160
        %v3162 = vpop.permute.xlu0 %3161
        %s3164 = sor.u32 256, 40
        %3165 = vbcast.lane.b32.xlu0 %v3143, %s3164
        %v3166 = vpop.permute.xlu0 %3165
        %s3168 = sor.u32 256, 48
        %3169 = vbcast.lane.b32.xlu0 %v3143, %s3168
        %v3170 = vpop.permute.xlu0 %3169
        %s3172 = sor.u32 256, 56
        %3173 = vbcast.lane.b32.xlu0 %v3143, %s3172
        %v3174 = vpop.permute.xlu0 %3173
        %s3176 = sor.u32 256, 64
        %3177 = vbcast.lane.b32.xlu0 %v3143, %s3176
        %v3178 = vpop.permute.xlu0 %3177
        %s3180 = sor.u32 256, 72
        %3181 = vbcast.lane.b32.xlu0 %v3143, %s3180
        %v3182 = vpop.permute.xlu0 %3181
        %s3184 = sor.u32 256, 80
        %3185 = vbcast.lane.b32.xlu0 %v3143, %s3184
        %v3186 = vpop.permute.xlu0 %3185
        %s3188 = sor.u32 256, 88
        %3189 = vbcast.lane.b32.xlu0 %v3143, %s3188
        %v3190 = vpop.permute.xlu0 %3189
        %s3192 = sor.u32 256, 96
        %3193 = vbcast.lane.b32.xlu0 %v3143, %s3192
        %v3194 = vpop.permute.xlu0 %3193
        %s3196 = sor.u32 256, 104
        %3197 = vbcast.lane.b32.xlu0 %v3143, %s3196
        %v3198 = vpop.permute.xlu0 %3197
        %s3200 = sor.u32 256, 112
        %3201 = vbcast.lane.b32.xlu0 %v3143, %s3200
        %v3202 = vpop.permute.xlu0 %3201
        %s3204 = sor.u32 256, 120
        %3205 = vbcast.lane.b32.xlu0 %v3143, %s3204
        %v3206 = vpop.permute.xlu0 %3205
        %v3207 = vlaneseq
        %v3208 = vshrl.u32 %v3207, 7
        %v3209 = vsub.s32 7, %v3208
        %v3210 = vrot.slane %v574, %v3209
        %3212 = vbcast.lane.b32.xlu0 %v3210, 256
        %v3213 = vpop.permute.xlu0 %3212
        %s3215 = sor.u32 256, 8
        %3216 = vbcast.lane.b32.xlu0 %v3210, %s3215
        %v3217 = vpop.permute.xlu0 %3216
        %s3219 = sor.u32 256, 16
        %3220 = vbcast.lane.b32.xlu0 %v3210, %s3219
        %v3221 = vpop.permute.xlu0 %3220
        %s3223 = sor.u32 256, 24
        %3224 = vbcast.lane.b32.xlu0 %v3210, %s3223
        %v3225 = vpop.permute.xlu0 %3224
        %s3227 = sor.u32 256, 32
        %3228 = vbcast.lane.b32.xlu0 %v3210, %s3227
        %v3229 = vpop.permute.xlu0 %3228
        %s3231 = sor.u32 256, 40
        %3232 = vbcast.lane.b32.xlu0 %v3210, %s3231
        %v3233 = vpop.permute.xlu0 %3232
        %s3235 = sor.u32 256, 48
        %3236 = vbcast.lane.b32.xlu0 %v3210, %s3235
        %v3237 = vpop.permute.xlu0 %3236
        %s3239 = sor.u32 256, 56
        %3240 = vbcast.lane.b32.xlu0 %v3210, %s3239
        %v3241 = vpop.permute.xlu0 %3240
        %s3243 = sor.u32 256, 64
        %3244 = vbcast.lane.b32.xlu0 %v3210, %s3243
        %v3245 = vpop.permute.xlu0 %3244
        %s3247 = sor.u32 256, 72
        %3248 = vbcast.lane.b32.xlu0 %v3210, %s3247
        %v3249 = vpop.permute.xlu0 %3248
        %s3251 = sor.u32 256, 80
        %3252 = vbcast.lane.b32.xlu0 %v3210, %s3251
        %v3253 = vpop.permute.xlu0 %3252
        %s3255 = sor.u32 256, 88
        %3256 = vbcast.lane.b32.xlu0 %v3210, %s3255
        %v3257 = vpop.permute.xlu0 %3256
        %s3259 = sor.u32 256, 96
        %3260 = vbcast.lane.b32.xlu0 %v3210, %s3259
        %v3261 = vpop.permute.xlu0 %3260
        %s3263 = sor.u32 256, 104
        %3264 = vbcast.lane.b32.xlu0 %v3210, %s3263
        %v3265 = vpop.permute.xlu0 %3264
        %s3267 = sor.u32 256, 112
        %3268 = vbcast.lane.b32.xlu0 %v3210, %s3267
        %v3269 = vpop.permute.xlu0 %3268
        %s3271 = sor.u32 256, 120
        %3272 = vbcast.lane.b32.xlu0 %v3210, %s3271
        %v3273 = vpop.permute.xlu0 %3272
        %v3274 = vlaneseq
        %v3275 = vshrl.u32 %v3274, 7
        %v3276 = vsub.s32 0, %v3275
        %v3277 = vrot.slane %v575, %v3276
        %3279 = vbcast.lane.b32.xlu0 %v3277, 256
        %v3280 = vpop.permute.xlu0 %3279
        %s3282 = sor.u32 256, 8
        %3283 = vbcast.lane.b32.xlu0 %v3277, %s3282
        %v3284 = vpop.permute.xlu0 %3283
        %s3286 = sor.u32 256, 16
        %3287 = vbcast.lane.b32.xlu0 %v3277, %s3286
        %v3288 = vpop.permute.xlu0 %3287
        %s3290 = sor.u32 256, 24
        %3291 = vbcast.lane.b32.xlu0 %v3277, %s3290
        %v3292 = vpop.permute.xlu0 %3291
        %s3294 = sor.u32 256, 32
        %3295 = vbcast.lane.b32.xlu0 %v3277, %s3294
        %v3296 = vpop.permute.xlu0 %3295
        %s3298 = sor.u32 256, 40
        %3299 = vbcast.lane.b32.xlu0 %v3277, %s3298
        %v3300 = vpop.permute.xlu0 %3299
        %s3302 = sor.u32 256, 48
        %3303 = vbcast.lane.b32.xlu0 %v3277, %s3302
        %v3304 = vpop.permute.xlu0 %3303
        %s3306 = sor.u32 256, 56
        %3307 = vbcast.lane.b32.xlu0 %v3277, %s3306
        %v3308 = vpop.permute.xlu0 %3307
        %s3310 = sor.u32 256, 64
        %3311 = vbcast.lane.b32.xlu0 %v3277, %s3310
        %v3312 = vpop.permute.xlu0 %3311
        %s3314 = sor.u32 256, 72
        %3315 = vbcast.lane.b32.xlu0 %v3277, %s3314
        %v3316 = vpop.permute.xlu0 %3315
        %s3318 = sor.u32 256, 80
        %3319 = vbcast.lane.b32.xlu0 %v3277, %s3318
        %v3320 = vpop.permute.xlu0 %3319
        %s3322 = sor.u32 256, 88
        %3323 = vbcast.lane.b32.xlu0 %v3277, %s3322
        %v3324 = vpop.permute.xlu0 %3323
        %s3326 = sor.u32 256, 96
        %3327 = vbcast.lane.b32.xlu0 %v3277, %s3326
        %v3328 = vpop.permute.xlu0 %3327
        %s3330 = sor.u32 256, 104
        %3331 = vbcast.lane.b32.xlu0 %v3277, %s3330
        %v3332 = vpop.permute.xlu0 %3331
        %s3334 = sor.u32 256, 112
        %3335 = vbcast.lane.b32.xlu0 %v3277, %s3334
        %v3336 = vpop.permute.xlu0 %3335
        %s3338 = sor.u32 256, 120
        %3339 = vbcast.lane.b32.xlu0 %v3277, %s3338
        %v3340 = vpop.permute.xlu0 %3339
        %v3341 = vlaneseq
        %v3342 = vshrl.u32 %v3341, 7
        %v3343 = vsub.s32 1, %v3342
        %v3344 = vrot.slane %v575, %v3343
        %3346 = vbcast.lane.b32.xlu0 %v3344, 256
        %v3347 = vpop.permute.xlu0 %3346
        %s3349 = sor.u32 256, 8
        %3350 = vbcast.lane.b32.xlu0 %v3344, %s3349
        %v3351 = vpop.permute.xlu0 %3350
        %s3353 = sor.u32 256, 16
        %3354 = vbcast.lane.b32.xlu0 %v3344, %s3353
        %v3355 = vpop.permute.xlu0 %3354
        %s3357 = sor.u32 256, 24
        %3358 = vbcast.lane.b32.xlu0 %v3344, %s3357
        %v3359 = vpop.permute.xlu0 %3358
        %s3361 = sor.u32 256, 32
        %3362 = vbcast.lane.b32.xlu0 %v3344, %s3361
        %v3363 = vpop.permute.xlu0 %3362
        %s3365 = sor.u32 256, 40
        %3366 = vbcast.lane.b32.xlu0 %v3344, %s3365
        %v3367 = vpop.permute.xlu0 %3366
        %s3369 = sor.u32 256, 48
        %3370 = vbcast.lane.b32.xlu0 %v3344, %s3369
        %v3371 = vpop.permute.xlu0 %3370
        %s3373 = sor.u32 256, 56
        %3374 = vbcast.lane.b32.xlu0 %v3344, %s3373
        %v3375 = vpop.permute.xlu0 %3374
        %s3377 = sor.u32 256, 64
        %3378 = vbcast.lane.b32.xlu0 %v3344, %s3377
        %v3379 = vpop.permute.xlu0 %3378
        %s3381 = sor.u32 256, 72
        %3382 = vbcast.lane.b32.xlu0 %v3344, %s3381
        %v3383 = vpop.permute.xlu0 %3382
        %s3385 = sor.u32 256, 80
        %3386 = vbcast.lane.b32.xlu0 %v3344, %s3385
        %v3387 = vpop.permute.xlu0 %3386
        %s3389 = sor.u32 256, 88
        %3390 = vbcast.lane.b32.xlu0 %v3344, %s3389
        %v3391 = vpop.permute.xlu0 %3390
        %s3393 = sor.u32 256, 96
        %3394 = vbcast.lane.b32.xlu0 %v3344, %s3393
        %v3395 = vpop.permute.xlu0 %3394
        %s3397 = sor.u32 256, 104
        %3398 = vbcast.lane.b32.xlu0 %v3344, %s3397
        %v3399 = vpop.permute.xlu0 %3398
        %s3401 = sor.u32 256, 112
        %3402 = vbcast.lane.b32.xlu0 %v3344, %s3401
        %v3403 = vpop.permute.xlu0 %3402
        %s3405 = sor.u32 256, 120
        %3406 = vbcast.lane.b32.xlu0 %v3344, %s3405
        %v3407 = vpop.permute.xlu0 %3406
        %v3408 = vlaneseq
        %v3409 = vshrl.u32 %v3408, 7
        %v3410 = vsub.s32 2, %v3409
        %v3411 = vrot.slane %v575, %v3410
        %3413 = vbcast.lane.b32.xlu0 %v3411, 256
        %v3414 = vpop.permute.xlu0 %3413
        %s3416 = sor.u32 256, 8
        %3417 = vbcast.lane.b32.xlu0 %v3411, %s3416
        %v3418 = vpop.permute.xlu0 %3417
        %s3420 = sor.u32 256, 16
        %3421 = vbcast.lane.b32.xlu0 %v3411, %s3420
        %v3422 = vpop.permute.xlu0 %3421
        %s3424 = sor.u32 256, 24
        %3425 = vbcast.lane.b32.xlu0 %v3411, %s3424
        %v3426 = vpop.permute.xlu0 %3425
        %s3428 = sor.u32 256, 32
        %3429 = vbcast.lane.b32.xlu0 %v3411, %s3428
        %v3430 = vpop.permute.xlu0 %3429
        %s3432 = sor.u32 256, 40
        %3433 = vbcast.lane.b32.xlu0 %v3411, %s3432
        %v3434 = vpop.permute.xlu0 %3433
        %s3436 = sor.u32 256, 48
        %3437 = vbcast.lane.b32.xlu0 %v3411, %s3436
        %v3438 = vpop.permute.xlu0 %3437
        %s3440 = sor.u32 256, 56
        %3441 = vbcast.lane.b32.xlu0 %v3411, %s3440
        %v3442 = vpop.permute.xlu0 %3441
        %s3444 = sor.u32 256, 64
        %3445 = vbcast.lane.b32.xlu0 %v3411, %s3444
        %v3446 = vpop.permute.xlu0 %3445
        %s3448 = sor.u32 256, 72
        %3449 = vbcast.lane.b32.xlu0 %v3411, %s3448
        %v3450 = vpop.permute.xlu0 %3449
        %s3452 = sor.u32 256, 80
        %3453 = vbcast.lane.b32.xlu0 %v3411, %s3452
        %v3454 = vpop.permute.xlu0 %3453
        %s3456 = sor.u32 256, 88
        %3457 = vbcast.lane.b32.xlu0 %v3411, %s3456
        %v3458 = vpop.permute.xlu0 %3457
        %s3460 = sor.u32 256, 96
        %3461 = vbcast.lane.b32.xlu0 %v3411, %s3460
        %v3462 = vpop.permute.xlu0 %3461
        %s3464 = sor.u32 256, 104
        %3465 = vbcast.lane.b32.xlu0 %v3411, %s3464
        %v3466 = vpop.permute.xlu0 %3465
        %s3468 = sor.u32 256, 112
        %3469 = vbcast.lane.b32.xlu0 %v3411, %s3468
        %v3470 = vpop.permute.xlu0 %3469
        %s3472 = sor.u32 256, 120
        %3473 = vbcast.lane.b32.xlu0 %v3411, %s3472
        %v3474 = vpop.permute.xlu0 %3473
        %v3475 = vlaneseq
        %v3476 = vshrl.u32 %v3475, 7
        %v3477 = vsub.s32 3, %v3476
        %v3478 = vrot.slane %v575, %v3477
        %3480 = vbcast.lane.b32.xlu0 %v3478, 256
        %v3481 = vpop.permute.xlu0 %3480
        %s3483 = sor.u32 256, 8
        %3484 = vbcast.lane.b32.xlu0 %v3478, %s3483
        %v3485 = vpop.permute.xlu0 %3484
        %s3487 = sor.u32 256, 16
        %3488 = vbcast.lane.b32.xlu0 %v3478, %s3487
        %v3489 = vpop.permute.xlu0 %3488
        %s3491 = sor.u32 256, 24
        %3492 = vbcast.lane.b32.xlu0 %v3478, %s3491
        %v3493 = vpop.permute.xlu0 %3492
        %s3495 = sor.u32 256, 32
        %3496 = vbcast.lane.b32.xlu0 %v3478, %s3495
        %v3497 = vpop.permute.xlu0 %3496
        %s3499 = sor.u32 256, 40
        %3500 = vbcast.lane.b32.xlu0 %v3478, %s3499
        %v3501 = vpop.permute.xlu0 %3500
        %s3503 = sor.u32 256, 48
        %3504 = vbcast.lane.b32.xlu0 %v3478, %s3503
        %v3505 = vpop.permute.xlu0 %3504
        %s3507 = sor.u32 256, 56
        %3508 = vbcast.lane.b32.xlu0 %v3478, %s3507
        %v3509 = vpop.permute.xlu0 %3508
        %s3511 = sor.u32 256, 64
        %3512 = vbcast.lane.b32.xlu0 %v3478, %s3511
        %v3513 = vpop.permute.xlu0 %3512
        %s3515 = sor.u32 256, 72
        %3516 = vbcast.lane.b32.xlu0 %v3478, %s3515
        %v3517 = vpop.permute.xlu0 %3516
        %s3519 = sor.u32 256, 80
        %3520 = vbcast.lane.b32.xlu0 %v3478, %s3519
        %v3521 = vpop.permute.xlu0 %3520
        %s3523 = sor.u32 256, 88
        %3524 = vbcast.lane.b32.xlu0 %v3478, %s3523
        %v3525 = vpop.permute.xlu0 %3524
        %s3527 = sor.u32 256, 96
        %3528 = vbcast.lane.b32.xlu0 %v3478, %s3527
        %v3529 = vpop.permute.xlu0 %3528
        %s3531 = sor.u32 256, 104
        %3532 = vbcast.lane.b32.xlu0 %v3478, %s3531
        %v3533 = vpop.permute.xlu0 %3532
        %s3535 = sor.u32 256, 112
        %3536 = vbcast.lane.b32.xlu0 %v3478, %s3535
        %v3537 = vpop.permute.xlu0 %3536
        %s3539 = sor.u32 256, 120
        %3540 = vbcast.lane.b32.xlu0 %v3478, %s3539
        %v3541 = vpop.permute.xlu0 %3540
        %v3542 = vlaneseq
        %v3543 = vshrl.u32 %v3542, 7
        %v3544 = vsub.s32 4, %v3543
        %v3545 = vrot.slane %v575, %v3544
        %3547 = vbcast.lane.b32.xlu0 %v3545, 256
        %v3548 = vpop.permute.xlu0 %3547
        %s3550 = sor.u32 256, 8
        %3551 = vbcast.lane.b32.xlu0 %v3545, %s3550
        %v3552 = vpop.permute.xlu0 %3551
        %s3554 = sor.u32 256, 16
        %3555 = vbcast.lane.b32.xlu0 %v3545, %s3554
        %v3556 = vpop.permute.xlu0 %3555
        %s3558 = sor.u32 256, 24
        %3559 = vbcast.lane.b32.xlu0 %v3545, %s3558
        %v3560 = vpop.permute.xlu0 %3559
        %s3562 = sor.u32 256, 32
        %3563 = vbcast.lane.b32.xlu0 %v3545, %s3562
        %v3564 = vpop.permute.xlu0 %3563
        %s3566 = sor.u32 256, 40
        %3567 = vbcast.lane.b32.xlu0 %v3545, %s3566
        %v3568 = vpop.permute.xlu0 %3567
        %s3570 = sor.u32 256, 48
        %3571 = vbcast.lane.b32.xlu0 %v3545, %s3570
        %v3572 = vpop.permute.xlu0 %3571
        %s3574 = sor.u32 256, 56
        %3575 = vbcast.lane.b32.xlu0 %v3545, %s3574
        %v3576 = vpop.permute.xlu0 %3575
        %s3578 = sor.u32 256, 64
        %3579 = vbcast.lane.b32.xlu0 %v3545, %s3578
        %v3580 = vpop.permute.xlu0 %3579
        %s3582 = sor.u32 256, 72
        %3583 = vbcast.lane.b32.xlu0 %v3545, %s3582
        %v3584 = vpop.permute.xlu0 %3583
        %s3586 = sor.u32 256, 80
        %3587 = vbcast.lane.b32.xlu0 %v3545, %s3586
        %v3588 = vpop.permute.xlu0 %3587
        %s3590 = sor.u32 256, 88
        %3591 = vbcast.lane.b32.xlu0 %v3545, %s3590
        %v3592 = vpop.permute.xlu0 %3591
        %s3594 = sor.u32 256, 96
        %3595 = vbcast.lane.b32.xlu0 %v3545, %s3594
        %v3596 = vpop.permute.xlu0 %3595
        %s3598 = sor.u32 256, 104
        %3599 = vbcast.lane.b32.xlu0 %v3545, %s3598
        %v3600 = vpop.permute.xlu0 %3599
        %s3602 = sor.u32 256, 112
        %3603 = vbcast.lane.b32.xlu0 %v3545, %s3602
        %v3604 = vpop.permute.xlu0 %3603
        %s3606 = sor.u32 256, 120
        %3607 = vbcast.lane.b32.xlu0 %v3545, %s3606
        %v3608 = vpop.permute.xlu0 %3607
        %v3609 = vlaneseq
        %v3610 = vshrl.u32 %v3609, 7
        %v3611 = vsub.s32 5, %v3610
        %v3612 = vrot.slane %v575, %v3611
        %3614 = vbcast.lane.b32.xlu0 %v3612, 256
        %v3615 = vpop.permute.xlu0 %3614
        %s3617 = sor.u32 256, 8
        %3618 = vbcast.lane.b32.xlu0 %v3612, %s3617
        %v3619 = vpop.permute.xlu0 %3618
        %s3621 = sor.u32 256, 16
        %3622 = vbcast.lane.b32.xlu0 %v3612, %s3621
        %v3623 = vpop.permute.xlu0 %3622
        %s3625 = sor.u32 256, 24
        %3626 = vbcast.lane.b32.xlu0 %v3612, %s3625
        %v3627 = vpop.permute.xlu0 %3626
        %s3629 = sor.u32 256, 32
        %3630 = vbcast.lane.b32.xlu0 %v3612, %s3629
        %v3631 = vpop.permute.xlu0 %3630
        %s3633 = sor.u32 256, 40
        %3634 = vbcast.lane.b32.xlu0 %v3612, %s3633
        %v3635 = vpop.permute.xlu0 %3634
        %s3637 = sor.u32 256, 48
        %3638 = vbcast.lane.b32.xlu0 %v3612, %s3637
        %v3639 = vpop.permute.xlu0 %3638
        %s3641 = sor.u32 256, 56
        %3642 = vbcast.lane.b32.xlu0 %v3612, %s3641
        %v3643 = vpop.permute.xlu0 %3642
        %s3645 = sor.u32 256, 64
        %3646 = vbcast.lane.b32.xlu0 %v3612, %s3645
        %v3647 = vpop.permute.xlu0 %3646
        %s3649 = sor.u32 256, 72
        %3650 = vbcast.lane.b32.xlu0 %v3612, %s3649
        %v3651 = vpop.permute.xlu0 %3650
        %s3653 = sor.u32 256, 80
        %3654 = vbcast.lane.b32.xlu0 %v3612, %s3653
        %v3655 = vpop.permute.xlu0 %3654
        %s3657 = sor.u32 256, 88
        %3658 = vbcast.lane.b32.xlu0 %v3612, %s3657
        %v3659 = vpop.permute.xlu0 %3658
        %s3661 = sor.u32 256, 96
        %3662 = vbcast.lane.b32.xlu0 %v3612, %s3661
        %v3663 = vpop.permute.xlu0 %3662
        %s3665 = sor.u32 256, 104
        %3666 = vbcast.lane.b32.xlu0 %v3612, %s3665
        %v3667 = vpop.permute.xlu0 %3666
        %s3669 = sor.u32 256, 112
        %3670 = vbcast.lane.b32.xlu0 %v3612, %s3669
        %v3671 = vpop.permute.xlu0 %3670
        %s3673 = sor.u32 256, 120
        %3674 = vbcast.lane.b32.xlu0 %v3612, %s3673
        %v3675 = vpop.permute.xlu0 %3674
        %v3676 = vlaneseq
        %v3677 = vshrl.u32 %v3676, 7
        %v3678 = vsub.s32 6, %v3677
        %v3679 = vrot.slane %v575, %v3678
        %3681 = vbcast.lane.b32.xlu0 %v3679, 256
        %v3682 = vpop.permute.xlu0 %3681
        %s3684 = sor.u32 256, 8
        %3685 = vbcast.lane.b32.xlu0 %v3679, %s3684
        %v3686 = vpop.permute.xlu0 %3685
        %s3688 = sor.u32 256, 16
        %3689 = vbcast.lane.b32.xlu0 %v3679, %s3688
        %v3690 = vpop.permute.xlu0 %3689
        %s3692 = sor.u32 256, 24
        %3693 = vbcast.lane.b32.xlu0 %v3679, %s3692
        %v3694 = vpop.permute.xlu0 %3693
        %s3696 = sor.u32 256, 32
        %3697 = vbcast.lane.b32.xlu0 %v3679, %s3696
        %v3698 = vpop.permute.xlu0 %3697
        %s3700 = sor.u32 256, 40
        %3701 = vbcast.lane.b32.xlu0 %v3679, %s3700
        %v3702 = vpop.permute.xlu0 %3701
        %s3704 = sor.u32 256, 48
        %3705 = vbcast.lane.b32.xlu0 %v3679, %s3704
        %v3706 = vpop.permute.xlu0 %3705
        %s3708 = sor.u32 256, 56
        %3709 = vbcast.lane.b32.xlu0 %v3679, %s3708
        %v3710 = vpop.permute.xlu0 %3709
        %s3712 = sor.u32 256, 64
        %3713 = vbcast.lane.b32.xlu0 %v3679, %s3712
        %v3714 = vpop.permute.xlu0 %3713
        %s3716 = sor.u32 256, 72
        %3717 = vbcast.lane.b32.xlu0 %v3679, %s3716
        %v3718 = vpop.permute.xlu0 %3717
        %s3720 = sor.u32 256, 80
        %3721 = vbcast.lane.b32.xlu0 %v3679, %s3720
        %v3722 = vpop.permute.xlu0 %3721
        %s3724 = sor.u32 256, 88
        %3725 = vbcast.lane.b32.xlu0 %v3679, %s3724
        %v3726 = vpop.permute.xlu0 %3725
        %s3728 = sor.u32 256, 96
        %3729 = vbcast.lane.b32.xlu0 %v3679, %s3728
        %v3730 = vpop.permute.xlu0 %3729
        %s3732 = sor.u32 256, 104
        %3733 = vbcast.lane.b32.xlu0 %v3679, %s3732
        %v3734 = vpop.permute.xlu0 %3733
        %s3736 = sor.u32 256, 112
        %3737 = vbcast.lane.b32.xlu0 %v3679, %s3736
        %v3738 = vpop.permute.xlu0 %3737
        %s3740 = sor.u32 256, 120
        %3741 = vbcast.lane.b32.xlu0 %v3679, %s3740
        %v3742 = vpop.permute.xlu0 %3741
        %v3743 = vlaneseq
        %v3744 = vshrl.u32 %v3743, 7
        %v3745 = vsub.s32 7, %v3744
        %v3746 = vrot.slane %v575, %v3745
        %3748 = vbcast.lane.b32.xlu0 %v3746, 256
        %v3749 = vpop.permute.xlu0 %3748
        %s3751 = sor.u32 256, 8
        %3752 = vbcast.lane.b32.xlu0 %v3746, %s3751
        %v3753 = vpop.permute.xlu0 %3752
        %s3755 = sor.u32 256, 16
        %3756 = vbcast.lane.b32.xlu0 %v3746, %s3755
        %v3757 = vpop.permute.xlu0 %3756
        %s3759 = sor.u32 256, 24
        %3760 = vbcast.lane.b32.xlu0 %v3746, %s3759
        %v3761 = vpop.permute.xlu0 %3760
        %s3763 = sor.u32 256, 32
        %3764 = vbcast.lane.b32.xlu0 %v3746, %s3763
        %v3765 = vpop.permute.xlu0 %3764
        %s3767 = sor.u32 256, 40
        %3768 = vbcast.lane.b32.xlu0 %v3746, %s3767
        %v3769 = vpop.permute.xlu0 %3768
        %s3771 = sor.u32 256, 48
        %3772 = vbcast.lane.b32.xlu0 %v3746, %s3771
        %v3773 = vpop.permute.xlu0 %3772
        %s3775 = sor.u32 256, 56
        %3776 = vbcast.lane.b32.xlu0 %v3746, %s3775
        %v3777 = vpop.permute.xlu0 %3776
        %s3779 = sor.u32 256, 64
        %3780 = vbcast.lane.b32.xlu0 %v3746, %s3779
        %v3781 = vpop.permute.xlu0 %3780
        %s3783 = sor.u32 256, 72
        %3784 = vbcast.lane.b32.xlu0 %v3746, %s3783
        %v3785 = vpop.permute.xlu0 %3784
        %s3787 = sor.u32 256, 80
        %3788 = vbcast.lane.b32.xlu0 %v3746, %s3787
        %v3789 = vpop.permute.xlu0 %3788
        %s3791 = sor.u32 256, 88
        %3792 = vbcast.lane.b32.xlu0 %v3746, %s3791
        %v3793 = vpop.permute.xlu0 %3792
        %s3795 = sor.u32 256, 96
        %3796 = vbcast.lane.b32.xlu0 %v3746, %s3795
        %v3797 = vpop.permute.xlu0 %3796
        %s3799 = sor.u32 256, 104
        %3800 = vbcast.lane.b32.xlu0 %v3746, %s3799
        %v3801 = vpop.permute.xlu0 %3800
        %s3803 = sor.u32 256, 112
        %3804 = vbcast.lane.b32.xlu0 %v3746, %s3803
        %v3805 = vpop.permute.xlu0 %3804
        %s3807 = sor.u32 256, 120
        %3808 = vbcast.lane.b32.xlu0 %v3746, %s3807
        %v3809 = vpop.permute.xlu0 %3808
        %v3810 = vlaneseq
        %v3811 = vshrl.u32 %v3810, 7
        %v3812 = vsub.s32 0, %v3811
        %v3813 = vrot.slane %v576, %v3812
        %3815 = vbcast.lane.b32.xlu0 %v3813, 256
        %v3816 = vpop.permute.xlu0 %3815
        %s3818 = sor.u32 256, 8
        %3819 = vbcast.lane.b32.xlu0 %v3813, %s3818
        %v3820 = vpop.permute.xlu0 %3819
        %s3822 = sor.u32 256, 16
        %3823 = vbcast.lane.b32.xlu0 %v3813, %s3822
        %v3824 = vpop.permute.xlu0 %3823
        %s3826 = sor.u32 256, 24
        %3827 = vbcast.lane.b32.xlu0 %v3813, %s3826
        %v3828 = vpop.permute.xlu0 %3827
        %s3830 = sor.u32 256, 32
        %3831 = vbcast.lane.b32.xlu0 %v3813, %s3830
        %v3832 = vpop.permute.xlu0 %3831
        %s3834 = sor.u32 256, 40
        %3835 = vbcast.lane.b32.xlu0 %v3813, %s3834
        %v3836 = vpop.permute.xlu0 %3835
        %s3838 = sor.u32 256, 48
        %3839 = vbcast.lane.b32.xlu0 %v3813, %s3838
        %v3840 = vpop.permute.xlu0 %3839
        %s3842 = sor.u32 256, 56
        %3843 = vbcast.lane.b32.xlu0 %v3813, %s3842
        %v3844 = vpop.permute.xlu0 %3843
        %s3846 = sor.u32 256, 64
        %3847 = vbcast.lane.b32.xlu0 %v3813, %s3846
        %v3848 = vpop.permute.xlu0 %3847
        %s3850 = sor.u32 256, 72
        %3851 = vbcast.lane.b32.xlu0 %v3813, %s3850
        %v3852 = vpop.permute.xlu0 %3851
        %s3854 = sor.u32 256, 80
        %3855 = vbcast.lane.b32.xlu0 %v3813, %s3854
        %v3856 = vpop.permute.xlu0 %3855
        %s3858 = sor.u32 256, 88
        %3859 = vbcast.lane.b32.xlu0 %v3813, %s3858
        %v3860 = vpop.permute.xlu0 %3859
        %s3862 = sor.u32 256, 96
        %3863 = vbcast.lane.b32.xlu0 %v3813, %s3862
        %v3864 = vpop.permute.xlu0 %3863
        %s3866 = sor.u32 256, 104
        %3867 = vbcast.lane.b32.xlu0 %v3813, %s3866
        %v3868 = vpop.permute.xlu0 %3867
        %s3870 = sor.u32 256, 112
        %3871 = vbcast.lane.b32.xlu0 %v3813, %s3870
        %v3872 = vpop.permute.xlu0 %3871
        %s3874 = sor.u32 256, 120
        %3875 = vbcast.lane.b32.xlu0 %v3813, %s3874
        %v3876 = vpop.permute.xlu0 %3875
        %v3877 = vlaneseq
        %v3878 = vshrl.u32 %v3877, 7
        %v3879 = vsub.s32 1, %v3878
        %v3880 = vrot.slane %v576, %v3879
        %3882 = vbcast.lane.b32.xlu0 %v3880, 256
        %v3883 = vpop.permute.xlu0 %3882
        %s3885 = sor.u32 256, 8
        %3886 = vbcast.lane.b32.xlu0 %v3880, %s3885
        %v3887 = vpop.permute.xlu0 %3886
        %s3889 = sor.u32 256, 16
        %3890 = vbcast.lane.b32.xlu0 %v3880, %s3889
        %v3891 = vpop.permute.xlu0 %3890
        %s3893 = sor.u32 256, 24
        %3894 = vbcast.lane.b32.xlu0 %v3880, %s3893
        %v3895 = vpop.permute.xlu0 %3894
        %s3897 = sor.u32 256, 32
        %3898 = vbcast.lane.b32.xlu0 %v3880, %s3897
        %v3899 = vpop.permute.xlu0 %3898
        %s3901 = sor.u32 256, 40
        %3902 = vbcast.lane.b32.xlu0 %v3880, %s3901
        %v3903 = vpop.permute.xlu0 %3902
        %s3905 = sor.u32 256, 48
        %3906 = vbcast.lane.b32.xlu0 %v3880, %s3905
        %v3907 = vpop.permute.xlu0 %3906
        %s3909 = sor.u32 256, 56
        %3910 = vbcast.lane.b32.xlu0 %v3880, %s3909
        %v3911 = vpop.permute.xlu0 %3910
        %s3913 = sor.u32 256, 64
        %3914 = vbcast.lane.b32.xlu0 %v3880, %s3913
        %v3915 = vpop.permute.xlu0 %3914
        %s3917 = sor.u32 256, 72
        %3918 = vbcast.lane.b32.xlu0 %v3880, %s3917
        %v3919 = vpop.permute.xlu0 %3918
        %s3921 = sor.u32 256, 80
        %3922 = vbcast.lane.b32.xlu0 %v3880, %s3921
        %v3923 = vpop.permute.xlu0 %3922
        %s3925 = sor.u32 256, 88
        %3926 = vbcast.lane.b32.xlu0 %v3880, %s3925
        %v3927 = vpop.permute.xlu0 %3926
        %s3929 = sor.u32 256, 96
        %3930 = vbcast.lane.b32.xlu0 %v3880, %s3929
        %v3931 = vpop.permute.xlu0 %3930
        %s3933 = sor.u32 256, 104
        %3934 = vbcast.lane.b32.xlu0 %v3880, %s3933
        %v3935 = vpop.permute.xlu0 %3934
        %s3937 = sor.u32 256, 112
        %3938 = vbcast.lane.b32.xlu0 %v3880, %s3937
        %v3939 = vpop.permute.xlu0 %3938
        %s3941 = sor.u32 256, 120
        %3942 = vbcast.lane.b32.xlu0 %v3880, %s3941
        %v3943 = vpop.permute.xlu0 %3942
        %v3944 = vlaneseq
        %v3945 = vshrl.u32 %v3944, 7
        %v3946 = vsub.s32 2, %v3945
        %v3947 = vrot.slane %v576, %v3946
        %3949 = vbcast.lane.b32.xlu0 %v3947, 256
        %v3950 = vpop.permute.xlu0 %3949
        %s3952 = sor.u32 256, 8
        %3953 = vbcast.lane.b32.xlu0 %v3947, %s3952
        %v3954 = vpop.permute.xlu0 %3953
        %s3956 = sor.u32 256, 16
        %3957 = vbcast.lane.b32.xlu0 %v3947, %s3956
        %v3958 = vpop.permute.xlu0 %3957
        %s3960 = sor.u32 256, 24
        %3961 = vbcast.lane.b32.xlu0 %v3947, %s3960
        %v3962 = vpop.permute.xlu0 %3961
        %s3964 = sor.u32 256, 32
        %3965 = vbcast.lane.b32.xlu0 %v3947, %s3964
        %v3966 = vpop.permute.xlu0 %3965
        %s3968 = sor.u32 256, 40
        %3969 = vbcast.lane.b32.xlu0 %v3947, %s3968
        %v3970 = vpop.permute.xlu0 %3969
        %s3972 = sor.u32 256, 48
        %3973 = vbcast.lane.b32.xlu0 %v3947, %s3972
        %v3974 = vpop.permute.xlu0 %3973
        %s3976 = sor.u32 256, 56
        %3977 = vbcast.lane.b32.xlu0 %v3947, %s3976
        %v3978 = vpop.permute.xlu0 %3977
        %s3980 = sor.u32 256, 64
        %3981 = vbcast.lane.b32.xlu0 %v3947, %s3980
        %v3982 = vpop.permute.xlu0 %3981
        %s3984 = sor.u32 256, 72
        %3985 = vbcast.lane.b32.xlu0 %v3947, %s3984
        %v3986 = vpop.permute.xlu0 %3985
        %s3988 = sor.u32 256, 80
        %3989 = vbcast.lane.b32.xlu0 %v3947, %s3988
        %v3990 = vpop.permute.xlu0 %3989
        %s3992 = sor.u32 256, 88
        %3993 = vbcast.lane.b32.xlu0 %v3947, %s3992
        %v3994 = vpop.permute.xlu0 %3993
        %s3996 = sor.u32 256, 96
        %3997 = vbcast.lane.b32.xlu0 %v3947, %s3996
        %v3998 = vpop.permute.xlu0 %3997
        %s4000 = sor.u32 256, 104
        %4001 = vbcast.lane.b32.xlu0 %v3947, %s4000
        %v4002 = vpop.permute.xlu0 %4001
        %s4004 = sor.u32 256, 112
        %4005 = vbcast.lane.b32.xlu0 %v3947, %s4004
        %v4006 = vpop.permute.xlu0 %4005
        %s4008 = sor.u32 256, 120
        %4009 = vbcast.lane.b32.xlu0 %v3947, %s4008
        %v4010 = vpop.permute.xlu0 %4009
        %v4011 = vlaneseq
        %v4012 = vshrl.u32 %v4011, 7
        %v4013 = vsub.s32 3, %v4012
        %v4014 = vrot.slane %v576, %v4013
        %4016 = vbcast.lane.b32.xlu0 %v4014, 256
        %v4017 = vpop.permute.xlu0 %4016
        %s4019 = sor.u32 256, 8
        %4020 = vbcast.lane.b32.xlu0 %v4014, %s4019
        %v4021 = vpop.permute.xlu0 %4020
        %s4023 = sor.u32 256, 16
        %4024 = vbcast.lane.b32.xlu0 %v4014, %s4023
        %v4025 = vpop.permute.xlu0 %4024
        %s4027 = sor.u32 256, 24
        %4028 = vbcast.lane.b32.xlu0 %v4014, %s4027
        %v4029 = vpop.permute.xlu0 %4028
        %s4031 = sor.u32 256, 32
        %4032 = vbcast.lane.b32.xlu0 %v4014, %s4031
        %v4033 = vpop.permute.xlu0 %4032
        %s4035 = sor.u32 256, 40
        %4036 = vbcast.lane.b32.xlu0 %v4014, %s4035
        %v4037 = vpop.permute.xlu0 %4036
        %s4039 = sor.u32 256, 48
        %4040 = vbcast.lane.b32.xlu0 %v4014, %s4039
        %v4041 = vpop.permute.xlu0 %4040
        %s4043 = sor.u32 256, 56
        %4044 = vbcast.lane.b32.xlu0 %v4014, %s4043
        %v4045 = vpop.permute.xlu0 %4044
        %s4047 = sor.u32 256, 64
        %4048 = vbcast.lane.b32.xlu0 %v4014, %s4047
        %v4049 = vpop.permute.xlu0 %4048
        %s4051 = sor.u32 256, 72
        %4052 = vbcast.lane.b32.xlu0 %v4014, %s4051
        %v4053 = vpop.permute.xlu0 %4052
        %s4055 = sor.u32 256, 80
        %4056 = vbcast.lane.b32.xlu0 %v4014, %s4055
        %v4057 = vpop.permute.xlu0 %4056
        %s4059 = sor.u32 256, 88
        %4060 = vbcast.lane.b32.xlu0 %v4014, %s4059
        %v4061 = vpop.permute.xlu0 %4060
        %s4063 = sor.u32 256, 96
        %4064 = vbcast.lane.b32.xlu0 %v4014, %s4063
        %v4065 = vpop.permute.xlu0 %4064
        %s4067 = sor.u32 256, 104
        %4068 = vbcast.lane.b32.xlu0 %v4014, %s4067
        %v4069 = vpop.permute.xlu0 %4068
        %s4071 = sor.u32 256, 112
        %4072 = vbcast.lane.b32.xlu0 %v4014, %s4071
        %v4073 = vpop.permute.xlu0 %4072
        %s4075 = sor.u32 256, 120
        %4076 = vbcast.lane.b32.xlu0 %v4014, %s4075
        %v4077 = vpop.permute.xlu0 %4076
        %v4078 = vlaneseq
        %v4079 = vshrl.u32 %v4078, 7
        %v4080 = vsub.s32 4, %v4079
        %v4081 = vrot.slane %v576, %v4080
        %4083 = vbcast.lane.b32.xlu0 %v4081, 256
        %v4084 = vpop.permute.xlu0 %4083
        %s4086 = sor.u32 256, 8
        %4087 = vbcast.lane.b32.xlu0 %v4081, %s4086
        %v4088 = vpop.permute.xlu0 %4087
        %s4090 = sor.u32 256, 16
        %4091 = vbcast.lane.b32.xlu0 %v4081, %s4090
        %v4092 = vpop.permute.xlu0 %4091
        %s4094 = sor.u32 256, 24
        %4095 = vbcast.lane.b32.xlu0 %v4081, %s4094
        %v4096 = vpop.permute.xlu0 %4095
        %s4098 = sor.u32 256, 32
        %4099 = vbcast.lane.b32.xlu0 %v4081, %s4098
        %v4100 = vpop.permute.xlu0 %4099
        %s4102 = sor.u32 256, 40
        %4103 = vbcast.lane.b32.xlu0 %v4081, %s4102
        %v4104 = vpop.permute.xlu0 %4103
        %s4106 = sor.u32 256, 48
        %4107 = vbcast.lane.b32.xlu0 %v4081, %s4106
        %v4108 = vpop.permute.xlu0 %4107
        %s4110 = sor.u32 256, 56
        %4111 = vbcast.lane.b32.xlu0 %v4081, %s4110
        %v4112 = vpop.permute.xlu0 %4111
        %s4114 = sor.u32 256, 64
        %4115 = vbcast.lane.b32.xlu0 %v4081, %s4114
        %v4116 = vpop.permute.xlu0 %4115
        %s4118 = sor.u32 256, 72
        %4119 = vbcast.lane.b32.xlu0 %v4081, %s4118
        %v4120 = vpop.permute.xlu0 %4119
        %s4122 = sor.u32 256, 80
        %4123 = vbcast.lane.b32.xlu0 %v4081, %s4122
        %v4124 = vpop.permute.xlu0 %4123
        %s4126 = sor.u32 256, 88
        %4127 = vbcast.lane.b32.xlu0 %v4081, %s4126
        %v4128 = vpop.permute.xlu0 %4127
        %s4130 = sor.u32 256, 96
        %4131 = vbcast.lane.b32.xlu0 %v4081, %s4130
        %v4132 = vpop.permute.xlu0 %4131
        %s4134 = sor.u32 256, 104
        %4135 = vbcast.lane.b32.xlu0 %v4081, %s4134
        %v4136 = vpop.permute.xlu0 %4135
        %s4138 = sor.u32 256, 112
        %4139 = vbcast.lane.b32.xlu0 %v4081, %s4138
        %v4140 = vpop.permute.xlu0 %4139
        %s4142 = sor.u32 256, 120
        %4143 = vbcast.lane.b32.xlu0 %v4081, %s4142
        %v4144 = vpop.permute.xlu0 %4143
        %v4145 = vlaneseq
        %v4146 = vshrl.u32 %v4145, 7
        %v4147 = vsub.s32 5, %v4146
        %v4148 = vrot.slane %v576, %v4147
        %4150 = vbcast.lane.b32.xlu0 %v4148, 256
        %v4151 = vpop.permute.xlu0 %4150
        %s4153 = sor.u32 256, 8
        %4154 = vbcast.lane.b32.xlu0 %v4148, %s4153
        %v4155 = vpop.permute.xlu0 %4154
        %s4157 = sor.u32 256, 16
        %4158 = vbcast.lane.b32.xlu0 %v4148, %s4157
        %v4159 = vpop.permute.xlu0 %4158
        %s4161 = sor.u32 256, 24
        %4162 = vbcast.lane.b32.xlu0 %v4148, %s4161
        %v4163 = vpop.permute.xlu0 %4162
        %s4165 = sor.u32 256, 32
        %4166 = vbcast.lane.b32.xlu0 %v4148, %s4165
        %v4167 = vpop.permute.xlu0 %4166
        %s4169 = sor.u32 256, 40
        %4170 = vbcast.lane.b32.xlu0 %v4148, %s4169
        %v4171 = vpop.permute.xlu0 %4170
        %s4173 = sor.u32 256, 48
        %4174 = vbcast.lane.b32.xlu0 %v4148, %s4173
        %v4175 = vpop.permute.xlu0 %4174
        %s4177 = sor.u32 256, 56
        %4178 = vbcast.lane.b32.xlu0 %v4148, %s4177
        %v4179 = vpop.permute.xlu0 %4178
        %s4181 = sor.u32 256, 64
        %4182 = vbcast.lane.b32.xlu0 %v4148, %s4181
        %v4183 = vpop.permute.xlu0 %4182
        %s4185 = sor.u32 256, 72
        %4186 = vbcast.lane.b32.xlu0 %v4148, %s4185
        %v4187 = vpop.permute.xlu0 %4186
        %s4189 = sor.u32 256, 80
        %4190 = vbcast.lane.b32.xlu0 %v4148, %s4189
        %v4191 = vpop.permute.xlu0 %4190
        %s4193 = sor.u32 256, 88
        %4194 = vbcast.lane.b32.xlu0 %v4148, %s4193
        %v4195 = vpop.permute.xlu0 %4194
        %s4197 = sor.u32 256, 96
        %4198 = vbcast.lane.b32.xlu0 %v4148, %s4197
        %v4199 = vpop.permute.xlu0 %4198
        %s4201 = sor.u32 256, 104
        %4202 = vbcast.lane.b32.xlu0 %v4148, %s4201
        %v4203 = vpop.permute.xlu0 %4202
        %s4205 = sor.u32 256, 112
        %4206 = vbcast.lane.b32.xlu0 %v4148, %s4205
        %v4207 = vpop.permute.xlu0 %4206
        %s4209 = sor.u32 256, 120
        %4210 = vbcast.lane.b32.xlu0 %v4148, %s4209
        %v4211 = vpop.permute.xlu0 %4210
        %v4212 = vlaneseq
        %v4213 = vshrl.u32 %v4212, 7
        %v4214 = vsub.s32 6, %v4213
        %v4215 = vrot.slane %v576, %v4214
        %4217 = vbcast.lane.b32.xlu0 %v4215, 256
        %v4218 = vpop.permute.xlu0 %4217
        %s4220 = sor.u32 256, 8
        %4221 = vbcast.lane.b32.xlu0 %v4215, %s4220
        %v4222 = vpop.permute.xlu0 %4221
        %s4224 = sor.u32 256, 16
        %4225 = vbcast.lane.b32.xlu0 %v4215, %s4224
        %v4226 = vpop.permute.xlu0 %4225
        %s4228 = sor.u32 256, 24
        %4229 = vbcast.lane.b32.xlu0 %v4215, %s4228
        %v4230 = vpop.permute.xlu0 %4229
        %s4232 = sor.u32 256, 32
        %4233 = vbcast.lane.b32.xlu0 %v4215, %s4232
        %v4234 = vpop.permute.xlu0 %4233
        %s4236 = sor.u32 256, 40
        %4237 = vbcast.lane.b32.xlu0 %v4215, %s4236
        %v4238 = vpop.permute.xlu0 %4237
        %s4240 = sor.u32 256, 48
        %4241 = vbcast.lane.b32.xlu0 %v4215, %s4240
        %v4242 = vpop.permute.xlu0 %4241
        %s4244 = sor.u32 256, 56
        %4245 = vbcast.lane.b32.xlu0 %v4215, %s4244
        %v4246 = vpop.permute.xlu0 %4245
        %s4248 = sor.u32 256, 64
        %4249 = vbcast.lane.b32.xlu0 %v4215, %s4248
        %v4250 = vpop.permute.xlu0 %4249
        %s4252 = sor.u32 256, 72
        %4253 = vbcast.lane.b32.xlu0 %v4215, %s4252
        %v4254 = vpop.permute.xlu0 %4253
        %s4256 = sor.u32 256, 80
        %4257 = vbcast.lane.b32.xlu0 %v4215, %s4256
        %v4258 = vpop.permute.xlu0 %4257
        %s4260 = sor.u32 256, 88
        %4261 = vbcast.lane.b32.xlu0 %v4215, %s4260
        %v4262 = vpop.permute.xlu0 %4261
        %s4264 = sor.u32 256, 96
        %4265 = vbcast.lane.b32.xlu0 %v4215, %s4264
        %v4266 = vpop.permute.xlu0 %4265
        %s4268 = sor.u32 256, 104
        %4269 = vbcast.lane.b32.xlu0 %v4215, %s4268
        %v4270 = vpop.permute.xlu0 %4269
        %s4272 = sor.u32 256, 112
        %4273 = vbcast.lane.b32.xlu0 %v4215, %s4272
        %v4274 = vpop.permute.xlu0 %4273
        %s4276 = sor.u32 256, 120
        %4277 = vbcast.lane.b32.xlu0 %v4215, %s4276
        %v4278 = vpop.permute.xlu0 %4277
        %v4279 = vlaneseq
        %v4280 = vshrl.u32 %v4279, 7
        %v4281 = vsub.s32 7, %v4280
        %v4282 = vrot.slane %v576, %v4281
        %4284 = vbcast.lane.b32.xlu0 %v4282, 256
        %v4285 = vpop.permute.xlu0 %4284
        %s4287 = sor.u32 256, 8
        %4288 = vbcast.lane.b32.xlu0 %v4282, %s4287
        %v4289 = vpop.permute.xlu0 %4288
        %s4291 = sor.u32 256, 16
        %4292 = vbcast.lane.b32.xlu0 %v4282, %s4291
        %v4293 = vpop.permute.xlu0 %4292
        %s4295 = sor.u32 256, 24
        %4296 = vbcast.lane.b32.xlu0 %v4282, %s4295
        %v4297 = vpop.permute.xlu0 %4296
        %s4299 = sor.u32 256, 32
        %4300 = vbcast.lane.b32.xlu0 %v4282, %s4299
        %v4301 = vpop.permute.xlu0 %4300
        %s4303 = sor.u32 256, 40
        %4304 = vbcast.lane.b32.xlu0 %v4282, %s4303
        %v4305 = vpop.permute.xlu0 %4304
        %s4307 = sor.u32 256, 48
        %4308 = vbcast.lane.b32.xlu0 %v4282, %s4307
        %v4309 = vpop.permute.xlu0 %4308
        %s4311 = sor.u32 256, 56
        %4312 = vbcast.lane.b32.xlu0 %v4282, %s4311
        %v4313 = vpop.permute.xlu0 %4312
        %s4315 = sor.u32 256, 64
        %4316 = vbcast.lane.b32.xlu0 %v4282, %s4315
        %v4317 = vpop.permute.xlu0 %4316
        %s4319 = sor.u32 256, 72
        %4320 = vbcast.lane.b32.xlu0 %v4282, %s4319
        %v4321 = vpop.permute.xlu0 %4320
        %s4323 = sor.u32 256, 80
        %4324 = vbcast.lane.b32.xlu0 %v4282, %s4323
        %v4325 = vpop.permute.xlu0 %4324
        %s4327 = sor.u32 256, 88
        %4328 = vbcast.lane.b32.xlu0 %v4282, %s4327
        %v4329 = vpop.permute.xlu0 %4328
        %s4331 = sor.u32 256, 96
        %4332 = vbcast.lane.b32.xlu0 %v4282, %s4331
        %v4333 = vpop.permute.xlu0 %4332
        %s4335 = sor.u32 256, 104
        %4336 = vbcast.lane.b32.xlu0 %v4282, %s4335
        %v4337 = vpop.permute.xlu0 %4336
        %s4339 = sor.u32 256, 112
        %4340 = vbcast.lane.b32.xlu0 %v4282, %s4339
        %v4341 = vpop.permute.xlu0 %4340
        %s4343 = sor.u32 256, 120
        %4344 = vbcast.lane.b32.xlu0 %v4282, %s4343
        %v4345 = vpop.permute.xlu0 %4344
        %v4346 = vlaneseq
        %v4347 = vshrl.u32 %v4346, 7
        %v4348 = vsub.s32 0, %v4347
        %v4349 = vrot.slane %v577, %v4348
        %4351 = vbcast.lane.b32.xlu0 %v4349, 256
        %v4352 = vpop.permute.xlu0 %4351
        %s4354 = sor.u32 256, 8
        %4355 = vbcast.lane.b32.xlu0 %v4349, %s4354
        %v4356 = vpop.permute.xlu0 %4355
        %s4358 = sor.u32 256, 16
        %4359 = vbcast.lane.b32.xlu0 %v4349, %s4358
        %v4360 = vpop.permute.xlu0 %4359
        %s4362 = sor.u32 256, 24
        %4363 = vbcast.lane.b32.xlu0 %v4349, %s4362
        %v4364 = vpop.permute.xlu0 %4363
        %s4366 = sor.u32 256, 32
        %4367 = vbcast.lane.b32.xlu0 %v4349, %s4366
        %v4368 = vpop.permute.xlu0 %4367
        %s4370 = sor.u32 256, 40
        %4371 = vbcast.lane.b32.xlu0 %v4349, %s4370
        %v4372 = vpop.permute.xlu0 %4371
        %s4374 = sor.u32 256, 48
        %4375 = vbcast.lane.b32.xlu0 %v4349, %s4374
        %v4376 = vpop.permute.xlu0 %4375
        %s4378 = sor.u32 256, 56
        %4379 = vbcast.lane.b32.xlu0 %v4349, %s4378
        %v4380 = vpop.permute.xlu0 %4379
        %s4382 = sor.u32 256, 64
        %4383 = vbcast.lane.b32.xlu0 %v4349, %s4382
        %v4384 = vpop.permute.xlu0 %4383
        %s4386 = sor.u32 256, 72
        %4387 = vbcast.lane.b32.xlu0 %v4349, %s4386
        %v4388 = vpop.permute.xlu0 %4387
        %s4390 = sor.u32 256, 80
        %4391 = vbcast.lane.b32.xlu0 %v4349, %s4390
        %v4392 = vpop.permute.xlu0 %4391
        %s4394 = sor.u32 256, 88
        %4395 = vbcast.lane.b32.xlu0 %v4349, %s4394
        %v4396 = vpop.permute.xlu0 %4395
        %s4398 = sor.u32 256, 96
        %4399 = vbcast.lane.b32.xlu0 %v4349, %s4398
        %v4400 = vpop.permute.xlu0 %4399
        %s4402 = sor.u32 256, 104
        %4403 = vbcast.lane.b32.xlu0 %v4349, %s4402
        %v4404 = vpop.permute.xlu0 %4403
        %s4406 = sor.u32 256, 112
        %4407 = vbcast.lane.b32.xlu0 %v4349, %s4406
        %v4408 = vpop.permute.xlu0 %4407
        %s4410 = sor.u32 256, 120
        %4411 = vbcast.lane.b32.xlu0 %v4349, %s4410
        %v4412 = vpop.permute.xlu0 %4411
        %v4413 = vlaneseq
        %v4414 = vshrl.u32 %v4413, 7
        %v4415 = vsub.s32 1, %v4414
        %v4416 = vrot.slane %v577, %v4415
        %4418 = vbcast.lane.b32.xlu0 %v4416, 256
        %v4419 = vpop.permute.xlu0 %4418
        %s4421 = sor.u32 256, 8
        %4422 = vbcast.lane.b32.xlu0 %v4416, %s4421
        %v4423 = vpop.permute.xlu0 %4422
        %s4425 = sor.u32 256, 16
        %4426 = vbcast.lane.b32.xlu0 %v4416, %s4425
        %v4427 = vpop.permute.xlu0 %4426
        %s4429 = sor.u32 256, 24
        %4430 = vbcast.lane.b32.xlu0 %v4416, %s4429
        %v4431 = vpop.permute.xlu0 %4430
        %s4433 = sor.u32 256, 32
        %4434 = vbcast.lane.b32.xlu0 %v4416, %s4433
        %v4435 = vpop.permute.xlu0 %4434
        %s4437 = sor.u32 256, 40
        %4438 = vbcast.lane.b32.xlu0 %v4416, %s4437
        %v4439 = vpop.permute.xlu0 %4438
        %s4441 = sor.u32 256, 48
        %4442 = vbcast.lane.b32.xlu0 %v4416, %s4441
        %v4443 = vpop.permute.xlu0 %4442
        %s4445 = sor.u32 256, 56
        %4446 = vbcast.lane.b32.xlu0 %v4416, %s4445
        %v4447 = vpop.permute.xlu0 %4446
        %s4449 = sor.u32 256, 64
        %4450 = vbcast.lane.b32.xlu0 %v4416, %s4449
        %v4451 = vpop.permute.xlu0 %4450
        %s4453 = sor.u32 256, 72
        %4454 = vbcast.lane.b32.xlu0 %v4416, %s4453
        %v4455 = vpop.permute.xlu0 %4454
        %s4457 = sor.u32 256, 80
        %4458 = vbcast.lane.b32.xlu0 %v4416, %s4457
        %v4459 = vpop.permute.xlu0 %4458
        %s4461 = sor.u32 256, 88
        %4462 = vbcast.lane.b32.xlu0 %v4416, %s4461
        %v4463 = vpop.permute.xlu0 %4462
        %s4465 = sor.u32 256, 96
        %4466 = vbcast.lane.b32.xlu0 %v4416, %s4465
        %v4467 = vpop.permute.xlu0 %4466
        %s4469 = sor.u32 256, 104
        %4470 = vbcast.lane.b32.xlu0 %v4416, %s4469
        %v4471 = vpop.permute.xlu0 %4470
        %s4473 = sor.u32 256, 112
        %4474 = vbcast.lane.b32.xlu0 %v4416, %s4473
        %v4475 = vpop.permute.xlu0 %4474
        %s4477 = sor.u32 256, 120
        %4478 = vbcast.lane.b32.xlu0 %v4416, %s4477
        %v4479 = vpop.permute.xlu0 %4478
        %v4480 = vlaneseq
        %v4481 = vshrl.u32 %v4480, 7
        %v4482 = vsub.s32 2, %v4481
        %v4483 = vrot.slane %v577, %v4482
        %4485 = vbcast.lane.b32.xlu0 %v4483, 256
        %v4486 = vpop.permute.xlu0 %4485
        %s4488 = sor.u32 256, 8
        %4489 = vbcast.lane.b32.xlu0 %v4483, %s4488
        %v4490 = vpop.permute.xlu0 %4489
        %s4492 = sor.u32 256, 16
        %4493 = vbcast.lane.b32.xlu0 %v4483, %s4492
        %v4494 = vpop.permute.xlu0 %4493
        %s4496 = sor.u32 256, 24
        %4497 = vbcast.lane.b32.xlu0 %v4483, %s4496
        %v4498 = vpop.permute.xlu0 %4497
        %s4500 = sor.u32 256, 32
        %4501 = vbcast.lane.b32.xlu0 %v4483, %s4500
        %v4502 = vpop.permute.xlu0 %4501
        %s4504 = sor.u32 256, 40
        %4505 = vbcast.lane.b32.xlu0 %v4483, %s4504
        %v4506 = vpop.permute.xlu0 %4505
        %s4508 = sor.u32 256, 48
        %4509 = vbcast.lane.b32.xlu0 %v4483, %s4508
        %v4510 = vpop.permute.xlu0 %4509
        %s4512 = sor.u32 256, 56
        %4513 = vbcast.lane.b32.xlu0 %v4483, %s4512
        %v4514 = vpop.permute.xlu0 %4513
        %s4516 = sor.u32 256, 64
        %4517 = vbcast.lane.b32.xlu0 %v4483, %s4516
        %v4518 = vpop.permute.xlu0 %4517
        %s4520 = sor.u32 256, 72
        %4521 = vbcast.lane.b32.xlu0 %v4483, %s4520
        %v4522 = vpop.permute.xlu0 %4521
        %s4524 = sor.u32 256, 80
        %4525 = vbcast.lane.b32.xlu0 %v4483, %s4524
        %v4526 = vpop.permute.xlu0 %4525
        %s4528 = sor.u32 256, 88
        %4529 = vbcast.lane.b32.xlu0 %v4483, %s4528
        %v4530 = vpop.permute.xlu0 %4529
        %s4532 = sor.u32 256, 96
        %4533 = vbcast.lane.b32.xlu0 %v4483, %s4532
        %v4534 = vpop.permute.xlu0 %4533
        %s4536 = sor.u32 256, 104
        %4537 = vbcast.lane.b32.xlu0 %v4483, %s4536
        %v4538 = vpop.permute.xlu0 %4537
        %s4540 = sor.u32 256, 112
        %4541 = vbcast.lane.b32.xlu0 %v4483, %s4540
        %v4542 = vpop.permute.xlu0 %4541
        %s4544 = sor.u32 256, 120
        %4545 = vbcast.lane.b32.xlu0 %v4483, %s4544
        %v4546 = vpop.permute.xlu0 %4545
        %v4547 = vlaneseq
        %v4548 = vshrl.u32 %v4547, 7
        %v4549 = vsub.s32 3, %v4548
        %v4550 = vrot.slane %v577, %v4549
        %4552 = vbcast.lane.b32.xlu0 %v4550, 256
        %v4553 = vpop.permute.xlu0 %4552
        %s4555 = sor.u32 256, 8
        %4556 = vbcast.lane.b32.xlu0 %v4550, %s4555
        %v4557 = vpop.permute.xlu0 %4556
        %s4559 = sor.u32 256, 16
        %4560 = vbcast.lane.b32.xlu0 %v4550, %s4559
        %v4561 = vpop.permute.xlu0 %4560
        %s4563 = sor.u32 256, 24
        %4564 = vbcast.lane.b32.xlu0 %v4550, %s4563
        %v4565 = vpop.permute.xlu0 %4564
        %s4567 = sor.u32 256, 32
        %4568 = vbcast.lane.b32.xlu0 %v4550, %s4567
        %v4569 = vpop.permute.xlu0 %4568
        %s4571 = sor.u32 256, 40
        %4572 = vbcast.lane.b32.xlu0 %v4550, %s4571
        %v4573 = vpop.permute.xlu0 %4572
        %s4575 = sor.u32 256, 48
        %4576 = vbcast.lane.b32.xlu0 %v4550, %s4575
        %v4577 = vpop.permute.xlu0 %4576
        %s4579 = sor.u32 256, 56
        %4580 = vbcast.lane.b32.xlu0 %v4550, %s4579
        %v4581 = vpop.permute.xlu0 %4580
        %s4583 = sor.u32 256, 64
        %4584 = vbcast.lane.b32.xlu0 %v4550, %s4583
        %v4585 = vpop.permute.xlu0 %4584
        %s4587 = sor.u32 256, 72
        %4588 = vbcast.lane.b32.xlu0 %v4550, %s4587
        %v4589 = vpop.permute.xlu0 %4588
        %s4591 = sor.u32 256, 80
        %4592 = vbcast.lane.b32.xlu0 %v4550, %s4591
        %v4593 = vpop.permute.xlu0 %4592
        %s4595 = sor.u32 256, 88
        %4596 = vbcast.lane.b32.xlu0 %v4550, %s4595
        %v4597 = vpop.permute.xlu0 %4596
        %s4599 = sor.u32 256, 96
        %4600 = vbcast.lane.b32.xlu0 %v4550, %s4599
        %v4601 = vpop.permute.xlu0 %4600
        %s4603 = sor.u32 256, 104
        %4604 = vbcast.lane.b32.xlu0 %v4550, %s4603
        %v4605 = vpop.permute.xlu0 %4604
        %s4607 = sor.u32 256, 112
        %4608 = vbcast.lane.b32.xlu0 %v4550, %s4607
        %v4609 = vpop.permute.xlu0 %4608
        %s4611 = sor.u32 256, 120
        %4612 = vbcast.lane.b32.xlu0 %v4550, %s4611
        %v4613 = vpop.permute.xlu0 %4612
        %v4614 = vlaneseq
        %v4615 = vshrl.u32 %v4614, 7
        %v4616 = vsub.s32 4, %v4615
        %v4617 = vrot.slane %v577, %v4616
        %4619 = vbcast.lane.b32.xlu0 %v4617, 256
        %v4620 = vpop.permute.xlu0 %4619
        %s4622 = sor.u32 256, 8
        %4623 = vbcast.lane.b32.xlu0 %v4617, %s4622
        %v4624 = vpop.permute.xlu0 %4623
        %s4626 = sor.u32 256, 16
        %4627 = vbcast.lane.b32.xlu0 %v4617, %s4626
        %v4628 = vpop.permute.xlu0 %4627
        %s4630 = sor.u32 256, 24
        %4631 = vbcast.lane.b32.xlu0 %v4617, %s4630
        %v4632 = vpop.permute.xlu0 %4631
        %s4634 = sor.u32 256, 32
        %4635 = vbcast.lane.b32.xlu0 %v4617, %s4634
        %v4636 = vpop.permute.xlu0 %4635
        %s4638 = sor.u32 256, 40
        %4639 = vbcast.lane.b32.xlu0 %v4617, %s4638
        %v4640 = vpop.permute.xlu0 %4639
        %s4642 = sor.u32 256, 48
        %4643 = vbcast.lane.b32.xlu0 %v4617, %s4642
        %v4644 = vpop.permute.xlu0 %4643
        %s4646 = sor.u32 256, 56
        %4647 = vbcast.lane.b32.xlu0 %v4617, %s4646
        %v4648 = vpop.permute.xlu0 %4647
        %s4650 = sor.u32 256, 64
        %4651 = vbcast.lane.b32.xlu0 %v4617, %s4650
        %v4652 = vpop.permute.xlu0 %4651
        %s4654 = sor.u32 256, 72
        %4655 = vbcast.lane.b32.xlu0 %v4617, %s4654
        %v4656 = vpop.permute.xlu0 %4655
        %s4658 = sor.u32 256, 80
        %4659 = vbcast.lane.b32.xlu0 %v4617, %s4658
        %v4660 = vpop.permute.xlu0 %4659
        %s4662 = sor.u32 256, 88
        %4663 = vbcast.lane.b32.xlu0 %v4617, %s4662
        %v4664 = vpop.permute.xlu0 %4663
        %s4666 = sor.u32 256, 96
        %4667 = vbcast.lane.b32.xlu0 %v4617, %s4666
        %v4668 = vpop.permute.xlu0 %4667
        %s4670 = sor.u32 256, 104
        %4671 = vbcast.lane.b32.xlu0 %v4617, %s4670
        %v4672 = vpop.permute.xlu0 %4671
        %s4674 = sor.u32 256, 112
        %4675 = vbcast.lane.b32.xlu0 %v4617, %s4674
        %v4676 = vpop.permute.xlu0 %4675
        %s4678 = sor.u32 256, 120
        %4679 = vbcast.lane.b32.xlu0 %v4617, %s4678
        %v4680 = vpop.permute.xlu0 %4679
        %v4681 = vlaneseq
        %v4682 = vshrl.u32 %v4681, 7
        %v4683 = vsub.s32 5, %v4682
        %v4684 = vrot.slane %v577, %v4683
        %4686 = vbcast.lane.b32.xlu0 %v4684, 256
        %v4687 = vpop.permute.xlu0 %4686
        %s4689 = sor.u32 256, 8
        %4690 = vbcast.lane.b32.xlu0 %v4684, %s4689
        %v4691 = vpop.permute.xlu0 %4690
        %s4693 = sor.u32 256, 16
        %4694 = vbcast.lane.b32.xlu0 %v4684, %s4693
        %v4695 = vpop.permute.xlu0 %4694
        %s4697 = sor.u32 256, 24
        %4698 = vbcast.lane.b32.xlu0 %v4684, %s4697
        %v4699 = vpop.permute.xlu0 %4698
        %s4701 = sor.u32 256, 32
        %4702 = vbcast.lane.b32.xlu0 %v4684, %s4701
        %v4703 = vpop.permute.xlu0 %4702
        %s4705 = sor.u32 256, 40
        %4706 = vbcast.lane.b32.xlu0 %v4684, %s4705
        %v4707 = vpop.permute.xlu0 %4706
        %s4709 = sor.u32 256, 48
        %4710 = vbcast.lane.b32.xlu0 %v4684, %s4709
        %v4711 = vpop.permute.xlu0 %4710
        %s4713 = sor.u32 256, 56
        %4714 = vbcast.lane.b32.xlu0 %v4684, %s4713
        %v4715 = vpop.permute.xlu0 %4714
        %s4717 = sor.u32 256, 64
        %4718 = vbcast.lane.b32.xlu0 %v4684, %s4717
        %v4719 = vpop.permute.xlu0 %4718
        %s4721 = sor.u32 256, 72
        %4722 = vbcast.lane.b32.xlu0 %v4684, %s4721
        %v4723 = vpop.permute.xlu0 %4722
        %s4725 = sor.u32 256, 80
        %4726 = vbcast.lane.b32.xlu0 %v4684, %s4725
        %v4727 = vpop.permute.xlu0 %4726
        %s4729 = sor.u32 256, 88
        %4730 = vbcast.lane.b32.xlu0 %v4684, %s4729
        %v4731 = vpop.permute.xlu0 %4730
        %s4733 = sor.u32 256, 96
        %4734 = vbcast.lane.b32.xlu0 %v4684, %s4733
        %v4735 = vpop.permute.xlu0 %4734
        %s4737 = sor.u32 256, 104
        %4738 = vbcast.lane.b32.xlu0 %v4684, %s4737
        %v4739 = vpop.permute.xlu0 %4738
        %s4741 = sor.u32 256, 112
        %4742 = vbcast.lane.b32.xlu0 %v4684, %s4741
        %v4743 = vpop.permute.xlu0 %4742
        %s4745 = sor.u32 256, 120
        %4746 = vbcast.lane.b32.xlu0 %v4684, %s4745
        %v4747 = vpop.permute.xlu0 %4746
        %v4748 = vlaneseq
        %v4749 = vshrl.u32 %v4748, 7
        %v4750 = vsub.s32 6, %v4749
        %v4751 = vrot.slane %v577, %v4750
        %4753 = vbcast.lane.b32.xlu0 %v4751, 256
        %v4754 = vpop.permute.xlu0 %4753
        %s4756 = sor.u32 256, 8
        %4757 = vbcast.lane.b32.xlu0 %v4751, %s4756
        %v4758 = vpop.permute.xlu0 %4757
        %s4760 = sor.u32 256, 16
        %4761 = vbcast.lane.b32.xlu0 %v4751, %s4760
        %v4762 = vpop.permute.xlu0 %4761
        %s4764 = sor.u32 256, 24
        %4765 = vbcast.lane.b32.xlu0 %v4751, %s4764
        %v4766 = vpop.permute.xlu0 %4765
        %s4768 = sor.u32 256, 32
        %4769 = vbcast.lane.b32.xlu0 %v4751, %s4768
        %v4770 = vpop.permute.xlu0 %4769
        %s4772 = sor.u32 256, 40
        %4773 = vbcast.lane.b32.xlu0 %v4751, %s4772
        %v4774 = vpop.permute.xlu0 %4773
        %s4776 = sor.u32 256, 48
        %4777 = vbcast.lane.b32.xlu0 %v4751, %s4776
        %v4778 = vpop.permute.xlu0 %4777
        %s4780 = sor.u32 256, 56
        %4781 = vbcast.lane.b32.xlu0 %v4751, %s4780
        %v4782 = vpop.permute.xlu0 %4781
        %s4784 = sor.u32 256, 64
        %4785 = vbcast.lane.b32.xlu0 %v4751, %s4784
        %v4786 = vpop.permute.xlu0 %4785
        %s4788 = sor.u32 256, 72
        %4789 = vbcast.lane.b32.xlu0 %v4751, %s4788
        %v4790 = vpop.permute.xlu0 %4789
        %s4792 = sor.u32 256, 80
        %4793 = vbcast.lane.b32.xlu0 %v4751, %s4792
        %v4794 = vpop.permute.xlu0 %4793
        %s4796 = sor.u32 256, 88
        %4797 = vbcast.lane.b32.xlu0 %v4751, %s4796
        %v4798 = vpop.permute.xlu0 %4797
        %s4800 = sor.u32 256, 96
        %4801 = vbcast.lane.b32.xlu0 %v4751, %s4800
        %v4802 = vpop.permute.xlu0 %4801
        %s4804 = sor.u32 256, 104
        %4805 = vbcast.lane.b32.xlu0 %v4751, %s4804
        %v4806 = vpop.permute.xlu0 %4805
        %s4808 = sor.u32 256, 112
        %4809 = vbcast.lane.b32.xlu0 %v4751, %s4808
        %v4810 = vpop.permute.xlu0 %4809
        %s4812 = sor.u32 256, 120
        %4813 = vbcast.lane.b32.xlu0 %v4751, %s4812
        %v4814 = vpop.permute.xlu0 %4813
        %v4815 = vlaneseq
        %v4816 = vshrl.u32 %v4815, 7
        %v4817 = vsub.s32 7, %v4816
        %v4818 = vrot.slane %v577, %v4817
        %4820 = vbcast.lane.b32.xlu0 %v4818, 256
        %v4821 = vpop.permute.xlu0 %4820
        %s4823 = sor.u32 256, 8
        %4824 = vbcast.lane.b32.xlu0 %v4818, %s4823
        %v4825 = vpop.permute.xlu0 %4824
        %s4827 = sor.u32 256, 16
        %4828 = vbcast.lane.b32.xlu0 %v4818, %s4827
        %v4829 = vpop.permute.xlu0 %4828
        %s4831 = sor.u32 256, 24
        %4832 = vbcast.lane.b32.xlu0 %v4818, %s4831
        %v4833 = vpop.permute.xlu0 %4832
        %s4835 = sor.u32 256, 32
        %4836 = vbcast.lane.b32.xlu0 %v4818, %s4835
        %v4837 = vpop.permute.xlu0 %4836
        %s4839 = sor.u32 256, 40
        %4840 = vbcast.lane.b32.xlu0 %v4818, %s4839
        %v4841 = vpop.permute.xlu0 %4840
        %s4843 = sor.u32 256, 48
        %4844 = vbcast.lane.b32.xlu0 %v4818, %s4843
        %v4845 = vpop.permute.xlu0 %4844
        %s4847 = sor.u32 256, 56
        %4848 = vbcast.lane.b32.xlu0 %v4818, %s4847
        %v4849 = vpop.permute.xlu0 %4848
        %s4851 = sor.u32 256, 64
        %4852 = vbcast.lane.b32.xlu0 %v4818, %s4851
        %v4853 = vpop.permute.xlu0 %4852
        %s4855 = sor.u32 256, 72
        %4856 = vbcast.lane.b32.xlu0 %v4818, %s4855
        %v4857 = vpop.permute.xlu0 %4856
        %s4859 = sor.u32 256, 80
        %4860 = vbcast.lane.b32.xlu0 %v4818, %s4859
        %v4861 = vpop.permute.xlu0 %4860
        %s4863 = sor.u32 256, 88
        %4864 = vbcast.lane.b32.xlu0 %v4818, %s4863
        %v4865 = vpop.permute.xlu0 %4864
        %s4867 = sor.u32 256, 96
        %4868 = vbcast.lane.b32.xlu0 %v4818, %s4867
        %v4869 = vpop.permute.xlu0 %4868
        %s4871 = sor.u32 256, 104
        %4872 = vbcast.lane.b32.xlu0 %v4818, %s4871
        %v4873 = vpop.permute.xlu0 %4872
        %s4875 = sor.u32 256, 112
        %4876 = vbcast.lane.b32.xlu0 %v4818, %s4875
        %v4877 = vpop.permute.xlu0 %4876
        %s4879 = sor.u32 256, 120
        %4880 = vbcast.lane.b32.xlu0 %v4818, %s4879
        %v4881 = vpop.permute.xlu0 %4880
        %v4882 = vadd.f32 %v600, %v578
        %v4883 = vadd.f32 %v604, %v579
        %v4884 = vadd.f32 %v608, %v580
        %v4885 = vadd.f32 %v612, %v581
        %v4886 = vadd.f32 %v616, %v582
        %v4887 = vadd.f32 %v620, %v583
        %v4888 = vadd.f32 %v624, %v584
        %v4889 = vadd.f32 %v628, %v585
        %v4890 = vadd.f32 %v632, %v586
        %v4891 = vadd.f32 %v636, %v587
        %v4892 = vadd.f32 %v640, %v588
        %v4893 = vadd.f32 %v644, %v589
        %v4894 = vadd.f32 %v648, %v590
        %v4895 = vadd.f32 %v652, %v591
        %v4896 = vadd.f32 %v656, %v592
        %v4897 = vadd.f32 %v660, %v593
        %v4898 = vadd.f32 %v667, %v578
        %v4899 = vadd.f32 %v671, %v579
        %v4900 = vadd.f32 %v675, %v580
        %v4901 = vadd.f32 %v679, %v581
        %v4902 = vadd.f32 %v683, %v582
        %v4903 = vadd.f32 %v687, %v583
        %v4904 = vadd.f32 %v691, %v584
        %v4905 = vadd.f32 %v695, %v585
        %v4906 = vadd.f32 %v699, %v586
        %v4907 = vadd.f32 %v703, %v587
        %v4908 = vadd.f32 %v707, %v588
        %v4909 = vadd.f32 %v711, %v589
        %v4910 = vadd.f32 %v715, %v590
        %v4911 = vadd.f32 %v719, %v591
        %v4912 = vadd.f32 %v723, %v592
        %v4913 = vadd.f32 %v727, %v593
        %v4914 = vadd.f32 %v734, %v578
        %v4915 = vadd.f32 %v738, %v579
        %v4916 = vadd.f32 %v742, %v580
        %v4917 = vadd.f32 %v746, %v581
        %v4918 = vadd.f32 %v750, %v582
        %v4919 = vadd.f32 %v754, %v583
        %v4920 = vadd.f32 %v758, %v584
        %v4921 = vadd.f32 %v762, %v585
        %v4922 = vadd.f32 %v766, %v586
        %v4923 = vadd.f32 %v770, %v587
        %v4924 = vadd.f32 %v774, %v588
        %v4925 = vadd.f32 %v778, %v589
        %v4926 = vadd.f32 %v782, %v590
        %v4927 = vadd.f32 %v786, %v591
        %v4928 = vadd.f32 %v790, %v592
        %v4929 = vadd.f32 %v794, %v593
        %v4930 = vadd.f32 %v801, %v578
        %v4931 = vadd.f32 %v805, %v579
        %v4932 = vadd.f32 %v809, %v580
        %v4933 = vadd.f32 %v813, %v581
        %v4934 = vadd.f32 %v817, %v582
        %v4935 = vadd.f32 %v821, %v583
        %v4936 = vadd.f32 %v825, %v584
        %v4937 = vadd.f32 %v829, %v585
        %v4938 = vadd.f32 %v833, %v586
        %v4939 = vadd.f32 %v837, %v587
        %v4940 = vadd.f32 %v841, %v588
        %v4941 = vadd.f32 %v845, %v589
        %v4942 = vadd.f32 %v849, %v590
        %v4943 = vadd.f32 %v853, %v591
        %v4944 = vadd.f32 %v857, %v592
        %v4945 = vadd.f32 %v861, %v593
        %v4946 = vadd.f32 %v868, %v578
        %v4947 = vadd.f32 %v872, %v579
        %v4948 = vadd.f32 %v876, %v580
        %v4949 = vadd.f32 %v880, %v581
        %v4950 = vadd.f32 %v884, %v582
        %v4951 = vadd.f32 %v888, %v583
        %v4952 = vadd.f32 %v892, %v584
        %v4953 = vadd.f32 %v896, %v585
        %v4954 = vadd.f32 %v900, %v586
        %v4955 = vadd.f32 %v904, %v587
        %v4956 = vadd.f32 %v908, %v588
        %v4957 = vadd.f32 %v912, %v589
        %v4958 = vadd.f32 %v916, %v590
        %v4959 = vadd.f32 %v920, %v591
        %v4960 = vadd.f32 %v924, %v592
        %v4961 = vadd.f32 %v928, %v593
        %v4962 = vadd.f32 %v935, %v578
        %v4963 = vadd.f32 %v939, %v579
        %v4964 = vadd.f32 %v943, %v580
        %v4965 = vadd.f32 %v947, %v581
        %v4966 = vadd.f32 %v951, %v582
        %v4967 = vadd.f32 %v955, %v583
        %v4968 = vadd.f32 %v959, %v584
        %v4969 = vadd.f32 %v963, %v585
        %v4970 = vadd.f32 %v967, %v586
        %v4971 = vadd.f32 %v971, %v587
        %v4972 = vadd.f32 %v975, %v588
        %v4973 = vadd.f32 %v979, %v589
        %v4974 = vadd.f32 %v983, %v590
        %v4975 = vadd.f32 %v987, %v591
        %v4976 = vadd.f32 %v991, %v592
        %v4977 = vadd.f32 %v995, %v593
        %v4978 = vadd.f32 %v1002, %v578
        %v4979 = vadd.f32 %v1006, %v579
        %v4980 = vadd.f32 %v1010, %v580
        %v4981 = vadd.f32 %v1014, %v581
        %v4982 = vadd.f32 %v1018, %v582
        %v4983 = vadd.f32 %v1022, %v583
        %v4984 = vadd.f32 %v1026, %v584
        %v4985 = vadd.f32 %v1030, %v585
        %v4986 = vadd.f32 %v1034, %v586
        %v4987 = vadd.f32 %v1038, %v587
        %v4988 = vadd.f32 %v1042, %v588
        %v4989 = vadd.f32 %v1046, %v589
        %v4990 = vadd.f32 %v1050, %v590
        %v4991 = vadd.f32 %v1054, %v591
        %v4992 = vadd.f32 %v1058, %v592
        %v4993 = vadd.f32 %v1062, %v593
        %v4994 = vadd.f32 %v1069, %v578
        %v4995 = vadd.f32 %v1073, %v579
        %v4996 = vadd.f32 %v1077, %v580
        %v4997 = vadd.f32 %v1081, %v581
        %v4998 = vadd.f32 %v1085, %v582
        %v4999 = vadd.f32 %v1089, %v583
        %v5000 = vadd.f32 %v1093, %v584
        %v5001 = vadd.f32 %v1097, %v585
        %v5002 = vadd.f32 %v1101, %v586
        %v5003 = vadd.f32 %v1105, %v587
        %v5004 = vadd.f32 %v1109, %v588
        %v5005 = vadd.f32 %v1113, %v589
        %v5006 = vadd.f32 %v1117, %v590
        %v5007 = vadd.f32 %v1121, %v591
        %v5008 = vadd.f32 %v1125, %v592
        %v5009 = vadd.f32 %v1129, %v593
        %v5010 = vadd.f32 %v1136, %v578
        %v5011 = vadd.f32 %v1140, %v579
        %v5012 = vadd.f32 %v1144, %v580
        %v5013 = vadd.f32 %v1148, %v581
        %v5014 = vadd.f32 %v1152, %v582
        %v5015 = vadd.f32 %v1156, %v583
        %v5016 = vadd.f32 %v1160, %v584
        %v5017 = vadd.f32 %v1164, %v585
        %v5018 = vadd.f32 %v1168, %v586
        %v5019 = vadd.f32 %v1172, %v587
        %v5020 = vadd.f32 %v1176, %v588
        %v5021 = vadd.f32 %v1180, %v589
        %v5022 = vadd.f32 %v1184, %v590
        %v5023 = vadd.f32 %v1188, %v591
        %v5024 = vadd.f32 %v1192, %v592
        %v5025 = vadd.f32 %v1196, %v593
        %v5026 = vadd.f32 %v1203, %v578
        %v5027 = vadd.f32 %v1207, %v579
        %v5028 = vadd.f32 %v1211, %v580
        %v5029 = vadd.f32 %v1215, %v581
        %v5030 = vadd.f32 %v1219, %v582
        %v5031 = vadd.f32 %v1223, %v583
        %v5032 = vadd.f32 %v1227, %v584
        %v5033 = vadd.f32 %v1231, %v585
        %v5034 = vadd.f32 %v1235, %v586
        %v5035 = vadd.f32 %v1239, %v587
        %v5036 = vadd.f32 %v1243, %v588
        %v5037 = vadd.f32 %v1247, %v589
        %v5038 = vadd.f32 %v1251, %v590
        %v5039 = vadd.f32 %v1255, %v591
        %v5040 = vadd.f32 %v1259, %v592
        %v5041 = vadd.f32 %v1263, %v593
        %v5042 = vadd.f32 %v1270, %v578
        %v5043 = vadd.f32 %v1274, %v579
        %v5044 = vadd.f32 %v1278, %v580
        %v5045 = vadd.f32 %v1282, %v581
        %v5046 = vadd.f32 %v1286, %v582
        %v5047 = vadd.f32 %v1290, %v583
        %v5048 = vadd.f32 %v1294, %v584
        %v5049 = vadd.f32 %v1298, %v585
        %v5050 = vadd.f32 %v1302, %v586
        %v5051 = vadd.f32 %v1306, %v587
        %v5052 = vadd.f32 %v1310, %v588
        %v5053 = vadd.f32 %v1314, %v589
        %v5054 = vadd.f32 %v1318, %v590
        %v5055 = vadd.f32 %v1322, %v591
        %v5056 = vadd.f32 %v1326, %v592
        %v5057 = vadd.f32 %v1330, %v593
        %v5058 = vadd.f32 %v1337, %v578
        %v5059 = vadd.f32 %v1341, %v579
        %v5060 = vadd.f32 %v1345, %v580
        %v5061 = vadd.f32 %v1349, %v581
        %v5062 = vadd.f32 %v1353, %v582
        %v5063 = vadd.f32 %v1357, %v583
        %v5064 = vadd.f32 %v1361, %v584
        %v5065 = vadd.f32 %v1365, %v585
        %v5066 = vadd.f32 %v1369, %v586
        %v5067 = vadd.f32 %v1373, %v587
        %v5068 = vadd.f32 %v1377, %v588
        %v5069 = vadd.f32 %v1381, %v589
        %v5070 = vadd.f32 %v1385, %v590
        %v5071 = vadd.f32 %v1389, %v591
        %v5072 = vadd.f32 %v1393, %v592
        %v5073 = vadd.f32 %v1397, %v593
        %v5074 = vadd.f32 %v1404, %v578
        %v5075 = vadd.f32 %v1408, %v579
        %v5076 = vadd.f32 %v1412, %v580
        %v5077 = vadd.f32 %v1416, %v581
        %v5078 = vadd.f32 %v1420, %v582
        %v5079 = vadd.f32 %v1424, %v583
        %v5080 = vadd.f32 %v1428, %v584
        %v5081 = vadd.f32 %v1432, %v585
        %v5082 = vadd.f32 %v1436, %v586
        %v5083 = vadd.f32 %v1440, %v587
        %v5084 = vadd.f32 %v1444, %v588
        %v5085 = vadd.f32 %v1448, %v589
        %v5086 = vadd.f32 %v1452, %v590
        %v5087 = vadd.f32 %v1456, %v591
        %v5088 = vadd.f32 %v1460, %v592
        %v5089 = vadd.f32 %v1464, %v593
        %v5090 = vadd.f32 %v1471, %v578
        %v5091 = vadd.f32 %v1475, %v579
        %v5092 = vadd.f32 %v1479, %v580
        %v5093 = vadd.f32 %v1483, %v581
        %v5094 = vadd.f32 %v1487, %v582
        %v5095 = vadd.f32 %v1491, %v583
        %v5096 = vadd.f32 %v1495, %v584
        %v5097 = vadd.f32 %v1499, %v585
        %v5098 = vadd.f32 %v1503, %v586
        %v5099 = vadd.f32 %v1507, %v587
        %v5100 = vadd.f32 %v1511, %v588
        %v5101 = vadd.f32 %v1515, %v589
        %v5102 = vadd.f32 %v1519, %v590
        %v5103 = vadd.f32 %v1523, %v591
        %v5104 = vadd.f32 %v1527, %v592
        %v5105 = vadd.f32 %v1531, %v593
        %v5106 = vadd.f32 %v1538, %v578
        %v5107 = vadd.f32 %v1542, %v579
        %v5108 = vadd.f32 %v1546, %v580
        %v5109 = vadd.f32 %v1550, %v581
        %v5110 = vadd.f32 %v1554, %v582
        %v5111 = vadd.f32 %v1558, %v583
        %v5112 = vadd.f32 %v1562, %v584
        %v5113 = vadd.f32 %v1566, %v585
        %v5114 = vadd.f32 %v1570, %v586
        %v5115 = vadd.f32 %v1574, %v587
        %v5116 = vadd.f32 %v1578, %v588
        %v5117 = vadd.f32 %v1582, %v589
        %v5118 = vadd.f32 %v1586, %v590
        %v5119 = vadd.f32 %v1590, %v591
        %v5120 = vadd.f32 %v1594, %v592
        %v5121 = vadd.f32 %v1598, %v593
        %v5122 = vadd.f32 %v1605, %v578
        %v5123 = vadd.f32 %v1609, %v579
        %v5124 = vadd.f32 %v1613, %v580
        %v5125 = vadd.f32 %v1617, %v581
        %v5126 = vadd.f32 %v1621, %v582
        %v5127 = vadd.f32 %v1625, %v583
        %v5128 = vadd.f32 %v1629, %v584
        %v5129 = vadd.f32 %v1633, %v585
        %v5130 = vadd.f32 %v1637, %v586
        %v5131 = vadd.f32 %v1641, %v587
        %v5132 = vadd.f32 %v1645, %v588
        %v5133 = vadd.f32 %v1649, %v589
        %v5134 = vadd.f32 %v1653, %v590
        %v5135 = vadd.f32 %v1657, %v591
        %v5136 = vadd.f32 %v1661, %v592
        %v5137 = vadd.f32 %v1665, %v593
        %v5138 = vadd.f32 %v1672, %v578
        %v5139 = vadd.f32 %v1676, %v579
        %v5140 = vadd.f32 %v1680, %v580
        %v5141 = vadd.f32 %v1684, %v581
        %v5142 = vadd.f32 %v1688, %v582
        %v5143 = vadd.f32 %v1692, %v583
        %v5144 = vadd.f32 %v1696, %v584
        %v5145 = vadd.f32 %v1700, %v585
        %v5146 = vadd.f32 %v1704, %v586
        %v5147 = vadd.f32 %v1708, %v587
        %v5148 = vadd.f32 %v1712, %v588
        %v5149 = vadd.f32 %v1716, %v589
        %v5150 = vadd.f32 %v1720, %v590
        %v5151 = vadd.f32 %v1724, %v591
        %v5152 = vadd.f32 %v1728, %v592
        %v5153 = vadd.f32 %v1732, %v593
        %v5154 = vadd.f32 %v1739, %v578
        %v5155 = vadd.f32 %v1743, %v579
        %v5156 = vadd.f32 %v1747, %v580
        %v5157 = vadd.f32 %v1751, %v581
        %v5158 = vadd.f32 %v1755, %v582
        %v5159 = vadd.f32 %v1759, %v583
        %v5160 = vadd.f32 %v1763, %v584
        %v5161 = vadd.f32 %v1767, %v585
        %v5162 = vadd.f32 %v1771, %v586
        %v5163 = vadd.f32 %v1775, %v587
        %v5164 = vadd.f32 %v1779, %v588
        %v5165 = vadd.f32 %v1783, %v589
        %v5166 = vadd.f32 %v1787, %v590
        %v5167 = vadd.f32 %v1791, %v591
        %v5168 = vadd.f32 %v1795, %v592
        %v5169 = vadd.f32 %v1799, %v593
        %v5170 = vadd.f32 %v1806, %v578
        %v5171 = vadd.f32 %v1810, %v579
        %v5172 = vadd.f32 %v1814, %v580
        %v5173 = vadd.f32 %v1818, %v581
        %v5174 = vadd.f32 %v1822, %v582
        %v5175 = vadd.f32 %v1826, %v583
        %v5176 = vadd.f32 %v1830, %v584
        %v5177 = vadd.f32 %v1834, %v585
        %v5178 = vadd.f32 %v1838, %v586
        %v5179 = vadd.f32 %v1842, %v587
        %v5180 = vadd.f32 %v1846, %v588
        %v5181 = vadd.f32 %v1850, %v589
        %v5182 = vadd.f32 %v1854, %v590
        %v5183 = vadd.f32 %v1858, %v591
        %v5184 = vadd.f32 %v1862, %v592
        %v5185 = vadd.f32 %v1866, %v593
        %v5186 = vadd.f32 %v1873, %v578
        %v5187 = vadd.f32 %v1877, %v579
        %v5188 = vadd.f32 %v1881, %v580
        %v5189 = vadd.f32 %v1885, %v581
        %v5190 = vadd.f32 %v1889, %v582
        %v5191 = vadd.f32 %v1893, %v583
        %v5192 = vadd.f32 %v1897, %v584
        %v5193 = vadd.f32 %v1901, %v585
        %v5194 = vadd.f32 %v1905, %v586
        %v5195 = vadd.f32 %v1909, %v587
        %v5196 = vadd.f32 %v1913, %v588
        %v5197 = vadd.f32 %v1917, %v589
        %v5198 = vadd.f32 %v1921, %v590
        %v5199 = vadd.f32 %v1925, %v591
        %v5200 = vadd.f32 %v1929, %v592
        %v5201 = vadd.f32 %v1933, %v593
        %v5202 = vadd.f32 %v1940, %v578
        %v5203 = vadd.f32 %v1944, %v579
        %v5204 = vadd.f32 %v1948, %v580
        %v5205 = vadd.f32 %v1952, %v581
        %v5206 = vadd.f32 %v1956, %v582
        %v5207 = vadd.f32 %v1960, %v583
        %v5208 = vadd.f32 %v1964, %v584
        %v5209 = vadd.f32 %v1968, %v585
        %v5210 = vadd.f32 %v1972, %v586
        %v5211 = vadd.f32 %v1976, %v587
        %v5212 = vadd.f32 %v1980, %v588
        %v5213 = vadd.f32 %v1984, %v589
        %v5214 = vadd.f32 %v1988, %v590
        %v5215 = vadd.f32 %v1992, %v591
        %v5216 = vadd.f32 %v1996, %v592
        %v5217 = vadd.f32 %v2000, %v593
        %v5218 = vadd.f32 %v2007, %v578
        %v5219 = vadd.f32 %v2011, %v579
        %v5220 = vadd.f32 %v2015, %v580
        %v5221 = vadd.f32 %v2019, %v581
        %v5222 = vadd.f32 %v2023, %v582
        %v5223 = vadd.f32 %v2027, %v583
        %v5224 = vadd.f32 %v2031, %v584
        %v5225 = vadd.f32 %v2035, %v585
        %v5226 = vadd.f32 %v2039, %v586
        %v5227 = vadd.f32 %v2043, %v587
        %v5228 = vadd.f32 %v2047, %v588
        %v5229 = vadd.f32 %v2051, %v589
        %v5230 = vadd.f32 %v2055, %v590
        %v5231 = vadd.f32 %v2059, %v591
        %v5232 = vadd.f32 %v2063, %v592
        %v5233 = vadd.f32 %v2067, %v593
        %v5234 = vadd.f32 %v2074, %v578
        %v5235 = vadd.f32 %v2078, %v579
        %v5236 = vadd.f32 %v2082, %v580
        %v5237 = vadd.f32 %v2086, %v581
        %v5238 = vadd.f32 %v2090, %v582
        %v5239 = vadd.f32 %v2094, %v583
        %v5240 = vadd.f32 %v2098, %v584
        %v5241 = vadd.f32 %v2102, %v585
        %v5242 = vadd.f32 %v2106, %v586
        %v5243 = vadd.f32 %v2110, %v587
        %v5244 = vadd.f32 %v2114, %v588
        %v5245 = vadd.f32 %v2118, %v589
        %v5246 = vadd.f32 %v2122, %v590
        %v5247 = vadd.f32 %v2126, %v591
        %v5248 = vadd.f32 %v2130, %v592
        %v5249 = vadd.f32 %v2134, %v593
        %v5250 = vadd.f32 %v2141, %v578
        %v5251 = vadd.f32 %v2145, %v579
        %v5252 = vadd.f32 %v2149, %v580
        %v5253 = vadd.f32 %v2153, %v581
        %v5254 = vadd.f32 %v2157, %v582
        %v5255 = vadd.f32 %v2161, %v583
        %v5256 = vadd.f32 %v2165, %v584
        %v5257 = vadd.f32 %v2169, %v585
        %v5258 = vadd.f32 %v2173, %v586
        %v5259 = vadd.f32 %v2177, %v587
        %v5260 = vadd.f32 %v2181, %v588
        %v5261 = vadd.f32 %v2185, %v589
        %v5262 = vadd.f32 %v2189, %v590
        %v5263 = vadd.f32 %v2193, %v591
        %v5264 = vadd.f32 %v2197, %v592
        %v5265 = vadd.f32 %v2201, %v593
        %v5266 = vadd.f32 %v2208, %v578
        %v5267 = vadd.f32 %v2212, %v579
        %v5268 = vadd.f32 %v2216, %v580
        %v5269 = vadd.f32 %v2220, %v581
        %v5270 = vadd.f32 %v2224, %v582
        %v5271 = vadd.f32 %v2228, %v583
        %v5272 = vadd.f32 %v2232, %v584
        %v5273 = vadd.f32 %v2236, %v585
        %v5274 = vadd.f32 %v2240, %v586
        %v5275 = vadd.f32 %v2244, %v587
        %v5276 = vadd.f32 %v2248, %v588
        %v5277 = vadd.f32 %v2252, %v589
        %v5278 = vadd.f32 %v2256, %v590
        %v5279 = vadd.f32 %v2260, %v591
        %v5280 = vadd.f32 %v2264, %v592
        %v5281 = vadd.f32 %v2268, %v593
        %v5282 = vadd.f32 %v2275, %v578
        %v5283 = vadd.f32 %v2279, %v579
        %v5284 = vadd.f32 %v2283, %v580
        %v5285 = vadd.f32 %v2287, %v581
        %v5286 = vadd.f32 %v2291, %v582
        %v5287 = vadd.f32 %v2295, %v583
        %v5288 = vadd.f32 %v2299, %v584
        %v5289 = vadd.f32 %v2303, %v585
        %v5290 = vadd.f32 %v2307, %v586
        %v5291 = vadd.f32 %v2311, %v587
        %v5292 = vadd.f32 %v2315, %v588
        %v5293 = vadd.f32 %v2319, %v589
        %v5294 = vadd.f32 %v2323, %v590
        %v5295 = vadd.f32 %v2327, %v591
        %v5296 = vadd.f32 %v2331, %v592
        %v5297 = vadd.f32 %v2335, %v593
        %v5298 = vadd.f32 %v2342, %v578
        %v5299 = vadd.f32 %v2346, %v579
        %v5300 = vadd.f32 %v2350, %v580
        %v5301 = vadd.f32 %v2354, %v581
        %v5302 = vadd.f32 %v2358, %v582
        %v5303 = vadd.f32 %v2362, %v583
        %v5304 = vadd.f32 %v2366, %v584
        %v5305 = vadd.f32 %v2370, %v585
        %v5306 = vadd.f32 %v2374, %v586
        %v5307 = vadd.f32 %v2378, %v587
        %v5308 = vadd.f32 %v2382, %v588
        %v5309 = vadd.f32 %v2386, %v589
        %v5310 = vadd.f32 %v2390, %v590
        %v5311 = vadd.f32 %v2394, %v591
        %v5312 = vadd.f32 %v2398, %v592
        %v5313 = vadd.f32 %v2402, %v593
        %v5314 = vadd.f32 %v2409, %v578
        %v5315 = vadd.f32 %v2413, %v579
        %v5316 = vadd.f32 %v2417, %v580
        %v5317 = vadd.f32 %v2421, %v581
        %v5318 = vadd.f32 %v2425, %v582
        %v5319 = vadd.f32 %v2429, %v583
        %v5320 = vadd.f32 %v2433, %v584
        %v5321 = vadd.f32 %v2437, %v585
        %v5322 = vadd.f32 %v2441, %v586
        %v5323 = vadd.f32 %v2445, %v587
        %v5324 = vadd.f32 %v2449, %v588
        %v5325 = vadd.f32 %v2453, %v589
        %v5326 = vadd.f32 %v2457, %v590
        %v5327 = vadd.f32 %v2461, %v591
        %v5328 = vadd.f32 %v2465, %v592
        %v5329 = vadd.f32 %v2469, %v593
        %v5330 = vadd.f32 %v2476, %v578
        %v5331 = vadd.f32 %v2480, %v579
        %v5332 = vadd.f32 %v2484, %v580
        %v5333 = vadd.f32 %v2488, %v581
        %v5334 = vadd.f32 %v2492, %v582
        %v5335 = vadd.f32 %v2496, %v583
        %v5336 = vadd.f32 %v2500, %v584
        %v5337 = vadd.f32 %v2504, %v585
        %v5338 = vadd.f32 %v2508, %v586
        %v5339 = vadd.f32 %v2512, %v587
        %v5340 = vadd.f32 %v2516, %v588
        %v5341 = vadd.f32 %v2520, %v589
        %v5342 = vadd.f32 %v2524, %v590
        %v5343 = vadd.f32 %v2528, %v591
        %v5344 = vadd.f32 %v2532, %v592
        %v5345 = vadd.f32 %v2536, %v593
        %v5346 = vadd.f32 %v2543, %v578
        %v5347 = vadd.f32 %v2547, %v579
        %v5348 = vadd.f32 %v2551, %v580
        %v5349 = vadd.f32 %v2555, %v581
        %v5350 = vadd.f32 %v2559, %v582
        %v5351 = vadd.f32 %v2563, %v583
        %v5352 = vadd.f32 %v2567, %v584
        %v5353 = vadd.f32 %v2571, %v585
        %v5354 = vadd.f32 %v2575, %v586
        %v5355 = vadd.f32 %v2579, %v587
        %v5356 = vadd.f32 %v2583, %v588
        %v5357 = vadd.f32 %v2587, %v589
        %v5358 = vadd.f32 %v2591, %v590
        %v5359 = vadd.f32 %v2595, %v591
        %v5360 = vadd.f32 %v2599, %v592
        %v5361 = vadd.f32 %v2603, %v593
        %v5362 = vadd.f32 %v2610, %v578
        %v5363 = vadd.f32 %v2614, %v579
        %v5364 = vadd.f32 %v2618, %v580
        %v5365 = vadd.f32 %v2622, %v581
        %v5366 = vadd.f32 %v2626, %v582
        %v5367 = vadd.f32 %v2630, %v583
        %v5368 = vadd.f32 %v2634, %v584
        %v5369 = vadd.f32 %v2638, %v585
        %v5370 = vadd.f32 %v2642, %v586
        %v5371 = vadd.f32 %v2646, %v587
        %v5372 = vadd.f32 %v2650, %v588
        %v5373 = vadd.f32 %v2654, %v589
        %v5374 = vadd.f32 %v2658, %v590
        %v5375 = vadd.f32 %v2662, %v591
        %v5376 = vadd.f32 %v2666, %v592
        %v5377 = vadd.f32 %v2670, %v593
        %v5378 = vadd.f32 %v2677, %v578
        %v5379 = vadd.f32 %v2681, %v579
        %v5380 = vadd.f32 %v2685, %v580
        %v5381 = vadd.f32 %v2689, %v581
        %v5382 = vadd.f32 %v2693, %v582
        %v5383 = vadd.f32 %v2697, %v583
        %v5384 = vadd.f32 %v2701, %v584
        %v5385 = vadd.f32 %v2705, %v585
        %v5386 = vadd.f32 %v2709, %v586
        %v5387 = vadd.f32 %v2713, %v587
        %v5388 = vadd.f32 %v2717, %v588
        %v5389 = vadd.f32 %v2721, %v589
        %v5390 = vadd.f32 %v2725, %v590
        %v5391 = vadd.f32 %v2729, %v591
        %v5392 = vadd.f32 %v2733, %v592
        %v5393 = vadd.f32 %v2737, %v593
        %v5394 = vadd.f32 %v2744, %v578
        %v5395 = vadd.f32 %v2748, %v579
        %v5396 = vadd.f32 %v2752, %v580
        %v5397 = vadd.f32 %v2756, %v581
        %v5398 = vadd.f32 %v2760, %v582
        %v5399 = vadd.f32 %v2764, %v583
        %v5400 = vadd.f32 %v2768, %v584
        %v5401 = vadd.f32 %v2772, %v585
        %v5402 = vadd.f32 %v2776, %v586
        %v5403 = vadd.f32 %v2780, %v587
        %v5404 = vadd.f32 %v2784, %v588
        %v5405 = vadd.f32 %v2788, %v589
        %v5406 = vadd.f32 %v2792, %v590
        %v5407 = vadd.f32 %v2796, %v591
        %v5408 = vadd.f32 %v2800, %v592
        %v5409 = vadd.f32 %v2804, %v593
        %v5410 = vadd.f32 %v2811, %v578
        %v5411 = vadd.f32 %v2815, %v579
        %v5412 = vadd.f32 %v2819, %v580
        %v5413 = vadd.f32 %v2823, %v581
        %v5414 = vadd.f32 %v2827, %v582
        %v5415 = vadd.f32 %v2831, %v583
        %v5416 = vadd.f32 %v2835, %v584
        %v5417 = vadd.f32 %v2839, %v585
        %v5418 = vadd.f32 %v2843, %v586
        %v5419 = vadd.f32 %v2847, %v587
        %v5420 = vadd.f32 %v2851, %v588
        %v5421 = vadd.f32 %v2855, %v589
        %v5422 = vadd.f32 %v2859, %v590
        %v5423 = vadd.f32 %v2863, %v591
        %v5424 = vadd.f32 %v2867, %v592
        %v5425 = vadd.f32 %v2871, %v593
        %v5426 = vadd.f32 %v2878, %v578
        %v5427 = vadd.f32 %v2882, %v579
        %v5428 = vadd.f32 %v2886, %v580
        %v5429 = vadd.f32 %v2890, %v581
        %v5430 = vadd.f32 %v2894, %v582
        %v5431 = vadd.f32 %v2898, %v583
        %v5432 = vadd.f32 %v2902, %v584
        %v5433 = vadd.f32 %v2906, %v585
        %v5434 = vadd.f32 %v2910, %v586
        %v5435 = vadd.f32 %v2914, %v587
        %v5436 = vadd.f32 %v2918, %v588
        %v5437 = vadd.f32 %v2922, %v589
        %v5438 = vadd.f32 %v2926, %v590
        %v5439 = vadd.f32 %v2930, %v591
        %v5440 = vadd.f32 %v2934, %v592
        %v5441 = vadd.f32 %v2938, %v593
        %v5442 = vadd.f32 %v2945, %v578
        %v5443 = vadd.f32 %v2949, %v579
        %v5444 = vadd.f32 %v2953, %v580
        %v5445 = vadd.f32 %v2957, %v581
        %v5446 = vadd.f32 %v2961, %v582
        %v5447 = vadd.f32 %v2965, %v583
        %v5448 = vadd.f32 %v2969, %v584
        %v5449 = vadd.f32 %v2973, %v585
        %v5450 = vadd.f32 %v2977, %v586
        %v5451 = vadd.f32 %v2981, %v587
        %v5452 = vadd.f32 %v2985, %v588
        %v5453 = vadd.f32 %v2989, %v589
        %v5454 = vadd.f32 %v2993, %v590
        %v5455 = vadd.f32 %v2997, %v591
        %v5456 = vadd.f32 %v3001, %v592
        %v5457 = vadd.f32 %v3005, %v593
        %v5458 = vadd.f32 %v3012, %v578
        %v5459 = vadd.f32 %v3016, %v579
        %v5460 = vadd.f32 %v3020, %v580
        %v5461 = vadd.f32 %v3024, %v581
        %v5462 = vadd.f32 %v3028, %v582
        %v5463 = vadd.f32 %v3032, %v583
        %v5464 = vadd.f32 %v3036, %v584
        %v5465 = vadd.f32 %v3040, %v585
        %v5466 = vadd.f32 %v3044, %v586
        %v5467 = vadd.f32 %v3048, %v587
        %v5468 = vadd.f32 %v3052, %v588
        %v5469 = vadd.f32 %v3056, %v589
        %v5470 = vadd.f32 %v3060, %v590
        %v5471 = vadd.f32 %v3064, %v591
        %v5472 = vadd.f32 %v3068, %v592
        %v5473 = vadd.f32 %v3072, %v593
        %v5474 = vadd.f32 %v3079, %v578
        %v5475 = vadd.f32 %v3083, %v579
        %v5476 = vadd.f32 %v3087, %v580
        %v5477 = vadd.f32 %v3091, %v581
        %v5478 = vadd.f32 %v3095, %v582
        %v5479 = vadd.f32 %v3099, %v583
        %v5480 = vadd.f32 %v3103, %v584
        %v5481 = vadd.f32 %v3107, %v585
        %v5482 = vadd.f32 %v3111, %v586
        %v5483 = vadd.f32 %v3115, %v587
        %v5484 = vadd.f32 %v3119, %v588
        %v5485 = vadd.f32 %v3123, %v589
        %v5486 = vadd.f32 %v3127, %v590
        %v5487 = vadd.f32 %v3131, %v591
        %v5488 = vadd.f32 %v3135, %v592
        %v5489 = vadd.f32 %v3139, %v593
        %v5490 = vadd.f32 %v3146, %v578
        %v5491 = vadd.f32 %v3150, %v579
        %v5492 = vadd.f32 %v3154, %v580
        %v5493 = vadd.f32 %v3158, %v581
        %v5494 = vadd.f32 %v3162, %v582
        %v5495 = vadd.f32 %v3166, %v583
        %v5496 = vadd.f32 %v3170, %v584
        %v5497 = vadd.f32 %v3174, %v585
        %v5498 = vadd.f32 %v3178, %v586
        %v5499 = vadd.f32 %v3182, %v587
        %v5500 = vadd.f32 %v3186, %v588
        %v5501 = vadd.f32 %v3190, %v589
        %v5502 = vadd.f32 %v3194, %v590
        %v5503 = vadd.f32 %v3198, %v591
        %v5504 = vadd.f32 %v3202, %v592
        %v5505 = vadd.f32 %v3206, %v593
        %v5506 = vadd.f32 %v3213, %v578
        %v5507 = vadd.f32 %v3217, %v579
        %v5508 = vadd.f32 %v3221, %v580
        %v5509 = vadd.f32 %v3225, %v581
        %v5510 = vadd.f32 %v3229, %v582
        %v5511 = vadd.f32 %v3233, %v583
        %v5512 = vadd.f32 %v3237, %v584
        %v5513 = vadd.f32 %v3241, %v585
        %v5514 = vadd.f32 %v3245, %v586
        %v5515 = vadd.f32 %v3249, %v587
        %v5516 = vadd.f32 %v3253, %v588
        %v5517 = vadd.f32 %v3257, %v589
        %v5518 = vadd.f32 %v3261, %v590
        %v5519 = vadd.f32 %v3265, %v591
        %v5520 = vadd.f32 %v3269, %v592
        %v5521 = vadd.f32 %v3273, %v593
        %v5522 = vadd.f32 %v3280, %v578
        %v5523 = vadd.f32 %v3284, %v579
        %v5524 = vadd.f32 %v3288, %v580
        %v5525 = vadd.f32 %v3292, %v581
        %v5526 = vadd.f32 %v3296, %v582
        %v5527 = vadd.f32 %v3300, %v583
        %v5528 = vadd.f32 %v3304, %v584
        %v5529 = vadd.f32 %v3308, %v585
        %v5530 = vadd.f32 %v3312, %v586
        %v5531 = vadd.f32 %v3316, %v587
        %v5532 = vadd.f32 %v3320, %v588
        %v5533 = vadd.f32 %v3324, %v589
        %v5534 = vadd.f32 %v3328, %v590
        %v5535 = vadd.f32 %v3332, %v591
        %v5536 = vadd.f32 %v3336, %v592
        %v5537 = vadd.f32 %v3340, %v593
        %v5538 = vadd.f32 %v3347, %v578
        %v5539 = vadd.f32 %v3351, %v579
        %v5540 = vadd.f32 %v3355, %v580
        %v5541 = vadd.f32 %v3359, %v581
        %v5542 = vadd.f32 %v3363, %v582
        %v5543 = vadd.f32 %v3367, %v583
        %v5544 = vadd.f32 %v3371, %v584
        %v5545 = vadd.f32 %v3375, %v585
        %v5546 = vadd.f32 %v3379, %v586
        %v5547 = vadd.f32 %v3383, %v587
        %v5548 = vadd.f32 %v3387, %v588
        %v5549 = vadd.f32 %v3391, %v589
        %v5550 = vadd.f32 %v3395, %v590
        %v5551 = vadd.f32 %v3399, %v591
        %v5552 = vadd.f32 %v3403, %v592
        %v5553 = vadd.f32 %v3407, %v593
        %v5554 = vadd.f32 %v3414, %v578
        %v5555 = vadd.f32 %v3418, %v579
        %v5556 = vadd.f32 %v3422, %v580
        %v5557 = vadd.f32 %v3426, %v581
        %v5558 = vadd.f32 %v3430, %v582
        %v5559 = vadd.f32 %v3434, %v583
        %v5560 = vadd.f32 %v3438, %v584
        %v5561 = vadd.f32 %v3442, %v585
        %v5562 = vadd.f32 %v3446, %v586
        %v5563 = vadd.f32 %v3450, %v587
        %v5564 = vadd.f32 %v3454, %v588
        %v5565 = vadd.f32 %v3458, %v589
        %v5566 = vadd.f32 %v3462, %v590
        %v5567 = vadd.f32 %v3466, %v591
        %v5568 = vadd.f32 %v3470, %v592
        %v5569 = vadd.f32 %v3474, %v593
        %v5570 = vadd.f32 %v3481, %v578
        %v5571 = vadd.f32 %v3485, %v579
        %v5572 = vadd.f32 %v3489, %v580
        %v5573 = vadd.f32 %v3493, %v581
        %v5574 = vadd.f32 %v3497, %v582
        %v5575 = vadd.f32 %v3501, %v583
        %v5576 = vadd.f32 %v3505, %v584
        %v5577 = vadd.f32 %v3509, %v585
        %v5578 = vadd.f32 %v3513, %v586
        %v5579 = vadd.f32 %v3517, %v587
        %v5580 = vadd.f32 %v3521, %v588
        %v5581 = vadd.f32 %v3525, %v589
        %v5582 = vadd.f32 %v3529, %v590
        %v5583 = vadd.f32 %v3533, %v591
        %v5584 = vadd.f32 %v3537, %v592
        %v5585 = vadd.f32 %v3541, %v593
        %v5586 = vadd.f32 %v3548, %v578
        %v5587 = vadd.f32 %v3552, %v579
        %v5588 = vadd.f32 %v3556, %v580
        %v5589 = vadd.f32 %v3560, %v581
        %v5590 = vadd.f32 %v3564, %v582
        %v5591 = vadd.f32 %v3568, %v583
        %v5592 = vadd.f32 %v3572, %v584
        %v5593 = vadd.f32 %v3576, %v585
        %v5594 = vadd.f32 %v3580, %v586
        %v5595 = vadd.f32 %v3584, %v587
        %v5596 = vadd.f32 %v3588, %v588
        %v5597 = vadd.f32 %v3592, %v589
        %v5598 = vadd.f32 %v3596, %v590
        %v5599 = vadd.f32 %v3600, %v591
        %v5600 = vadd.f32 %v3604, %v592
        %v5601 = vadd.f32 %v3608, %v593
        %v5602 = vadd.f32 %v3615, %v578
        %v5603 = vadd.f32 %v3619, %v579
        %v5604 = vadd.f32 %v3623, %v580
        %v5605 = vadd.f32 %v3627, %v581
        %v5606 = vadd.f32 %v3631, %v582
        %v5607 = vadd.f32 %v3635, %v583
        %v5608 = vadd.f32 %v3639, %v584
        %v5609 = vadd.f32 %v3643, %v585
        %v5610 = vadd.f32 %v3647, %v586
        %v5611 = vadd.f32 %v3651, %v587
        %v5612 = vadd.f32 %v3655, %v588
        %v5613 = vadd.f32 %v3659, %v589
        %v5614 = vadd.f32 %v3663, %v590
        %v5615 = vadd.f32 %v3667, %v591
        %v5616 = vadd.f32 %v3671, %v592
        %v5617 = vadd.f32 %v3675, %v593
        %v5618 = vadd.f32 %v3682, %v578
        %v5619 = vadd.f32 %v3686, %v579
        %v5620 = vadd.f32 %v3690, %v580
        %v5621 = vadd.f32 %v3694, %v581
        %v5622 = vadd.f32 %v3698, %v582
        %v5623 = vadd.f32 %v3702, %v583
        %v5624 = vadd.f32 %v3706, %v584
        %v5625 = vadd.f32 %v3710, %v585
        %v5626 = vadd.f32 %v3714, %v586
        %v5627 = vadd.f32 %v3718, %v587
        %v5628 = vadd.f32 %v3722, %v588
        %v5629 = vadd.f32 %v3726, %v589
        %v5630 = vadd.f32 %v3730, %v590
        %v5631 = vadd.f32 %v3734, %v591
        %v5632 = vadd.f32 %v3738, %v592
        %v5633 = vadd.f32 %v3742, %v593
        %v5634 = vadd.f32 %v3749, %v578
        %v5635 = vadd.f32 %v3753, %v579
        %v5636 = vadd.f32 %v3757, %v580
        %v5637 = vadd.f32 %v3761, %v581
        %v5638 = vadd.f32 %v3765, %v582
        %v5639 = vadd.f32 %v3769, %v583
        %v5640 = vadd.f32 %v3773, %v584
        %v5641 = vadd.f32 %v3777, %v585
        %v5642 = vadd.f32 %v3781, %v586
        %v5643 = vadd.f32 %v3785, %v587
        %v5644 = vadd.f32 %v3789, %v588
        %v5645 = vadd.f32 %v3793, %v589
        %v5646 = vadd.f32 %v3797, %v590
        %v5647 = vadd.f32 %v3801, %v591
        %v5648 = vadd.f32 %v3805, %v592
        %v5649 = vadd.f32 %v3809, %v593
        %v5650 = vadd.f32 %v3816, %v578
        %v5651 = vadd.f32 %v3820, %v579
        %v5652 = vadd.f32 %v3824, %v580
        %v5653 = vadd.f32 %v3828, %v581
        %v5654 = vadd.f32 %v3832, %v582
        %v5655 = vadd.f32 %v3836, %v583
        %v5656 = vadd.f32 %v3840, %v584
        %v5657 = vadd.f32 %v3844, %v585
        %v5658 = vadd.f32 %v3848, %v586
        %v5659 = vadd.f32 %v3852, %v587
        %v5660 = vadd.f32 %v3856, %v588
        %v5661 = vadd.f32 %v3860, %v589
        %v5662 = vadd.f32 %v3864, %v590
        %v5663 = vadd.f32 %v3868, %v591
        %v5664 = vadd.f32 %v3872, %v592
        %v5665 = vadd.f32 %v3876, %v593
        %v5666 = vadd.f32 %v3883, %v578
        %v5667 = vadd.f32 %v3887, %v579
        %v5668 = vadd.f32 %v3891, %v580
        %v5669 = vadd.f32 %v3895, %v581
        %v5670 = vadd.f32 %v3899, %v582
        %v5671 = vadd.f32 %v3903, %v583
        %v5672 = vadd.f32 %v3907, %v584
        %v5673 = vadd.f32 %v3911, %v585
        %v5674 = vadd.f32 %v3915, %v586
        %v5675 = vadd.f32 %v3919, %v587
        %v5676 = vadd.f32 %v3923, %v588
        %v5677 = vadd.f32 %v3927, %v589
        %v5678 = vadd.f32 %v3931, %v590
        %v5679 = vadd.f32 %v3935, %v591
        %v5680 = vadd.f32 %v3939, %v592
        %v5681 = vadd.f32 %v3943, %v593
        %v5682 = vadd.f32 %v3950, %v578
        %v5683 = vadd.f32 %v3954, %v579
        %v5684 = vadd.f32 %v3958, %v580
        %v5685 = vadd.f32 %v3962, %v581
        %v5686 = vadd.f32 %v3966, %v582
        %v5687 = vadd.f32 %v3970, %v583
        %v5688 = vadd.f32 %v3974, %v584
        %v5689 = vadd.f32 %v3978, %v585
        %v5690 = vadd.f32 %v3982, %v586
        %v5691 = vadd.f32 %v3986, %v587
        %v5692 = vadd.f32 %v3990, %v588
        %v5693 = vadd.f32 %v3994, %v589
        %v5694 = vadd.f32 %v3998, %v590
        %v5695 = vadd.f32 %v4002, %v591
        %v5696 = vadd.f32 %v4006, %v592
        %v5697 = vadd.f32 %v4010, %v593
        %v5698 = vadd.f32 %v4017, %v578
        %v5699 = vadd.f32 %v4021, %v579
        %v5700 = vadd.f32 %v4025, %v580
        %v5701 = vadd.f32 %v4029, %v581
        %v5702 = vadd.f32 %v4033, %v582
        %v5703 = vadd.f32 %v4037, %v583
        %v5704 = vadd.f32 %v4041, %v584
        %v5705 = vadd.f32 %v4045, %v585
        %v5706 = vadd.f32 %v4049, %v586
        %v5707 = vadd.f32 %v4053, %v587
        %v5708 = vadd.f32 %v4057, %v588
        %v5709 = vadd.f32 %v4061, %v589
        %v5710 = vadd.f32 %v4065, %v590
        %v5711 = vadd.f32 %v4069, %v591
        %v5712 = vadd.f32 %v4073, %v592
        %v5713 = vadd.f32 %v4077, %v593
        %v5714 = vadd.f32 %v4084, %v578
        %v5715 = vadd.f32 %v4088, %v579
        %v5716 = vadd.f32 %v4092, %v580
        %v5717 = vadd.f32 %v4096, %v581
        %v5718 = vadd.f32 %v4100, %v582
        %v5719 = vadd.f32 %v4104, %v583
        %v5720 = vadd.f32 %v4108, %v584
        %v5721 = vadd.f32 %v4112, %v585
        %v5722 = vadd.f32 %v4116, %v586
        %v5723 = vadd.f32 %v4120, %v587
        %v5724 = vadd.f32 %v4124, %v588
        %v5725 = vadd.f32 %v4128, %v589
        %v5726 = vadd.f32 %v4132, %v590
        %v5727 = vadd.f32 %v4136, %v591
        %v5728 = vadd.f32 %v4140, %v592
        %v5729 = vadd.f32 %v4144, %v593
        %v5730 = vadd.f32 %v4151, %v578
        %v5731 = vadd.f32 %v4155, %v579
        %v5732 = vadd.f32 %v4159, %v580
        %v5733 = vadd.f32 %v4163, %v581
        %v5734 = vadd.f32 %v4167, %v582
        %v5735 = vadd.f32 %v4171, %v583
        %v5736 = vadd.f32 %v4175, %v584
        %v5737 = vadd.f32 %v4179, %v585
        %v5738 = vadd.f32 %v4183, %v586
        %v5739 = vadd.f32 %v4187, %v587
        %v5740 = vadd.f32 %v4191, %v588
        %v5741 = vadd.f32 %v4195, %v589
        %v5742 = vadd.f32 %v4199, %v590
        %v5743 = vadd.f32 %v4203, %v591
        %v5744 = vadd.f32 %v4207, %v592
        %v5745 = vadd.f32 %v4211, %v593
        %v5746 = vadd.f32 %v4218, %v578
        %v5747 = vadd.f32 %v4222, %v579
        %v5748 = vadd.f32 %v4226, %v580
        %v5749 = vadd.f32 %v4230, %v581
        %v5750 = vadd.f32 %v4234, %v582
        %v5751 = vadd.f32 %v4238, %v583
        %v5752 = vadd.f32 %v4242, %v584
        %v5753 = vadd.f32 %v4246, %v585
        %v5754 = vadd.f32 %v4250, %v586
        %v5755 = vadd.f32 %v4254, %v587
        %v5756 = vadd.f32 %v4258, %v588
        %v5757 = vadd.f32 %v4262, %v589
        %v5758 = vadd.f32 %v4266, %v590
        %v5759 = vadd.f32 %v4270, %v591
        %v5760 = vadd.f32 %v4274, %v592
        %v5761 = vadd.f32 %v4278, %v593
        %v5762 = vadd.f32 %v4285, %v578
        %v5763 = vadd.f32 %v4289, %v579
        %v5764 = vadd.f32 %v4293, %v580
        %v5765 = vadd.f32 %v4297, %v581
        %v5766 = vadd.f32 %v4301, %v582
        %v5767 = vadd.f32 %v4305, %v583
        %v5768 = vadd.f32 %v4309, %v584
        %v5769 = vadd.f32 %v4313, %v585
        %v5770 = vadd.f32 %v4317, %v586
        %v5771 = vadd.f32 %v4321, %v587
        %v5772 = vadd.f32 %v4325, %v588
        %v5773 = vadd.f32 %v4329, %v589
        %v5774 = vadd.f32 %v4333, %v590
        %v5775 = vadd.f32 %v4337, %v591
        %v5776 = vadd.f32 %v4341, %v592
        %v5777 = vadd.f32 %v4345, %v593
        %v5778 = vadd.f32 %v4352, %v578
        %v5779 = vadd.f32 %v4356, %v579
        %v5780 = vadd.f32 %v4360, %v580
        %v5781 = vadd.f32 %v4364, %v581
        %v5782 = vadd.f32 %v4368, %v582
        %v5783 = vadd.f32 %v4372, %v583
        %v5784 = vadd.f32 %v4376, %v584
        %v5785 = vadd.f32 %v4380, %v585
        %v5786 = vadd.f32 %v4384, %v586
        %v5787 = vadd.f32 %v4388, %v587
        %v5788 = vadd.f32 %v4392, %v588
        %v5789 = vadd.f32 %v4396, %v589
        %v5790 = vadd.f32 %v4400, %v590
        %v5791 = vadd.f32 %v4404, %v591
        %v5792 = vadd.f32 %v4408, %v592
        %v5793 = vadd.f32 %v4412, %v593
        %v5794 = vadd.f32 %v4419, %v578
        %v5795 = vadd.f32 %v4423, %v579
        %v5796 = vadd.f32 %v4427, %v580
        %v5797 = vadd.f32 %v4431, %v581
        %v5798 = vadd.f32 %v4435, %v582
        %v5799 = vadd.f32 %v4439, %v583
        %v5800 = vadd.f32 %v4443, %v584
        %v5801 = vadd.f32 %v4447, %v585
        %v5802 = vadd.f32 %v4451, %v586
        %v5803 = vadd.f32 %v4455, %v587
        %v5804 = vadd.f32 %v4459, %v588
        %v5805 = vadd.f32 %v4463, %v589
        %v5806 = vadd.f32 %v4467, %v590
        %v5807 = vadd.f32 %v4471, %v591
        %v5808 = vadd.f32 %v4475, %v592
        %v5809 = vadd.f32 %v4479, %v593
        %v5810 = vadd.f32 %v4486, %v578
        %v5811 = vadd.f32 %v4490, %v579
        %v5812 = vadd.f32 %v4494, %v580
        %v5813 = vadd.f32 %v4498, %v581
        %v5814 = vadd.f32 %v4502, %v582
        %v5815 = vadd.f32 %v4506, %v583
        %v5816 = vadd.f32 %v4510, %v584
        %v5817 = vadd.f32 %v4514, %v585
        %v5818 = vadd.f32 %v4518, %v586
        %v5819 = vadd.f32 %v4522, %v587
        %v5820 = vadd.f32 %v4526, %v588
        %v5821 = vadd.f32 %v4530, %v589
        %v5822 = vadd.f32 %v4534, %v590
        %v5823 = vadd.f32 %v4538, %v591
        %v5824 = vadd.f32 %v4542, %v592
        %v5825 = vadd.f32 %v4546, %v593
        %v5826 = vadd.f32 %v4553, %v578
        %v5827 = vadd.f32 %v4557, %v579
        %v5828 = vadd.f32 %v4561, %v580
        %v5829 = vadd.f32 %v4565, %v581
        %v5830 = vadd.f32 %v4569, %v582
        %v5831 = vadd.f32 %v4573, %v583
        %v5832 = vadd.f32 %v4577, %v584
        %v5833 = vadd.f32 %v4581, %v585
        %v5834 = vadd.f32 %v4585, %v586
        %v5835 = vadd.f32 %v4589, %v587
        %v5836 = vadd.f32 %v4593, %v588
        %v5837 = vadd.f32 %v4597, %v589
        %v5838 = vadd.f32 %v4601, %v590
        %v5839 = vadd.f32 %v4605, %v591
        %v5840 = vadd.f32 %v4609, %v592
        %v5841 = vadd.f32 %v4613, %v593
        %v5842 = vadd.f32 %v4620, %v578
        %v5843 = vadd.f32 %v4624, %v579
        %v5844 = vadd.f32 %v4628, %v580
        %v5845 = vadd.f32 %v4632, %v581
        %v5846 = vadd.f32 %v4636, %v582
        %v5847 = vadd.f32 %v4640, %v583
        %v5848 = vadd.f32 %v4644, %v584
        %v5849 = vadd.f32 %v4648, %v585
        %v5850 = vadd.f32 %v4652, %v586
        %v5851 = vadd.f32 %v4656, %v587
        %v5852 = vadd.f32 %v4660, %v588
        %v5853 = vadd.f32 %v4664, %v589
        %v5854 = vadd.f32 %v4668, %v590
        %v5855 = vadd.f32 %v4672, %v591
        %v5856 = vadd.f32 %v4676, %v592
        %v5857 = vadd.f32 %v4680, %v593
        %v5858 = vadd.f32 %v4687, %v578
        %v5859 = vadd.f32 %v4691, %v579
        %v5860 = vadd.f32 %v4695, %v580
        %v5861 = vadd.f32 %v4699, %v581
        %v5862 = vadd.f32 %v4703, %v582
        %v5863 = vadd.f32 %v4707, %v583
        %v5864 = vadd.f32 %v4711, %v584
        %v5865 = vadd.f32 %v4715, %v585
        %v5866 = vadd.f32 %v4719, %v586
        %v5867 = vadd.f32 %v4723, %v587
        %v5868 = vadd.f32 %v4727, %v588
        %v5869 = vadd.f32 %v4731, %v589
        %v5870 = vadd.f32 %v4735, %v590
        %v5871 = vadd.f32 %v4739, %v591
        %v5872 = vadd.f32 %v4743, %v592
        %v5873 = vadd.f32 %v4747, %v593
        %v5874 = vadd.f32 %v4754, %v578
        %v5875 = vadd.f32 %v4758, %v579
        %v5876 = vadd.f32 %v4762, %v580
        %v5877 = vadd.f32 %v4766, %v581
        %v5878 = vadd.f32 %v4770, %v582
        %v5879 = vadd.f32 %v4774, %v583
        %v5880 = vadd.f32 %v4778, %v584
        %v5881 = vadd.f32 %v4782, %v585
        %v5882 = vadd.f32 %v4786, %v586
        %v5883 = vadd.f32 %v4790, %v587
        %v5884 = vadd.f32 %v4794, %v588
        %v5885 = vadd.f32 %v4798, %v589
        %v5886 = vadd.f32 %v4802, %v590
        %v5887 = vadd.f32 %v4806, %v591
        %v5888 = vadd.f32 %v4810, %v592
        %v5889 = vadd.f32 %v4814, %v593
        %v5890 = vadd.f32 %v4821, %v578
        %v5891 = vadd.f32 %v4825, %v579
        %v5892 = vadd.f32 %v4829, %v580
        %v5893 = vadd.f32 %v4833, %v581
        %v5894 = vadd.f32 %v4837, %v582
        %v5895 = vadd.f32 %v4841, %v583
        %v5896 = vadd.f32 %v4845, %v584
        %v5897 = vadd.f32 %v4849, %v585
        %v5898 = vadd.f32 %v4853, %v586
        %v5899 = vadd.f32 %v4857, %v587
        %v5900 = vadd.f32 %v4861, %v588
        %v5901 = vadd.f32 %v4865, %v589
        %v5902 = vadd.f32 %v4869, %v590
        %v5903 = vadd.f32 %v4873, %v591
        %v5904 = vadd.f32 %v4877, %v592
        %v5905 = vadd.f32 %v4881, %v593
        %v5906 = vtanh.pop %v4882
        %v5907 = vtanh.pop %v4883
        %v5908 = vtanh.pop %v4884
        %v5909 = vtanh.pop %v4885
        %v5910 = vtanh.pop %v4886
        %v5911 = vtanh.pop %v4887
        %v5912 = vtanh.pop %v4888
        %v5913 = vtanh.pop %v4889
        %v5914 = vtanh.pop %v4890
        %v5915 = vtanh.pop %v4891
        %v5916 = vtanh.pop %v4892
        %v5917 = vtanh.pop %v4893
        %v5918 = vtanh.pop %v4894
        %v5919 = vtanh.pop %v4895
        %v5920 = vtanh.pop %v4896
        %v5921 = vtanh.pop %v4897
        %v5922 = vtanh.pop %v4898
        %v5923 = vtanh.pop %v4899
        %v5924 = vtanh.pop %v4900
        %v5925 = vtanh.pop %v4901
        %v5926 = vtanh.pop %v4902
        %v5927 = vtanh.pop %v4903
        %v5928 = vtanh.pop %v4904
        %v5929 = vtanh.pop %v4905
        %v5930 = vtanh.pop %v4906
        %v5931 = vtanh.pop %v4907
        %v5932 = vtanh.pop %v4908
        %v5933 = vtanh.pop %v4909
        %v5934 = vtanh.pop %v4910
        %v5935 = vtanh.pop %v4911
        %v5936 = vtanh.pop %v4912
        %v5937 = vtanh.pop %v4913
        %v5938 = vtanh.pop %v4914
        %v5939 = vtanh.pop %v4915
        %v5940 = vtanh.pop %v4916
        %v5941 = vtanh.pop %v4917
        %v5942 = vtanh.pop %v4918
        %v5943 = vtanh.pop %v4919
        %v5944 = vtanh.pop %v4920
        %v5945 = vtanh.pop %v4921
        %v5946 = vtanh.pop %v4922
        %v5947 = vtanh.pop %v4923
        %v5948 = vtanh.pop %v4924
        %v5949 = vtanh.pop %v4925
        %v5950 = vtanh.pop %v4926
        %v5951 = vtanh.pop %v4927
        %v5952 = vtanh.pop %v4928
        %v5953 = vtanh.pop %v4929
        %v5954 = vtanh.pop %v4930
        %v5955 = vtanh.pop %v4931
        %v5956 = vtanh.pop %v4932
        %v5957 = vtanh.pop %v4933
        %v5958 = vtanh.pop %v4934
        %v5959 = vtanh.pop %v4935
        %v5960 = vtanh.pop %v4936
        %v5961 = vtanh.pop %v4937
        %v5962 = vtanh.pop %v4938
        %v5963 = vtanh.pop %v4939
        %v5964 = vtanh.pop %v4940
        %v5965 = vtanh.pop %v4941
        %v5966 = vtanh.pop %v4942
        %v5967 = vtanh.pop %v4943
        %v5968 = vtanh.pop %v4944
        %v5969 = vtanh.pop %v4945
        %v5970 = vtanh.pop %v4946
        %v5971 = vtanh.pop %v4947
        %v5972 = vtanh.pop %v4948
        %v5973 = vtanh.pop %v4949
        %v5974 = vtanh.pop %v4950
        %v5975 = vtanh.pop %v4951
        %v5976 = vtanh.pop %v4952
        %v5977 = vtanh.pop %v4953
        %v5978 = vtanh.pop %v4954
        %v5979 = vtanh.pop %v4955
        %v5980 = vtanh.pop %v4956
        %v5981 = vtanh.pop %v4957
        %v5982 = vtanh.pop %v4958
        %v5983 = vtanh.pop %v4959
        %v5984 = vtanh.pop %v4960
        %v5985 = vtanh.pop %v4961
        %v5986 = vtanh.pop %v4962
        %v5987 = vtanh.pop %v4963
        %v5988 = vtanh.pop %v4964
        %v5989 = vtanh.pop %v4965
        %v5990 = vtanh.pop %v4966
        %v5991 = vtanh.pop %v4967
        %v5992 = vtanh.pop %v4968
        %v5993 = vtanh.pop %v4969
        %v5994 = vtanh.pop %v4970
        %v5995 = vtanh.pop %v4971
        %v5996 = vtanh.pop %v4972
        %v5997 = vtanh.pop %v4973
        %v5998 = vtanh.pop %v4974
        %v5999 = vtanh.pop %v4975
        %v6000 = vtanh.pop %v4976
        %v6001 = vtanh.pop %v4977
        %v6002 = vtanh.pop %v4978
        %v6003 = vtanh.pop %v4979
        %v6004 = vtanh.pop %v4980
        %v6005 = vtanh.pop %v4981
        %v6006 = vtanh.pop %v4982
        %v6007 = vtanh.pop %v4983
        %v6008 = vtanh.pop %v4984
        %v6009 = vtanh.pop %v4985
        %v6010 = vtanh.pop %v4986
        %v6011 = vtanh.pop %v4987
        %v6012 = vtanh.pop %v4988
        %v6013 = vtanh.pop %v4989
        %v6014 = vtanh.pop %v4990
        %v6015 = vtanh.pop %v4991
        %v6016 = vtanh.pop %v4992
        %v6017 = vtanh.pop %v4993
        %v6018 = vtanh.pop %v4994
        %v6019 = vtanh.pop %v4995
        %v6020 = vtanh.pop %v4996
        %v6021 = vtanh.pop %v4997
        %v6022 = vtanh.pop %v4998
        %v6023 = vtanh.pop %v4999
        %v6024 = vtanh.pop %v5000
        %v6025 = vtanh.pop %v5001
        %v6026 = vtanh.pop %v5002
        %v6027 = vtanh.pop %v5003
        %v6028 = vtanh.pop %v5004
        %v6029 = vtanh.pop %v5005
        %v6030 = vtanh.pop %v5006
        %v6031 = vtanh.pop %v5007
        %v6032 = vtanh.pop %v5008
        %v6033 = vtanh.pop %v5009
        %v6034 = vtanh.pop %v5010
        %v6035 = vtanh.pop %v5011
        %v6036 = vtanh.pop %v5012
        %v6037 = vtanh.pop %v5013
        %v6038 = vtanh.pop %v5014
        %v6039 = vtanh.pop %v5015
        %v6040 = vtanh.pop %v5016
        %v6041 = vtanh.pop %v5017
        %v6042 = vtanh.pop %v5018
        %v6043 = vtanh.pop %v5019
        %v6044 = vtanh.pop %v5020
        %v6045 = vtanh.pop %v5021
        %v6046 = vtanh.pop %v5022
        %v6047 = vtanh.pop %v5023
        %v6048 = vtanh.pop %v5024
        %v6049 = vtanh.pop %v5025
        %v6050 = vtanh.pop %v5026
        %v6051 = vtanh.pop %v5027
        %v6052 = vtanh.pop %v5028
        %v6053 = vtanh.pop %v5029
        %v6054 = vtanh.pop %v5030
        %v6055 = vtanh.pop %v5031
        %v6056 = vtanh.pop %v5032
        %v6057 = vtanh.pop %v5033
        %v6058 = vtanh.pop %v5034
        %v6059 = vtanh.pop %v5035
        %v6060 = vtanh.pop %v5036
        %v6061 = vtanh.pop %v5037
        %v6062 = vtanh.pop %v5038
        %v6063 = vtanh.pop %v5039
        %v6064 = vtanh.pop %v5040
        %v6065 = vtanh.pop %v5041
        %v6066 = vtanh.pop %v5042
        %v6067 = vtanh.pop %v5043
        %v6068 = vtanh.pop %v5044
        %v6069 = vtanh.pop %v5045
        %v6070 = vtanh.pop %v5046
        %v6071 = vtanh.pop %v5047
        %v6072 = vtanh.pop %v5048
        %v6073 = vtanh.pop %v5049
        %v6074 = vtanh.pop %v5050
        %v6075 = vtanh.pop %v5051
        %v6076 = vtanh.pop %v5052
        %v6077 = vtanh.pop %v5053
        %v6078 = vtanh.pop %v5054
        %v6079 = vtanh.pop %v5055
        %v6080 = vtanh.pop %v5056
        %v6081 = vtanh.pop %v5057
        %v6082 = vtanh.pop %v5058
        %v6083 = vtanh.pop %v5059
        %v6084 = vtanh.pop %v5060
        %v6085 = vtanh.pop %v5061
        %v6086 = vtanh.pop %v5062
        %v6087 = vtanh.pop %v5063
        %v6088 = vtanh.pop %v5064
        %v6089 = vtanh.pop %v5065
        %v6090 = vtanh.pop %v5066
        %v6091 = vtanh.pop %v5067
        %v6092 = vtanh.pop %v5068
        %v6093 = vtanh.pop %v5069
        %v6094 = vtanh.pop %v5070
        %v6095 = vtanh.pop %v5071
        %v6096 = vtanh.pop %v5072
        %v6097 = vtanh.pop %v5073
        %v6098 = vtanh.pop %v5074
        %v6099 = vtanh.pop %v5075
        %v6100 = vtanh.pop %v5076
        %v6101 = vtanh.pop %v5077
        %v6102 = vtanh.pop %v5078
        %v6103 = vtanh.pop %v5079
        %v6104 = vtanh.pop %v5080
        %v6105 = vtanh.pop %v5081
        %v6106 = vtanh.pop %v5082
        %v6107 = vtanh.pop %v5083
        %v6108 = vtanh.pop %v5084
        %v6109 = vtanh.pop %v5085
        %v6110 = vtanh.pop %v5086
        %v6111 = vtanh.pop %v5087
        %v6112 = vtanh.pop %v5088
        %v6113 = vtanh.pop %v5089
        %v6114 = vtanh.pop %v5090
        %v6115 = vtanh.pop %v5091
        %v6116 = vtanh.pop %v5092
        %v6117 = vtanh.pop %v5093
        %v6118 = vtanh.pop %v5094
        %v6119 = vtanh.pop %v5095
        %v6120 = vtanh.pop %v5096
        %v6121 = vtanh.pop %v5097
        %v6122 = vtanh.pop %v5098
        %v6123 = vtanh.pop %v5099
        %v6124 = vtanh.pop %v5100
        %v6125 = vtanh.pop %v5101
        %v6126 = vtanh.pop %v5102
        %v6127 = vtanh.pop %v5103
        %v6128 = vtanh.pop %v5104
        %v6129 = vtanh.pop %v5105
        %v6130 = vtanh.pop %v5106
        %v6131 = vtanh.pop %v5107
        %v6132 = vtanh.pop %v5108
        %v6133 = vtanh.pop %v5109
        %v6134 = vtanh.pop %v5110
        %v6135 = vtanh.pop %v5111
        %v6136 = vtanh.pop %v5112
        %v6137 = vtanh.pop %v5113
        %v6138 = vtanh.pop %v5114
        %v6139 = vtanh.pop %v5115
        %v6140 = vtanh.pop %v5116
        %v6141 = vtanh.pop %v5117
        %v6142 = vtanh.pop %v5118
        %v6143 = vtanh.pop %v5119
        %v6144 = vtanh.pop %v5120
        %v6145 = vtanh.pop %v5121
        %v6146 = vtanh.pop %v5122
        %v6147 = vtanh.pop %v5123
        %v6148 = vtanh.pop %v5124
        %v6149 = vtanh.pop %v5125
        %v6150 = vtanh.pop %v5126
        %v6151 = vtanh.pop %v5127
        %v6152 = vtanh.pop %v5128
        %v6153 = vtanh.pop %v5129
        %v6154 = vtanh.pop %v5130
        %v6155 = vtanh.pop %v5131
        %v6156 = vtanh.pop %v5132
        %v6157 = vtanh.pop %v5133
        %v6158 = vtanh.pop %v5134
        %v6159 = vtanh.pop %v5135
        %v6160 = vtanh.pop %v5136
        %v6161 = vtanh.pop %v5137
        %v6162 = vtanh.pop %v5138
        %v6163 = vtanh.pop %v5139
        %v6164 = vtanh.pop %v5140
        %v6165 = vtanh.pop %v5141
        %v6166 = vtanh.pop %v5142
        %v6167 = vtanh.pop %v5143
        %v6168 = vtanh.pop %v5144
        %v6169 = vtanh.pop %v5145
        %v6170 = vtanh.pop %v5146
        %v6171 = vtanh.pop %v5147
        %v6172 = vtanh.pop %v5148
        %v6173 = vtanh.pop %v5149
        %v6174 = vtanh.pop %v5150
        %v6175 = vtanh.pop %v5151
        %v6176 = vtanh.pop %v5152
        %v6177 = vtanh.pop %v5153
        %v6178 = vtanh.pop %v5154
        %v6179 = vtanh.pop %v5155
        %v6180 = vtanh.pop %v5156
        %v6181 = vtanh.pop %v5157
        %v6182 = vtanh.pop %v5158
        %v6183 = vtanh.pop %v5159
        %v6184 = vtanh.pop %v5160
        %v6185 = vtanh.pop %v5161
        %v6186 = vtanh.pop %v5162
        %v6187 = vtanh.pop %v5163
        %v6188 = vtanh.pop %v5164
        %v6189 = vtanh.pop %v5165
        %v6190 = vtanh.pop %v5166
        %v6191 = vtanh.pop %v5167
        %v6192 = vtanh.pop %v5168
        %v6193 = vtanh.pop %v5169
        %v6194 = vtanh.pop %v5170
        %v6195 = vtanh.pop %v5171
        %v6196 = vtanh.pop %v5172
        %v6197 = vtanh.pop %v5173
        %v6198 = vtanh.pop %v5174
        %v6199 = vtanh.pop %v5175
        %v6200 = vtanh.pop %v5176
        %v6201 = vtanh.pop %v5177
        %v6202 = vtanh.pop %v5178
        %v6203 = vtanh.pop %v5179
        %v6204 = vtanh.pop %v5180
        %v6205 = vtanh.pop %v5181
        %v6206 = vtanh.pop %v5182
        %v6207 = vtanh.pop %v5183
        %v6208 = vtanh.pop %v5184
        %v6209 = vtanh.pop %v5185
        %v6210 = vtanh.pop %v5186
        %v6211 = vtanh.pop %v5187
        %v6212 = vtanh.pop %v5188
        %v6213 = vtanh.pop %v5189
        %v6214 = vtanh.pop %v5190
        %v6215 = vtanh.pop %v5191
        %v6216 = vtanh.pop %v5192
        %v6217 = vtanh.pop %v5193
        %v6218 = vtanh.pop %v5194
        %v6219 = vtanh.pop %v5195
        %v6220 = vtanh.pop %v5196
        %v6221 = vtanh.pop %v5197
        %v6222 = vtanh.pop %v5198
        %v6223 = vtanh.pop %v5199
        %v6224 = vtanh.pop %v5200
        %v6225 = vtanh.pop %v5201
        %v6226 = vtanh.pop %v5202
        %v6227 = vtanh.pop %v5203
        %v6228 = vtanh.pop %v5204
        %v6229 = vtanh.pop %v5205
        %v6230 = vtanh.pop %v5206
        %v6231 = vtanh.pop %v5207
        %v6232 = vtanh.pop %v5208
        %v6233 = vtanh.pop %v5209
        %v6234 = vtanh.pop %v5210
        %v6235 = vtanh.pop %v5211
        %v6236 = vtanh.pop %v5212
        %v6237 = vtanh.pop %v5213
        %v6238 = vtanh.pop %v5214
        %v6239 = vtanh.pop %v5215
        %v6240 = vtanh.pop %v5216
        %v6241 = vtanh.pop %v5217
        %v6242 = vtanh.pop %v5218
        %v6243 = vtanh.pop %v5219
        %v6244 = vtanh.pop %v5220
        %v6245 = vtanh.pop %v5221
        %v6246 = vtanh.pop %v5222
        %v6247 = vtanh.pop %v5223
        %v6248 = vtanh.pop %v5224
        %v6249 = vtanh.pop %v5225
        %v6250 = vtanh.pop %v5226
        %v6251 = vtanh.pop %v5227
        %v6252 = vtanh.pop %v5228
        %v6253 = vtanh.pop %v5229
        %v6254 = vtanh.pop %v5230
        %v6255 = vtanh.pop %v5231
        %v6256 = vtanh.pop %v5232
        %v6257 = vtanh.pop %v5233
        %v6258 = vtanh.pop %v5234
        %v6259 = vtanh.pop %v5235
        %v6260 = vtanh.pop %v5236
        %v6261 = vtanh.pop %v5237
        %v6262 = vtanh.pop %v5238
        %v6263 = vtanh.pop %v5239
        %v6264 = vtanh.pop %v5240
        %v6265 = vtanh.pop %v5241
        %v6266 = vtanh.pop %v5242
        %v6267 = vtanh.pop %v5243
        %v6268 = vtanh.pop %v5244
        %v6269 = vtanh.pop %v5245
        %v6270 = vtanh.pop %v5246
        %v6271 = vtanh.pop %v5247
        %v6272 = vtanh.pop %v5248
        %v6273 = vtanh.pop %v5249
        %v6274 = vtanh.pop %v5250
        %v6275 = vtanh.pop %v5251
        %v6276 = vtanh.pop %v5252
        %v6277 = vtanh.pop %v5253
        %v6278 = vtanh.pop %v5254
        %v6279 = vtanh.pop %v5255
        %v6280 = vtanh.pop %v5256
        %v6281 = vtanh.pop %v5257
        %v6282 = vtanh.pop %v5258
        %v6283 = vtanh.pop %v5259
        %v6284 = vtanh.pop %v5260
        %v6285 = vtanh.pop %v5261
        %v6286 = vtanh.pop %v5262
        %v6287 = vtanh.pop %v5263
        %v6288 = vtanh.pop %v5264
        %v6289 = vtanh.pop %v5265
        %v6290 = vtanh.pop %v5266
        %v6291 = vtanh.pop %v5267
        %v6292 = vtanh.pop %v5268
        %v6293 = vtanh.pop %v5269
        %v6294 = vtanh.pop %v5270
        %v6295 = vtanh.pop %v5271
        %v6296 = vtanh.pop %v5272
        %v6297 = vtanh.pop %v5273
        %v6298 = vtanh.pop %v5274
        %v6299 = vtanh.pop %v5275
        %v6300 = vtanh.pop %v5276
        %v6301 = vtanh.pop %v5277
        %v6302 = vtanh.pop %v5278
        %v6303 = vtanh.pop %v5279
        %v6304 = vtanh.pop %v5280
        %v6305 = vtanh.pop %v5281
        %v6306 = vtanh.pop %v5282
        %v6307 = vtanh.pop %v5283
        %v6308 = vtanh.pop %v5284
        %v6309 = vtanh.pop %v5285
        %v6310 = vtanh.pop %v5286
        %v6311 = vtanh.pop %v5287
        %v6312 = vtanh.pop %v5288
        %v6313 = vtanh.pop %v5289
        %v6314 = vtanh.pop %v5290
        %v6315 = vtanh.pop %v5291
        %v6316 = vtanh.pop %v5292
        %v6317 = vtanh.pop %v5293
        %v6318 = vtanh.pop %v5294
        %v6319 = vtanh.pop %v5295
        %v6320 = vtanh.pop %v5296
        %v6321 = vtanh.pop %v5297
        %v6322 = vtanh.pop %v5298
        %v6323 = vtanh.pop %v5299
        %v6324 = vtanh.pop %v5300
        %v6325 = vtanh.pop %v5301
        %v6326 = vtanh.pop %v5302
        %v6327 = vtanh.pop %v5303
        %v6328 = vtanh.pop %v5304
        %v6329 = vtanh.pop %v5305
        %v6330 = vtanh.pop %v5306
        %v6331 = vtanh.pop %v5307
        %v6332 = vtanh.pop %v5308
        %v6333 = vtanh.pop %v5309
        %v6334 = vtanh.pop %v5310
        %v6335 = vtanh.pop %v5311
        %v6336 = vtanh.pop %v5312
        %v6337 = vtanh.pop %v5313
        %v6338 = vtanh.pop %v5314
        %v6339 = vtanh.pop %v5315
        %v6340 = vtanh.pop %v5316
        %v6341 = vtanh.pop %v5317
        %v6342 = vtanh.pop %v5318
        %v6343 = vtanh.pop %v5319
        %v6344 = vtanh.pop %v5320
        %v6345 = vtanh.pop %v5321
        %v6346 = vtanh.pop %v5322
        %v6347 = vtanh.pop %v5323
        %v6348 = vtanh.pop %v5324
        %v6349 = vtanh.pop %v5325
        %v6350 = vtanh.pop %v5326
        %v6351 = vtanh.pop %v5327
        %v6352 = vtanh.pop %v5328
        %v6353 = vtanh.pop %v5329
        %v6354 = vtanh.pop %v5330
        %v6355 = vtanh.pop %v5331
        %v6356 = vtanh.pop %v5332
        %v6357 = vtanh.pop %v5333
        %v6358 = vtanh.pop %v5334
        %v6359 = vtanh.pop %v5335
        %v6360 = vtanh.pop %v5336
        %v6361 = vtanh.pop %v5337
        %v6362 = vtanh.pop %v5338
        %v6363 = vtanh.pop %v5339
        %v6364 = vtanh.pop %v5340
        %v6365 = vtanh.pop %v5341
        %v6366 = vtanh.pop %v5342
        %v6367 = vtanh.pop %v5343
        %v6368 = vtanh.pop %v5344
        %v6369 = vtanh.pop %v5345
        %v6370 = vtanh.pop %v5346
        %v6371 = vtanh.pop %v5347
        %v6372 = vtanh.pop %v5348
        %v6373 = vtanh.pop %v5349
        %v6374 = vtanh.pop %v5350
        %v6375 = vtanh.pop %v5351
        %v6376 = vtanh.pop %v5352
        %v6377 = vtanh.pop %v5353
        %v6378 = vtanh.pop %v5354
        %v6379 = vtanh.pop %v5355
        %v6380 = vtanh.pop %v5356
        %v6381 = vtanh.pop %v5357
        %v6382 = vtanh.pop %v5358
        %v6383 = vtanh.pop %v5359
        %v6384 = vtanh.pop %v5360
        %v6385 = vtanh.pop %v5361
        %v6386 = vtanh.pop %v5362
        %v6387 = vtanh.pop %v5363
        %v6388 = vtanh.pop %v5364
        %v6389 = vtanh.pop %v5365
        %v6390 = vtanh.pop %v5366
        %v6391 = vtanh.pop %v5367
        %v6392 = vtanh.pop %v5368
        %v6393 = vtanh.pop %v5369
        %v6394 = vtanh.pop %v5370
        %v6395 = vtanh.pop %v5371
        %v6396 = vtanh.pop %v5372
        %v6397 = vtanh.pop %v5373
        %v6398 = vtanh.pop %v5374
        %v6399 = vtanh.pop %v5375
        %v6400 = vtanh.pop %v5376
        %v6401 = vtanh.pop %v5377
        %v6402 = vtanh.pop %v5378
        %v6403 = vtanh.pop %v5379
        %v6404 = vtanh.pop %v5380
        %v6405 = vtanh.pop %v5381
        %v6406 = vtanh.pop %v5382
        %v6407 = vtanh.pop %v5383
        %v6408 = vtanh.pop %v5384
        %v6409 = vtanh.pop %v5385
        %v6410 = vtanh.pop %v5386
        %v6411 = vtanh.pop %v5387
        %v6412 = vtanh.pop %v5388
        %v6413 = vtanh.pop %v5389
        %v6414 = vtanh.pop %v5390
        %v6415 = vtanh.pop %v5391
        %v6416 = vtanh.pop %v5392
        %v6417 = vtanh.pop %v5393
        %v6418 = vtanh.pop %v5394
        %v6419 = vtanh.pop %v5395
        %v6420 = vtanh.pop %v5396
        %v6421 = vtanh.pop %v5397
        %v6422 = vtanh.pop %v5398
        %v6423 = vtanh.pop %v5399
        %v6424 = vtanh.pop %v5400
        %v6425 = vtanh.pop %v5401
        %v6426 = vtanh.pop %v5402
        %v6427 = vtanh.pop %v5403
        %v6428 = vtanh.pop %v5404
        %v6429 = vtanh.pop %v5405
        %v6430 = vtanh.pop %v5406
        %v6431 = vtanh.pop %v5407
        %v6432 = vtanh.pop %v5408
        %v6433 = vtanh.pop %v5409
        %v6434 = vtanh.pop %v5410
        %v6435 = vtanh.pop %v5411
        %v6436 = vtanh.pop %v5412
        %v6437 = vtanh.pop %v5413
        %v6438 = vtanh.pop %v5414
        %v6439 = vtanh.pop %v5415
        %v6440 = vtanh.pop %v5416
        %v6441 = vtanh.pop %v5417
        %v6442 = vtanh.pop %v5418
        %v6443 = vtanh.pop %v5419
        %v6444 = vtanh.pop %v5420
        %v6445 = vtanh.pop %v5421
        %v6446 = vtanh.pop %v5422
        %v6447 = vtanh.pop %v5423
        %v6448 = vtanh.pop %v5424
        %v6449 = vtanh.pop %v5425
        %v6450 = vtanh.pop %v5426
        %v6451 = vtanh.pop %v5427
        %v6452 = vtanh.pop %v5428
        %v6453 = vtanh.pop %v5429
        %v6454 = vtanh.pop %v5430
        %v6455 = vtanh.pop %v5431
        %v6456 = vtanh.pop %v5432
        %v6457 = vtanh.pop %v5433
        %v6458 = vtanh.pop %v5434
        %v6459 = vtanh.pop %v5435
        %v6460 = vtanh.pop %v5436
        %v6461 = vtanh.pop %v5437
        %v6462 = vtanh.pop %v5438
        %v6463 = vtanh.pop %v5439
        %v6464 = vtanh.pop %v5440
        %v6465 = vtanh.pop %v5441
        %v6466 = vtanh.pop %v5442
        %v6467 = vtanh.pop %v5443
        %v6468 = vtanh.pop %v5444
        %v6469 = vtanh.pop %v5445
        %v6470 = vtanh.pop %v5446
        %v6471 = vtanh.pop %v5447
        %v6472 = vtanh.pop %v5448
        %v6473 = vtanh.pop %v5449
        %v6474 = vtanh.pop %v5450
        %v6475 = vtanh.pop %v5451
        %v6476 = vtanh.pop %v5452
        %v6477 = vtanh.pop %v5453
        %v6478 = vtanh.pop %v5454
        %v6479 = vtanh.pop %v5455
        %v6480 = vtanh.pop %v5456
        %v6481 = vtanh.pop %v5457
        %v6482 = vtanh.pop %v5458
        %v6483 = vtanh.pop %v5459
        %v6484 = vtanh.pop %v5460
        %v6485 = vtanh.pop %v5461
        %v6486 = vtanh.pop %v5462
        %v6487 = vtanh.pop %v5463
        %v6488 = vtanh.pop %v5464
        %v6489 = vtanh.pop %v5465
        %v6490 = vtanh.pop %v5466
        %v6491 = vtanh.pop %v5467
        %v6492 = vtanh.pop %v5468
        %v6493 = vtanh.pop %v5469
        %v6494 = vtanh.pop %v5470
        %v6495 = vtanh.pop %v5471
        %v6496 = vtanh.pop %v5472
        %v6497 = vtanh.pop %v5473
        %v6498 = vtanh.pop %v5474
        %v6499 = vtanh.pop %v5475
        %v6500 = vtanh.pop %v5476
        %v6501 = vtanh.pop %v5477
        %v6502 = vtanh.pop %v5478
        %v6503 = vtanh.pop %v5479
        %v6504 = vtanh.pop %v5480
        %v6505 = vtanh.pop %v5481
        %v6506 = vtanh.pop %v5482
        %v6507 = vtanh.pop %v5483
        %v6508 = vtanh.pop %v5484
        %v6509 = vtanh.pop %v5485
        %v6510 = vtanh.pop %v5486
        %v6511 = vtanh.pop %v5487
        %v6512 = vtanh.pop %v5488
        %v6513 = vtanh.pop %v5489
        %v6514 = vtanh.pop %v5490
        %v6515 = vtanh.pop %v5491
        %v6516 = vtanh.pop %v5492
        %v6517 = vtanh.pop %v5493
        %v6518 = vtanh.pop %v5494
        %v6519 = vtanh.pop %v5495
        %v6520 = vtanh.pop %v5496
        %v6521 = vtanh.pop %v5497
        %v6522 = vtanh.pop %v5498
        %v6523 = vtanh.pop %v5499
        %v6524 = vtanh.pop %v5500
        %v6525 = vtanh.pop %v5501
        %v6526 = vtanh.pop %v5502
        %v6527 = vtanh.pop %v5503
        %v6528 = vtanh.pop %v5504
        %v6529 = vtanh.pop %v5505
        %v6530 = vtanh.pop %v5506
        %v6531 = vtanh.pop %v5507
        %v6532 = vtanh.pop %v5508
        %v6533 = vtanh.pop %v5509
        %v6534 = vtanh.pop %v5510
        %v6535 = vtanh.pop %v5511
        %v6536 = vtanh.pop %v5512
        %v6537 = vtanh.pop %v5513
        %v6538 = vtanh.pop %v5514
        %v6539 = vtanh.pop %v5515
        %v6540 = vtanh.pop %v5516
        %v6541 = vtanh.pop %v5517
        %v6542 = vtanh.pop %v5518
        %v6543 = vtanh.pop %v5519
        %v6544 = vtanh.pop %v5520
        %v6545 = vtanh.pop %v5521
        %v6546 = vtanh.pop %v5522
        %v6547 = vtanh.pop %v5523
        %v6548 = vtanh.pop %v5524
        %v6549 = vtanh.pop %v5525
        %v6550 = vtanh.pop %v5526
        %v6551 = vtanh.pop %v5527
        %v6552 = vtanh.pop %v5528
        %v6553 = vtanh.pop %v5529
        %v6554 = vtanh.pop %v5530
        %v6555 = vtanh.pop %v5531
        %v6556 = vtanh.pop %v5532
        %v6557 = vtanh.pop %v5533
        %v6558 = vtanh.pop %v5534
        %v6559 = vtanh.pop %v5535
        %v6560 = vtanh.pop %v5536
        %v6561 = vtanh.pop %v5537
        %v6562 = vtanh.pop %v5538
        %v6563 = vtanh.pop %v5539
        %v6564 = vtanh.pop %v5540
        %v6565 = vtanh.pop %v5541
        %v6566 = vtanh.pop %v5542
        %v6567 = vtanh.pop %v5543
        %v6568 = vtanh.pop %v5544
        %v6569 = vtanh.pop %v5545
        %v6570 = vtanh.pop %v5546
        %v6571 = vtanh.pop %v5547
        %v6572 = vtanh.pop %v5548
        %v6573 = vtanh.pop %v5549
        %v6574 = vtanh.pop %v5550
        %v6575 = vtanh.pop %v5551
        %v6576 = vtanh.pop %v5552
        %v6577 = vtanh.pop %v5553
        %v6578 = vtanh.pop %v5554
        %v6579 = vtanh.pop %v5555
        %v6580 = vtanh.pop %v5556
        %v6581 = vtanh.pop %v5557
        %v6582 = vtanh.pop %v5558
        %v6583 = vtanh.pop %v5559
        %v6584 = vtanh.pop %v5560
        %v6585 = vtanh.pop %v5561
        %v6586 = vtanh.pop %v5562
        %v6587 = vtanh.pop %v5563
        %v6588 = vtanh.pop %v5564
        %v6589 = vtanh.pop %v5565
        %v6590 = vtanh.pop %v5566
        %v6591 = vtanh.pop %v5567
        %v6592 = vtanh.pop %v5568
        %v6593 = vtanh.pop %v5569
        %v6594 = vtanh.pop %v5570
        %v6595 = vtanh.pop %v5571
        %v6596 = vtanh.pop %v5572
        %v6597 = vtanh.pop %v5573
        %v6598 = vtanh.pop %v5574
        %v6599 = vtanh.pop %v5575
        %v6600 = vtanh.pop %v5576
        %v6601 = vtanh.pop %v5577
        %v6602 = vtanh.pop %v5578
        %v6603 = vtanh.pop %v5579
        %v6604 = vtanh.pop %v5580
        %v6605 = vtanh.pop %v5581
        %v6606 = vtanh.pop %v5582
        %v6607 = vtanh.pop %v5583
        %v6608 = vtanh.pop %v5584
        %v6609 = vtanh.pop %v5585
        %v6610 = vtanh.pop %v5586
        %v6611 = vtanh.pop %v5587
        %v6612 = vtanh.pop %v5588
        %v6613 = vtanh.pop %v5589
        %v6614 = vtanh.pop %v5590
        %v6615 = vtanh.pop %v5591
        %v6616 = vtanh.pop %v5592
        %v6617 = vtanh.pop %v5593
        %v6618 = vtanh.pop %v5594
        %v6619 = vtanh.pop %v5595
        %v6620 = vtanh.pop %v5596
        %v6621 = vtanh.pop %v5597
        %v6622 = vtanh.pop %v5598
        %v6623 = vtanh.pop %v5599
        %v6624 = vtanh.pop %v5600
        %v6625 = vtanh.pop %v5601
        %v6626 = vtanh.pop %v5602
        %v6627 = vtanh.pop %v5603
        %v6628 = vtanh.pop %v5604
        %v6629 = vtanh.pop %v5605
        %v6630 = vtanh.pop %v5606
        %v6631 = vtanh.pop %v5607
        %v6632 = vtanh.pop %v5608
        %v6633 = vtanh.pop %v5609
        %v6634 = vtanh.pop %v5610
        %v6635 = vtanh.pop %v5611
        %v6636 = vtanh.pop %v5612
        %v6637 = vtanh.pop %v5613
        %v6638 = vtanh.pop %v5614
        %v6639 = vtanh.pop %v5615
        %v6640 = vtanh.pop %v5616
        %v6641 = vtanh.pop %v5617
        %v6642 = vtanh.pop %v5618
        %v6643 = vtanh.pop %v5619
        %v6644 = vtanh.pop %v5620
        %v6645 = vtanh.pop %v5621
        %v6646 = vtanh.pop %v5622
        %v6647 = vtanh.pop %v5623
        %v6648 = vtanh.pop %v5624
        %v6649 = vtanh.pop %v5625
        %v6650 = vtanh.pop %v5626
        %v6651 = vtanh.pop %v5627
        %v6652 = vtanh.pop %v5628
        %v6653 = vtanh.pop %v5629
        %v6654 = vtanh.pop %v5630
        %v6655 = vtanh.pop %v5631
        %v6656 = vtanh.pop %v5632
        %v6657 = vtanh.pop %v5633
        %v6658 = vtanh.pop %v5634
        %v6659 = vtanh.pop %v5635
        %v6660 = vtanh.pop %v5636
        %v6661 = vtanh.pop %v5637
        %v6662 = vtanh.pop %v5638
        %v6663 = vtanh.pop %v5639
        %v6664 = vtanh.pop %v5640
        %v6665 = vtanh.pop %v5641
        %v6666 = vtanh.pop %v5642
        %v6667 = vtanh.pop %v5643
        %v6668 = vtanh.pop %v5644
        %v6669 = vtanh.pop %v5645
        %v6670 = vtanh.pop %v5646
        %v6671 = vtanh.pop %v5647
        %v6672 = vtanh.pop %v5648
        %v6673 = vtanh.pop %v5649
        %v6674 = vtanh.pop %v5650
        %v6675 = vtanh.pop %v5651
        %v6676 = vtanh.pop %v5652
        %v6677 = vtanh.pop %v5653
        %v6678 = vtanh.pop %v5654
        %v6679 = vtanh.pop %v5655
        %v6680 = vtanh.pop %v5656
        %v6681 = vtanh.pop %v5657
        %v6682 = vtanh.pop %v5658
        %v6683 = vtanh.pop %v5659
        %v6684 = vtanh.pop %v5660
        %v6685 = vtanh.pop %v5661
        %v6686 = vtanh.pop %v5662
        %v6687 = vtanh.pop %v5663
        %v6688 = vtanh.pop %v5664
        %v6689 = vtanh.pop %v5665
        %v6690 = vtanh.pop %v5666
        %v6691 = vtanh.pop %v5667
        %v6692 = vtanh.pop %v5668
        %v6693 = vtanh.pop %v5669
        %v6694 = vtanh.pop %v5670
        %v6695 = vtanh.pop %v5671
        %v6696 = vtanh.pop %v5672
        %v6697 = vtanh.pop %v5673
        %v6698 = vtanh.pop %v5674
        %v6699 = vtanh.pop %v5675
        %v6700 = vtanh.pop %v5676
        %v6701 = vtanh.pop %v5677
        %v6702 = vtanh.pop %v5678
        %v6703 = vtanh.pop %v5679
        %v6704 = vtanh.pop %v5680
        %v6705 = vtanh.pop %v5681
        %v6706 = vtanh.pop %v5682
        %v6707 = vtanh.pop %v5683
        %v6708 = vtanh.pop %v5684
        %v6709 = vtanh.pop %v5685
        %v6710 = vtanh.pop %v5686
        %v6711 = vtanh.pop %v5687
        %v6712 = vtanh.pop %v5688
        %v6713 = vtanh.pop %v5689
        %v6714 = vtanh.pop %v5690
        %v6715 = vtanh.pop %v5691
        %v6716 = vtanh.pop %v5692
        %v6717 = vtanh.pop %v5693
        %v6718 = vtanh.pop %v5694
        %v6719 = vtanh.pop %v5695
        %v6720 = vtanh.pop %v5696
        %v6721 = vtanh.pop %v5697
        %v6722 = vtanh.pop %v5698
        %v6723 = vtanh.pop %v5699
        %v6724 = vtanh.pop %v5700
        %v6725 = vtanh.pop %v5701
        %v6726 = vtanh.pop %v5702
        %v6727 = vtanh.pop %v5703
        %v6728 = vtanh.pop %v5704
        %v6729 = vtanh.pop %v5705
        %v6730 = vtanh.pop %v5706
        %v6731 = vtanh.pop %v5707
        %v6732 = vtanh.pop %v5708
        %v6733 = vtanh.pop %v5709
        %v6734 = vtanh.pop %v5710
        %v6735 = vtanh.pop %v5711
        %v6736 = vtanh.pop %v5712
        %v6737 = vtanh.pop %v5713
        %v6738 = vtanh.pop %v5714
        %v6739 = vtanh.pop %v5715
        %v6740 = vtanh.pop %v5716
        %v6741 = vtanh.pop %v5717
        %v6742 = vtanh.pop %v5718
        %v6743 = vtanh.pop %v5719
        %v6744 = vtanh.pop %v5720
        %v6745 = vtanh.pop %v5721
        %v6746 = vtanh.pop %v5722
        %v6747 = vtanh.pop %v5723
        %v6748 = vtanh.pop %v5724
        %v6749 = vtanh.pop %v5725
        %v6750 = vtanh.pop %v5726
        %v6751 = vtanh.pop %v5727
        %v6752 = vtanh.pop %v5728
        %v6753 = vtanh.pop %v5729
        %v6754 = vtanh.pop %v5730
        %v6755 = vtanh.pop %v5731
        %v6756 = vtanh.pop %v5732
        %v6757 = vtanh.pop %v5733
        %v6758 = vtanh.pop %v5734
        %v6759 = vtanh.pop %v5735
        %v6760 = vtanh.pop %v5736
        %v6761 = vtanh.pop %v5737
        %v6762 = vtanh.pop %v5738
        %v6763 = vtanh.pop %v5739
        %v6764 = vtanh.pop %v5740
        %v6765 = vtanh.pop %v5741
        %v6766 = vtanh.pop %v5742
        %v6767 = vtanh.pop %v5743
        %v6768 = vtanh.pop %v5744
        %v6769 = vtanh.pop %v5745
        %v6770 = vtanh.pop %v5746
        %v6771 = vtanh.pop %v5747
        %v6772 = vtanh.pop %v5748
        %v6773 = vtanh.pop %v5749
        %v6774 = vtanh.pop %v5750
        %v6775 = vtanh.pop %v5751
        %v6776 = vtanh.pop %v5752
        %v6777 = vtanh.pop %v5753
        %v6778 = vtanh.pop %v5754
        %v6779 = vtanh.pop %v5755
        %v6780 = vtanh.pop %v5756
        %v6781 = vtanh.pop %v5757
        %v6782 = vtanh.pop %v5758
        %v6783 = vtanh.pop %v5759
        %v6784 = vtanh.pop %v5760
        %v6785 = vtanh.pop %v5761
        %v6786 = vtanh.pop %v5762
        %v6787 = vtanh.pop %v5763
        %v6788 = vtanh.pop %v5764
        %v6789 = vtanh.pop %v5765
        %v6790 = vtanh.pop %v5766
        %v6791 = vtanh.pop %v5767
        %v6792 = vtanh.pop %v5768
        %v6793 = vtanh.pop %v5769
        %v6794 = vtanh.pop %v5770
        %v6795 = vtanh.pop %v5771
        %v6796 = vtanh.pop %v5772
        %v6797 = vtanh.pop %v5773
        %v6798 = vtanh.pop %v5774
        %v6799 = vtanh.pop %v5775
        %v6800 = vtanh.pop %v5776
        %v6801 = vtanh.pop %v5777
        %v6802 = vtanh.pop %v5778
        %v6803 = vtanh.pop %v5779
        %v6804 = vtanh.pop %v5780
        %v6805 = vtanh.pop %v5781
        %v6806 = vtanh.pop %v5782
        %v6807 = vtanh.pop %v5783
        %v6808 = vtanh.pop %v5784
        %v6809 = vtanh.pop %v5785
        %v6810 = vtanh.pop %v5786
        %v6811 = vtanh.pop %v5787
        %v6812 = vtanh.pop %v5788
        %v6813 = vtanh.pop %v5789
        %v6814 = vtanh.pop %v5790
        %v6815 = vtanh.pop %v5791
        %v6816 = vtanh.pop %v5792
        %v6817 = vtanh.pop %v5793
        %v6818 = vtanh.pop %v5794
        %v6819 = vtanh.pop %v5795
        %v6820 = vtanh.pop %v5796
        %v6821 = vtanh.pop %v5797
        %v6822 = vtanh.pop %v5798
        %v6823 = vtanh.pop %v5799
        %v6824 = vtanh.pop %v5800
        %v6825 = vtanh.pop %v5801
        %v6826 = vtanh.pop %v5802
        %v6827 = vtanh.pop %v5803
        %v6828 = vtanh.pop %v5804
        %v6829 = vtanh.pop %v5805
        %v6830 = vtanh.pop %v5806
        %v6831 = vtanh.pop %v5807
        %v6832 = vtanh.pop %v5808
        %v6833 = vtanh.pop %v5809
        %v6834 = vtanh.pop %v5810
        %v6835 = vtanh.pop %v5811
        %v6836 = vtanh.pop %v5812
        %v6837 = vtanh.pop %v5813
        %v6838 = vtanh.pop %v5814
        %v6839 = vtanh.pop %v5815
        %v6840 = vtanh.pop %v5816
        %v6841 = vtanh.pop %v5817
        %v6842 = vtanh.pop %v5818
        %v6843 = vtanh.pop %v5819
        %v6844 = vtanh.pop %v5820
        %v6845 = vtanh.pop %v5821
        %v6846 = vtanh.pop %v5822
        %v6847 = vtanh.pop %v5823
        %v6848 = vtanh.pop %v5824
        %v6849 = vtanh.pop %v5825
        %v6850 = vtanh.pop %v5826
        %v6851 = vtanh.pop %v5827
        %v6852 = vtanh.pop %v5828
        %v6853 = vtanh.pop %v5829
        %v6854 = vtanh.pop %v5830
        %v6855 = vtanh.pop %v5831
        %v6856 = vtanh.pop %v5832
        %v6857 = vtanh.pop %v5833
        %v6858 = vtanh.pop %v5834
        %v6859 = vtanh.pop %v5835
        %v6860 = vtanh.pop %v5836
        %v6861 = vtanh.pop %v5837
        %v6862 = vtanh.pop %v5838
        %v6863 = vtanh.pop %v5839
        %v6864 = vtanh.pop %v5840
        %v6865 = vtanh.pop %v5841
        %v6866 = vtanh.pop %v5842
        %v6867 = vtanh.pop %v5843
        %v6868 = vtanh.pop %v5844
        %v6869 = vtanh.pop %v5845
        %v6870 = vtanh.pop %v5846
        %v6871 = vtanh.pop %v5847
        %v6872 = vtanh.pop %v5848
        %v6873 = vtanh.pop %v5849
        %v6874 = vtanh.pop %v5850
        %v6875 = vtanh.pop %v5851
        %v6876 = vtanh.pop %v5852
        %v6877 = vtanh.pop %v5853
        %v6878 = vtanh.pop %v5854
        %v6879 = vtanh.pop %v5855
        %v6880 = vtanh.pop %v5856
        %v6881 = vtanh.pop %v5857
        %v6882 = vtanh.pop %v5858
        %v6883 = vtanh.pop %v5859
        %v6884 = vtanh.pop %v5860
        %v6885 = vtanh.pop %v5861
        %v6886 = vtanh.pop %v5862
        %v6887 = vtanh.pop %v5863
        %v6888 = vtanh.pop %v5864
        %v6889 = vtanh.pop %v5865
        %v6890 = vtanh.pop %v5866
        %v6891 = vtanh.pop %v5867
        %v6892 = vtanh.pop %v5868
        %v6893 = vtanh.pop %v5869
        %v6894 = vtanh.pop %v5870
        %v6895 = vtanh.pop %v5871
        %v6896 = vtanh.pop %v5872
        %v6897 = vtanh.pop %v5873
        %v6898 = vtanh.pop %v5874
        %v6899 = vtanh.pop %v5875
        %v6900 = vtanh.pop %v5876
        %v6901 = vtanh.pop %v5877
        %v6902 = vtanh.pop %v5878
        %v6903 = vtanh.pop %v5879
        %v6904 = vtanh.pop %v5880
        %v6905 = vtanh.pop %v5881
        %v6906 = vtanh.pop %v5882
        %v6907 = vtanh.pop %v5883
        %v6908 = vtanh.pop %v5884
        %v6909 = vtanh.pop %v5885
        %v6910 = vtanh.pop %v5886
        %v6911 = vtanh.pop %v5887
        %v6912 = vtanh.pop %v5888
        %v6913 = vtanh.pop %v5889
        %v6914 = vtanh.pop %v5890
        %v6915 = vtanh.pop %v5891
        %v6916 = vtanh.pop %v5892
        %v6917 = vtanh.pop %v5893
        %v6918 = vtanh.pop %v5894
        %v6919 = vtanh.pop %v5895
        %v6920 = vtanh.pop %v5896
        %v6921 = vtanh.pop %v5897
        %v6922 = vtanh.pop %v5898
        %v6923 = vtanh.pop %v5899
        %v6924 = vtanh.pop %v5900
        %v6925 = vtanh.pop %v5901
        %v6926 = vtanh.pop %v5902
        %v6927 = vtanh.pop %v5903
        %v6928 = vtanh.pop %v5904
        %v6929 = vtanh.pop %v5905
        %v6930 = vld [vmem:[%s5] sm:$0x1]
        %6931 = vmatprep.subr.mxu0 0.0
        %6932 = vmatpush1.msra.mxu0 %v5921
        %6933 = vmatprep.subr.mxu0 0.0
        %6934 = vmatpush1.msra.mxu0 %v5920
        %6935 = vmatprep.subr.mxu0 0.0
        %6936 = vmatpush1.msra.mxu0 %v5919
        %6937 = vmatprep.subr.mxu0 0.0
        %6938 = vmatpush1.msra.mxu0 %v5918
        %6939 = vmatprep.subr.mxu0 0.0
        %6940 = vmatpush1.msra.mxu0 %v5917
        %6941 = vmatprep.subr.mxu0 0.0
        %6942 = vmatpush1.msra.mxu0 %v5916
        %6943 = vmatprep.subr.mxu0 0.0
        %6944 = vmatpush1.msra.mxu0 %v5915
        %6945 = vmatprep.subr.mxu0 0.0
        %6946 = vmatpush1.msra.mxu0 %v5914
        %6947 = vmatprep.subr.mxu0 0.0
        %6948 = vmatpush1.msra.mxu0 %v5913
        %6949 = vmatprep.subr.mxu0 0.0
        %6950 = vmatpush1.msra.mxu0 %v5912
        %6951 = vmatprep.subr.mxu0 0.0
        %6952 = vmatpush1.msra.mxu0 %v5911
        %6953 = vmatprep.subr.mxu0 0.0
        %6954 = vmatpush1.msra.mxu0 %v5910
        %6955 = vmatprep.subr.mxu0 0.0
        %6956 = vmatpush1.msra.mxu0 %v5909
        %6957 = vmatprep.subr.mxu0 0.0
        %6958 = vmatpush1.msra.mxu0 %v5908
        %6959 = vmatprep.subr.mxu0 0.0
        %6960 = vmatpush1.msra.mxu0 %v5907
        %6961 = vmatprep.subr.mxu0 0.0
        %6962 = vmatpush1.msra.mxu0 %v5906
        %6963 = vmatprep.subr.mxu0 0.0
        %6964 = vmatpush2.msra.mxu0 0.0
        %6965 = vmatprep.subr.mxu0 0.0
        %6966 = vmatpush2.msra.mxu0 0.0
        %6967 = vmatprep.subr.mxu0 0.0
        %6968 = vmatpush2.msra.mxu0 0.0
        %6969 = vmatprep.subr.mxu0 0.0
        %6970 = vmatpush2.msra.mxu0 0.0
        %6971 = vmatprep.subr.mxu0 0.0
        %6972 = vmatpush2.msra.mxu0 0.0
        %6973 = vmatprep.subr.mxu0 0.0
        %6974 = vmatpush2.msra.mxu0 0.0
        %6975 = vmatprep.subr.mxu0 0.0
        %6976 = vmatpush2.msra.mxu0 0.0
        %6977 = vmatprep.subr.mxu0 0.0
        %6978 = vmatpush2.msra.mxu0 0.0
        %6979 = vmatprep.subr.mxu0 0.0
        %6980 = vmatpush2.msra.mxu0 0.0
        %6981 = vmatprep.subr.mxu0 0.0
        %6982 = vmatpush2.msra.mxu0 0.0
        %6983 = vmatprep.subr.mxu0 0.0
        %6984 = vmatpush2.msra.mxu0 0.0
        %6985 = vmatprep.subr.mxu0 0.0
        %6986 = vmatpush2.msra.mxu0 0.0
        %6987 = vmatprep.subr.mxu0 0.0
        %6988 = vmatpush2.msra.mxu0 0.0
        %6989 = vmatprep.subr.mxu0 0.0
        %6990 = vmatpush2.msra.mxu0 0.0
        %6991 = vmatprep.subr.mxu0 0.0
        %6992 = vmatpush2.msra.mxu0 0.0
        %6993 = vmatprep.subr.mxu0 0.0
        %6994 = vmatpush2.msra.mxu0 0.0
        %6995 = vmatprep.mubr.f32.mxu0 0.0
        %6996 = vmatmul.mubr.f32.gmra.mxu0 %v6930
        %v6997 = vpop.f32.mrf.mxu0
        %v6998 = vadd.f32 0.0, %v6997
        %v6999 = vpop.f32.mrf.mxu0
        %7000 = vdwg.mxu0
        %7001 = vmatprep.subr.mxu0 0.0
        %7002 = vmatpush1.msra.mxu0 %v5937
        %7003 = vmatprep.subr.mxu0 0.0
        %7004 = vmatpush1.msra.mxu0 %v5936
        %7005 = vmatprep.subr.mxu0 0.0
        %7006 = vmatpush1.msra.mxu0 %v5935
        %7007 = vmatprep.subr.mxu0 0.0
        %7008 = vmatpush1.msra.mxu0 %v5934
        %7009 = vmatprep.subr.mxu0 0.0
        %7010 = vmatpush1.msra.mxu0 %v5933
        %7011 = vmatprep.subr.mxu0 0.0
        %7012 = vmatpush1.msra.mxu0 %v5932
        %7013 = vmatprep.subr.mxu0 0.0
        %7014 = vmatpush1.msra.mxu0 %v5931
        %7015 = vmatprep.subr.mxu0 0.0
        %7016 = vmatpush1.msra.mxu0 %v5930
        %7017 = vmatprep.subr.mxu0 0.0
        %7018 = vmatpush1.msra.mxu0 %v5929
        %7019 = vmatprep.subr.mxu0 0.0
        %7020 = vmatpush1.msra.mxu0 %v5928
        %7021 = vmatprep.subr.mxu0 0.0
        %7022 = vmatpush1.msra.mxu0 %v5927
        %7023 = vmatprep.subr.mxu0 0.0
        %7024 = vmatpush1.msra.mxu0 %v5926
        %7025 = vmatprep.subr.mxu0 0.0
        %7026 = vmatpush1.msra.mxu0 %v5925
        %7027 = vmatprep.subr.mxu0 0.0
        %7028 = vmatpush1.msra.mxu0 %v5924
        %7029 = vmatprep.subr.mxu0 0.0
        %7030 = vmatpush1.msra.mxu0 %v5923
        %7031 = vmatprep.subr.mxu0 0.0
        %7032 = vmatpush1.msra.mxu0 %v5922
        %7033 = vmatprep.subr.mxu0 0.0
        %7034 = vmatpush2.msra.mxu0 0.0
        %7035 = vmatprep.subr.mxu0 0.0
        %7036 = vmatpush2.msra.mxu0 0.0
        %7037 = vmatprep.subr.mxu0 0.0
        %7038 = vmatpush2.msra.mxu0 0.0
        %7039 = vmatprep.subr.mxu0 0.0
        %7040 = vmatpush2.msra.mxu0 0.0
        %7041 = vmatprep.subr.mxu0 0.0
        %7042 = vmatpush2.msra.mxu0 0.0
        %7043 = vmatprep.subr.mxu0 0.0
        %7044 = vmatpush2.msra.mxu0 0.0
        %7045 = vmatprep.subr.mxu0 0.0
        %7046 = vmatpush2.msra.mxu0 0.0
        %7047 = vmatprep.subr.mxu0 0.0
        %7048 = vmatpush2.msra.mxu0 0.0
        %7049 = vmatprep.subr.mxu0 0.0
        %7050 = vmatpush2.msra.mxu0 0.0
        %7051 = vmatprep.subr.mxu0 0.0
        %7052 = vmatpush2.msra.mxu0 0.0
        %7053 = vmatprep.subr.mxu0 0.0
        %7054 = vmatpush2.msra.mxu0 0.0
        %7055 = vmatprep.subr.mxu0 0.0
        %7056 = vmatpush2.msra.mxu0 0.0
        %7057 = vmatprep.subr.mxu0 0.0
        %7058 = vmatpush2.msra.mxu0 0.0
        %7059 = vmatprep.subr.mxu0 0.0
        %7060 = vmatpush2.msra.mxu0 0.0
        %7061 = vmatprep.subr.mxu0 0.0
        %7062 = vmatpush2.msra.mxu0 0.0
        %7063 = vmatprep.subr.mxu0 0.0
        %7064 = vmatpush2.msra.mxu0 0.0
        %7065 = vmatprep.mubr.f32.mxu0 0.0
        %7066 = vmatmul.mubr.f32.gmra.mxu0 %v6930
        %v7067 = vpop.f32.mrf.mxu0
        %v7068 = vadd.f32 0.0, %v7067
        %v7069 = vpop.f32.mrf.mxu0
        %7070 = vdwg.mxu0
        %7071 = vmatprep.subr.mxu0 0.0
        %7072 = vmatpush1.msra.mxu0 %v5953
        %7073 = vmatprep.subr.mxu0 0.0
        %7074 = vmatpush1.msra.mxu0 %v5952
        %7075 = vmatprep.subr.mxu0 0.0
        %7076 = vmatpush1.msra.mxu0 %v5951
        %7077 = vmatprep.subr.mxu0 0.0
        %7078 = vmatpush1.msra.mxu0 %v5950
        %7079 = vmatprep.subr.mxu0 0.0
        %7080 = vmatpush1.msra.mxu0 %v5949
        %7081 = vmatprep.subr.mxu0 0.0
        %7082 = vmatpush1.msra.mxu0 %v5948
        %7083 = vmatprep.subr.mxu0 0.0
        %7084 = vmatpush1.msra.mxu0 %v5947
        %7085 = vmatprep.subr.mxu0 0.0
        %7086 = vmatpush1.msra.mxu0 %v5946
        %7087 = vmatprep.subr.mxu0 0.0
        %7088 = vmatpush1.msra.mxu0 %v5945
        %7089 = vmatprep.subr.mxu0 0.0
        %7090 = vmatpush1.msra.mxu0 %v5944
        %7091 = vmatprep.subr.mxu0 0.0
        %7092 = vmatpush1.msra.mxu0 %v5943
        %7093 = vmatprep.subr.mxu0 0.0
        %7094 = vmatpush1.msra.mxu0 %v5942
        %7095 = vmatprep.subr.mxu0 0.0
        %7096 = vmatpush1.msra.mxu0 %v5941
        %7097 = vmatprep.subr.mxu0 0.0
        %7098 = vmatpush1.msra.mxu0 %v5940
        %7099 = vmatprep.subr.mxu0 0.0
        %7100 = vmatpush1.msra.mxu0 %v5939
        %7101 = vmatprep.subr.mxu0 0.0
        %7102 = vmatpush1.msra.mxu0 %v5938
        %7103 = vmatprep.subr.mxu0 0.0
        %7104 = vmatpush2.msra.mxu0 0.0
        %7105 = vmatprep.subr.mxu0 0.0
        %7106 = vmatpush2.msra.mxu0 0.0
        %7107 = vmatprep.subr.mxu0 0.0
        %7108 = vmatpush2.msra.mxu0 0.0
        %7109 = vmatprep.subr.mxu0 0.0
        %7110 = vmatpush2.msra.mxu0 0.0
        %7111 = vmatprep.subr.mxu0 0.0
        %7112 = vmatpush2.msra.mxu0 0.0
        %7113 = vmatprep.subr.mxu0 0.0
        %7114 = vmatpush2.msra.mxu0 0.0
        %7115 = vmatprep.subr.mxu0 0.0
        %7116 = vmatpush2.msra.mxu0 0.0
        %7117 = vmatprep.subr.mxu0 0.0
        %7118 = vmatpush2.msra.mxu0 0.0
        %7119 = vmatprep.subr.mxu0 0.0
        %7120 = vmatpush2.msra.mxu0 0.0
        %7121 = vmatprep.subr.mxu0 0.0
        %7122 = vmatpush2.msra.mxu0 0.0
        %7123 = vmatprep.subr.mxu0 0.0
        %7124 = vmatpush2.msra.mxu0 0.0
        %7125 = vmatprep.subr.mxu0 0.0
        %7126 = vmatpush2.msra.mxu0 0.0
        %7127 = vmatprep.subr.mxu0 0.0
        %7128 = vmatpush2.msra.mxu0 0.0
        %7129 = vmatprep.subr.mxu0 0.0
        %7130 = vmatpush2.msra.mxu0 0.0
        %7131 = vmatprep.subr.mxu0 0.0
        %7132 = vmatpush2.msra.mxu0 0.0
        %7133 = vmatprep.subr.mxu0 0.0
        %7134 = vmatpush2.msra.mxu0 0.0
        %7135 = vmatprep.mubr.f32.mxu0 0.0
        %7136 = vmatmul.mubr.f32.gmra.mxu0 %v6930
        %v7137 = vpop.f32.mrf.mxu0
        %v7138 = vadd.f32 0.0, %v7137
        %v7139 = vpop.f32.mrf.mxu0
        %7140 = vdwg.mxu0
        %7141 = vmatprep.subr.mxu0 0.0
        %7142 = vmatpush1.msra.mxu0 %v5969
        %7143 = vmatprep.subr.mxu0 0.0
        %7144 = vmatpush1.msra.mxu0 %v5968
        %7145 = vmatprep.subr.mxu0 0.0
        %7146 = vmatpush1.msra.mxu0 %v5967
        %7147 = vmatprep.subr.mxu0 0.0
        %7148 = vmatpush1.msra.mxu0 %v5966
        %7149 = vmatprep.subr.mxu0 0.0
        %7150 = vmatpush1.msra.mxu0 %v5965
        %7151 = vmatprep.subr.mxu0 0.0
        %7152 = vmatpush1.msra.mxu0 %v5964
        %7153 = vmatprep.subr.mxu0 0.0
        %7154 = vmatpush1.msra.mxu0 %v5963
        %7155 = vmatprep.subr.mxu0 0.0
        %7156 = vmatpush1.msra.mxu0 %v5962
        %7157 = vmatprep.subr.mxu0 0.0
        %7158 = vmatpush1.msra.mxu0 %v5961
        %7159 = vmatprep.subr.mxu0 0.0
        %7160 = vmatpush1.msra.mxu0 %v5960
        %7161 = vmatprep.subr.mxu0 0.0
        %7162 = vmatpush1.msra.mxu0 %v5959
        %7163 = vmatprep.subr.mxu0 0.0
        %7164 = vmatpush1.msra.mxu0 %v5958
        %7165 = vmatprep.subr.mxu0 0.0
        %7166 = vmatpush1.msra.mxu0 %v5957
        %7167 = vmatprep.subr.mxu0 0.0
        %7168 = vmatpush1.msra.mxu0 %v5956
        %7169 = vmatprep.subr.mxu0 0.0
        %7170 = vmatpush1.msra.mxu0 %v5955
        %7171 = vmatprep.subr.mxu0 0.0
        %7172 = vmatpush1.msra.mxu0 %v5954
        %7173 = vmatprep.subr.mxu0 0.0
        %7174 = vmatpush2.msra.mxu0 0.0
        %7175 = vmatprep.subr.mxu0 0.0
        %7176 = vmatpush2.msra.mxu0 0.0
        %7177 = vmatprep.subr.mxu0 0.0
        %7178 = vmatpush2.msra.mxu0 0.0
        %7179 = vmatprep.subr.mxu0 0.0
        %7180 = vmatpush2.msra.mxu0 0.0
        %7181 = vmatprep.subr.mxu0 0.0
        %7182 = vmatpush2.msra.mxu0 0.0
        %7183 = vmatprep.subr.mxu0 0.0
        %7184 = vmatpush2.msra.mxu0 0.0
        %7185 = vmatprep.subr.mxu0 0.0
        %7186 = vmatpush2.msra.mxu0 0.0
        %7187 = vmatprep.subr.mxu0 0.0
        %7188 = vmatpush2.msra.mxu0 0.0
        %7189 = vmatprep.subr.mxu0 0.0
        %7190 = vmatpush2.msra.mxu0 0.0
        %7191 = vmatprep.subr.mxu0 0.0
        %7192 = vmatpush2.msra.mxu0 0.0
        %7193 = vmatprep.subr.mxu0 0.0
        %7194 = vmatpush2.msra.mxu0 0.0
        %7195 = vmatprep.subr.mxu0 0.0
        %7196 = vmatpush2.msra.mxu0 0.0
        %7197 = vmatprep.subr.mxu0 0.0
        %7198 = vmatpush2.msra.mxu0 0.0
        %7199 = vmatprep.subr.mxu0 0.0
        %7200 = vmatpush2.msra.mxu0 0.0
        %7201 = vmatprep.subr.mxu0 0.0
        %7202 = vmatpush2.msra.mxu0 0.0
        %7203 = vmatprep.subr.mxu0 0.0
        %7204 = vmatpush2.msra.mxu0 0.0
        %7205 = vmatprep.mubr.f32.mxu0 0.0
        %7206 = vmatmul.mubr.f32.gmra.mxu0 %v6930
        %v7207 = vpop.f32.mrf.mxu0
        %v7208 = vadd.f32 0.0, %v7207
        %v7209 = vpop.f32.mrf.mxu0
        %7210 = vdwg.mxu0
        %7211 = vmatprep.subr.mxu0 0.0
        %7212 = vmatpush1.msra.mxu0 %v5985
        %7213 = vmatprep.subr.mxu0 0.0
        %7214 = vmatpush1.msra.mxu0 %v5984
        %7215 = vmatprep.subr.mxu0 0.0
        %7216 = vmatpush1.msra.mxu0 %v5983
        %7217 = vmatprep.subr.mxu0 0.0
        %7218 = vmatpush1.msra.mxu0 %v5982
        %7219 = vmatprep.subr.mxu0 0.0
        %7220 = vmatpush1.msra.mxu0 %v5981
        %7221 = vmatprep.subr.mxu0 0.0
        %7222 = vmatpush1.msra.mxu0 %v5980
        %7223 = vmatprep.subr.mxu0 0.0
        %7224 = vmatpush1.msra.mxu0 %v5979
        %7225 = vmatprep.subr.mxu0 0.0
        %7226 = vmatpush1.msra.mxu0 %v5978
        %7227 = vmatprep.subr.mxu0 0.0
        %7228 = vmatpush1.msra.mxu0 %v5977
        %7229 = vmatprep.subr.mxu0 0.0
        %7230 = vmatpush1.msra.mxu0 %v5976
        %7231 = vmatprep.subr.mxu0 0.0
        %7232 = vmatpush1.msra.mxu0 %v5975
        %7233 = vmatprep.subr.mxu0 0.0
        %7234 = vmatpush1.msra.mxu0 %v5974
        %7235 = vmatprep.subr.mxu0 0.0
        %7236 = vmatpush1.msra.mxu0 %v5973
        %7237 = vmatprep.subr.mxu0 0.0
        %7238 = vmatpush1.msra.mxu0 %v5972
        %7239 = vmatprep.subr.mxu0 0.0
        %7240 = vmatpush1.msra.mxu0 %v5971
        %7241 = vmatprep.subr.mxu0 0.0
        %7242 = vmatpush1.msra.mxu0 %v5970
        %7243 = vmatprep.subr.mxu0 0.0
        %7244 = vmatpush2.msra.mxu0 0.0
        %7245 = vmatprep.subr.mxu0 0.0
        %7246 = vmatpush2.msra.mxu0 0.0
        %7247 = vmatprep.subr.mxu0 0.0
        %7248 = vmatpush2.msra.mxu0 0.0
        %7249 = vmatprep.subr.mxu0 0.0
        %7250 = vmatpush2.msra.mxu0 0.0
        %7251 = vmatprep.subr.mxu0 0.0
        %7252 = vmatpush2.msra.mxu0 0.0
        %7253 = vmatprep.subr.mxu0 0.0
        %7254 = vmatpush2.msra.mxu0 0.0
        %7255 = vmatprep.subr.mxu0 0.0
        %7256 = vmatpush2.msra.mxu0 0.0
        %7257 = vmatprep.subr.mxu0 0.0
        %7258 = vmatpush2.msra.mxu0 0.0
        %7259 = vmatprep.subr.mxu0 0.0
        %7260 = vmatpush2.msra.mxu0 0.0
        %7261 = vmatprep.subr.mxu0 0.0
        %7262 = vmatpush2.msra.mxu0 0.0
        %7263 = vmatprep.subr.mxu0 0.0
        %7264 = vmatpush2.msra.mxu0 0.0
        %7265 = vmatprep.subr.mxu0 0.0
        %7266 = vmatpush2.msra.mxu0 0.0
        %7267 = vmatprep.subr.mxu0 0.0
        %7268 = vmatpush2.msra.mxu0 0.0
        %7269 = vmatprep.subr.mxu0 0.0
        %7270 = vmatpush2.msra.mxu0 0.0
        %7271 = vmatprep.subr.mxu0 0.0
        %7272 = vmatpush2.msra.mxu0 0.0
        %7273 = vmatprep.subr.mxu0 0.0
        %7274 = vmatpush2.msra.mxu0 0.0
        %7275 = vmatprep.mubr.f32.mxu0 0.0
        %7276 = vmatmul.mubr.f32.gmra.mxu0 %v6930
        %v7277 = vpop.f32.mrf.mxu0
        %v7278 = vadd.f32 0.0, %v7277
        %v7279 = vpop.f32.mrf.mxu0
        %7280 = vdwg.mxu0
        %7281 = vmatprep.subr.mxu0 0.0
        %7282 = vmatpush1.msra.mxu0 %v6001
        %7283 = vmatprep.subr.mxu0 0.0
        %7284 = vmatpush1.msra.mxu0 %v6000
        %7285 = vmatprep.subr.mxu0 0.0
        %7286 = vmatpush1.msra.mxu0 %v5999
        %7287 = vmatprep.subr.mxu0 0.0
        %7288 = vmatpush1.msra.mxu0 %v5998
        %7289 = vmatprep.subr.mxu0 0.0
        %7290 = vmatpush1.msra.mxu0 %v5997
        %7291 = vmatprep.subr.mxu0 0.0
        %7292 = vmatpush1.msra.mxu0 %v5996
        %7293 = vmatprep.subr.mxu0 0.0
        %7294 = vmatpush1.msra.mxu0 %v5995
        %7295 = vmatprep.subr.mxu0 0.0
        %7296 = vmatpush1.msra.mxu0 %v5994
        %7297 = vmatprep.subr.mxu0 0.0
        %7298 = vmatpush1.msra.mxu0 %v5993
        %7299 = vmatprep.subr.mxu0 0.0
        %7300 = vmatpush1.msra.mxu0 %v5992
        %7301 = vmatprep.subr.mxu0 0.0
        %7302 = vmatpush1.msra.mxu0 %v5991
        %7303 = vmatprep.subr.mxu0 0.0
        %7304 = vmatpush1.msra.mxu0 %v5990
        %7305 = vmatprep.subr.mxu0 0.0
        %7306 = vmatpush1.msra.mxu0 %v5989
        %7307 = vmatprep.subr.mxu0 0.0
        %7308 = vmatpush1.msra.mxu0 %v5988
        %7309 = vmatprep.subr.mxu0 0.0
        %7310 = vmatpush1.msra.mxu0 %v5987
        %7311 = vmatprep.subr.mxu0 0.0
        %7312 = vmatpush1.msra.mxu0 %v5986
        %7313 = vmatprep.subr.mxu0 0.0
        %7314 = vmatpush2.msra.mxu0 0.0
        %7315 = vmatprep.subr.mxu0 0.0
        %7316 = vmatpush2.msra.mxu0 0.0
        %7317 = vmatprep.subr.mxu0 0.0
        %7318 = vmatpush2.msra.mxu0 0.0
        %7319 = vmatprep.subr.mxu0 0.0
        %7320 = vmatpush2.msra.mxu0 0.0
        %7321 = vmatprep.subr.mxu0 0.0
        %7322 = vmatpush2.msra.mxu0 0.0
        %7323 = vmatprep.subr.mxu0 0.0
        %7324 = vmatpush2.msra.mxu0 0.0
        %7325 = vmatprep.subr.mxu0 0.0
        %7326 = vmatpush2.msra.mxu0 0.0
        %7327 = vmatprep.subr.mxu0 0.0
        %7328 = vmatpush2.msra.mxu0 0.0
        %7329 = vmatprep.subr.mxu0 0.0
        %7330 = vmatpush2.msra.mxu0 0.0
        %7331 = vmatprep.subr.mxu0 0.0
        %7332 = vmatpush2.msra.mxu0 0.0
        %7333 = vmatprep.subr.mxu0 0.0
        %7334 = vmatpush2.msra.mxu0 0.0
        %7335 = vmatprep.subr.mxu0 0.0
        %7336 = vmatpush2.msra.mxu0 0.0
        %7337 = vmatprep.subr.mxu0 0.0
        %7338 = vmatpush2.msra.mxu0 0.0
        %7339 = vmatprep.subr.mxu0 0.0
        %7340 = vmatpush2.msra.mxu0 0.0
        %7341 = vmatprep.subr.mxu0 0.0
        %7342 = vmatpush2.msra.mxu0 0.0
        %7343 = vmatprep.subr.mxu0 0.0
        %7344 = vmatpush2.msra.mxu0 0.0
        %7345 = vmatprep.mubr.f32.mxu0 0.0
        %7346 = vmatmul.mubr.f32.gmra.mxu0 %v6930
        %v7347 = vpop.f32.mrf.mxu0
        %v7348 = vadd.f32 0.0, %v7347
        %v7349 = vpop.f32.mrf.mxu0
        %7350 = vdwg.mxu0
        %7351 = vmatprep.subr.mxu0 0.0
        %7352 = vmatpush1.msra.mxu0 %v6017
        %7353 = vmatprep.subr.mxu0 0.0
        %7354 = vmatpush1.msra.mxu0 %v6016
        %7355 = vmatprep.subr.mxu0 0.0
        %7356 = vmatpush1.msra.mxu0 %v6015
        %7357 = vmatprep.subr.mxu0 0.0
        %7358 = vmatpush1.msra.mxu0 %v6014
        %7359 = vmatprep.subr.mxu0 0.0
        %7360 = vmatpush1.msra.mxu0 %v6013
        %7361 = vmatprep.subr.mxu0 0.0
        %7362 = vmatpush1.msra.mxu0 %v6012
        %7363 = vmatprep.subr.mxu0 0.0
        %7364 = vmatpush1.msra.mxu0 %v6011
        %7365 = vmatprep.subr.mxu0 0.0
        %7366 = vmatpush1.msra.mxu0 %v6010
        %7367 = vmatprep.subr.mxu0 0.0
        %7368 = vmatpush1.msra.mxu0 %v6009
        %7369 = vmatprep.subr.mxu0 0.0
        %7370 = vmatpush1.msra.mxu0 %v6008
        %7371 = vmatprep.subr.mxu0 0.0
        %7372 = vmatpush1.msra.mxu0 %v6007
        %7373 = vmatprep.subr.mxu0 0.0
        %7374 = vmatpush1.msra.mxu0 %v6006
        %7375 = vmatprep.subr.mxu0 0.0
        %7376 = vmatpush1.msra.mxu0 %v6005
        %7377 = vmatprep.subr.mxu0 0.0
        %7378 = vmatpush1.msra.mxu0 %v6004
        %7379 = vmatprep.subr.mxu0 0.0
        %7380 = vmatpush1.msra.mxu0 %v6003
        %7381 = vmatprep.subr.mxu0 0.0
        %7382 = vmatpush1.msra.mxu0 %v6002
        %7383 = vmatprep.subr.mxu0 0.0
        %7384 = vmatpush2.msra.mxu0 0.0
        %7385 = vmatprep.subr.mxu0 0.0
        %7386 = vmatpush2.msra.mxu0 0.0
        %7387 = vmatprep.subr.mxu0 0.0
        %7388 = vmatpush2.msra.mxu0 0.0
        %7389 = vmatprep.subr.mxu0 0.0
        %7390 = vmatpush2.msra.mxu0 0.0
        %7391 = vmatprep.subr.mxu0 0.0
        %7392 = vmatpush2.msra.mxu0 0.0
        %7393 = vmatprep.subr.mxu0 0.0
        %7394 = vmatpush2.msra.mxu0 0.0
        %7395 = vmatprep.subr.mxu0 0.0
        %7396 = vmatpush2.msra.mxu0 0.0
        %7397 = vmatprep.subr.mxu0 0.0
        %7398 = vmatpush2.msra.mxu0 0.0
        %7399 = vmatprep.subr.mxu0 0.0
        %7400 = vmatpush2.msra.mxu0 0.0
        %7401 = vmatprep.subr.mxu0 0.0
        %7402 = vmatpush2.msra.mxu0 0.0
        %7403 = vmatprep.subr.mxu0 0.0
        %7404 = vmatpush2.msra.mxu0 0.0
        %7405 = vmatprep.subr.mxu0 0.0
        %7406 = vmatpush2.msra.mxu0 0.0
        %7407 = vmatprep.subr.mxu0 0.0
        %7408 = vmatpush2.msra.mxu0 0.0
        %7409 = vmatprep.subr.mxu0 0.0
        %7410 = vmatpush2.msra.mxu0 0.0
        %7411 = vmatprep.subr.mxu0 0.0
        %7412 = vmatpush2.msra.mxu0 0.0
        %7413 = vmatprep.subr.mxu0 0.0
        %7414 = vmatpush2.msra.mxu0 0.0
        %7415 = vmatprep.mubr.f32.mxu0 0.0
        %7416 = vmatmul.mubr.f32.gmra.mxu0 %v6930
        %v7417 = vpop.f32.mrf.mxu0
        %v7418 = vadd.f32 0.0, %v7417
        %v7419 = vpop.f32.mrf.mxu0
        %7420 = vdwg.mxu0
        %7421 = vmatprep.subr.mxu0 0.0
        %7422 = vmatpush1.msra.mxu0 %v6033
        %7423 = vmatprep.subr.mxu0 0.0
        %7424 = vmatpush1.msra.mxu0 %v6032
        %7425 = vmatprep.subr.mxu0 0.0
        %7426 = vmatpush1.msra.mxu0 %v6031
        %7427 = vmatprep.subr.mxu0 0.0
        %7428 = vmatpush1.msra.mxu0 %v6030
        %7429 = vmatprep.subr.mxu0 0.0
        %7430 = vmatpush1.msra.mxu0 %v6029
        %7431 = vmatprep.subr.mxu0 0.0
        %7432 = vmatpush1.msra.mxu0 %v6028
        %7433 = vmatprep.subr.mxu0 0.0
        %7434 = vmatpush1.msra.mxu0 %v6027
        %7435 = vmatprep.subr.mxu0 0.0
        %7436 = vmatpush1.msra.mxu0 %v6026
        %7437 = vmatprep.subr.mxu0 0.0
        %7438 = vmatpush1.msra.mxu0 %v6025
        %7439 = vmatprep.subr.mxu0 0.0
        %7440 = vmatpush1.msra.mxu0 %v6024
        %7441 = vmatprep.subr.mxu0 0.0
        %7442 = vmatpush1.msra.mxu0 %v6023
        %7443 = vmatprep.subr.mxu0 0.0
        %7444 = vmatpush1.msra.mxu0 %v6022
        %7445 = vmatprep.subr.mxu0 0.0
        %7446 = vmatpush1.msra.mxu0 %v6021
        %7447 = vmatprep.subr.mxu0 0.0
        %7448 = vmatpush1.msra.mxu0 %v6020
        %7449 = vmatprep.subr.mxu0 0.0
        %7450 = vmatpush1.msra.mxu0 %v6019
        %7451 = vmatprep.subr.mxu0 0.0
        %7452 = vmatpush1.msra.mxu0 %v6018
        %7453 = vmatprep.subr.mxu0 0.0
        %7454 = vmatpush2.msra.mxu0 0.0
        %7455 = vmatprep.subr.mxu0 0.0
        %7456 = vmatpush2.msra.mxu0 0.0
        %7457 = vmatprep.subr.mxu0 0.0
        %7458 = vmatpush2.msra.mxu0 0.0
        %7459 = vmatprep.subr.mxu0 0.0
        %7460 = vmatpush2.msra.mxu0 0.0
        %7461 = vmatprep.subr.mxu0 0.0
        %7462 = vmatpush2.msra.mxu0 0.0
        %7463 = vmatprep.subr.mxu0 0.0
        %7464 = vmatpush2.msra.mxu0 0.0
        %7465 = vmatprep.subr.mxu0 0.0
        %7466 = vmatpush2.msra.mxu0 0.0
        %7467 = vmatprep.subr.mxu0 0.0
        %7468 = vmatpush2.msra.mxu0 0.0
        %7469 = vmatprep.subr.mxu0 0.0
        %7470 = vmatpush2.msra.mxu0 0.0
        %7471 = vmatprep.subr.mxu0 0.0
        %7472 = vmatpush2.msra.mxu0 0.0
        %7473 = vmatprep.subr.mxu0 0.0
        %7474 = vmatpush2.msra.mxu0 0.0
        %7475 = vmatprep.subr.mxu0 0.0
        %7476 = vmatpush2.msra.mxu0 0.0
        %7477 = vmatprep.subr.mxu0 0.0
        %7478 = vmatpush2.msra.mxu0 0.0
        %7479 = vmatprep.subr.mxu0 0.0
        %7480 = vmatpush2.msra.mxu0 0.0
        %7481 = vmatprep.subr.mxu0 0.0
        %7482 = vmatpush2.msra.mxu0 0.0
        %7483 = vmatprep.subr.mxu0 0.0
        %7484 = vmatpush2.msra.mxu0 0.0
        %7485 = vmatprep.mubr.f32.mxu0 0.0
        %7486 = vmatmul.mubr.f32.gmra.mxu0 %v6930
        %v7487 = vpop.f32.mrf.mxu0
        %v7488 = vadd.f32 0.0, %v7487
        %v7489 = vpop.f32.mrf.mxu0
        %7490 = vdwg.mxu0
        %7491 = vmatprep.subr.mxu0 0.0
        %7492 = vmatpush1.msra.mxu0 %v6049
        %7493 = vmatprep.subr.mxu0 0.0
        %7494 = vmatpush1.msra.mxu0 %v6048
        %7495 = vmatprep.subr.mxu0 0.0
        %7496 = vmatpush1.msra.mxu0 %v6047
        %7497 = vmatprep.subr.mxu0 0.0
        %7498 = vmatpush1.msra.mxu0 %v6046
        %7499 = vmatprep.subr.mxu0 0.0
        %7500 = vmatpush1.msra.mxu0 %v6045
        %7501 = vmatprep.subr.mxu0 0.0
        %7502 = vmatpush1.msra.mxu0 %v6044
        %7503 = vmatprep.subr.mxu0 0.0
        %7504 = vmatpush1.msra.mxu0 %v6043
        %7505 = vmatprep.subr.mxu0 0.0
        %7506 = vmatpush1.msra.mxu0 %v6042
        %7507 = vmatprep.subr.mxu0 0.0
        %7508 = vmatpush1.msra.mxu0 %v6041
        %7509 = vmatprep.subr.mxu0 0.0
        %7510 = vmatpush1.msra.mxu0 %v6040
        %7511 = vmatprep.subr.mxu0 0.0
        %7512 = vmatpush1.msra.mxu0 %v6039
        %7513 = vmatprep.subr.mxu0 0.0
        %7514 = vmatpush1.msra.mxu0 %v6038
        %7515 = vmatprep.subr.mxu0 0.0
        %7516 = vmatpush1.msra.mxu0 %v6037
        %7517 = vmatprep.subr.mxu0 0.0
        %7518 = vmatpush1.msra.mxu0 %v6036
        %7519 = vmatprep.subr.mxu0 0.0
        %7520 = vmatpush1.msra.mxu0 %v6035
        %7521 = vmatprep.subr.mxu0 0.0
        %7522 = vmatpush1.msra.mxu0 %v6034
        %7523 = vmatprep.subr.mxu0 0.0
        %7524 = vmatpush2.msra.mxu0 0.0
        %7525 = vmatprep.subr.mxu0 0.0
        %7526 = vmatpush2.msra.mxu0 0.0
        %7527 = vmatprep.subr.mxu0 0.0
        %7528 = vmatpush2.msra.mxu0 0.0
        %7529 = vmatprep.subr.mxu0 0.0
        %7530 = vmatpush2.msra.mxu0 0.0
        %7531 = vmatprep.subr.mxu0 0.0
        %7532 = vmatpush2.msra.mxu0 0.0
        %7533 = vmatprep.subr.mxu0 0.0
        %7534 = vmatpush2.msra.mxu0 0.0
        %7535 = vmatprep.subr.mxu0 0.0
        %7536 = vmatpush2.msra.mxu0 0.0
        %7537 = vmatprep.subr.mxu0 0.0
        %7538 = vmatpush2.msra.mxu0 0.0
        %7539 = vmatprep.subr.mxu0 0.0
        %7540 = vmatpush2.msra.mxu0 0.0
        %7541 = vmatprep.subr.mxu0 0.0
        %7542 = vmatpush2.msra.mxu0 0.0
        %7543 = vmatprep.subr.mxu0 0.0
        %7544 = vmatpush2.msra.mxu0 0.0
        %7545 = vmatprep.subr.mxu0 0.0
        %7546 = vmatpush2.msra.mxu0 0.0
        %7547 = vmatprep.subr.mxu0 0.0
        %7548 = vmatpush2.msra.mxu0 0.0
        %7549 = vmatprep.subr.mxu0 0.0
        %7550 = vmatpush2.msra.mxu0 0.0
        %7551 = vmatprep.subr.mxu0 0.0
        %7552 = vmatpush2.msra.mxu0 0.0
        %7553 = vmatprep.subr.mxu0 0.0
        %7554 = vmatpush2.msra.mxu0 0.0
        %7555 = vmatprep.mubr.f32.mxu0 0.0
        %7556 = vmatmul.mubr.f32.gmra.mxu0 %v6930
        %v7557 = vpop.f32.mrf.mxu0
        %v7558 = vadd.f32 0.0, %v7557
        %v7559 = vpop.f32.mrf.mxu0
        %7560 = vdwg.mxu0
        %7561 = vmatprep.subr.mxu0 0.0
        %7562 = vmatpush1.msra.mxu0 %v6065
        %7563 = vmatprep.subr.mxu0 0.0
        %7564 = vmatpush1.msra.mxu0 %v6064
        %7565 = vmatprep.subr.mxu0 0.0
        %7566 = vmatpush1.msra.mxu0 %v6063
        %7567 = vmatprep.subr.mxu0 0.0
        %7568 = vmatpush1.msra.mxu0 %v6062
        %7569 = vmatprep.subr.mxu0 0.0
        %7570 = vmatpush1.msra.mxu0 %v6061
        %7571 = vmatprep.subr.mxu0 0.0
        %7572 = vmatpush1.msra.mxu0 %v6060
        %7573 = vmatprep.subr.mxu0 0.0
        %7574 = vmatpush1.msra.mxu0 %v6059
        %7575 = vmatprep.subr.mxu0 0.0
        %7576 = vmatpush1.msra.mxu0 %v6058
        %7577 = vmatprep.subr.mxu0 0.0
        %7578 = vmatpush1.msra.mxu0 %v6057
        %7579 = vmatprep.subr.mxu0 0.0
        %7580 = vmatpush1.msra.mxu0 %v6056
        %7581 = vmatprep.subr.mxu0 0.0
        %7582 = vmatpush1.msra.mxu0 %v6055
        %7583 = vmatprep.subr.mxu0 0.0
        %7584 = vmatpush1.msra.mxu0 %v6054
        %7585 = vmatprep.subr.mxu0 0.0
        %7586 = vmatpush1.msra.mxu0 %v6053
        %7587 = vmatprep.subr.mxu0 0.0
        %7588 = vmatpush1.msra.mxu0 %v6052
        %7589 = vmatprep.subr.mxu0 0.0
        %7590 = vmatpush1.msra.mxu0 %v6051
        %7591 = vmatprep.subr.mxu0 0.0
        %7592 = vmatpush1.msra.mxu0 %v6050
        %7593 = vmatprep.subr.mxu0 0.0
        %7594 = vmatpush2.msra.mxu0 0.0
        %7595 = vmatprep.subr.mxu0 0.0
        %7596 = vmatpush2.msra.mxu0 0.0
        %7597 = vmatprep.subr.mxu0 0.0
        %7598 = vmatpush2.msra.mxu0 0.0
        %7599 = vmatprep.subr.mxu0 0.0
        %7600 = vmatpush2.msra.mxu0 0.0
        %7601 = vmatprep.subr.mxu0 0.0
        %7602 = vmatpush2.msra.mxu0 0.0
        %7603 = vmatprep.subr.mxu0 0.0
        %7604 = vmatpush2.msra.mxu0 0.0
        %7605 = vmatprep.subr.mxu0 0.0
        %7606 = vmatpush2.msra.mxu0 0.0
        %7607 = vmatprep.subr.mxu0 0.0
        %7608 = vmatpush2.msra.mxu0 0.0
        %7609 = vmatprep.subr.mxu0 0.0
        %7610 = vmatpush2.msra.mxu0 0.0
        %7611 = vmatprep.subr.mxu0 0.0
        %7612 = vmatpush2.msra.mxu0 0.0
        %7613 = vmatprep.subr.mxu0 0.0
        %7614 = vmatpush2.msra.mxu0 0.0
        %7615 = vmatprep.subr.mxu0 0.0
        %7616 = vmatpush2.msra.mxu0 0.0
        %7617 = vmatprep.subr.mxu0 0.0
        %7618 = vmatpush2.msra.mxu0 0.0
        %7619 = vmatprep.subr.mxu0 0.0
        %7620 = vmatpush2.msra.mxu0 0.0
        %7621 = vmatprep.subr.mxu0 0.0
        %7622 = vmatpush2.msra.mxu0 0.0
        %7623 = vmatprep.subr.mxu0 0.0
        %7624 = vmatpush2.msra.mxu0 0.0
        %7625 = vmatprep.mubr.f32.mxu0 0.0
        %7626 = vmatmul.mubr.f32.gmra.mxu0 %v6930
        %v7627 = vpop.f32.mrf.mxu0
        %v7628 = vadd.f32 0.0, %v7627
        %v7629 = vpop.f32.mrf.mxu0
        %7630 = vdwg.mxu0
        %7631 = vmatprep.subr.mxu0 0.0
        %7632 = vmatpush1.msra.mxu0 %v6081
        %7633 = vmatprep.subr.mxu0 0.0
        %7634 = vmatpush1.msra.mxu0 %v6080
        %7635 = vmatprep.subr.mxu0 0.0
        %7636 = vmatpush1.msra.mxu0 %v6079
        %7637 = vmatprep.subr.mxu0 0.0
        %7638 = vmatpush1.msra.mxu0 %v6078
        %7639 = vmatprep.subr.mxu0 0.0
        %7640 = vmatpush1.msra.mxu0 %v6077
        %7641 = vmatprep.subr.mxu0 0.0
        %7642 = vmatpush1.msra.mxu0 %v6076
        %7643 = vmatprep.subr.mxu0 0.0
        %7644 = vmatpush1.msra.mxu0 %v6075
        %7645 = vmatprep.subr.mxu0 0.0
        %7646 = vmatpush1.msra.mxu0 %v6074
        %7647 = vmatprep.subr.mxu0 0.0
        %7648 = vmatpush1.msra.mxu0 %v6073
        %7649 = vmatprep.subr.mxu0 0.0
        %7650 = vmatpush1.msra.mxu0 %v6072
        %7651 = vmatprep.subr.mxu0 0.0
        %7652 = vmatpush1.msra.mxu0 %v6071
        %7653 = vmatprep.subr.mxu0 0.0
        %7654 = vmatpush1.msra.mxu0 %v6070
        %7655 = vmatprep.subr.mxu0 0.0
        %7656 = vmatpush1.msra.mxu0 %v6069
        %7657 = vmatprep.subr.mxu0 0.0
        %7658 = vmatpush1.msra.mxu0 %v6068
        %7659 = vmatprep.subr.mxu0 0.0
        %7660 = vmatpush1.msra.mxu0 %v6067
        %7661 = vmatprep.subr.mxu0 0.0
        %7662 = vmatpush1.msra.mxu0 %v6066
        %7663 = vmatprep.subr.mxu0 0.0
        %7664 = vmatpush2.msra.mxu0 0.0
        %7665 = vmatprep.subr.mxu0 0.0
        %7666 = vmatpush2.msra.mxu0 0.0
        %7667 = vmatprep.subr.mxu0 0.0
        %7668 = vmatpush2.msra.mxu0 0.0
        %7669 = vmatprep.subr.mxu0 0.0
        %7670 = vmatpush2.msra.mxu0 0.0
        %7671 = vmatprep.subr.mxu0 0.0
        %7672 = vmatpush2.msra.mxu0 0.0
        %7673 = vmatprep.subr.mxu0 0.0
        %7674 = vmatpush2.msra.mxu0 0.0
        %7675 = vmatprep.subr.mxu0 0.0
        %7676 = vmatpush2.msra.mxu0 0.0
        %7677 = vmatprep.subr.mxu0 0.0
        %7678 = vmatpush2.msra.mxu0 0.0
        %7679 = vmatprep.subr.mxu0 0.0
        %7680 = vmatpush2.msra.mxu0 0.0
        %7681 = vmatprep.subr.mxu0 0.0
        %7682 = vmatpush2.msra.mxu0 0.0
        %7683 = vmatprep.subr.mxu0 0.0
        %7684 = vmatpush2.msra.mxu0 0.0
        %7685 = vmatprep.subr.mxu0 0.0
        %7686 = vmatpush2.msra.mxu0 0.0
        %7687 = vmatprep.subr.mxu0 0.0
        %7688 = vmatpush2.msra.mxu0 0.0
        %7689 = vmatprep.subr.mxu0 0.0
        %7690 = vmatpush2.msra.mxu0 0.0
        %7691 = vmatprep.subr.mxu0 0.0
        %7692 = vmatpush2.msra.mxu0 0.0
        %7693 = vmatprep.subr.mxu0 0.0
        %7694 = vmatpush2.msra.mxu0 0.0
        %7695 = vmatprep.mubr.f32.mxu0 0.0
        %7696 = vmatmul.mubr.f32.gmra.mxu0 %v6930
        %v7697 = vpop.f32.mrf.mxu0
        %v7698 = vadd.f32 0.0, %v7697
        %v7699 = vpop.f32.mrf.mxu0
        %7700 = vdwg.mxu0
        %7701 = vmatprep.subr.mxu0 0.0
        %7702 = vmatpush1.msra.mxu0 %v6097
        %7703 = vmatprep.subr.mxu0 0.0
        %7704 = vmatpush1.msra.mxu0 %v6096
        %7705 = vmatprep.subr.mxu0 0.0
        %7706 = vmatpush1.msra.mxu0 %v6095
        %7707 = vmatprep.subr.mxu0 0.0
        %7708 = vmatpush1.msra.mxu0 %v6094
        %7709 = vmatprep.subr.mxu0 0.0
        %7710 = vmatpush1.msra.mxu0 %v6093
        %7711 = vmatprep.subr.mxu0 0.0
        %7712 = vmatpush1.msra.mxu0 %v6092
        %7713 = vmatprep.subr.mxu0 0.0
        %7714 = vmatpush1.msra.mxu0 %v6091
        %7715 = vmatprep.subr.mxu0 0.0
        %7716 = vmatpush1.msra.mxu0 %v6090
        %7717 = vmatprep.subr.mxu0 0.0
        %7718 = vmatpush1.msra.mxu0 %v6089
        %7719 = vmatprep.subr.mxu0 0.0
        %7720 = vmatpush1.msra.mxu0 %v6088
        %7721 = vmatprep.subr.mxu0 0.0
        %7722 = vmatpush1.msra.mxu0 %v6087
        %7723 = vmatprep.subr.mxu0 0.0
        %7724 = vmatpush1.msra.mxu0 %v6086
        %7725 = vmatprep.subr.mxu0 0.0
        %7726 = vmatpush1.msra.mxu0 %v6085
        %7727 = vmatprep.subr.mxu0 0.0
        %7728 = vmatpush1.msra.mxu0 %v6084
        %7729 = vmatprep.subr.mxu0 0.0
        %7730 = vmatpush1.msra.mxu0 %v6083
        %7731 = vmatprep.subr.mxu0 0.0
        %7732 = vmatpush1.msra.mxu0 %v6082
        %7733 = vmatprep.subr.mxu0 0.0
        %7734 = vmatpush2.msra.mxu0 0.0
        %7735 = vmatprep.subr.mxu0 0.0
        %7736 = vmatpush2.msra.mxu0 0.0
        %7737 = vmatprep.subr.mxu0 0.0
        %7738 = vmatpush2.msra.mxu0 0.0
        %7739 = vmatprep.subr.mxu0 0.0
        %7740 = vmatpush2.msra.mxu0 0.0
        %7741 = vmatprep.subr.mxu0 0.0
        %7742 = vmatpush2.msra.mxu0 0.0
        %7743 = vmatprep.subr.mxu0 0.0
        %7744 = vmatpush2.msra.mxu0 0.0
        %7745 = vmatprep.subr.mxu0 0.0
        %7746 = vmatpush2.msra.mxu0 0.0
        %7747 = vmatprep.subr.mxu0 0.0
        %7748 = vmatpush2.msra.mxu0 0.0
        %7749 = vmatprep.subr.mxu0 0.0
        %7750 = vmatpush2.msra.mxu0 0.0
        %7751 = vmatprep.subr.mxu0 0.0
        %7752 = vmatpush2.msra.mxu0 0.0
        %7753 = vmatprep.subr.mxu0 0.0
        %7754 = vmatpush2.msra.mxu0 0.0
        %7755 = vmatprep.subr.mxu0 0.0
        %7756 = vmatpush2.msra.mxu0 0.0
        %7757 = vmatprep.subr.mxu0 0.0
        %7758 = vmatpush2.msra.mxu0 0.0
        %7759 = vmatprep.subr.mxu0 0.0
        %7760 = vmatpush2.msra.mxu0 0.0
        %7761 = vmatprep.subr.mxu0 0.0
        %7762 = vmatpush2.msra.mxu0 0.0
        %7763 = vmatprep.subr.mxu0 0.0
        %7764 = vmatpush2.msra.mxu0 0.0
        %7765 = vmatprep.mubr.f32.mxu0 0.0
        %7766 = vmatmul.mubr.f32.gmra.mxu0 %v6930
        %v7767 = vpop.f32.mrf.mxu0
        %v7768 = vadd.f32 0.0, %v7767
        %v7769 = vpop.f32.mrf.mxu0
        %7770 = vdwg.mxu0
        %7771 = vmatprep.subr.mxu0 0.0
        %7772 = vmatpush1.msra.mxu0 %v6113
        %7773 = vmatprep.subr.mxu0 0.0
        %7774 = vmatpush1.msra.mxu0 %v6112
        %7775 = vmatprep.subr.mxu0 0.0
        %7776 = vmatpush1.msra.mxu0 %v6111
        %7777 = vmatprep.subr.mxu0 0.0
        %7778 = vmatpush1.msra.mxu0 %v6110
        %7779 = vmatprep.subr.mxu0 0.0
        %7780 = vmatpush1.msra.mxu0 %v6109
        %7781 = vmatprep.subr.mxu0 0.0
        %7782 = vmatpush1.msra.mxu0 %v6108
        %7783 = vmatprep.subr.mxu0 0.0
        %7784 = vmatpush1.msra.mxu0 %v6107
        %7785 = vmatprep.subr.mxu0 0.0
        %7786 = vmatpush1.msra.mxu0 %v6106
        %7787 = vmatprep.subr.mxu0 0.0
        %7788 = vmatpush1.msra.mxu0 %v6105
        %7789 = vmatprep.subr.mxu0 0.0
        %7790 = vmatpush1.msra.mxu0 %v6104
        %7791 = vmatprep.subr.mxu0 0.0
        %7792 = vmatpush1.msra.mxu0 %v6103
        %7793 = vmatprep.subr.mxu0 0.0
        %7794 = vmatpush1.msra.mxu0 %v6102
        %7795 = vmatprep.subr.mxu0 0.0
        %7796 = vmatpush1.msra.mxu0 %v6101
        %7797 = vmatprep.subr.mxu0 0.0
        %7798 = vmatpush1.msra.mxu0 %v6100
        %7799 = vmatprep.subr.mxu0 0.0
        %7800 = vmatpush1.msra.mxu0 %v6099
        %7801 = vmatprep.subr.mxu0 0.0
        %7802 = vmatpush1.msra.mxu0 %v6098
        %7803 = vmatprep.subr.mxu0 0.0
        %7804 = vmatpush2.msra.mxu0 0.0
        %7805 = vmatprep.subr.mxu0 0.0
        %7806 = vmatpush2.msra.mxu0 0.0
        %7807 = vmatprep.subr.mxu0 0.0
        %7808 = vmatpush2.msra.mxu0 0.0
        %7809 = vmatprep.subr.mxu0 0.0
        %7810 = vmatpush2.msra.mxu0 0.0
        %7811 = vmatprep.subr.mxu0 0.0
        %7812 = vmatpush2.msra.mxu0 0.0
        %7813 = vmatprep.subr.mxu0 0.0
        %7814 = vmatpush2.msra.mxu0 0.0
        %7815 = vmatprep.subr.mxu0 0.0
        %7816 = vmatpush2.msra.mxu0 0.0
        %7817 = vmatprep.subr.mxu0 0.0
        %7818 = vmatpush2.msra.mxu0 0.0
        %7819 = vmatprep.subr.mxu0 0.0
        %7820 = vmatpush2.msra.mxu0 0.0
        %7821 = vmatprep.subr.mxu0 0.0
        %7822 = vmatpush2.msra.mxu0 0.0
        %7823 = vmatprep.subr.mxu0 0.0
        %7824 = vmatpush2.msra.mxu0 0.0
        %7825 = vmatprep.subr.mxu0 0.0
        %7826 = vmatpush2.msra.mxu0 0.0
        %7827 = vmatprep.subr.mxu0 0.0
        %7828 = vmatpush2.msra.mxu0 0.0
        %7829 = vmatprep.subr.mxu0 0.0
        %7830 = vmatpush2.msra.mxu0 0.0
        %7831 = vmatprep.subr.mxu0 0.0
        %7832 = vmatpush2.msra.mxu0 0.0
        %7833 = vmatprep.subr.mxu0 0.0
        %7834 = vmatpush2.msra.mxu0 0.0
        %7835 = vmatprep.mubr.f32.mxu0 0.0
        %7836 = vmatmul.mubr.f32.gmra.mxu0 %v6930
        %v7837 = vpop.f32.mrf.mxu0
        %v7838 = vadd.f32 0.0, %v7837
        %v7839 = vpop.f32.mrf.mxu0
        %7840 = vdwg.mxu0
        %7841 = vmatprep.subr.mxu0 0.0
        %7842 = vmatpush1.msra.mxu0 %v6129
        %7843 = vmatprep.subr.mxu0 0.0
        %7844 = vmatpush1.msra.mxu0 %v6128
        %7845 = vmatprep.subr.mxu0 0.0
        %7846 = vmatpush1.msra.mxu0 %v6127
        %7847 = vmatprep.subr.mxu0 0.0
        %7848 = vmatpush1.msra.mxu0 %v6126
        %7849 = vmatprep.subr.mxu0 0.0
        %7850 = vmatpush1.msra.mxu0 %v6125
        %7851 = vmatprep.subr.mxu0 0.0
        %7852 = vmatpush1.msra.mxu0 %v6124
        %7853 = vmatprep.subr.mxu0 0.0
        %7854 = vmatpush1.msra.mxu0 %v6123
        %7855 = vmatprep.subr.mxu0 0.0
        %7856 = vmatpush1.msra.mxu0 %v6122
        %7857 = vmatprep.subr.mxu0 0.0
        %7858 = vmatpush1.msra.mxu0 %v6121
        %7859 = vmatprep.subr.mxu0 0.0
        %7860 = vmatpush1.msra.mxu0 %v6120
        %7861 = vmatprep.subr.mxu0 0.0
        %7862 = vmatpush1.msra.mxu0 %v6119
        %7863 = vmatprep.subr.mxu0 0.0
        %7864 = vmatpush1.msra.mxu0 %v6118
        %7865 = vmatprep.subr.mxu0 0.0
        %7866 = vmatpush1.msra.mxu0 %v6117
        %7867 = vmatprep.subr.mxu0 0.0
        %7868 = vmatpush1.msra.mxu0 %v6116
        %7869 = vmatprep.subr.mxu0 0.0
        %7870 = vmatpush1.msra.mxu0 %v6115
        %7871 = vmatprep.subr.mxu0 0.0
        %7872 = vmatpush1.msra.mxu0 %v6114
        %7873 = vmatprep.subr.mxu0 0.0
        %7874 = vmatpush2.msra.mxu0 0.0
        %7875 = vmatprep.subr.mxu0 0.0
        %7876 = vmatpush2.msra.mxu0 0.0
        %7877 = vmatprep.subr.mxu0 0.0
        %7878 = vmatpush2.msra.mxu0 0.0
        %7879 = vmatprep.subr.mxu0 0.0
        %7880 = vmatpush2.msra.mxu0 0.0
        %7881 = vmatprep.subr.mxu0 0.0
        %7882 = vmatpush2.msra.mxu0 0.0
        %7883 = vmatprep.subr.mxu0 0.0
        %7884 = vmatpush2.msra.mxu0 0.0
        %7885 = vmatprep.subr.mxu0 0.0
        %7886 = vmatpush2.msra.mxu0 0.0
        %7887 = vmatprep.subr.mxu0 0.0
        %7888 = vmatpush2.msra.mxu0 0.0
        %7889 = vmatprep.subr.mxu0 0.0
        %7890 = vmatpush2.msra.mxu0 0.0
        %7891 = vmatprep.subr.mxu0 0.0
        %7892 = vmatpush2.msra.mxu0 0.0
        %7893 = vmatprep.subr.mxu0 0.0
        %7894 = vmatpush2.msra.mxu0 0.0
        %7895 = vmatprep.subr.mxu0 0.0
        %7896 = vmatpush2.msra.mxu0 0.0
        %7897 = vmatprep.subr.mxu0 0.0
        %7898 = vmatpush2.msra.mxu0 0.0
        %7899 = vmatprep.subr.mxu0 0.0
        %7900 = vmatpush2.msra.mxu0 0.0
        %7901 = vmatprep.subr.mxu0 0.0
        %7902 = vmatpush2.msra.mxu0 0.0
        %7903 = vmatprep.subr.mxu0 0.0
        %7904 = vmatpush2.msra.mxu0 0.0
        %7905 = vmatprep.mubr.f32.mxu0 0.0
        %7906 = vmatmul.mubr.f32.gmra.mxu0 %v6930
        %v7907 = vpop.f32.mrf.mxu0
        %v7908 = vadd.f32 0.0, %v7907
        %v7909 = vpop.f32.mrf.mxu0
        %7910 = vdwg.mxu0
        %7911 = vmatprep.subr.mxu0 0.0
        %7912 = vmatpush1.msra.mxu0 %v6145
        %7913 = vmatprep.subr.mxu0 0.0
        %7914 = vmatpush1.msra.mxu0 %v6144
        %7915 = vmatprep.subr.mxu0 0.0
        %7916 = vmatpush1.msra.mxu0 %v6143
        %7917 = vmatprep.subr.mxu0 0.0
        %7918 = vmatpush1.msra.mxu0 %v6142
        %7919 = vmatprep.subr.mxu0 0.0
        %7920 = vmatpush1.msra.mxu0 %v6141
        %7921 = vmatprep.subr.mxu0 0.0
        %7922 = vmatpush1.msra.mxu0 %v6140
        %7923 = vmatprep.subr.mxu0 0.0
        %7924 = vmatpush1.msra.mxu0 %v6139
        %7925 = vmatprep.subr.mxu0 0.0
        %7926 = vmatpush1.msra.mxu0 %v6138
        %7927 = vmatprep.subr.mxu0 0.0
        %7928 = vmatpush1.msra.mxu0 %v6137
        %7929 = vmatprep.subr.mxu0 0.0
        %7930 = vmatpush1.msra.mxu0 %v6136
        %7931 = vmatprep.subr.mxu0 0.0
        %7932 = vmatpush1.msra.mxu0 %v6135
        %7933 = vmatprep.subr.mxu0 0.0
        %7934 = vmatpush1.msra.mxu0 %v6134
        %7935 = vmatprep.subr.mxu0 0.0
        %7936 = vmatpush1.msra.mxu0 %v6133
        %7937 = vmatprep.subr.mxu0 0.0
        %7938 = vmatpush1.msra.mxu0 %v6132
        %7939 = vmatprep.subr.mxu0 0.0
        %7940 = vmatpush1.msra.mxu0 %v6131
        %7941 = vmatprep.subr.mxu0 0.0
        %7942 = vmatpush1.msra.mxu0 %v6130
        %7943 = vmatprep.subr.mxu0 0.0
        %7944 = vmatpush2.msra.mxu0 0.0
        %7945 = vmatprep.subr.mxu0 0.0
        %7946 = vmatpush2.msra.mxu0 0.0
        %7947 = vmatprep.subr.mxu0 0.0
        %7948 = vmatpush2.msra.mxu0 0.0
        %7949 = vmatprep.subr.mxu0 0.0
        %7950 = vmatpush2.msra.mxu0 0.0
        %7951 = vmatprep.subr.mxu0 0.0
        %7952 = vmatpush2.msra.mxu0 0.0
        %7953 = vmatprep.subr.mxu0 0.0
        %7954 = vmatpush2.msra.mxu0 0.0
        %7955 = vmatprep.subr.mxu0 0.0
        %7956 = vmatpush2.msra.mxu0 0.0
        %7957 = vmatprep.subr.mxu0 0.0
        %7958 = vmatpush2.msra.mxu0 0.0
        %7959 = vmatprep.subr.mxu0 0.0
        %7960 = vmatpush2.msra.mxu0 0.0
        %7961 = vmatprep.subr.mxu0 0.0
        %7962 = vmatpush2.msra.mxu0 0.0
        %7963 = vmatprep.subr.mxu0 0.0
        %7964 = vmatpush2.msra.mxu0 0.0
        %7965 = vmatprep.subr.mxu0 0.0
        %7966 = vmatpush2.msra.mxu0 0.0
        %7967 = vmatprep.subr.mxu0 0.0
        %7968 = vmatpush2.msra.mxu0 0.0
        %7969 = vmatprep.subr.mxu0 0.0
        %7970 = vmatpush2.msra.mxu0 0.0
        %7971 = vmatprep.subr.mxu0 0.0
        %7972 = vmatpush2.msra.mxu0 0.0
        %7973 = vmatprep.subr.mxu0 0.0
        %7974 = vmatpush2.msra.mxu0 0.0
        %7975 = vmatprep.mubr.f32.mxu0 0.0
        %7976 = vmatmul.mubr.f32.gmra.mxu0 %v6930
        %v7977 = vpop.f32.mrf.mxu0
        %v7978 = vadd.f32 0.0, %v7977
        %v7979 = vpop.f32.mrf.mxu0
        %7980 = vdwg.mxu0
        %7981 = vmatprep.subr.mxu0 0.0
        %7982 = vmatpush1.msra.mxu0 %v6161
        %7983 = vmatprep.subr.mxu0 0.0
        %7984 = vmatpush1.msra.mxu0 %v6160
        %7985 = vmatprep.subr.mxu0 0.0
        %7986 = vmatpush1.msra.mxu0 %v6159
        %7987 = vmatprep.subr.mxu0 0.0
        %7988 = vmatpush1.msra.mxu0 %v6158
        %7989 = vmatprep.subr.mxu0 0.0
        %7990 = vmatpush1.msra.mxu0 %v6157
        %7991 = vmatprep.subr.mxu0 0.0
        %7992 = vmatpush1.msra.mxu0 %v6156
        %7993 = vmatprep.subr.mxu0 0.0
        %7994 = vmatpush1.msra.mxu0 %v6155
        %7995 = vmatprep.subr.mxu0 0.0
        %7996 = vmatpush1.msra.mxu0 %v6154
        %7997 = vmatprep.subr.mxu0 0.0
        %7998 = vmatpush1.msra.mxu0 %v6153
        %7999 = vmatprep.subr.mxu0 0.0
        %8000 = vmatpush1.msra.mxu0 %v6152
        %8001 = vmatprep.subr.mxu0 0.0
        %8002 = vmatpush1.msra.mxu0 %v6151
        %8003 = vmatprep.subr.mxu0 0.0
        %8004 = vmatpush1.msra.mxu0 %v6150
        %8005 = vmatprep.subr.mxu0 0.0
        %8006 = vmatpush1.msra.mxu0 %v6149
        %8007 = vmatprep.subr.mxu0 0.0
        %8008 = vmatpush1.msra.mxu0 %v6148
        %8009 = vmatprep.subr.mxu0 0.0
        %8010 = vmatpush1.msra.mxu0 %v6147
        %8011 = vmatprep.subr.mxu0 0.0
        %8012 = vmatpush1.msra.mxu0 %v6146
        %8013 = vmatprep.subr.mxu0 0.0
        %8014 = vmatpush2.msra.mxu0 0.0
        %8015 = vmatprep.subr.mxu0 0.0
        %8016 = vmatpush2.msra.mxu0 0.0
        %8017 = vmatprep.subr.mxu0 0.0
        %8018 = vmatpush2.msra.mxu0 0.0
        %8019 = vmatprep.subr.mxu0 0.0
        %8020 = vmatpush2.msra.mxu0 0.0
        %8021 = vmatprep.subr.mxu0 0.0
        %8022 = vmatpush2.msra.mxu0 0.0
        %8023 = vmatprep.subr.mxu0 0.0
        %8024 = vmatpush2.msra.mxu0 0.0
        %8025 = vmatprep.subr.mxu0 0.0
        %8026 = vmatpush2.msra.mxu0 0.0
        %8027 = vmatprep.subr.mxu0 0.0
        %8028 = vmatpush2.msra.mxu0 0.0
        %8029 = vmatprep.subr.mxu0 0.0
        %8030 = vmatpush2.msra.mxu0 0.0
        %8031 = vmatprep.subr.mxu0 0.0
        %8032 = vmatpush2.msra.mxu0 0.0
        %8033 = vmatprep.subr.mxu0 0.0
        %8034 = vmatpush2.msra.mxu0 0.0
        %8035 = vmatprep.subr.mxu0 0.0
        %8036 = vmatpush2.msra.mxu0 0.0
        %8037 = vmatprep.subr.mxu0 0.0
        %8038 = vmatpush2.msra.mxu0 0.0
        %8039 = vmatprep.subr.mxu0 0.0
        %8040 = vmatpush2.msra.mxu0 0.0
        %8041 = vmatprep.subr.mxu0 0.0
        %8042 = vmatpush2.msra.mxu0 0.0
        %8043 = vmatprep.subr.mxu0 0.0
        %8044 = vmatpush2.msra.mxu0 0.0
        %8045 = vmatprep.mubr.f32.mxu0 0.0
        %8046 = vmatmul.mubr.f32.gmra.mxu0 %v6930
        %v8047 = vpop.f32.mrf.mxu0
        %v8048 = vadd.f32 0.0, %v8047
        %v8049 = vpop.f32.mrf.mxu0
        %8050 = vdwg.mxu0
        %8051 = vmatprep.subr.mxu0 0.0
        %8052 = vmatpush1.msra.mxu0 %v6177
        %8053 = vmatprep.subr.mxu0 0.0
        %8054 = vmatpush1.msra.mxu0 %v6176
        %8055 = vmatprep.subr.mxu0 0.0
        %8056 = vmatpush1.msra.mxu0 %v6175
        %8057 = vmatprep.subr.mxu0 0.0
        %8058 = vmatpush1.msra.mxu0 %v6174
        %8059 = vmatprep.subr.mxu0 0.0
        %8060 = vmatpush1.msra.mxu0 %v6173
        %8061 = vmatprep.subr.mxu0 0.0
        %8062 = vmatpush1.msra.mxu0 %v6172
        %8063 = vmatprep.subr.mxu0 0.0
        %8064 = vmatpush1.msra.mxu0 %v6171
        %8065 = vmatprep.subr.mxu0 0.0
        %8066 = vmatpush1.msra.mxu0 %v6170
        %8067 = vmatprep.subr.mxu0 0.0
        %8068 = vmatpush1.msra.mxu0 %v6169
        %8069 = vmatprep.subr.mxu0 0.0
        %8070 = vmatpush1.msra.mxu0 %v6168
        %8071 = vmatprep.subr.mxu0 0.0
        %8072 = vmatpush1.msra.mxu0 %v6167
        %8073 = vmatprep.subr.mxu0 0.0
        %8074 = vmatpush1.msra.mxu0 %v6166
        %8075 = vmatprep.subr.mxu0 0.0
        %8076 = vmatpush1.msra.mxu0 %v6165
        %8077 = vmatprep.subr.mxu0 0.0
        %8078 = vmatpush1.msra.mxu0 %v6164
        %8079 = vmatprep.subr.mxu0 0.0
        %8080 = vmatpush1.msra.mxu0 %v6163
        %8081 = vmatprep.subr.mxu0 0.0
        %8082 = vmatpush1.msra.mxu0 %v6162
        %8083 = vmatprep.subr.mxu0 0.0
        %8084 = vmatpush2.msra.mxu0 0.0
        %8085 = vmatprep.subr.mxu0 0.0
        %8086 = vmatpush2.msra.mxu0 0.0
        %8087 = vmatprep.subr.mxu0 0.0
        %8088 = vmatpush2.msra.mxu0 0.0
        %8089 = vmatprep.subr.mxu0 0.0
        %8090 = vmatpush2.msra.mxu0 0.0
        %8091 = vmatprep.subr.mxu0 0.0
        %8092 = vmatpush2.msra.mxu0 0.0
        %8093 = vmatprep.subr.mxu0 0.0
        %8094 = vmatpush2.msra.mxu0 0.0
        %8095 = vmatprep.subr.mxu0 0.0
        %8096 = vmatpush2.msra.mxu0 0.0
        %8097 = vmatprep.subr.mxu0 0.0
        %8098 = vmatpush2.msra.mxu0 0.0
        %8099 = vmatprep.subr.mxu0 0.0
        %8100 = vmatpush2.msra.mxu0 0.0
        %8101 = vmatprep.subr.mxu0 0.0
        %8102 = vmatpush2.msra.mxu0 0.0
        %8103 = vmatprep.subr.mxu0 0.0
        %8104 = vmatpush2.msra.mxu0 0.0
        %8105 = vmatprep.subr.mxu0 0.0
        %8106 = vmatpush2.msra.mxu0 0.0
        %8107 = vmatprep.subr.mxu0 0.0
        %8108 = vmatpush2.msra.mxu0 0.0
        %8109 = vmatprep.subr.mxu0 0.0
        %8110 = vmatpush2.msra.mxu0 0.0
        %8111 = vmatprep.subr.mxu0 0.0
        %8112 = vmatpush2.msra.mxu0 0.0
        %8113 = vmatprep.subr.mxu0 0.0
        %8114 = vmatpush2.msra.mxu0 0.0
        %8115 = vmatprep.mubr.f32.mxu0 0.0
        %8116 = vmatmul.mubr.f32.gmra.mxu0 %v6930
        %v8117 = vpop.f32.mrf.mxu0
        %v8118 = vadd.f32 0.0, %v8117
        %v8119 = vpop.f32.mrf.mxu0
        %8120 = vdwg.mxu0
        %8121 = vmatprep.subr.mxu0 0.0
        %8122 = vmatpush1.msra.mxu0 %v6193
        %8123 = vmatprep.subr.mxu0 0.0
        %8124 = vmatpush1.msra.mxu0 %v6192
        %8125 = vmatprep.subr.mxu0 0.0
        %8126 = vmatpush1.msra.mxu0 %v6191
        %8127 = vmatprep.subr.mxu0 0.0
        %8128 = vmatpush1.msra.mxu0 %v6190
        %8129 = vmatprep.subr.mxu0 0.0
        %8130 = vmatpush1.msra.mxu0 %v6189
        %8131 = vmatprep.subr.mxu0 0.0
        %8132 = vmatpush1.msra.mxu0 %v6188
        %8133 = vmatprep.subr.mxu0 0.0
        %8134 = vmatpush1.msra.mxu0 %v6187
        %8135 = vmatprep.subr.mxu0 0.0
        %8136 = vmatpush1.msra.mxu0 %v6186
        %8137 = vmatprep.subr.mxu0 0.0
        %8138 = vmatpush1.msra.mxu0 %v6185
        %8139 = vmatprep.subr.mxu0 0.0
        %8140 = vmatpush1.msra.mxu0 %v6184
        %8141 = vmatprep.subr.mxu0 0.0
        %8142 = vmatpush1.msra.mxu0 %v6183
        %8143 = vmatprep.subr.mxu0 0.0
        %8144 = vmatpush1.msra.mxu0 %v6182
        %8145 = vmatprep.subr.mxu0 0.0
        %8146 = vmatpush1.msra.mxu0 %v6181
        %8147 = vmatprep.subr.mxu0 0.0
        %8148 = vmatpush1.msra.mxu0 %v6180
        %8149 = vmatprep.subr.mxu0 0.0
        %8150 = vmatpush1.msra.mxu0 %v6179
        %8151 = vmatprep.subr.mxu0 0.0
        %8152 = vmatpush1.msra.mxu0 %v6178
        %8153 = vmatprep.subr.mxu0 0.0
        %8154 = vmatpush2.msra.mxu0 0.0
        %8155 = vmatprep.subr.mxu0 0.0
        %8156 = vmatpush2.msra.mxu0 0.0
        %8157 = vmatprep.subr.mxu0 0.0
        %8158 = vmatpush2.msra.mxu0 0.0
        %8159 = vmatprep.subr.mxu0 0.0
        %8160 = vmatpush2.msra.mxu0 0.0
        %8161 = vmatprep.subr.mxu0 0.0
        %8162 = vmatpush2.msra.mxu0 0.0
        %8163 = vmatprep.subr.mxu0 0.0
        %8164 = vmatpush2.msra.mxu0 0.0
        %8165 = vmatprep.subr.mxu0 0.0
        %8166 = vmatpush2.msra.mxu0 0.0
        %8167 = vmatprep.subr.mxu0 0.0
        %8168 = vmatpush2.msra.mxu0 0.0
        %8169 = vmatprep.subr.mxu0 0.0
        %8170 = vmatpush2.msra.mxu0 0.0
        %8171 = vmatprep.subr.mxu0 0.0
        %8172 = vmatpush2.msra.mxu0 0.0
        %8173 = vmatprep.subr.mxu0 0.0
        %8174 = vmatpush2.msra.mxu0 0.0
        %8175 = vmatprep.subr.mxu0 0.0
        %8176 = vmatpush2.msra.mxu0 0.0
        %8177 = vmatprep.subr.mxu0 0.0
        %8178 = vmatpush2.msra.mxu0 0.0
        %8179 = vmatprep.subr.mxu0 0.0
        %8180 = vmatpush2.msra.mxu0 0.0
        %8181 = vmatprep.subr.mxu0 0.0
        %8182 = vmatpush2.msra.mxu0 0.0
        %8183 = vmatprep.subr.mxu0 0.0
        %8184 = vmatpush2.msra.mxu0 0.0
        %8185 = vmatprep.mubr.f32.mxu0 0.0
        %8186 = vmatmul.mubr.f32.gmra.mxu0 %v6930
        %v8187 = vpop.f32.mrf.mxu0
        %v8188 = vadd.f32 0.0, %v8187
        %v8189 = vpop.f32.mrf.mxu0
        %8190 = vdwg.mxu0
        %8191 = vmatprep.subr.mxu0 0.0
        %8192 = vmatpush1.msra.mxu0 %v6209
        %8193 = vmatprep.subr.mxu0 0.0
        %8194 = vmatpush1.msra.mxu0 %v6208
        %8195 = vmatprep.subr.mxu0 0.0
        %8196 = vmatpush1.msra.mxu0 %v6207
        %8197 = vmatprep.subr.mxu0 0.0
        %8198 = vmatpush1.msra.mxu0 %v6206
        %8199 = vmatprep.subr.mxu0 0.0
        %8200 = vmatpush1.msra.mxu0 %v6205
        %8201 = vmatprep.subr.mxu0 0.0
        %8202 = vmatpush1.msra.mxu0 %v6204
        %8203 = vmatprep.subr.mxu0 0.0
        %8204 = vmatpush1.msra.mxu0 %v6203
        %8205 = vmatprep.subr.mxu0 0.0
        %8206 = vmatpush1.msra.mxu0 %v6202
        %8207 = vmatprep.subr.mxu0 0.0
        %8208 = vmatpush1.msra.mxu0 %v6201
        %8209 = vmatprep.subr.mxu0 0.0
        %8210 = vmatpush1.msra.mxu0 %v6200
        %8211 = vmatprep.subr.mxu0 0.0
        %8212 = vmatpush1.msra.mxu0 %v6199
        %8213 = vmatprep.subr.mxu0 0.0
        %8214 = vmatpush1.msra.mxu0 %v6198
        %8215 = vmatprep.subr.mxu0 0.0
        %8216 = vmatpush1.msra.mxu0 %v6197
        %8217 = vmatprep.subr.mxu0 0.0
        %8218 = vmatpush1.msra.mxu0 %v6196
        %8219 = vmatprep.subr.mxu0 0.0
        %8220 = vmatpush1.msra.mxu0 %v6195
        %8221 = vmatprep.subr.mxu0 0.0
        %8222 = vmatpush1.msra.mxu0 %v6194
        %8223 = vmatprep.subr.mxu0 0.0
        %8224 = vmatpush2.msra.mxu0 0.0
        %8225 = vmatprep.subr.mxu0 0.0
        %8226 = vmatpush2.msra.mxu0 0.0
        %8227 = vmatprep.subr.mxu0 0.0
        %8228 = vmatpush2.msra.mxu0 0.0
        %8229 = vmatprep.subr.mxu0 0.0
        %8230 = vmatpush2.msra.mxu0 0.0
        %8231 = vmatprep.subr.mxu0 0.0
        %8232 = vmatpush2.msra.mxu0 0.0
        %8233 = vmatprep.subr.mxu0 0.0
        %8234 = vmatpush2.msra.mxu0 0.0
        %8235 = vmatprep.subr.mxu0 0.0
        %8236 = vmatpush2.msra.mxu0 0.0
        %8237 = vmatprep.subr.mxu0 0.0
        %8238 = vmatpush2.msra.mxu0 0.0
        %8239 = vmatprep.subr.mxu0 0.0
        %8240 = vmatpush2.msra.mxu0 0.0
        %8241 = vmatprep.subr.mxu0 0.0
        %8242 = vmatpush2.msra.mxu0 0.0
        %8243 = vmatprep.subr.mxu0 0.0
        %8244 = vmatpush2.msra.mxu0 0.0
        %8245 = vmatprep.subr.mxu0 0.0
        %8246 = vmatpush2.msra.mxu0 0.0
        %8247 = vmatprep.subr.mxu0 0.0
        %8248 = vmatpush2.msra.mxu0 0.0
        %8249 = vmatprep.subr.mxu0 0.0
        %8250 = vmatpush2.msra.mxu0 0.0
        %8251 = vmatprep.subr.mxu0 0.0
        %8252 = vmatpush2.msra.mxu0 0.0
        %8253 = vmatprep.subr.mxu0 0.0
        %8254 = vmatpush2.msra.mxu0 0.0
        %8255 = vmatprep.mubr.f32.mxu0 0.0
        %8256 = vmatmul.mubr.f32.gmra.mxu0 %v6930
        %v8257 = vpop.f32.mrf.mxu0
        %v8258 = vadd.f32 0.0, %v8257
        %v8259 = vpop.f32.mrf.mxu0
        %8260 = vdwg.mxu0
        %8261 = vmatprep.subr.mxu0 0.0
        %8262 = vmatpush1.msra.mxu0 %v6225
        %8263 = vmatprep.subr.mxu0 0.0
        %8264 = vmatpush1.msra.mxu0 %v6224
        %8265 = vmatprep.subr.mxu0 0.0
        %8266 = vmatpush1.msra.mxu0 %v6223
        %8267 = vmatprep.subr.mxu0 0.0
        %8268 = vmatpush1.msra.mxu0 %v6222
        %8269 = vmatprep.subr.mxu0 0.0
        %8270 = vmatpush1.msra.mxu0 %v6221
        %8271 = vmatprep.subr.mxu0 0.0
        %8272 = vmatpush1.msra.mxu0 %v6220
        %8273 = vmatprep.subr.mxu0 0.0
        %8274 = vmatpush1.msra.mxu0 %v6219
        %8275 = vmatprep.subr.mxu0 0.0
        %8276 = vmatpush1.msra.mxu0 %v6218
        %8277 = vmatprep.subr.mxu0 0.0
        %8278 = vmatpush1.msra.mxu0 %v6217
        %8279 = vmatprep.subr.mxu0 0.0
        %8280 = vmatpush1.msra.mxu0 %v6216
        %8281 = vmatprep.subr.mxu0 0.0
        %8282 = vmatpush1.msra.mxu0 %v6215
        %8283 = vmatprep.subr.mxu0 0.0
        %8284 = vmatpush1.msra.mxu0 %v6214
        %8285 = vmatprep.subr.mxu0 0.0
        %8286 = vmatpush1.msra.mxu0 %v6213
        %8287 = vmatprep.subr.mxu0 0.0
        %8288 = vmatpush1.msra.mxu0 %v6212
        %8289 = vmatprep.subr.mxu0 0.0
        %8290 = vmatpush1.msra.mxu0 %v6211
        %8291 = vmatprep.subr.mxu0 0.0
        %8292 = vmatpush1.msra.mxu0 %v6210
        %8293 = vmatprep.subr.mxu0 0.0
        %8294 = vmatpush2.msra.mxu0 0.0
        %8295 = vmatprep.subr.mxu0 0.0
        %8296 = vmatpush2.msra.mxu0 0.0
        %8297 = vmatprep.subr.mxu0 0.0
        %8298 = vmatpush2.msra.mxu0 0.0
        %8299 = vmatprep.subr.mxu0 0.0
        %8300 = vmatpush2.msra.mxu0 0.0
        %8301 = vmatprep.subr.mxu0 0.0
        %8302 = vmatpush2.msra.mxu0 0.0
        %8303 = vmatprep.subr.mxu0 0.0
        %8304 = vmatpush2.msra.mxu0 0.0
        %8305 = vmatprep.subr.mxu0 0.0
        %8306 = vmatpush2.msra.mxu0 0.0
        %8307 = vmatprep.subr.mxu0 0.0
        %8308 = vmatpush2.msra.mxu0 0.0
        %8309 = vmatprep.subr.mxu0 0.0
        %8310 = vmatpush2.msra.mxu0 0.0
        %8311 = vmatprep.subr.mxu0 0.0
        %8312 = vmatpush2.msra.mxu0 0.0
        %8313 = vmatprep.subr.mxu0 0.0
        %8314 = vmatpush2.msra.mxu0 0.0
        %8315 = vmatprep.subr.mxu0 0.0
        %8316 = vmatpush2.msra.mxu0 0.0
        %8317 = vmatprep.subr.mxu0 0.0
        %8318 = vmatpush2.msra.mxu0 0.0
        %8319 = vmatprep.subr.mxu0 0.0
        %8320 = vmatpush2.msra.mxu0 0.0
        %8321 = vmatprep.subr.mxu0 0.0
        %8322 = vmatpush2.msra.mxu0 0.0
        %8323 = vmatprep.subr.mxu0 0.0
        %8324 = vmatpush2.msra.mxu0 0.0
        %8325 = vmatprep.mubr.f32.mxu0 0.0
        %8326 = vmatmul.mubr.f32.gmra.mxu0 %v6930
        %v8327 = vpop.f32.mrf.mxu0
        %v8328 = vadd.f32 0.0, %v8327
        %v8329 = vpop.f32.mrf.mxu0
        %8330 = vdwg.mxu0
        %8331 = vmatprep.subr.mxu0 0.0
        %8332 = vmatpush1.msra.mxu0 %v6241
        %8333 = vmatprep.subr.mxu0 0.0
        %8334 = vmatpush1.msra.mxu0 %v6240
        %8335 = vmatprep.subr.mxu0 0.0
        %8336 = vmatpush1.msra.mxu0 %v6239
        %8337 = vmatprep.subr.mxu0 0.0
        %8338 = vmatpush1.msra.mxu0 %v6238
        %8339 = vmatprep.subr.mxu0 0.0
        %8340 = vmatpush1.msra.mxu0 %v6237
        %8341 = vmatprep.subr.mxu0 0.0
        %8342 = vmatpush1.msra.mxu0 %v6236
        %8343 = vmatprep.subr.mxu0 0.0
        %8344 = vmatpush1.msra.mxu0 %v6235
        %8345 = vmatprep.subr.mxu0 0.0
        %8346 = vmatpush1.msra.mxu0 %v6234
        %8347 = vmatprep.subr.mxu0 0.0
        %8348 = vmatpush1.msra.mxu0 %v6233
        %8349 = vmatprep.subr.mxu0 0.0
        %8350 = vmatpush1.msra.mxu0 %v6232
        %8351 = vmatprep.subr.mxu0 0.0
        %8352 = vmatpush1.msra.mxu0 %v6231
        %8353 = vmatprep.subr.mxu0 0.0
        %8354 = vmatpush1.msra.mxu0 %v6230
        %8355 = vmatprep.subr.mxu0 0.0
        %8356 = vmatpush1.msra.mxu0 %v6229
        %8357 = vmatprep.subr.mxu0 0.0
        %8358 = vmatpush1.msra.mxu0 %v6228
        %8359 = vmatprep.subr.mxu0 0.0
        %8360 = vmatpush1.msra.mxu0 %v6227
        %8361 = vmatprep.subr.mxu0 0.0
        %8362 = vmatpush1.msra.mxu0 %v6226
        %8363 = vmatprep.subr.mxu0 0.0
        %8364 = vmatpush2.msra.mxu0 0.0
        %8365 = vmatprep.subr.mxu0 0.0
        %8366 = vmatpush2.msra.mxu0 0.0
        %8367 = vmatprep.subr.mxu0 0.0
        %8368 = vmatpush2.msra.mxu0 0.0
        %8369 = vmatprep.subr.mxu0 0.0
        %8370 = vmatpush2.msra.mxu0 0.0
        %8371 = vmatprep.subr.mxu0 0.0
        %8372 = vmatpush2.msra.mxu0 0.0
        %8373 = vmatprep.subr.mxu0 0.0
        %8374 = vmatpush2.msra.mxu0 0.0
        %8375 = vmatprep.subr.mxu0 0.0
        %8376 = vmatpush2.msra.mxu0 0.0
        %8377 = vmatprep.subr.mxu0 0.0
        %8378 = vmatpush2.msra.mxu0 0.0
        %8379 = vmatprep.subr.mxu0 0.0
        %8380 = vmatpush2.msra.mxu0 0.0
        %8381 = vmatprep.subr.mxu0 0.0
        %8382 = vmatpush2.msra.mxu0 0.0
        %8383 = vmatprep.subr.mxu0 0.0
        %8384 = vmatpush2.msra.mxu0 0.0
        %8385 = vmatprep.subr.mxu0 0.0
        %8386 = vmatpush2.msra.mxu0 0.0
        %8387 = vmatprep.subr.mxu0 0.0
        %8388 = vmatpush2.msra.mxu0 0.0
        %8389 = vmatprep.subr.mxu0 0.0
        %8390 = vmatpush2.msra.mxu0 0.0
        %8391 = vmatprep.subr.mxu0 0.0
        %8392 = vmatpush2.msra.mxu0 0.0
        %8393 = vmatprep.subr.mxu0 0.0
        %8394 = vmatpush2.msra.mxu0 0.0
        %8395 = vmatprep.mubr.f32.mxu0 0.0
        %8396 = vmatmul.mubr.f32.gmra.mxu0 %v6930
        %v8397 = vpop.f32.mrf.mxu0
        %v8398 = vadd.f32 0.0, %v8397
        %v8399 = vpop.f32.mrf.mxu0
        %8400 = vdwg.mxu0
        %8401 = vmatprep.subr.mxu0 0.0
        %8402 = vmatpush1.msra.mxu0 %v6257
        %8403 = vmatprep.subr.mxu0 0.0
        %8404 = vmatpush1.msra.mxu0 %v6256
        %8405 = vmatprep.subr.mxu0 0.0
        %8406 = vmatpush1.msra.mxu0 %v6255
        %8407 = vmatprep.subr.mxu0 0.0
        %8408 = vmatpush1.msra.mxu0 %v6254
        %8409 = vmatprep.subr.mxu0 0.0
        %8410 = vmatpush1.msra.mxu0 %v6253
        %8411 = vmatprep.subr.mxu0 0.0
        %8412 = vmatpush1.msra.mxu0 %v6252
        %8413 = vmatprep.subr.mxu0 0.0
        %8414 = vmatpush1.msra.mxu0 %v6251
        %8415 = vmatprep.subr.mxu0 0.0
        %8416 = vmatpush1.msra.mxu0 %v6250
        %8417 = vmatprep.subr.mxu0 0.0
        %8418 = vmatpush1.msra.mxu0 %v6249
        %8419 = vmatprep.subr.mxu0 0.0
        %8420 = vmatpush1.msra.mxu0 %v6248
        %8421 = vmatprep.subr.mxu0 0.0
        %8422 = vmatpush1.msra.mxu0 %v6247
        %8423 = vmatprep.subr.mxu0 0.0
        %8424 = vmatpush1.msra.mxu0 %v6246
        %8425 = vmatprep.subr.mxu0 0.0
        %8426 = vmatpush1.msra.mxu0 %v6245
        %8427 = vmatprep.subr.mxu0 0.0
        %8428 = vmatpush1.msra.mxu0 %v6244
        %8429 = vmatprep.subr.mxu0 0.0
        %8430 = vmatpush1.msra.mxu0 %v6243
        %8431 = vmatprep.subr.mxu0 0.0
        %8432 = vmatpush1.msra.mxu0 %v6242
        %8433 = vmatprep.subr.mxu0 0.0
        %8434 = vmatpush2.msra.mxu0 0.0
        %8435 = vmatprep.subr.mxu0 0.0
        %8436 = vmatpush2.msra.mxu0 0.0
        %8437 = vmatprep.subr.mxu0 0.0
        %8438 = vmatpush2.msra.mxu0 0.0
        %8439 = vmatprep.subr.mxu0 0.0
        %8440 = vmatpush2.msra.mxu0 0.0
        %8441 = vmatprep.subr.mxu0 0.0
        %8442 = vmatpush2.msra.mxu0 0.0
        %8443 = vmatprep.subr.mxu0 0.0
        %8444 = vmatpush2.msra.mxu0 0.0
        %8445 = vmatprep.subr.mxu0 0.0
        %8446 = vmatpush2.msra.mxu0 0.0
        %8447 = vmatprep.subr.mxu0 0.0
        %8448 = vmatpush2.msra.mxu0 0.0
        %8449 = vmatprep.subr.mxu0 0.0
        %8450 = vmatpush2.msra.mxu0 0.0
        %8451 = vmatprep.subr.mxu0 0.0
        %8452 = vmatpush2.msra.mxu0 0.0
        %8453 = vmatprep.subr.mxu0 0.0
        %8454 = vmatpush2.msra.mxu0 0.0
        %8455 = vmatprep.subr.mxu0 0.0
        %8456 = vmatpush2.msra.mxu0 0.0
        %8457 = vmatprep.subr.mxu0 0.0
        %8458 = vmatpush2.msra.mxu0 0.0
        %8459 = vmatprep.subr.mxu0 0.0
        %8460 = vmatpush2.msra.mxu0 0.0
        %8461 = vmatprep.subr.mxu0 0.0
        %8462 = vmatpush2.msra.mxu0 0.0
        %8463 = vmatprep.subr.mxu0 0.0
        %8464 = vmatpush2.msra.mxu0 0.0
        %8465 = vmatprep.mubr.f32.mxu0 0.0
        %8466 = vmatmul.mubr.f32.gmra.mxu0 %v6930
        %v8467 = vpop.f32.mrf.mxu0
        %v8468 = vadd.f32 0.0, %v8467
        %v8469 = vpop.f32.mrf.mxu0
        %8470 = vdwg.mxu0
        %8471 = vmatprep.subr.mxu0 0.0
        %8472 = vmatpush1.msra.mxu0 %v6273
        %8473 = vmatprep.subr.mxu0 0.0
        %8474 = vmatpush1.msra.mxu0 %v6272
        %8475 = vmatprep.subr.mxu0 0.0
        %8476 = vmatpush1.msra.mxu0 %v6271
        %8477 = vmatprep.subr.mxu0 0.0
        %8478 = vmatpush1.msra.mxu0 %v6270
        %8479 = vmatprep.subr.mxu0 0.0
        %8480 = vmatpush1.msra.mxu0 %v6269
        %8481 = vmatprep.subr.mxu0 0.0
        %8482 = vmatpush1.msra.mxu0 %v6268
        %8483 = vmatprep.subr.mxu0 0.0
        %8484 = vmatpush1.msra.mxu0 %v6267
        %8485 = vmatprep.subr.mxu0 0.0
        %8486 = vmatpush1.msra.mxu0 %v6266
        %8487 = vmatprep.subr.mxu0 0.0
        %8488 = vmatpush1.msra.mxu0 %v6265
        %8489 = vmatprep.subr.mxu0 0.0
        %8490 = vmatpush1.msra.mxu0 %v6264
        %8491 = vmatprep.subr.mxu0 0.0
        %8492 = vmatpush1.msra.mxu0 %v6263
        %8493 = vmatprep.subr.mxu0 0.0
        %8494 = vmatpush1.msra.mxu0 %v6262
        %8495 = vmatprep.subr.mxu0 0.0
        %8496 = vmatpush1.msra.mxu0 %v6261
        %8497 = vmatprep.subr.mxu0 0.0
        %8498 = vmatpush1.msra.mxu0 %v6260
        %8499 = vmatprep.subr.mxu0 0.0
        %8500 = vmatpush1.msra.mxu0 %v6259
        %8501 = vmatprep.subr.mxu0 0.0
        %8502 = vmatpush1.msra.mxu0 %v6258
        %8503 = vmatprep.subr.mxu0 0.0
        %8504 = vmatpush2.msra.mxu0 0.0
        %8505 = vmatprep.subr.mxu0 0.0
        %8506 = vmatpush2.msra.mxu0 0.0
        %8507 = vmatprep.subr.mxu0 0.0
        %8508 = vmatpush2.msra.mxu0 0.0
        %8509 = vmatprep.subr.mxu0 0.0
        %8510 = vmatpush2.msra.mxu0 0.0
        %8511 = vmatprep.subr.mxu0 0.0
        %8512 = vmatpush2.msra.mxu0 0.0
        %8513 = vmatprep.subr.mxu0 0.0
        %8514 = vmatpush2.msra.mxu0 0.0
        %8515 = vmatprep.subr.mxu0 0.0
        %8516 = vmatpush2.msra.mxu0 0.0
        %8517 = vmatprep.subr.mxu0 0.0
        %8518 = vmatpush2.msra.mxu0 0.0
        %8519 = vmatprep.subr.mxu0 0.0
        %8520 = vmatpush2.msra.mxu0 0.0
        %8521 = vmatprep.subr.mxu0 0.0
        %8522 = vmatpush2.msra.mxu0 0.0
        %8523 = vmatprep.subr.mxu0 0.0
        %8524 = vmatpush2.msra.mxu0 0.0
        %8525 = vmatprep.subr.mxu0 0.0
        %8526 = vmatpush2.msra.mxu0 0.0
        %8527 = vmatprep.subr.mxu0 0.0
        %8528 = vmatpush2.msra.mxu0 0.0
        %8529 = vmatprep.subr.mxu0 0.0
        %8530 = vmatpush2.msra.mxu0 0.0
        %8531 = vmatprep.subr.mxu0 0.0
        %8532 = vmatpush2.msra.mxu0 0.0
        %8533 = vmatprep.subr.mxu0 0.0
        %8534 = vmatpush2.msra.mxu0 0.0
        %8535 = vmatprep.mubr.f32.mxu0 0.0
        %8536 = vmatmul.mubr.f32.gmra.mxu0 %v6930
        %v8537 = vpop.f32.mrf.mxu0
        %v8538 = vadd.f32 0.0, %v8537
        %v8539 = vpop.f32.mrf.mxu0
        %8540 = vdwg.mxu0
        %8541 = vmatprep.subr.mxu0 0.0
        %8542 = vmatpush1.msra.mxu0 %v6289
        %8543 = vmatprep.subr.mxu0 0.0
        %8544 = vmatpush1.msra.mxu0 %v6288
        %8545 = vmatprep.subr.mxu0 0.0
        %8546 = vmatpush1.msra.mxu0 %v6287
        %8547 = vmatprep.subr.mxu0 0.0
        %8548 = vmatpush1.msra.mxu0 %v6286
        %8549 = vmatprep.subr.mxu0 0.0
        %8550 = vmatpush1.msra.mxu0 %v6285
        %8551 = vmatprep.subr.mxu0 0.0
        %8552 = vmatpush1.msra.mxu0 %v6284
        %8553 = vmatprep.subr.mxu0 0.0
        %8554 = vmatpush1.msra.mxu0 %v6283
        %8555 = vmatprep.subr.mxu0 0.0
        %8556 = vmatpush1.msra.mxu0 %v6282
        %8557 = vmatprep.subr.mxu0 0.0
        %8558 = vmatpush1.msra.mxu0 %v6281
        %8559 = vmatprep.subr.mxu0 0.0
        %8560 = vmatpush1.msra.mxu0 %v6280
        %8561 = vmatprep.subr.mxu0 0.0
        %8562 = vmatpush1.msra.mxu0 %v6279
        %8563 = vmatprep.subr.mxu0 0.0
        %8564 = vmatpush1.msra.mxu0 %v6278
        %8565 = vmatprep.subr.mxu0 0.0
        %8566 = vmatpush1.msra.mxu0 %v6277
        %8567 = vmatprep.subr.mxu0 0.0
        %8568 = vmatpush1.msra.mxu0 %v6276
        %8569 = vmatprep.subr.mxu0 0.0
        %8570 = vmatpush1.msra.mxu0 %v6275
        %8571 = vmatprep.subr.mxu0 0.0
        %8572 = vmatpush1.msra.mxu0 %v6274
        %8573 = vmatprep.subr.mxu0 0.0
        %8574 = vmatpush2.msra.mxu0 0.0
        %8575 = vmatprep.subr.mxu0 0.0
        %8576 = vmatpush2.msra.mxu0 0.0
        %8577 = vmatprep.subr.mxu0 0.0
        %8578 = vmatpush2.msra.mxu0 0.0
        %8579 = vmatprep.subr.mxu0 0.0
        %8580 = vmatpush2.msra.mxu0 0.0
        %8581 = vmatprep.subr.mxu0 0.0
        %8582 = vmatpush2.msra.mxu0 0.0
        %8583 = vmatprep.subr.mxu0 0.0
        %8584 = vmatpush2.msra.mxu0 0.0
        %8585 = vmatprep.subr.mxu0 0.0
        %8586 = vmatpush2.msra.mxu0 0.0
        %8587 = vmatprep.subr.mxu0 0.0
        %8588 = vmatpush2.msra.mxu0 0.0
        %8589 = vmatprep.subr.mxu0 0.0
        %8590 = vmatpush2.msra.mxu0 0.0
        %8591 = vmatprep.subr.mxu0 0.0
        %8592 = vmatpush2.msra.mxu0 0.0
        %8593 = vmatprep.subr.mxu0 0.0
        %8594 = vmatpush2.msra.mxu0 0.0
        %8595 = vmatprep.subr.mxu0 0.0
        %8596 = vmatpush2.msra.mxu0 0.0
        %8597 = vmatprep.subr.mxu0 0.0
        %8598 = vmatpush2.msra.mxu0 0.0
        %8599 = vmatprep.subr.mxu0 0.0
        %8600 = vmatpush2.msra.mxu0 0.0
        %8601 = vmatprep.subr.mxu0 0.0
        %8602 = vmatpush2.msra.mxu0 0.0
        %8603 = vmatprep.subr.mxu0 0.0
        %8604 = vmatpush2.msra.mxu0 0.0
        %8605 = vmatprep.mubr.f32.mxu0 0.0
        %8606 = vmatmul.mubr.f32.gmra.mxu0 %v6930
        %v8607 = vpop.f32.mrf.mxu0
        %v8608 = vadd.f32 0.0, %v8607
        %v8609 = vpop.f32.mrf.mxu0
        %8610 = vdwg.mxu0
        %8611 = vmatprep.subr.mxu0 0.0
        %8612 = vmatpush1.msra.mxu0 %v6305
        %8613 = vmatprep.subr.mxu0 0.0
        %8614 = vmatpush1.msra.mxu0 %v6304
        %8615 = vmatprep.subr.mxu0 0.0
        %8616 = vmatpush1.msra.mxu0 %v6303
        %8617 = vmatprep.subr.mxu0 0.0
        %8618 = vmatpush1.msra.mxu0 %v6302
        %8619 = vmatprep.subr.mxu0 0.0
        %8620 = vmatpush1.msra.mxu0 %v6301
        %8621 = vmatprep.subr.mxu0 0.0
        %8622 = vmatpush1.msra.mxu0 %v6300
        %8623 = vmatprep.subr.mxu0 0.0
        %8624 = vmatpush1.msra.mxu0 %v6299
        %8625 = vmatprep.subr.mxu0 0.0
        %8626 = vmatpush1.msra.mxu0 %v6298
        %8627 = vmatprep.subr.mxu0 0.0
        %8628 = vmatpush1.msra.mxu0 %v6297
        %8629 = vmatprep.subr.mxu0 0.0
        %8630 = vmatpush1.msra.mxu0 %v6296
        %8631 = vmatprep.subr.mxu0 0.0
        %8632 = vmatpush1.msra.mxu0 %v6295
        %8633 = vmatprep.subr.mxu0 0.0
        %8634 = vmatpush1.msra.mxu0 %v6294
        %8635 = vmatprep.subr.mxu0 0.0
        %8636 = vmatpush1.msra.mxu0 %v6293
        %8637 = vmatprep.subr.mxu0 0.0
        %8638 = vmatpush1.msra.mxu0 %v6292
        %8639 = vmatprep.subr.mxu0 0.0
        %8640 = vmatpush1.msra.mxu0 %v6291
        %8641 = vmatprep.subr.mxu0 0.0
        %8642 = vmatpush1.msra.mxu0 %v6290
        %8643 = vmatprep.subr.mxu0 0.0
        %8644 = vmatpush2.msra.mxu0 0.0
        %8645 = vmatprep.subr.mxu0 0.0
        %8646 = vmatpush2.msra.mxu0 0.0
        %8647 = vmatprep.subr.mxu0 0.0
        %8648 = vmatpush2.msra.mxu0 0.0
        %8649 = vmatprep.subr.mxu0 0.0
        %8650 = vmatpush2.msra.mxu0 0.0
        %8651 = vmatprep.subr.mxu0 0.0
        %8652 = vmatpush2.msra.mxu0 0.0
        %8653 = vmatprep.subr.mxu0 0.0
        %8654 = vmatpush2.msra.mxu0 0.0
        %8655 = vmatprep.subr.mxu0 0.0
        %8656 = vmatpush2.msra.mxu0 0.0
        %8657 = vmatprep.subr.mxu0 0.0
        %8658 = vmatpush2.msra.mxu0 0.0
        %8659 = vmatprep.subr.mxu0 0.0
        %8660 = vmatpush2.msra.mxu0 0.0
        %8661 = vmatprep.subr.mxu0 0.0
        %8662 = vmatpush2.msra.mxu0 0.0
        %8663 = vmatprep.subr.mxu0 0.0
        %8664 = vmatpush2.msra.mxu0 0.0
        %8665 = vmatprep.subr.mxu0 0.0
        %8666 = vmatpush2.msra.mxu0 0.0
        %8667 = vmatprep.subr.mxu0 0.0
        %8668 = vmatpush2.msra.mxu0 0.0
        %8669 = vmatprep.subr.mxu0 0.0
        %8670 = vmatpush2.msra.mxu0 0.0
        %8671 = vmatprep.subr.mxu0 0.0
        %8672 = vmatpush2.msra.mxu0 0.0
        %8673 = vmatprep.subr.mxu0 0.0
        %8674 = vmatpush2.msra.mxu0 0.0
        %8675 = vmatprep.mubr.f32.mxu0 0.0
        %8676 = vmatmul.mubr.f32.gmra.mxu0 %v6930
        %v8677 = vpop.f32.mrf.mxu0
        %v8678 = vadd.f32 0.0, %v8677
        %v8679 = vpop.f32.mrf.mxu0
        %8680 = vdwg.mxu0
        %8681 = vmatprep.subr.mxu0 0.0
        %8682 = vmatpush1.msra.mxu0 %v6321
        %8683 = vmatprep.subr.mxu0 0.0
        %8684 = vmatpush1.msra.mxu0 %v6320
        %8685 = vmatprep.subr.mxu0 0.0
        %8686 = vmatpush1.msra.mxu0 %v6319
        %8687 = vmatprep.subr.mxu0 0.0
        %8688 = vmatpush1.msra.mxu0 %v6318
        %8689 = vmatprep.subr.mxu0 0.0
        %8690 = vmatpush1.msra.mxu0 %v6317
        %8691 = vmatprep.subr.mxu0 0.0
        %8692 = vmatpush1.msra.mxu0 %v6316
        %8693 = vmatprep.subr.mxu0 0.0
        %8694 = vmatpush1.msra.mxu0 %v6315
        %8695 = vmatprep.subr.mxu0 0.0
        %8696 = vmatpush1.msra.mxu0 %v6314
        %8697 = vmatprep.subr.mxu0 0.0
        %8698 = vmatpush1.msra.mxu0 %v6313
        %8699 = vmatprep.subr.mxu0 0.0
        %8700 = vmatpush1.msra.mxu0 %v6312
        %8701 = vmatprep.subr.mxu0 0.0
        %8702 = vmatpush1.msra.mxu0 %v6311
        %8703 = vmatprep.subr.mxu0 0.0
        %8704 = vmatpush1.msra.mxu0 %v6310
        %8705 = vmatprep.subr.mxu0 0.0
        %8706 = vmatpush1.msra.mxu0 %v6309
        %8707 = vmatprep.subr.mxu0 0.0
        %8708 = vmatpush1.msra.mxu0 %v6308
        %8709 = vmatprep.subr.mxu0 0.0
        %8710 = vmatpush1.msra.mxu0 %v6307
        %8711 = vmatprep.subr.mxu0 0.0
        %8712 = vmatpush1.msra.mxu0 %v6306
        %8713 = vmatprep.subr.mxu0 0.0
        %8714 = vmatpush2.msra.mxu0 0.0
        %8715 = vmatprep.subr.mxu0 0.0
        %8716 = vmatpush2.msra.mxu0 0.0
        %8717 = vmatprep.subr.mxu0 0.0
        %8718 = vmatpush2.msra.mxu0 0.0
        %8719 = vmatprep.subr.mxu0 0.0
        %8720 = vmatpush2.msra.mxu0 0.0
        %8721 = vmatprep.subr.mxu0 0.0
        %8722 = vmatpush2.msra.mxu0 0.0
        %8723 = vmatprep.subr.mxu0 0.0
        %8724 = vmatpush2.msra.mxu0 0.0
        %8725 = vmatprep.subr.mxu0 0.0
        %8726 = vmatpush2.msra.mxu0 0.0
        %8727 = vmatprep.subr.mxu0 0.0
        %8728 = vmatpush2.msra.mxu0 0.0
        %8729 = vmatprep.subr.mxu0 0.0
        %8730 = vmatpush2.msra.mxu0 0.0
        %8731 = vmatprep.subr.mxu0 0.0
        %8732 = vmatpush2.msra.mxu0 0.0
        %8733 = vmatprep.subr.mxu0 0.0
        %8734 = vmatpush2.msra.mxu0 0.0
        %8735 = vmatprep.subr.mxu0 0.0
        %8736 = vmatpush2.msra.mxu0 0.0
        %8737 = vmatprep.subr.mxu0 0.0
        %8738 = vmatpush2.msra.mxu0 0.0
        %8739 = vmatprep.subr.mxu0 0.0
        %8740 = vmatpush2.msra.mxu0 0.0
        %8741 = vmatprep.subr.mxu0 0.0
        %8742 = vmatpush2.msra.mxu0 0.0
        %8743 = vmatprep.subr.mxu0 0.0
        %8744 = vmatpush2.msra.mxu0 0.0
        %8745 = vmatprep.mubr.f32.mxu0 0.0
        %8746 = vmatmul.mubr.f32.gmra.mxu0 %v6930
        %v8747 = vpop.f32.mrf.mxu0
        %v8748 = vadd.f32 0.0, %v8747
        %v8749 = vpop.f32.mrf.mxu0
        %8750 = vdwg.mxu0
        %8751 = vmatprep.subr.mxu0 0.0
        %8752 = vmatpush1.msra.mxu0 %v6337
        %8753 = vmatprep.subr.mxu0 0.0
        %8754 = vmatpush1.msra.mxu0 %v6336
        %8755 = vmatprep.subr.mxu0 0.0
        %8756 = vmatpush1.msra.mxu0 %v6335
        %8757 = vmatprep.subr.mxu0 0.0
        %8758 = vmatpush1.msra.mxu0 %v6334
        %8759 = vmatprep.subr.mxu0 0.0
        %8760 = vmatpush1.msra.mxu0 %v6333
        %8761 = vmatprep.subr.mxu0 0.0
        %8762 = vmatpush1.msra.mxu0 %v6332
        %8763 = vmatprep.subr.mxu0 0.0
        %8764 = vmatpush1.msra.mxu0 %v6331
        %8765 = vmatprep.subr.mxu0 0.0
        %8766 = vmatpush1.msra.mxu0 %v6330
        %8767 = vmatprep.subr.mxu0 0.0
        %8768 = vmatpush1.msra.mxu0 %v6329
        %8769 = vmatprep.subr.mxu0 0.0
        %8770 = vmatpush1.msra.mxu0 %v6328
        %8771 = vmatprep.subr.mxu0 0.0
        %8772 = vmatpush1.msra.mxu0 %v6327
        %8773 = vmatprep.subr.mxu0 0.0
        %8774 = vmatpush1.msra.mxu0 %v6326
        %8775 = vmatprep.subr.mxu0 0.0
        %8776 = vmatpush1.msra.mxu0 %v6325
        %8777 = vmatprep.subr.mxu0 0.0
        %8778 = vmatpush1.msra.mxu0 %v6324
        %8779 = vmatprep.subr.mxu0 0.0
        %8780 = vmatpush1.msra.mxu0 %v6323
        %8781 = vmatprep.subr.mxu0 0.0
        %8782 = vmatpush1.msra.mxu0 %v6322
        %8783 = vmatprep.subr.mxu0 0.0
        %8784 = vmatpush2.msra.mxu0 0.0
        %8785 = vmatprep.subr.mxu0 0.0
        %8786 = vmatpush2.msra.mxu0 0.0
        %8787 = vmatprep.subr.mxu0 0.0
        %8788 = vmatpush2.msra.mxu0 0.0
        %8789 = vmatprep.subr.mxu0 0.0
        %8790 = vmatpush2.msra.mxu0 0.0
        %8791 = vmatprep.subr.mxu0 0.0
        %8792 = vmatpush2.msra.mxu0 0.0
        %8793 = vmatprep.subr.mxu0 0.0
        %8794 = vmatpush2.msra.mxu0 0.0
        %8795 = vmatprep.subr.mxu0 0.0
        %8796 = vmatpush2.msra.mxu0 0.0
        %8797 = vmatprep.subr.mxu0 0.0
        %8798 = vmatpush2.msra.mxu0 0.0
        %8799 = vmatprep.subr.mxu0 0.0
        %8800 = vmatpush2.msra.mxu0 0.0
        %8801 = vmatprep.subr.mxu0 0.0
        %8802 = vmatpush2.msra.mxu0 0.0
        %8803 = vmatprep.subr.mxu0 0.0
        %8804 = vmatpush2.msra.mxu0 0.0
        %8805 = vmatprep.subr.mxu0 0.0
        %8806 = vmatpush2.msra.mxu0 0.0
        %8807 = vmatprep.subr.mxu0 0.0
        %8808 = vmatpush2.msra.mxu0 0.0
        %8809 = vmatprep.subr.mxu0 0.0
        %8810 = vmatpush2.msra.mxu0 0.0
        %8811 = vmatprep.subr.mxu0 0.0
        %8812 = vmatpush2.msra.mxu0 0.0
        %8813 = vmatprep.subr.mxu0 0.0
        %8814 = vmatpush2.msra.mxu0 0.0
        %8815 = vmatprep.mubr.f32.mxu0 0.0
        %8816 = vmatmul.mubr.f32.gmra.mxu0 %v6930
        %v8817 = vpop.f32.mrf.mxu0
        %v8818 = vadd.f32 0.0, %v8817
        %v8819 = vpop.f32.mrf.mxu0
        %8820 = vdwg.mxu0
        %8821 = vmatprep.subr.mxu0 0.0
        %8822 = vmatpush1.msra.mxu0 %v6353
        %8823 = vmatprep.subr.mxu0 0.0
        %8824 = vmatpush1.msra.mxu0 %v6352
        %8825 = vmatprep.subr.mxu0 0.0
        %8826 = vmatpush1.msra.mxu0 %v6351
        %8827 = vmatprep.subr.mxu0 0.0
        %8828 = vmatpush1.msra.mxu0 %v6350
        %8829 = vmatprep.subr.mxu0 0.0
        %8830 = vmatpush1.msra.mxu0 %v6349
        %8831 = vmatprep.subr.mxu0 0.0
        %8832 = vmatpush1.msra.mxu0 %v6348
        %8833 = vmatprep.subr.mxu0 0.0
        %8834 = vmatpush1.msra.mxu0 %v6347
        %8835 = vmatprep.subr.mxu0 0.0
        %8836 = vmatpush1.msra.mxu0 %v6346
        %8837 = vmatprep.subr.mxu0 0.0
        %8838 = vmatpush1.msra.mxu0 %v6345
        %8839 = vmatprep.subr.mxu0 0.0
        %8840 = vmatpush1.msra.mxu0 %v6344
        %8841 = vmatprep.subr.mxu0 0.0
        %8842 = vmatpush1.msra.mxu0 %v6343
        %8843 = vmatprep.subr.mxu0 0.0
        %8844 = vmatpush1.msra.mxu0 %v6342
        %8845 = vmatprep.subr.mxu0 0.0
        %8846 = vmatpush1.msra.mxu0 %v6341
        %8847 = vmatprep.subr.mxu0 0.0
        %8848 = vmatpush1.msra.mxu0 %v6340
        %8849 = vmatprep.subr.mxu0 0.0
        %8850 = vmatpush1.msra.mxu0 %v6339
        %8851 = vmatprep.subr.mxu0 0.0
        %8852 = vmatpush1.msra.mxu0 %v6338
        %8853 = vmatprep.subr.mxu0 0.0
        %8854 = vmatpush2.msra.mxu0 0.0
        %8855 = vmatprep.subr.mxu0 0.0
        %8856 = vmatpush2.msra.mxu0 0.0
        %8857 = vmatprep.subr.mxu0 0.0
        %8858 = vmatpush2.msra.mxu0 0.0
        %8859 = vmatprep.subr.mxu0 0.0
        %8860 = vmatpush2.msra.mxu0 0.0
        %8861 = vmatprep.subr.mxu0 0.0
        %8862 = vmatpush2.msra.mxu0 0.0
        %8863 = vmatprep.subr.mxu0 0.0
        %8864 = vmatpush2.msra.mxu0 0.0
        %8865 = vmatprep.subr.mxu0 0.0
        %8866 = vmatpush2.msra.mxu0 0.0
        %8867 = vmatprep.subr.mxu0 0.0
        %8868 = vmatpush2.msra.mxu0 0.0
        %8869 = vmatprep.subr.mxu0 0.0
        %8870 = vmatpush2.msra.mxu0 0.0
        %8871 = vmatprep.subr.mxu0 0.0
        %8872 = vmatpush2.msra.mxu0 0.0
        %8873 = vmatprep.subr.mxu0 0.0
        %8874 = vmatpush2.msra.mxu0 0.0
        %8875 = vmatprep.subr.mxu0 0.0
        %8876 = vmatpush2.msra.mxu0 0.0
        %8877 = vmatprep.subr.mxu0 0.0
        %8878 = vmatpush2.msra.mxu0 0.0
        %8879 = vmatprep.subr.mxu0 0.0
        %8880 = vmatpush2.msra.mxu0 0.0
        %8881 = vmatprep.subr.mxu0 0.0
        %8882 = vmatpush2.msra.mxu0 0.0
        %8883 = vmatprep.subr.mxu0 0.0
        %8884 = vmatpush2.msra.mxu0 0.0
        %8885 = vmatprep.mubr.f32.mxu0 0.0
        %8886 = vmatmul.mubr.f32.gmra.mxu0 %v6930
        %v8887 = vpop.f32.mrf.mxu0
        %v8888 = vadd.f32 0.0, %v8887
        %v8889 = vpop.f32.mrf.mxu0
        %8890 = vdwg.mxu0
        %8891 = vmatprep.subr.mxu0 0.0
        %8892 = vmatpush1.msra.mxu0 %v6369
        %8893 = vmatprep.subr.mxu0 0.0
        %8894 = vmatpush1.msra.mxu0 %v6368
        %8895 = vmatprep.subr.mxu0 0.0
        %8896 = vmatpush1.msra.mxu0 %v6367
        %8897 = vmatprep.subr.mxu0 0.0
        %8898 = vmatpush1.msra.mxu0 %v6366
        %8899 = vmatprep.subr.mxu0 0.0
        %8900 = vmatpush1.msra.mxu0 %v6365
        %8901 = vmatprep.subr.mxu0 0.0
        %8902 = vmatpush1.msra.mxu0 %v6364
        %8903 = vmatprep.subr.mxu0 0.0
        %8904 = vmatpush1.msra.mxu0 %v6363
        %8905 = vmatprep.subr.mxu0 0.0
        %8906 = vmatpush1.msra.mxu0 %v6362
        %8907 = vmatprep.subr.mxu0 0.0
        %8908 = vmatpush1.msra.mxu0 %v6361
        %8909 = vmatprep.subr.mxu0 0.0
        %8910 = vmatpush1.msra.mxu0 %v6360
        %8911 = vmatprep.subr.mxu0 0.0
        %8912 = vmatpush1.msra.mxu0 %v6359
        %8913 = vmatprep.subr.mxu0 0.0
        %8914 = vmatpush1.msra.mxu0 %v6358
        %8915 = vmatprep.subr.mxu0 0.0
        %8916 = vmatpush1.msra.mxu0 %v6357
        %8917 = vmatprep.subr.mxu0 0.0
        %8918 = vmatpush1.msra.mxu0 %v6356
        %8919 = vmatprep.subr.mxu0 0.0
        %8920 = vmatpush1.msra.mxu0 %v6355
        %8921 = vmatprep.subr.mxu0 0.0
        %8922 = vmatpush1.msra.mxu0 %v6354
        %8923 = vmatprep.subr.mxu0 0.0
        %8924 = vmatpush2.msra.mxu0 0.0
        %8925 = vmatprep.subr.mxu0 0.0
        %8926 = vmatpush2.msra.mxu0 0.0
        %8927 = vmatprep.subr.mxu0 0.0
        %8928 = vmatpush2.msra.mxu0 0.0
        %8929 = vmatprep.subr.mxu0 0.0
        %8930 = vmatpush2.msra.mxu0 0.0
        %8931 = vmatprep.subr.mxu0 0.0
        %8932 = vmatpush2.msra.mxu0 0.0
        %8933 = vmatprep.subr.mxu0 0.0
        %8934 = vmatpush2.msra.mxu0 0.0
        %8935 = vmatprep.subr.mxu0 0.0
        %8936 = vmatpush2.msra.mxu0 0.0
        %8937 = vmatprep.subr.mxu0 0.0
        %8938 = vmatpush2.msra.mxu0 0.0
        %8939 = vmatprep.subr.mxu0 0.0
        %8940 = vmatpush2.msra.mxu0 0.0
        %8941 = vmatprep.subr.mxu0 0.0
        %8942 = vmatpush2.msra.mxu0 0.0
        %8943 = vmatprep.subr.mxu0 0.0
        %8944 = vmatpush2.msra.mxu0 0.0
        %8945 = vmatprep.subr.mxu0 0.0
        %8946 = vmatpush2.msra.mxu0 0.0
        %8947 = vmatprep.subr.mxu0 0.0
        %8948 = vmatpush2.msra.mxu0 0.0
        %8949 = vmatprep.subr.mxu0 0.0
        %8950 = vmatpush2.msra.mxu0 0.0
        %8951 = vmatprep.subr.mxu0 0.0
        %8952 = vmatpush2.msra.mxu0 0.0
        %8953 = vmatprep.subr.mxu0 0.0
        %8954 = vmatpush2.msra.mxu0 0.0
        %8955 = vmatprep.mubr.f32.mxu0 0.0
        %8956 = vmatmul.mubr.f32.gmra.mxu0 %v6930
        %v8957 = vpop.f32.mrf.mxu0
        %v8958 = vadd.f32 0.0, %v8957
        %v8959 = vpop.f32.mrf.mxu0
        %8960 = vdwg.mxu0
        %8961 = vmatprep.subr.mxu0 0.0
        %8962 = vmatpush1.msra.mxu0 %v6385
        %8963 = vmatprep.subr.mxu0 0.0
        %8964 = vmatpush1.msra.mxu0 %v6384
        %8965 = vmatprep.subr.mxu0 0.0
        %8966 = vmatpush1.msra.mxu0 %v6383
        %8967 = vmatprep.subr.mxu0 0.0
        %8968 = vmatpush1.msra.mxu0 %v6382
        %8969 = vmatprep.subr.mxu0 0.0
        %8970 = vmatpush1.msra.mxu0 %v6381
        %8971 = vmatprep.subr.mxu0 0.0
        %8972 = vmatpush1.msra.mxu0 %v6380
        %8973 = vmatprep.subr.mxu0 0.0
        %8974 = vmatpush1.msra.mxu0 %v6379
        %8975 = vmatprep.subr.mxu0 0.0
        %8976 = vmatpush1.msra.mxu0 %v6378
        %8977 = vmatprep.subr.mxu0 0.0
        %8978 = vmatpush1.msra.mxu0 %v6377
        %8979 = vmatprep.subr.mxu0 0.0
        %8980 = vmatpush1.msra.mxu0 %v6376
        %8981 = vmatprep.subr.mxu0 0.0
        %8982 = vmatpush1.msra.mxu0 %v6375
        %8983 = vmatprep.subr.mxu0 0.0
        %8984 = vmatpush1.msra.mxu0 %v6374
        %8985 = vmatprep.subr.mxu0 0.0
        %8986 = vmatpush1.msra.mxu0 %v6373
        %8987 = vmatprep.subr.mxu0 0.0
        %8988 = vmatpush1.msra.mxu0 %v6372
        %8989 = vmatprep.subr.mxu0 0.0
        %8990 = vmatpush1.msra.mxu0 %v6371
        %8991 = vmatprep.subr.mxu0 0.0
        %8992 = vmatpush1.msra.mxu0 %v6370
        %8993 = vmatprep.subr.mxu0 0.0
        %8994 = vmatpush2.msra.mxu0 0.0
        %8995 = vmatprep.subr.mxu0 0.0
        %8996 = vmatpush2.msra.mxu0 0.0
        %8997 = vmatprep.subr.mxu0 0.0
        %8998 = vmatpush2.msra.mxu0 0.0
        %8999 = vmatprep.subr.mxu0 0.0
        %9000 = vmatpush2.msra.mxu0 0.0
        %9001 = vmatprep.subr.mxu0 0.0
        %9002 = vmatpush2.msra.mxu0 0.0
        %9003 = vmatprep.subr.mxu0 0.0
        %9004 = vmatpush2.msra.mxu0 0.0
        %9005 = vmatprep.subr.mxu0 0.0
        %9006 = vmatpush2.msra.mxu0 0.0
        %9007 = vmatprep.subr.mxu0 0.0
        %9008 = vmatpush2.msra.mxu0 0.0
        %9009 = vmatprep.subr.mxu0 0.0
        %9010 = vmatpush2.msra.mxu0 0.0
        %9011 = vmatprep.subr.mxu0 0.0
        %9012 = vmatpush2.msra.mxu0 0.0
        %9013 = vmatprep.subr.mxu0 0.0
        %9014 = vmatpush2.msra.mxu0 0.0
        %9015 = vmatprep.subr.mxu0 0.0
        %9016 = vmatpush2.msra.mxu0 0.0
        %9017 = vmatprep.subr.mxu0 0.0
        %9018 = vmatpush2.msra.mxu0 0.0
        %9019 = vmatprep.subr.mxu0 0.0
        %9020 = vmatpush2.msra.mxu0 0.0
        %9021 = vmatprep.subr.mxu0 0.0
        %9022 = vmatpush2.msra.mxu0 0.0
        %9023 = vmatprep.subr.mxu0 0.0
        %9024 = vmatpush2.msra.mxu0 0.0
        %9025 = vmatprep.mubr.f32.mxu0 0.0
        %9026 = vmatmul.mubr.f32.gmra.mxu0 %v6930
        %v9027 = vpop.f32.mrf.mxu0
        %v9028 = vadd.f32 0.0, %v9027
        %v9029 = vpop.f32.mrf.mxu0
        %9030 = vdwg.mxu0
        %9031 = vmatprep.subr.mxu0 0.0
        %9032 = vmatpush1.msra.mxu0 %v6401
        %9033 = vmatprep.subr.mxu0 0.0
        %9034 = vmatpush1.msra.mxu0 %v6400
        %9035 = vmatprep.subr.mxu0 0.0
        %9036 = vmatpush1.msra.mxu0 %v6399
        %9037 = vmatprep.subr.mxu0 0.0
        %9038 = vmatpush1.msra.mxu0 %v6398
        %9039 = vmatprep.subr.mxu0 0.0
        %9040 = vmatpush1.msra.mxu0 %v6397
        %9041 = vmatprep.subr.mxu0 0.0
        %9042 = vmatpush1.msra.mxu0 %v6396
        %9043 = vmatprep.subr.mxu0 0.0
        %9044 = vmatpush1.msra.mxu0 %v6395
        %9045 = vmatprep.subr.mxu0 0.0
        %9046 = vmatpush1.msra.mxu0 %v6394
        %9047 = vmatprep.subr.mxu0 0.0
        %9048 = vmatpush1.msra.mxu0 %v6393
        %9049 = vmatprep.subr.mxu0 0.0
        %9050 = vmatpush1.msra.mxu0 %v6392
        %9051 = vmatprep.subr.mxu0 0.0
        %9052 = vmatpush1.msra.mxu0 %v6391
        %9053 = vmatprep.subr.mxu0 0.0
        %9054 = vmatpush1.msra.mxu0 %v6390
        %9055 = vmatprep.subr.mxu0 0.0
        %9056 = vmatpush1.msra.mxu0 %v6389
        %9057 = vmatprep.subr.mxu0 0.0
        %9058 = vmatpush1.msra.mxu0 %v6388
        %9059 = vmatprep.subr.mxu0 0.0
        %9060 = vmatpush1.msra.mxu0 %v6387
        %9061 = vmatprep.subr.mxu0 0.0
        %9062 = vmatpush1.msra.mxu0 %v6386
        %9063 = vmatprep.subr.mxu0 0.0
        %9064 = vmatpush2.msra.mxu0 0.0
        %9065 = vmatprep.subr.mxu0 0.0
        %9066 = vmatpush2.msra.mxu0 0.0
        %9067 = vmatprep.subr.mxu0 0.0
        %9068 = vmatpush2.msra.mxu0 0.0
        %9069 = vmatprep.subr.mxu0 0.0
        %9070 = vmatpush2.msra.mxu0 0.0
        %9071 = vmatprep.subr.mxu0 0.0
        %9072 = vmatpush2.msra.mxu0 0.0
        %9073 = vmatprep.subr.mxu0 0.0
        %9074 = vmatpush2.msra.mxu0 0.0
        %9075 = vmatprep.subr.mxu0 0.0
        %9076 = vmatpush2.msra.mxu0 0.0
        %9077 = vmatprep.subr.mxu0 0.0
        %9078 = vmatpush2.msra.mxu0 0.0
        %9079 = vmatprep.subr.mxu0 0.0
        %9080 = vmatpush2.msra.mxu0 0.0
        %9081 = vmatprep.subr.mxu0 0.0
        %9082 = vmatpush2.msra.mxu0 0.0
        %9083 = vmatprep.subr.mxu0 0.0
        %9084 = vmatpush2.msra.mxu0 0.0
        %9085 = vmatprep.subr.mxu0 0.0
        %9086 = vmatpush2.msra.mxu0 0.0
        %9087 = vmatprep.subr.mxu0 0.0
        %9088 = vmatpush2.msra.mxu0 0.0
        %9089 = vmatprep.subr.mxu0 0.0
        %9090 = vmatpush2.msra.mxu0 0.0
        %9091 = vmatprep.subr.mxu0 0.0
        %9092 = vmatpush2.msra.mxu0 0.0
        %9093 = vmatprep.subr.mxu0 0.0
        %9094 = vmatpush2.msra.mxu0 0.0
        %9095 = vmatprep.mubr.f32.mxu0 0.0
        %9096 = vmatmul.mubr.f32.gmra.mxu0 %v6930
        %v9097 = vpop.f32.mrf.mxu0
        %v9098 = vadd.f32 0.0, %v9097
        %v9099 = vpop.f32.mrf.mxu0
        %9100 = vdwg.mxu0
        %9101 = vmatprep.subr.mxu0 0.0
        %9102 = vmatpush1.msra.mxu0 %v6417
        %9103 = vmatprep.subr.mxu0 0.0
        %9104 = vmatpush1.msra.mxu0 %v6416
        %9105 = vmatprep.subr.mxu0 0.0
        %9106 = vmatpush1.msra.mxu0 %v6415
        %9107 = vmatprep.subr.mxu0 0.0
        %9108 = vmatpush1.msra.mxu0 %v6414
        %9109 = vmatprep.subr.mxu0 0.0
        %9110 = vmatpush1.msra.mxu0 %v6413
        %9111 = vmatprep.subr.mxu0 0.0
        %9112 = vmatpush1.msra.mxu0 %v6412
        %9113 = vmatprep.subr.mxu0 0.0
        %9114 = vmatpush1.msra.mxu0 %v6411
        %9115 = vmatprep.subr.mxu0 0.0
        %9116 = vmatpush1.msra.mxu0 %v6410
        %9117 = vmatprep.subr.mxu0 0.0
        %9118 = vmatpush1.msra.mxu0 %v6409
        %9119 = vmatprep.subr.mxu0 0.0
        %9120 = vmatpush1.msra.mxu0 %v6408
        %9121 = vmatprep.subr.mxu0 0.0
        %9122 = vmatpush1.msra.mxu0 %v6407
        %9123 = vmatprep.subr.mxu0 0.0
        %9124 = vmatpush1.msra.mxu0 %v6406
        %9125 = vmatprep.subr.mxu0 0.0
        %9126 = vmatpush1.msra.mxu0 %v6405
        %9127 = vmatprep.subr.mxu0 0.0
        %9128 = vmatpush1.msra.mxu0 %v6404
        %9129 = vmatprep.subr.mxu0 0.0
        %9130 = vmatpush1.msra.mxu0 %v6403
        %9131 = vmatprep.subr.mxu0 0.0
        %9132 = vmatpush1.msra.mxu0 %v6402
        %9133 = vmatprep.subr.mxu0 0.0
        %9134 = vmatpush2.msra.mxu0 0.0
        %9135 = vmatprep.subr.mxu0 0.0
        %9136 = vmatpush2.msra.mxu0 0.0
        %9137 = vmatprep.subr.mxu0 0.0
        %9138 = vmatpush2.msra.mxu0 0.0
        %9139 = vmatprep.subr.mxu0 0.0
        %9140 = vmatpush2.msra.mxu0 0.0
        %9141 = vmatprep.subr.mxu0 0.0
        %9142 = vmatpush2.msra.mxu0 0.0
        %9143 = vmatprep.subr.mxu0 0.0
        %9144 = vmatpush2.msra.mxu0 0.0
        %9145 = vmatprep.subr.mxu0 0.0
        %9146 = vmatpush2.msra.mxu0 0.0
        %9147 = vmatprep.subr.mxu0 0.0
        %9148 = vmatpush2.msra.mxu0 0.0
        %9149 = vmatprep.subr.mxu0 0.0
        %9150 = vmatpush2.msra.mxu0 0.0
        %9151 = vmatprep.subr.mxu0 0.0
        %9152 = vmatpush2.msra.mxu0 0.0
        %9153 = vmatprep.subr.mxu0 0.0
        %9154 = vmatpush2.msra.mxu0 0.0
        %9155 = vmatprep.subr.mxu0 0.0
        %9156 = vmatpush2.msra.mxu0 0.0
        %9157 = vmatprep.subr.mxu0 0.0
        %9158 = vmatpush2.msra.mxu0 0.0
        %9159 = vmatprep.subr.mxu0 0.0
        %9160 = vmatpush2.msra.mxu0 0.0
        %9161 = vmatprep.subr.mxu0 0.0
        %9162 = vmatpush2.msra.mxu0 0.0
        %9163 = vmatprep.subr.mxu0 0.0
        %9164 = vmatpush2.msra.mxu0 0.0
        %9165 = vmatprep.mubr.f32.mxu0 0.0
        %9166 = vmatmul.mubr.f32.gmra.mxu0 %v6930
        %v9167 = vpop.f32.mrf.mxu0
        %v9168 = vadd.f32 0.0, %v9167
        %v9169 = vpop.f32.mrf.mxu0
        %9170 = vdwg.mxu0
        %9171 = vmatprep.subr.mxu0 0.0
        %9172 = vmatpush1.msra.mxu0 %v6433
        %9173 = vmatprep.subr.mxu0 0.0
        %9174 = vmatpush1.msra.mxu0 %v6432
        %9175 = vmatprep.subr.mxu0 0.0
        %9176 = vmatpush1.msra.mxu0 %v6431
        %9177 = vmatprep.subr.mxu0 0.0
        %9178 = vmatpush1.msra.mxu0 %v6430
        %9179 = vmatprep.subr.mxu0 0.0
        %9180 = vmatpush1.msra.mxu0 %v6429
        %9181 = vmatprep.subr.mxu0 0.0
        %9182 = vmatpush1.msra.mxu0 %v6428
        %9183 = vmatprep.subr.mxu0 0.0
        %9184 = vmatpush1.msra.mxu0 %v6427
        %9185 = vmatprep.subr.mxu0 0.0
        %9186 = vmatpush1.msra.mxu0 %v6426
        %9187 = vmatprep.subr.mxu0 0.0
        %9188 = vmatpush1.msra.mxu0 %v6425
        %9189 = vmatprep.subr.mxu0 0.0
        %9190 = vmatpush1.msra.mxu0 %v6424
        %9191 = vmatprep.subr.mxu0 0.0
        %9192 = vmatpush1.msra.mxu0 %v6423
        %9193 = vmatprep.subr.mxu0 0.0
        %9194 = vmatpush1.msra.mxu0 %v6422
        %9195 = vmatprep.subr.mxu0 0.0
        %9196 = vmatpush1.msra.mxu0 %v6421
        %9197 = vmatprep.subr.mxu0 0.0
        %9198 = vmatpush1.msra.mxu0 %v6420
        %9199 = vmatprep.subr.mxu0 0.0
        %9200 = vmatpush1.msra.mxu0 %v6419
        %9201 = vmatprep.subr.mxu0 0.0
        %9202 = vmatpush1.msra.mxu0 %v6418
        %9203 = vmatprep.subr.mxu0 0.0
        %9204 = vmatpush2.msra.mxu0 0.0
        %9205 = vmatprep.subr.mxu0 0.0
        %9206 = vmatpush2.msra.mxu0 0.0
        %9207 = vmatprep.subr.mxu0 0.0
        %9208 = vmatpush2.msra.mxu0 0.0
        %9209 = vmatprep.subr.mxu0 0.0
        %9210 = vmatpush2.msra.mxu0 0.0
        %9211 = vmatprep.subr.mxu0 0.0
        %9212 = vmatpush2.msra.mxu0 0.0
        %9213 = vmatprep.subr.mxu0 0.0
        %9214 = vmatpush2.msra.mxu0 0.0
        %9215 = vmatprep.subr.mxu0 0.0
        %9216 = vmatpush2.msra.mxu0 0.0
        %9217 = vmatprep.subr.mxu0 0.0
        %9218 = vmatpush2.msra.mxu0 0.0
        %9219 = vmatprep.subr.mxu0 0.0
        %9220 = vmatpush2.msra.mxu0 0.0
        %9221 = vmatprep.subr.mxu0 0.0
        %9222 = vmatpush2.msra.mxu0 0.0
        %9223 = vmatprep.subr.mxu0 0.0
        %9224 = vmatpush2.msra.mxu0 0.0
        %9225 = vmatprep.subr.mxu0 0.0
        %9226 = vmatpush2.msra.mxu0 0.0
        %9227 = vmatprep.subr.mxu0 0.0
        %9228 = vmatpush2.msra.mxu0 0.0
        %9229 = vmatprep.subr.mxu0 0.0
        %9230 = vmatpush2.msra.mxu0 0.0
        %9231 = vmatprep.subr.mxu0 0.0
        %9232 = vmatpush2.msra.mxu0 0.0
        %9233 = vmatprep.subr.mxu0 0.0
        %9234 = vmatpush2.msra.mxu0 0.0
        %9235 = vmatprep.mubr.f32.mxu0 0.0
        %9236 = vmatmul.mubr.f32.gmra.mxu0 %v6930
        %v9237 = vpop.f32.mrf.mxu0
        %v9238 = vadd.f32 0.0, %v9237
        %v9239 = vpop.f32.mrf.mxu0
        %9240 = vdwg.mxu0
        %9241 = vmatprep.subr.mxu0 0.0
        %9242 = vmatpush1.msra.mxu0 %v6449
        %9243 = vmatprep.subr.mxu0 0.0
        %9244 = vmatpush1.msra.mxu0 %v6448
        %9245 = vmatprep.subr.mxu0 0.0
        %9246 = vmatpush1.msra.mxu0 %v6447
        %9247 = vmatprep.subr.mxu0 0.0
        %9248 = vmatpush1.msra.mxu0 %v6446
        %9249 = vmatprep.subr.mxu0 0.0
        %9250 = vmatpush1.msra.mxu0 %v6445
        %9251 = vmatprep.subr.mxu0 0.0
        %9252 = vmatpush1.msra.mxu0 %v6444
        %9253 = vmatprep.subr.mxu0 0.0
        %9254 = vmatpush1.msra.mxu0 %v6443
        %9255 = vmatprep.subr.mxu0 0.0
        %9256 = vmatpush1.msra.mxu0 %v6442
        %9257 = vmatprep.subr.mxu0 0.0
        %9258 = vmatpush1.msra.mxu0 %v6441
        %9259 = vmatprep.subr.mxu0 0.0
        %9260 = vmatpush1.msra.mxu0 %v6440
        %9261 = vmatprep.subr.mxu0 0.0
        %9262 = vmatpush1.msra.mxu0 %v6439
        %9263 = vmatprep.subr.mxu0 0.0
        %9264 = vmatpush1.msra.mxu0 %v6438
        %9265 = vmatprep.subr.mxu0 0.0
        %9266 = vmatpush1.msra.mxu0 %v6437
        %9267 = vmatprep.subr.mxu0 0.0
        %9268 = vmatpush1.msra.mxu0 %v6436
        %9269 = vmatprep.subr.mxu0 0.0
        %9270 = vmatpush1.msra.mxu0 %v6435
        %9271 = vmatprep.subr.mxu0 0.0
        %9272 = vmatpush1.msra.mxu0 %v6434
        %9273 = vmatprep.subr.mxu0 0.0
        %9274 = vmatpush2.msra.mxu0 0.0
        %9275 = vmatprep.subr.mxu0 0.0
        %9276 = vmatpush2.msra.mxu0 0.0
        %9277 = vmatprep.subr.mxu0 0.0
        %9278 = vmatpush2.msra.mxu0 0.0
        %9279 = vmatprep.subr.mxu0 0.0
        %9280 = vmatpush2.msra.mxu0 0.0
        %9281 = vmatprep.subr.mxu0 0.0
        %9282 = vmatpush2.msra.mxu0 0.0
        %9283 = vmatprep.subr.mxu0 0.0
        %9284 = vmatpush2.msra.mxu0 0.0
        %9285 = vmatprep.subr.mxu0 0.0
        %9286 = vmatpush2.msra.mxu0 0.0
        %9287 = vmatprep.subr.mxu0 0.0
        %9288 = vmatpush2.msra.mxu0 0.0
        %9289 = vmatprep.subr.mxu0 0.0
        %9290 = vmatpush2.msra.mxu0 0.0
        %9291 = vmatprep.subr.mxu0 0.0
        %9292 = vmatpush2.msra.mxu0 0.0
        %9293 = vmatprep.subr.mxu0 0.0
        %9294 = vmatpush2.msra.mxu0 0.0
        %9295 = vmatprep.subr.mxu0 0.0
        %9296 = vmatpush2.msra.mxu0 0.0
        %9297 = vmatprep.subr.mxu0 0.0
        %9298 = vmatpush2.msra.mxu0 0.0
        %9299 = vmatprep.subr.mxu0 0.0
        %9300 = vmatpush2.msra.mxu0 0.0
        %9301 = vmatprep.subr.mxu0 0.0
        %9302 = vmatpush2.msra.mxu0 0.0
        %9303 = vmatprep.subr.mxu0 0.0
        %9304 = vmatpush2.msra.mxu0 0.0
        %9305 = vmatprep.mubr.f32.mxu0 0.0
        %9306 = vmatmul.mubr.f32.gmra.mxu0 %v6930
        %v9307 = vpop.f32.mrf.mxu0
        %v9308 = vadd.f32 0.0, %v9307
        %v9309 = vpop.f32.mrf.mxu0
        %9310 = vdwg.mxu0
        %9311 = vmatprep.subr.mxu0 0.0
        %9312 = vmatpush1.msra.mxu0 %v6465
        %9313 = vmatprep.subr.mxu0 0.0
        %9314 = vmatpush1.msra.mxu0 %v6464
        %9315 = vmatprep.subr.mxu0 0.0
        %9316 = vmatpush1.msra.mxu0 %v6463
        %9317 = vmatprep.subr.mxu0 0.0
        %9318 = vmatpush1.msra.mxu0 %v6462
        %9319 = vmatprep.subr.mxu0 0.0
        %9320 = vmatpush1.msra.mxu0 %v6461
        %9321 = vmatprep.subr.mxu0 0.0
        %9322 = vmatpush1.msra.mxu0 %v6460
        %9323 = vmatprep.subr.mxu0 0.0
        %9324 = vmatpush1.msra.mxu0 %v6459
        %9325 = vmatprep.subr.mxu0 0.0
        %9326 = vmatpush1.msra.mxu0 %v6458
        %9327 = vmatprep.subr.mxu0 0.0
        %9328 = vmatpush1.msra.mxu0 %v6457
        %9329 = vmatprep.subr.mxu0 0.0
        %9330 = vmatpush1.msra.mxu0 %v6456
        %9331 = vmatprep.subr.mxu0 0.0
        %9332 = vmatpush1.msra.mxu0 %v6455
        %9333 = vmatprep.subr.mxu0 0.0
        %9334 = vmatpush1.msra.mxu0 %v6454
        %9335 = vmatprep.subr.mxu0 0.0
        %9336 = vmatpush1.msra.mxu0 %v6453
        %9337 = vmatprep.subr.mxu0 0.0
        %9338 = vmatpush1.msra.mxu0 %v6452
        %9339 = vmatprep.subr.mxu0 0.0
        %9340 = vmatpush1.msra.mxu0 %v6451
        %9341 = vmatprep.subr.mxu0 0.0
        %9342 = vmatpush1.msra.mxu0 %v6450
        %9343 = vmatprep.subr.mxu0 0.0
        %9344 = vmatpush2.msra.mxu0 0.0
        %9345 = vmatprep.subr.mxu0 0.0
        %9346 = vmatpush2.msra.mxu0 0.0
        %9347 = vmatprep.subr.mxu0 0.0
        %9348 = vmatpush2.msra.mxu0 0.0
        %9349 = vmatprep.subr.mxu0 0.0
        %9350 = vmatpush2.msra.mxu0 0.0
        %9351 = vmatprep.subr.mxu0 0.0
        %9352 = vmatpush2.msra.mxu0 0.0
        %9353 = vmatprep.subr.mxu0 0.0
        %9354 = vmatpush2.msra.mxu0 0.0
        %9355 = vmatprep.subr.mxu0 0.0
        %9356 = vmatpush2.msra.mxu0 0.0
        %9357 = vmatprep.subr.mxu0 0.0
        %9358 = vmatpush2.msra.mxu0 0.0
        %9359 = vmatprep.subr.mxu0 0.0
        %9360 = vmatpush2.msra.mxu0 0.0
        %9361 = vmatprep.subr.mxu0 0.0
        %9362 = vmatpush2.msra.mxu0 0.0
        %9363 = vmatprep.subr.mxu0 0.0
        %9364 = vmatpush2.msra.mxu0 0.0
        %9365 = vmatprep.subr.mxu0 0.0
        %9366 = vmatpush2.msra.mxu0 0.0
        %9367 = vmatprep.subr.mxu0 0.0
        %9368 = vmatpush2.msra.mxu0 0.0
        %9369 = vmatprep.subr.mxu0 0.0
        %9370 = vmatpush2.msra.mxu0 0.0
        %9371 = vmatprep.subr.mxu0 0.0
        %9372 = vmatpush2.msra.mxu0 0.0
        %9373 = vmatprep.subr.mxu0 0.0
        %9374 = vmatpush2.msra.mxu0 0.0
        %9375 = vmatprep.mubr.f32.mxu0 0.0
        %9376 = vmatmul.mubr.f32.gmra.mxu0 %v6930
        %v9377 = vpop.f32.mrf.mxu0
        %v9378 = vadd.f32 0.0, %v9377
        %v9379 = vpop.f32.mrf.mxu0
        %9380 = vdwg.mxu0
        %9381 = vmatprep.subr.mxu0 0.0
        %9382 = vmatpush1.msra.mxu0 %v6481
        %9383 = vmatprep.subr.mxu0 0.0
        %9384 = vmatpush1.msra.mxu0 %v6480
        %9385 = vmatprep.subr.mxu0 0.0
        %9386 = vmatpush1.msra.mxu0 %v6479
        %9387 = vmatprep.subr.mxu0 0.0
        %9388 = vmatpush1.msra.mxu0 %v6478
        %9389 = vmatprep.subr.mxu0 0.0
        %9390 = vmatpush1.msra.mxu0 %v6477
        %9391 = vmatprep.subr.mxu0 0.0
        %9392 = vmatpush1.msra.mxu0 %v6476
        %9393 = vmatprep.subr.mxu0 0.0
        %9394 = vmatpush1.msra.mxu0 %v6475
        %9395 = vmatprep.subr.mxu0 0.0
        %9396 = vmatpush1.msra.mxu0 %v6474
        %9397 = vmatprep.subr.mxu0 0.0
        %9398 = vmatpush1.msra.mxu0 %v6473
        %9399 = vmatprep.subr.mxu0 0.0
        %9400 = vmatpush1.msra.mxu0 %v6472
        %9401 = vmatprep.subr.mxu0 0.0
        %9402 = vmatpush1.msra.mxu0 %v6471
        %9403 = vmatprep.subr.mxu0 0.0
        %9404 = vmatpush1.msra.mxu0 %v6470
        %9405 = vmatprep.subr.mxu0 0.0
        %9406 = vmatpush1.msra.mxu0 %v6469
        %9407 = vmatprep.subr.mxu0 0.0
        %9408 = vmatpush1.msra.mxu0 %v6468
        %9409 = vmatprep.subr.mxu0 0.0
        %9410 = vmatpush1.msra.mxu0 %v6467
        %9411 = vmatprep.subr.mxu0 0.0
        %9412 = vmatpush1.msra.mxu0 %v6466
        %9413 = vmatprep.subr.mxu0 0.0
        %9414 = vmatpush2.msra.mxu0 0.0
        %9415 = vmatprep.subr.mxu0 0.0
        %9416 = vmatpush2.msra.mxu0 0.0
        %9417 = vmatprep.subr.mxu0 0.0
        %9418 = vmatpush2.msra.mxu0 0.0
        %9419 = vmatprep.subr.mxu0 0.0
        %9420 = vmatpush2.msra.mxu0 0.0
        %9421 = vmatprep.subr.mxu0 0.0
        %9422 = vmatpush2.msra.mxu0 0.0
        %9423 = vmatprep.subr.mxu0 0.0
        %9424 = vmatpush2.msra.mxu0 0.0
        %9425 = vmatprep.subr.mxu0 0.0
        %9426 = vmatpush2.msra.mxu0 0.0
        %9427 = vmatprep.subr.mxu0 0.0
        %9428 = vmatpush2.msra.mxu0 0.0
        %9429 = vmatprep.subr.mxu0 0.0
        %9430 = vmatpush2.msra.mxu0 0.0
        %9431 = vmatprep.subr.mxu0 0.0
        %9432 = vmatpush2.msra.mxu0 0.0
        %9433 = vmatprep.subr.mxu0 0.0
        %9434 = vmatpush2.msra.mxu0 0.0
        %9435 = vmatprep.subr.mxu0 0.0
        %9436 = vmatpush2.msra.mxu0 0.0
        %9437 = vmatprep.subr.mxu0 0.0
        %9438 = vmatpush2.msra.mxu0 0.0
        %9439 = vmatprep.subr.mxu0 0.0
        %9440 = vmatpush2.msra.mxu0 0.0
        %9441 = vmatprep.subr.mxu0 0.0
        %9442 = vmatpush2.msra.mxu0 0.0
        %9443 = vmatprep.subr.mxu0 0.0
        %9444 = vmatpush2.msra.mxu0 0.0
        %9445 = vmatprep.mubr.f32.mxu0 0.0
        %9446 = vmatmul.mubr.f32.gmra.mxu0 %v6930
        %v9447 = vpop.f32.mrf.mxu0
        %v9448 = vadd.f32 0.0, %v9447
        %v9449 = vpop.f32.mrf.mxu0
        %9450 = vdwg.mxu0
        %9451 = vmatprep.subr.mxu0 0.0
        %9452 = vmatpush1.msra.mxu0 %v6497
        %9453 = vmatprep.subr.mxu0 0.0
        %9454 = vmatpush1.msra.mxu0 %v6496
        %9455 = vmatprep.subr.mxu0 0.0
        %9456 = vmatpush1.msra.mxu0 %v6495
        %9457 = vmatprep.subr.mxu0 0.0
        %9458 = vmatpush1.msra.mxu0 %v6494
        %9459 = vmatprep.subr.mxu0 0.0
        %9460 = vmatpush1.msra.mxu0 %v6493
        %9461 = vmatprep.subr.mxu0 0.0
        %9462 = vmatpush1.msra.mxu0 %v6492
        %9463 = vmatprep.subr.mxu0 0.0
        %9464 = vmatpush1.msra.mxu0 %v6491
        %9465 = vmatprep.subr.mxu0 0.0
        %9466 = vmatpush1.msra.mxu0 %v6490
        %9467 = vmatprep.subr.mxu0 0.0
        %9468 = vmatpush1.msra.mxu0 %v6489
        %9469 = vmatprep.subr.mxu0 0.0
        %9470 = vmatpush1.msra.mxu0 %v6488
        %9471 = vmatprep.subr.mxu0 0.0
        %9472 = vmatpush1.msra.mxu0 %v6487
        %9473 = vmatprep.subr.mxu0 0.0
        %9474 = vmatpush1.msra.mxu0 %v6486
        %9475 = vmatprep.subr.mxu0 0.0
        %9476 = vmatpush1.msra.mxu0 %v6485
        %9477 = vmatprep.subr.mxu0 0.0
        %9478 = vmatpush1.msra.mxu0 %v6484
        %9479 = vmatprep.subr.mxu0 0.0
        %9480 = vmatpush1.msra.mxu0 %v6483
        %9481 = vmatprep.subr.mxu0 0.0
        %9482 = vmatpush1.msra.mxu0 %v6482
        %9483 = vmatprep.subr.mxu0 0.0
        %9484 = vmatpush2.msra.mxu0 0.0
        %9485 = vmatprep.subr.mxu0 0.0
        %9486 = vmatpush2.msra.mxu0 0.0
        %9487 = vmatprep.subr.mxu0 0.0
        %9488 = vmatpush2.msra.mxu0 0.0
        %9489 = vmatprep.subr.mxu0 0.0
        %9490 = vmatpush2.msra.mxu0 0.0
        %9491 = vmatprep.subr.mxu0 0.0
        %9492 = vmatpush2.msra.mxu0 0.0
        %9493 = vmatprep.subr.mxu0 0.0
        %9494 = vmatpush2.msra.mxu0 0.0
        %9495 = vmatprep.subr.mxu0 0.0
        %9496 = vmatpush2.msra.mxu0 0.0
        %9497 = vmatprep.subr.mxu0 0.0
        %9498 = vmatpush2.msra.mxu0 0.0
        %9499 = vmatprep.subr.mxu0 0.0
        %9500 = vmatpush2.msra.mxu0 0.0
        %9501 = vmatprep.subr.mxu0 0.0
        %9502 = vmatpush2.msra.mxu0 0.0
        %9503 = vmatprep.subr.mxu0 0.0
        %9504 = vmatpush2.msra.mxu0 0.0
        %9505 = vmatprep.subr.mxu0 0.0
        %9506 = vmatpush2.msra.mxu0 0.0
        %9507 = vmatprep.subr.mxu0 0.0
        %9508 = vmatpush2.msra.mxu0 0.0
        %9509 = vmatprep.subr.mxu0 0.0
        %9510 = vmatpush2.msra.mxu0 0.0
        %9511 = vmatprep.subr.mxu0 0.0
        %9512 = vmatpush2.msra.mxu0 0.0
        %9513 = vmatprep.subr.mxu0 0.0
        %9514 = vmatpush2.msra.mxu0 0.0
        %9515 = vmatprep.mubr.f32.mxu0 0.0
        %9516 = vmatmul.mubr.f32.gmra.mxu0 %v6930
        %v9517 = vpop.f32.mrf.mxu0
        %v9518 = vadd.f32 0.0, %v9517
        %v9519 = vpop.f32.mrf.mxu0
        %9520 = vdwg.mxu0
        %9521 = vmatprep.subr.mxu0 0.0
        %9522 = vmatpush1.msra.mxu0 %v6513
        %9523 = vmatprep.subr.mxu0 0.0
        %9524 = vmatpush1.msra.mxu0 %v6512
        %9525 = vmatprep.subr.mxu0 0.0
        %9526 = vmatpush1.msra.mxu0 %v6511
        %9527 = vmatprep.subr.mxu0 0.0
        %9528 = vmatpush1.msra.mxu0 %v6510
        %9529 = vmatprep.subr.mxu0 0.0
        %9530 = vmatpush1.msra.mxu0 %v6509
        %9531 = vmatprep.subr.mxu0 0.0
        %9532 = vmatpush1.msra.mxu0 %v6508
        %9533 = vmatprep.subr.mxu0 0.0
        %9534 = vmatpush1.msra.mxu0 %v6507
        %9535 = vmatprep.subr.mxu0 0.0
        %9536 = vmatpush1.msra.mxu0 %v6506
        %9537 = vmatprep.subr.mxu0 0.0
        %9538 = vmatpush1.msra.mxu0 %v6505
        %9539 = vmatprep.subr.mxu0 0.0
        %9540 = vmatpush1.msra.mxu0 %v6504
        %9541 = vmatprep.subr.mxu0 0.0
        %9542 = vmatpush1.msra.mxu0 %v6503
        %9543 = vmatprep.subr.mxu0 0.0
        %9544 = vmatpush1.msra.mxu0 %v6502
        %9545 = vmatprep.subr.mxu0 0.0
        %9546 = vmatpush1.msra.mxu0 %v6501
        %9547 = vmatprep.subr.mxu0 0.0
        %9548 = vmatpush1.msra.mxu0 %v6500
        %9549 = vmatprep.subr.mxu0 0.0
        %9550 = vmatpush1.msra.mxu0 %v6499
        %9551 = vmatprep.subr.mxu0 0.0
        %9552 = vmatpush1.msra.mxu0 %v6498
        %9553 = vmatprep.subr.mxu0 0.0
        %9554 = vmatpush2.msra.mxu0 0.0
        %9555 = vmatprep.subr.mxu0 0.0
        %9556 = vmatpush2.msra.mxu0 0.0
        %9557 = vmatprep.subr.mxu0 0.0
        %9558 = vmatpush2.msra.mxu0 0.0
        %9559 = vmatprep.subr.mxu0 0.0
        %9560 = vmatpush2.msra.mxu0 0.0
        %9561 = vmatprep.subr.mxu0 0.0
        %9562 = vmatpush2.msra.mxu0 0.0
        %9563 = vmatprep.subr.mxu0 0.0
        %9564 = vmatpush2.msra.mxu0 0.0
        %9565 = vmatprep.subr.mxu0 0.0
        %9566 = vmatpush2.msra.mxu0 0.0
        %9567 = vmatprep.subr.mxu0 0.0
        %9568 = vmatpush2.msra.mxu0 0.0
        %9569 = vmatprep.subr.mxu0 0.0
        %9570 = vmatpush2.msra.mxu0 0.0
        %9571 = vmatprep.subr.mxu0 0.0
        %9572 = vmatpush2.msra.mxu0 0.0
        %9573 = vmatprep.subr.mxu0 0.0
        %9574 = vmatpush2.msra.mxu0 0.0
        %9575 = vmatprep.subr.mxu0 0.0
        %9576 = vmatpush2.msra.mxu0 0.0
        %9577 = vmatprep.subr.mxu0 0.0
        %9578 = vmatpush2.msra.mxu0 0.0
        %9579 = vmatprep.subr.mxu0 0.0
        %9580 = vmatpush2.msra.mxu0 0.0
        %9581 = vmatprep.subr.mxu0 0.0
        %9582 = vmatpush2.msra.mxu0 0.0
        %9583 = vmatprep.subr.mxu0 0.0
        %9584 = vmatpush2.msra.mxu0 0.0
        %9585 = vmatprep.mubr.f32.mxu0 0.0
        %9586 = vmatmul.mubr.f32.gmra.mxu0 %v6930
        %v9587 = vpop.f32.mrf.mxu0
        %v9588 = vadd.f32 0.0, %v9587
        %v9589 = vpop.f32.mrf.mxu0
        %9590 = vdwg.mxu0
        %9591 = vmatprep.subr.mxu0 0.0
        %9592 = vmatpush1.msra.mxu0 %v6529
        %9593 = vmatprep.subr.mxu0 0.0
        %9594 = vmatpush1.msra.mxu0 %v6528
        %9595 = vmatprep.subr.mxu0 0.0
        %9596 = vmatpush1.msra.mxu0 %v6527
        %9597 = vmatprep.subr.mxu0 0.0
        %9598 = vmatpush1.msra.mxu0 %v6526
        %9599 = vmatprep.subr.mxu0 0.0
        %9600 = vmatpush1.msra.mxu0 %v6525
        %9601 = vmatprep.subr.mxu0 0.0
        %9602 = vmatpush1.msra.mxu0 %v6524
        %9603 = vmatprep.subr.mxu0 0.0
        %9604 = vmatpush1.msra.mxu0 %v6523
        %9605 = vmatprep.subr.mxu0 0.0
        %9606 = vmatpush1.msra.mxu0 %v6522
        %9607 = vmatprep.subr.mxu0 0.0
        %9608 = vmatpush1.msra.mxu0 %v6521
        %9609 = vmatprep.subr.mxu0 0.0
        %9610 = vmatpush1.msra.mxu0 %v6520
        %9611 = vmatprep.subr.mxu0 0.0
        %9612 = vmatpush1.msra.mxu0 %v6519
        %9613 = vmatprep.subr.mxu0 0.0
        %9614 = vmatpush1.msra.mxu0 %v6518
        %9615 = vmatprep.subr.mxu0 0.0
        %9616 = vmatpush1.msra.mxu0 %v6517
        %9617 = vmatprep.subr.mxu0 0.0
        %9618 = vmatpush1.msra.mxu0 %v6516
        %9619 = vmatprep.subr.mxu0 0.0
        %9620 = vmatpush1.msra.mxu0 %v6515
        %9621 = vmatprep.subr.mxu0 0.0
        %9622 = vmatpush1.msra.mxu0 %v6514
        %9623 = vmatprep.subr.mxu0 0.0
        %9624 = vmatpush2.msra.mxu0 0.0
        %9625 = vmatprep.subr.mxu0 0.0
        %9626 = vmatpush2.msra.mxu0 0.0
        %9627 = vmatprep.subr.mxu0 0.0
        %9628 = vmatpush2.msra.mxu0 0.0
        %9629 = vmatprep.subr.mxu0 0.0
        %9630 = vmatpush2.msra.mxu0 0.0
        %9631 = vmatprep.subr.mxu0 0.0
        %9632 = vmatpush2.msra.mxu0 0.0
        %9633 = vmatprep.subr.mxu0 0.0
        %9634 = vmatpush2.msra.mxu0 0.0
        %9635 = vmatprep.subr.mxu0 0.0
        %9636 = vmatpush2.msra.mxu0 0.0
        %9637 = vmatprep.subr.mxu0 0.0
        %9638 = vmatpush2.msra.mxu0 0.0
        %9639 = vmatprep.subr.mxu0 0.0
        %9640 = vmatpush2.msra.mxu0 0.0
        %9641 = vmatprep.subr.mxu0 0.0
        %9642 = vmatpush2.msra.mxu0 0.0
        %9643 = vmatprep.subr.mxu0 0.0
        %9644 = vmatpush2.msra.mxu0 0.0
        %9645 = vmatprep.subr.mxu0 0.0
        %9646 = vmatpush2.msra.mxu0 0.0
        %9647 = vmatprep.subr.mxu0 0.0
        %9648 = vmatpush2.msra.mxu0 0.0
        %9649 = vmatprep.subr.mxu0 0.0
        %9650 = vmatpush2.msra.mxu0 0.0
        %9651 = vmatprep.subr.mxu0 0.0
        %9652 = vmatpush2.msra.mxu0 0.0
        %9653 = vmatprep.subr.mxu0 0.0
        %9654 = vmatpush2.msra.mxu0 0.0
        %9655 = vmatprep.mubr.f32.mxu0 0.0
        %9656 = vmatmul.mubr.f32.gmra.mxu0 %v6930
        %v9657 = vpop.f32.mrf.mxu0
        %v9658 = vadd.f32 0.0, %v9657
        %v9659 = vpop.f32.mrf.mxu0
        %9660 = vdwg.mxu0
        %9661 = vmatprep.subr.mxu0 0.0
        %9662 = vmatpush1.msra.mxu0 %v6545
        %9663 = vmatprep.subr.mxu0 0.0
        %9664 = vmatpush1.msra.mxu0 %v6544
        %9665 = vmatprep.subr.mxu0 0.0
        %9666 = vmatpush1.msra.mxu0 %v6543
        %9667 = vmatprep.subr.mxu0 0.0
        %9668 = vmatpush1.msra.mxu0 %v6542
        %9669 = vmatprep.subr.mxu0 0.0
        %9670 = vmatpush1.msra.mxu0 %v6541
        %9671 = vmatprep.subr.mxu0 0.0
        %9672 = vmatpush1.msra.mxu0 %v6540
        %9673 = vmatprep.subr.mxu0 0.0
        %9674 = vmatpush1.msra.mxu0 %v6539
        %9675 = vmatprep.subr.mxu0 0.0
        %9676 = vmatpush1.msra.mxu0 %v6538
        %9677 = vmatprep.subr.mxu0 0.0
        %9678 = vmatpush1.msra.mxu0 %v6537
        %9679 = vmatprep.subr.mxu0 0.0
        %9680 = vmatpush1.msra.mxu0 %v6536
        %9681 = vmatprep.subr.mxu0 0.0
        %9682 = vmatpush1.msra.mxu0 %v6535
        %9683 = vmatprep.subr.mxu0 0.0
        %9684 = vmatpush1.msra.mxu0 %v6534
        %9685 = vmatprep.subr.mxu0 0.0
        %9686 = vmatpush1.msra.mxu0 %v6533
        %9687 = vmatprep.subr.mxu0 0.0
        %9688 = vmatpush1.msra.mxu0 %v6532
        %9689 = vmatprep.subr.mxu0 0.0
        %9690 = vmatpush1.msra.mxu0 %v6531
        %9691 = vmatprep.subr.mxu0 0.0
        %9692 = vmatpush1.msra.mxu0 %v6530
        %9693 = vmatprep.subr.mxu0 0.0
        %9694 = vmatpush2.msra.mxu0 0.0
        %9695 = vmatprep.subr.mxu0 0.0
        %9696 = vmatpush2.msra.mxu0 0.0
        %9697 = vmatprep.subr.mxu0 0.0
        %9698 = vmatpush2.msra.mxu0 0.0
        %9699 = vmatprep.subr.mxu0 0.0
        %9700 = vmatpush2.msra.mxu0 0.0
        %9701 = vmatprep.subr.mxu0 0.0
        %9702 = vmatpush2.msra.mxu0 0.0
        %9703 = vmatprep.subr.mxu0 0.0
        %9704 = vmatpush2.msra.mxu0 0.0
        %9705 = vmatprep.subr.mxu0 0.0
        %9706 = vmatpush2.msra.mxu0 0.0
        %9707 = vmatprep.subr.mxu0 0.0
        %9708 = vmatpush2.msra.mxu0 0.0
        %9709 = vmatprep.subr.mxu0 0.0
        %9710 = vmatpush2.msra.mxu0 0.0
        %9711 = vmatprep.subr.mxu0 0.0
        %9712 = vmatpush2.msra.mxu0 0.0
        %9713 = vmatprep.subr.mxu0 0.0
        %9714 = vmatpush2.msra.mxu0 0.0
        %9715 = vmatprep.subr.mxu0 0.0
        %9716 = vmatpush2.msra.mxu0 0.0
        %9717 = vmatprep.subr.mxu0 0.0
        %9718 = vmatpush2.msra.mxu0 0.0
        %9719 = vmatprep.subr.mxu0 0.0
        %9720 = vmatpush2.msra.mxu0 0.0
        %9721 = vmatprep.subr.mxu0 0.0
        %9722 = vmatpush2.msra.mxu0 0.0
        %9723 = vmatprep.subr.mxu0 0.0
        %9724 = vmatpush2.msra.mxu0 0.0
        %9725 = vmatprep.mubr.f32.mxu0 0.0
        %9726 = vmatmul.mubr.f32.gmra.mxu0 %v6930
        %v9727 = vpop.f32.mrf.mxu0
        %v9728 = vadd.f32 0.0, %v9727
        %v9729 = vpop.f32.mrf.mxu0
        %9730 = vdwg.mxu0
        %9731 = vmatprep.subr.mxu0 0.0
        %9732 = vmatpush1.msra.mxu0 %v6561
        %9733 = vmatprep.subr.mxu0 0.0
        %9734 = vmatpush1.msra.mxu0 %v6560
        %9735 = vmatprep.subr.mxu0 0.0
        %9736 = vmatpush1.msra.mxu0 %v6559
        %9737 = vmatprep.subr.mxu0 0.0
        %9738 = vmatpush1.msra.mxu0 %v6558
        %9739 = vmatprep.subr.mxu0 0.0
        %9740 = vmatpush1.msra.mxu0 %v6557
        %9741 = vmatprep.subr.mxu0 0.0
        %9742 = vmatpush1.msra.mxu0 %v6556
        %9743 = vmatprep.subr.mxu0 0.0
        %9744 = vmatpush1.msra.mxu0 %v6555
        %9745 = vmatprep.subr.mxu0 0.0
        %9746 = vmatpush1.msra.mxu0 %v6554
        %9747 = vmatprep.subr.mxu0 0.0
        %9748 = vmatpush1.msra.mxu0 %v6553
        %9749 = vmatprep.subr.mxu0 0.0
        %9750 = vmatpush1.msra.mxu0 %v6552
        %9751 = vmatprep.subr.mxu0 0.0
        %9752 = vmatpush1.msra.mxu0 %v6551
        %9753 = vmatprep.subr.mxu0 0.0
        %9754 = vmatpush1.msra.mxu0 %v6550
        %9755 = vmatprep.subr.mxu0 0.0
        %9756 = vmatpush1.msra.mxu0 %v6549
        %9757 = vmatprep.subr.mxu0 0.0
        %9758 = vmatpush1.msra.mxu0 %v6548
        %9759 = vmatprep.subr.mxu0 0.0
        %9760 = vmatpush1.msra.mxu0 %v6547
        %9761 = vmatprep.subr.mxu0 0.0
        %9762 = vmatpush1.msra.mxu0 %v6546
        %9763 = vmatprep.subr.mxu0 0.0
        %9764 = vmatpush2.msra.mxu0 0.0
        %9765 = vmatprep.subr.mxu0 0.0
        %9766 = vmatpush2.msra.mxu0 0.0
        %9767 = vmatprep.subr.mxu0 0.0
        %9768 = vmatpush2.msra.mxu0 0.0
        %9769 = vmatprep.subr.mxu0 0.0
        %9770 = vmatpush2.msra.mxu0 0.0
        %9771 = vmatprep.subr.mxu0 0.0
        %9772 = vmatpush2.msra.mxu0 0.0
        %9773 = vmatprep.subr.mxu0 0.0
        %9774 = vmatpush2.msra.mxu0 0.0
        %9775 = vmatprep.subr.mxu0 0.0
        %9776 = vmatpush2.msra.mxu0 0.0
        %9777 = vmatprep.subr.mxu0 0.0
        %9778 = vmatpush2.msra.mxu0 0.0
        %9779 = vmatprep.subr.mxu0 0.0
        %9780 = vmatpush2.msra.mxu0 0.0
        %9781 = vmatprep.subr.mxu0 0.0
        %9782 = vmatpush2.msra.mxu0 0.0
        %9783 = vmatprep.subr.mxu0 0.0
        %9784 = vmatpush2.msra.mxu0 0.0
        %9785 = vmatprep.subr.mxu0 0.0
        %9786 = vmatpush2.msra.mxu0 0.0
        %9787 = vmatprep.subr.mxu0 0.0
        %9788 = vmatpush2.msra.mxu0 0.0
        %9789 = vmatprep.subr.mxu0 0.0
        %9790 = vmatpush2.msra.mxu0 0.0
        %9791 = vmatprep.subr.mxu0 0.0
        %9792 = vmatpush2.msra.mxu0 0.0
        %9793 = vmatprep.subr.mxu0 0.0
        %9794 = vmatpush2.msra.mxu0 0.0
        %9795 = vmatprep.mubr.f32.mxu0 0.0
        %9796 = vmatmul.mubr.f32.gmra.mxu0 %v6930
        %v9797 = vpop.f32.mrf.mxu0
        %v9798 = vadd.f32 0.0, %v9797
        %v9799 = vpop.f32.mrf.mxu0
        %9800 = vdwg.mxu0
        %9801 = vmatprep.subr.mxu0 0.0
        %9802 = vmatpush1.msra.mxu0 %v6577
        %9803 = vmatprep.subr.mxu0 0.0
        %9804 = vmatpush1.msra.mxu0 %v6576
        %9805 = vmatprep.subr.mxu0 0.0
        %9806 = vmatpush1.msra.mxu0 %v6575
        %9807 = vmatprep.subr.mxu0 0.0
        %9808 = vmatpush1.msra.mxu0 %v6574
        %9809 = vmatprep.subr.mxu0 0.0
        %9810 = vmatpush1.msra.mxu0 %v6573
        %9811 = vmatprep.subr.mxu0 0.0
        %9812 = vmatpush1.msra.mxu0 %v6572
        %9813 = vmatprep.subr.mxu0 0.0
        %9814 = vmatpush1.msra.mxu0 %v6571
        %9815 = vmatprep.subr.mxu0 0.0
        %9816 = vmatpush1.msra.mxu0 %v6570
        %9817 = vmatprep.subr.mxu0 0.0
        %9818 = vmatpush1.msra.mxu0 %v6569
        %9819 = vmatprep.subr.mxu0 0.0
        %9820 = vmatpush1.msra.mxu0 %v6568
        %9821 = vmatprep.subr.mxu0 0.0
        %9822 = vmatpush1.msra.mxu0 %v6567
        %9823 = vmatprep.subr.mxu0 0.0
        %9824 = vmatpush1.msra.mxu0 %v6566
        %9825 = vmatprep.subr.mxu0 0.0
        %9826 = vmatpush1.msra.mxu0 %v6565
        %9827 = vmatprep.subr.mxu0 0.0
        %9828 = vmatpush1.msra.mxu0 %v6564
        %9829 = vmatprep.subr.mxu0 0.0
        %9830 = vmatpush1.msra.mxu0 %v6563
        %9831 = vmatprep.subr.mxu0 0.0
        %9832 = vmatpush1.msra.mxu0 %v6562
        %9833 = vmatprep.subr.mxu0 0.0
        %9834 = vmatpush2.msra.mxu0 0.0
        %9835 = vmatprep.subr.mxu0 0.0
        %9836 = vmatpush2.msra.mxu0 0.0
        %9837 = vmatprep.subr.mxu0 0.0
        %9838 = vmatpush2.msra.mxu0 0.0
        %9839 = vmatprep.subr.mxu0 0.0
        %9840 = vmatpush2.msra.mxu0 0.0
        %9841 = vmatprep.subr.mxu0 0.0
        %9842 = vmatpush2.msra.mxu0 0.0
        %9843 = vmatprep.subr.mxu0 0.0
        %9844 = vmatpush2.msra.mxu0 0.0
        %9845 = vmatprep.subr.mxu0 0.0
        %9846 = vmatpush2.msra.mxu0 0.0
        %9847 = vmatprep.subr.mxu0 0.0
        %9848 = vmatpush2.msra.mxu0 0.0
        %9849 = vmatprep.subr.mxu0 0.0
        %9850 = vmatpush2.msra.mxu0 0.0
        %9851 = vmatprep.subr.mxu0 0.0
        %9852 = vmatpush2.msra.mxu0 0.0
        %9853 = vmatprep.subr.mxu0 0.0
        %9854 = vmatpush2.msra.mxu0 0.0
        %9855 = vmatprep.subr.mxu0 0.0
        %9856 = vmatpush2.msra.mxu0 0.0
        %9857 = vmatprep.subr.mxu0 0.0
        %9858 = vmatpush2.msra.mxu0 0.0
        %9859 = vmatprep.subr.mxu0 0.0
        %9860 = vmatpush2.msra.mxu0 0.0
        %9861 = vmatprep.subr.mxu0 0.0
        %9862 = vmatpush2.msra.mxu0 0.0
        %9863 = vmatprep.subr.mxu0 0.0
        %9864 = vmatpush2.msra.mxu0 0.0
        %9865 = vmatprep.mubr.f32.mxu0 0.0
        %9866 = vmatmul.mubr.f32.gmra.mxu0 %v6930
        %v9867 = vpop.f32.mrf.mxu0
        %v9868 = vadd.f32 0.0, %v9867
        %v9869 = vpop.f32.mrf.mxu0
        %9870 = vdwg.mxu0
        %9871 = vmatprep.subr.mxu0 0.0
        %9872 = vmatpush1.msra.mxu0 %v6593
        %9873 = vmatprep.subr.mxu0 0.0
        %9874 = vmatpush1.msra.mxu0 %v6592
        %9875 = vmatprep.subr.mxu0 0.0
        %9876 = vmatpush1.msra.mxu0 %v6591
        %9877 = vmatprep.subr.mxu0 0.0
        %9878 = vmatpush1.msra.mxu0 %v6590
        %9879 = vmatprep.subr.mxu0 0.0
        %9880 = vmatpush1.msra.mxu0 %v6589
        %9881 = vmatprep.subr.mxu0 0.0
        %9882 = vmatpush1.msra.mxu0 %v6588
        %9883 = vmatprep.subr.mxu0 0.0
        %9884 = vmatpush1.msra.mxu0 %v6587
        %9885 = vmatprep.subr.mxu0 0.0
        %9886 = vmatpush1.msra.mxu0 %v6586
        %9887 = vmatprep.subr.mxu0 0.0
        %9888 = vmatpush1.msra.mxu0 %v6585
        %9889 = vmatprep.subr.mxu0 0.0
        %9890 = vmatpush1.msra.mxu0 %v6584
        %9891 = vmatprep.subr.mxu0 0.0
        %9892 = vmatpush1.msra.mxu0 %v6583
        %9893 = vmatprep.subr.mxu0 0.0
        %9894 = vmatpush1.msra.mxu0 %v6582
        %9895 = vmatprep.subr.mxu0 0.0
        %9896 = vmatpush1.msra.mxu0 %v6581
        %9897 = vmatprep.subr.mxu0 0.0
        %9898 = vmatpush1.msra.mxu0 %v6580
        %9899 = vmatprep.subr.mxu0 0.0
        %9900 = vmatpush1.msra.mxu0 %v6579
        %9901 = vmatprep.subr.mxu0 0.0
        %9902 = vmatpush1.msra.mxu0 %v6578
        %9903 = vmatprep.subr.mxu0 0.0
        %9904 = vmatpush2.msra.mxu0 0.0
        %9905 = vmatprep.subr.mxu0 0.0
        %9906 = vmatpush2.msra.mxu0 0.0
        %9907 = vmatprep.subr.mxu0 0.0
        %9908 = vmatpush2.msra.mxu0 0.0
        %9909 = vmatprep.subr.mxu0 0.0
        %9910 = vmatpush2.msra.mxu0 0.0
        %9911 = vmatprep.subr.mxu0 0.0
        %9912 = vmatpush2.msra.mxu0 0.0
        %9913 = vmatprep.subr.mxu0 0.0
        %9914 = vmatpush2.msra.mxu0 0.0
        %9915 = vmatprep.subr.mxu0 0.0
        %9916 = vmatpush2.msra.mxu0 0.0
        %9917 = vmatprep.subr.mxu0 0.0
        %9918 = vmatpush2.msra.mxu0 0.0
        %9919 = vmatprep.subr.mxu0 0.0
        %9920 = vmatpush2.msra.mxu0 0.0
        %9921 = vmatprep.subr.mxu0 0.0
        %9922 = vmatpush2.msra.mxu0 0.0
        %9923 = vmatprep.subr.mxu0 0.0
        %9924 = vmatpush2.msra.mxu0 0.0
        %9925 = vmatprep.subr.mxu0 0.0
        %9926 = vmatpush2.msra.mxu0 0.0
        %9927 = vmatprep.subr.mxu0 0.0
        %9928 = vmatpush2.msra.mxu0 0.0
        %9929 = vmatprep.subr.mxu0 0.0
        %9930 = vmatpush2.msra.mxu0 0.0
        %9931 = vmatprep.subr.mxu0 0.0
        %9932 = vmatpush2.msra.mxu0 0.0
        %9933 = vmatprep.subr.mxu0 0.0
        %9934 = vmatpush2.msra.mxu0 0.0
        %9935 = vmatprep.mubr.f32.mxu0 0.0
        %9936 = vmatmul.mubr.f32.gmra.mxu0 %v6930
        %v9937 = vpop.f32.mrf.mxu0
        %v9938 = vadd.f32 0.0, %v9937
        %v9939 = vpop.f32.mrf.mxu0
        %9940 = vdwg.mxu0
        %9941 = vmatprep.subr.mxu0 0.0
        %9942 = vmatpush1.msra.mxu0 %v6609
        %9943 = vmatprep.subr.mxu0 0.0
        %9944 = vmatpush1.msra.mxu0 %v6608
        %9945 = vmatprep.subr.mxu0 0.0
        %9946 = vmatpush1.msra.mxu0 %v6607
        %9947 = vmatprep.subr.mxu0 0.0
        %9948 = vmatpush1.msra.mxu0 %v6606
        %9949 = vmatprep.subr.mxu0 0.0
        %9950 = vmatpush1.msra.mxu0 %v6605
        %9951 = vmatprep.subr.mxu0 0.0
        %9952 = vmatpush1.msra.mxu0 %v6604
        %9953 = vmatprep.subr.mxu0 0.0
        %9954 = vmatpush1.msra.mxu0 %v6603
        %9955 = vmatprep.subr.mxu0 0.0
        %9956 = vmatpush1.msra.mxu0 %v6602
        %9957 = vmatprep.subr.mxu0 0.0
        %9958 = vmatpush1.msra.mxu0 %v6601
        %9959 = vmatprep.subr.mxu0 0.0
        %9960 = vmatpush1.msra.mxu0 %v6600
        %9961 = vmatprep.subr.mxu0 0.0
        %9962 = vmatpush1.msra.mxu0 %v6599
        %9963 = vmatprep.subr.mxu0 0.0
        %9964 = vmatpush1.msra.mxu0 %v6598
        %9965 = vmatprep.subr.mxu0 0.0
        %9966 = vmatpush1.msra.mxu0 %v6597
        %9967 = vmatprep.subr.mxu0 0.0
        %9968 = vmatpush1.msra.mxu0 %v6596
        %9969 = vmatprep.subr.mxu0 0.0
        %9970 = vmatpush1.msra.mxu0 %v6595
        %9971 = vmatprep.subr.mxu0 0.0
        %9972 = vmatpush1.msra.mxu0 %v6594
        %9973 = vmatprep.subr.mxu0 0.0
        %9974 = vmatpush2.msra.mxu0 0.0
        %9975 = vmatprep.subr.mxu0 0.0
        %9976 = vmatpush2.msra.mxu0 0.0
        %9977 = vmatprep.subr.mxu0 0.0
        %9978 = vmatpush2.msra.mxu0 0.0
        %9979 = vmatprep.subr.mxu0 0.0
        %9980 = vmatpush2.msra.mxu0 0.0
        %9981 = vmatprep.subr.mxu0 0.0
        %9982 = vmatpush2.msra.mxu0 0.0
        %9983 = vmatprep.subr.mxu0 0.0
        %9984 = vmatpush2.msra.mxu0 0.0
        %9985 = vmatprep.subr.mxu0 0.0
        %9986 = vmatpush2.msra.mxu0 0.0
        %9987 = vmatprep.subr.mxu0 0.0
        %9988 = vmatpush2.msra.mxu0 0.0
        %9989 = vmatprep.subr.mxu0 0.0
        %9990 = vmatpush2.msra.mxu0 0.0
        %9991 = vmatprep.subr.mxu0 0.0
        %9992 = vmatpush2.msra.mxu0 0.0
        %9993 = vmatprep.subr.mxu0 0.0
        %9994 = vmatpush2.msra.mxu0 0.0
        %9995 = vmatprep.subr.mxu0 0.0
        %9996 = vmatpush2.msra.mxu0 0.0
        %9997 = vmatprep.subr.mxu0 0.0
        %9998 = vmatpush2.msra.mxu0 0.0
        %9999 = vmatprep.subr.mxu0 0.0
        %10000 = vmatpush2.msra.mxu0 0.0
        %10001 = vmatprep.subr.mxu0 0.0
        %10002 = vmatpush2.msra.mxu0 0.0
        %10003 = vmatprep.subr.mxu0 0.0
        %10004 = vmatpush2.msra.mxu0 0.0
        %10005 = vmatprep.mubr.f32.mxu0 0.0
        %10006 = vmatmul.mubr.f32.gmra.mxu0 %v6930
        %v10007 = vpop.f32.mrf.mxu0
        %v10008 = vadd.f32 0.0, %v10007
        %v10009 = vpop.f32.mrf.mxu0
        %10010 = vdwg.mxu0
        %10011 = vmatprep.subr.mxu0 0.0
        %10012 = vmatpush1.msra.mxu0 %v6625
        %10013 = vmatprep.subr.mxu0 0.0
        %10014 = vmatpush1.msra.mxu0 %v6624
        %10015 = vmatprep.subr.mxu0 0.0
        %10016 = vmatpush1.msra.mxu0 %v6623
        %10017 = vmatprep.subr.mxu0 0.0
        %10018 = vmatpush1.msra.mxu0 %v6622
        %10019 = vmatprep.subr.mxu0 0.0
        %10020 = vmatpush1.msra.mxu0 %v6621
        %10021 = vmatprep.subr.mxu0 0.0
        %10022 = vmatpush1.msra.mxu0 %v6620
        %10023 = vmatprep.subr.mxu0 0.0
        %10024 = vmatpush1.msra.mxu0 %v6619
        %10025 = vmatprep.subr.mxu0 0.0
        %10026 = vmatpush1.msra.mxu0 %v6618
        %10027 = vmatprep.subr.mxu0 0.0
        %10028 = vmatpush1.msra.mxu0 %v6617
        %10029 = vmatprep.subr.mxu0 0.0
        %10030 = vmatpush1.msra.mxu0 %v6616
        %10031 = vmatprep.subr.mxu0 0.0
        %10032 = vmatpush1.msra.mxu0 %v6615
        %10033 = vmatprep.subr.mxu0 0.0
        %10034 = vmatpush1.msra.mxu0 %v6614
        %10035 = vmatprep.subr.mxu0 0.0
        %10036 = vmatpush1.msra.mxu0 %v6613
        %10037 = vmatprep.subr.mxu0 0.0
        %10038 = vmatpush1.msra.mxu0 %v6612
        %10039 = vmatprep.subr.mxu0 0.0
        %10040 = vmatpush1.msra.mxu0 %v6611
        %10041 = vmatprep.subr.mxu0 0.0
        %10042 = vmatpush1.msra.mxu0 %v6610
        %10043 = vmatprep.subr.mxu0 0.0
        %10044 = vmatpush2.msra.mxu0 0.0
        %10045 = vmatprep.subr.mxu0 0.0
        %10046 = vmatpush2.msra.mxu0 0.0
        %10047 = vmatprep.subr.mxu0 0.0
        %10048 = vmatpush2.msra.mxu0 0.0
        %10049 = vmatprep.subr.mxu0 0.0
        %10050 = vmatpush2.msra.mxu0 0.0
        %10051 = vmatprep.subr.mxu0 0.0
        %10052 = vmatpush2.msra.mxu0 0.0
        %10053 = vmatprep.subr.mxu0 0.0
        %10054 = vmatpush2.msra.mxu0 0.0
        %10055 = vmatprep.subr.mxu0 0.0
        %10056 = vmatpush2.msra.mxu0 0.0
        %10057 = vmatprep.subr.mxu0 0.0
        %10058 = vmatpush2.msra.mxu0 0.0
        %10059 = vmatprep.subr.mxu0 0.0
        %10060 = vmatpush2.msra.mxu0 0.0
        %10061 = vmatprep.subr.mxu0 0.0
        %10062 = vmatpush2.msra.mxu0 0.0
        %10063 = vmatprep.subr.mxu0 0.0
        %10064 = vmatpush2.msra.mxu0 0.0
        %10065 = vmatprep.subr.mxu0 0.0
        %10066 = vmatpush2.msra.mxu0 0.0
        %10067 = vmatprep.subr.mxu0 0.0
        %10068 = vmatpush2.msra.mxu0 0.0
        %10069 = vmatprep.subr.mxu0 0.0
        %10070 = vmatpush2.msra.mxu0 0.0
        %10071 = vmatprep.subr.mxu0 0.0
        %10072 = vmatpush2.msra.mxu0 0.0
        %10073 = vmatprep.subr.mxu0 0.0
        %10074 = vmatpush2.msra.mxu0 0.0
        %10075 = vmatprep.mubr.f32.mxu0 0.0
        %10076 = vmatmul.mubr.f32.gmra.mxu0 %v6930
        %v10077 = vpop.f32.mrf.mxu0
        %v10078 = vadd.f32 0.0, %v10077
        %v10079 = vpop.f32.mrf.mxu0
        %10080 = vdwg.mxu0
        %10081 = vmatprep.subr.mxu0 0.0
        %10082 = vmatpush1.msra.mxu0 %v6641
        %10083 = vmatprep.subr.mxu0 0.0
        %10084 = vmatpush1.msra.mxu0 %v6640
        %10085 = vmatprep.subr.mxu0 0.0
        %10086 = vmatpush1.msra.mxu0 %v6639
        %10087 = vmatprep.subr.mxu0 0.0
        %10088 = vmatpush1.msra.mxu0 %v6638
        %10089 = vmatprep.subr.mxu0 0.0
        %10090 = vmatpush1.msra.mxu0 %v6637
        %10091 = vmatprep.subr.mxu0 0.0
        %10092 = vmatpush1.msra.mxu0 %v6636
        %10093 = vmatprep.subr.mxu0 0.0
        %10094 = vmatpush1.msra.mxu0 %v6635
        %10095 = vmatprep.subr.mxu0 0.0
        %10096 = vmatpush1.msra.mxu0 %v6634
        %10097 = vmatprep.subr.mxu0 0.0
        %10098 = vmatpush1.msra.mxu0 %v6633
        %10099 = vmatprep.subr.mxu0 0.0
        %10100 = vmatpush1.msra.mxu0 %v6632
        %10101 = vmatprep.subr.mxu0 0.0
        %10102 = vmatpush1.msra.mxu0 %v6631
        %10103 = vmatprep.subr.mxu0 0.0
        %10104 = vmatpush1.msra.mxu0 %v6630
        %10105 = vmatprep.subr.mxu0 0.0
        %10106 = vmatpush1.msra.mxu0 %v6629
        %10107 = vmatprep.subr.mxu0 0.0
        %10108 = vmatpush1.msra.mxu0 %v6628
        %10109 = vmatprep.subr.mxu0 0.0
        %10110 = vmatpush1.msra.mxu0 %v6627
        %10111 = vmatprep.subr.mxu0 0.0
        %10112 = vmatpush1.msra.mxu0 %v6626
        %10113 = vmatprep.subr.mxu0 0.0
        %10114 = vmatpush2.msra.mxu0 0.0
        %10115 = vmatprep.subr.mxu0 0.0
        %10116 = vmatpush2.msra.mxu0 0.0
        %10117 = vmatprep.subr.mxu0 0.0
        %10118 = vmatpush2.msra.mxu0 0.0
        %10119 = vmatprep.subr.mxu0 0.0
        %10120 = vmatpush2.msra.mxu0 0.0
        %10121 = vmatprep.subr.mxu0 0.0
        %10122 = vmatpush2.msra.mxu0 0.0
        %10123 = vmatprep.subr.mxu0 0.0
        %10124 = vmatpush2.msra.mxu0 0.0
        %10125 = vmatprep.subr.mxu0 0.0
        %10126 = vmatpush2.msra.mxu0 0.0
        %10127 = vmatprep.subr.mxu0 0.0
        %10128 = vmatpush2.msra.mxu0 0.0
        %10129 = vmatprep.subr.mxu0 0.0
        %10130 = vmatpush2.msra.mxu0 0.0
        %10131 = vmatprep.subr.mxu0 0.0
        %10132 = vmatpush2.msra.mxu0 0.0
        %10133 = vmatprep.subr.mxu0 0.0
        %10134 = vmatpush2.msra.mxu0 0.0
        %10135 = vmatprep.subr.mxu0 0.0
        %10136 = vmatpush2.msra.mxu0 0.0
        %10137 = vmatprep.subr.mxu0 0.0
        %10138 = vmatpush2.msra.mxu0 0.0
        %10139 = vmatprep.subr.mxu0 0.0
        %10140 = vmatpush2.msra.mxu0 0.0
        %10141 = vmatprep.subr.mxu0 0.0
        %10142 = vmatpush2.msra.mxu0 0.0
        %10143 = vmatprep.subr.mxu0 0.0
        %10144 = vmatpush2.msra.mxu0 0.0
        %10145 = vmatprep.mubr.f32.mxu0 0.0
        %10146 = vmatmul.mubr.f32.gmra.mxu0 %v6930
        %v10147 = vpop.f32.mrf.mxu0
        %v10148 = vadd.f32 0.0, %v10147
        %v10149 = vpop.f32.mrf.mxu0
        %10150 = vdwg.mxu0
        %10151 = vmatprep.subr.mxu0 0.0
        %10152 = vmatpush1.msra.mxu0 %v6657
        %10153 = vmatprep.subr.mxu0 0.0
        %10154 = vmatpush1.msra.mxu0 %v6656
        %10155 = vmatprep.subr.mxu0 0.0
        %10156 = vmatpush1.msra.mxu0 %v6655
        %10157 = vmatprep.subr.mxu0 0.0
        %10158 = vmatpush1.msra.mxu0 %v6654
        %10159 = vmatprep.subr.mxu0 0.0
        %10160 = vmatpush1.msra.mxu0 %v6653
        %10161 = vmatprep.subr.mxu0 0.0
        %10162 = vmatpush1.msra.mxu0 %v6652
        %10163 = vmatprep.subr.mxu0 0.0
        %10164 = vmatpush1.msra.mxu0 %v6651
        %10165 = vmatprep.subr.mxu0 0.0
        %10166 = vmatpush1.msra.mxu0 %v6650
        %10167 = vmatprep.subr.mxu0 0.0
        %10168 = vmatpush1.msra.mxu0 %v6649
        %10169 = vmatprep.subr.mxu0 0.0
        %10170 = vmatpush1.msra.mxu0 %v6648
        %10171 = vmatprep.subr.mxu0 0.0
        %10172 = vmatpush1.msra.mxu0 %v6647
        %10173 = vmatprep.subr.mxu0 0.0
        %10174 = vmatpush1.msra.mxu0 %v6646
        %10175 = vmatprep.subr.mxu0 0.0
        %10176 = vmatpush1.msra.mxu0 %v6645
        %10177 = vmatprep.subr.mxu0 0.0
        %10178 = vmatpush1.msra.mxu0 %v6644
        %10179 = vmatprep.subr.mxu0 0.0
        %10180 = vmatpush1.msra.mxu0 %v6643
        %10181 = vmatprep.subr.mxu0 0.0
        %10182 = vmatpush1.msra.mxu0 %v6642
        %10183 = vmatprep.subr.mxu0 0.0
        %10184 = vmatpush2.msra.mxu0 0.0
        %10185 = vmatprep.subr.mxu0 0.0
        %10186 = vmatpush2.msra.mxu0 0.0
        %10187 = vmatprep.subr.mxu0 0.0
        %10188 = vmatpush2.msra.mxu0 0.0
        %10189 = vmatprep.subr.mxu0 0.0
        %10190 = vmatpush2.msra.mxu0 0.0
        %10191 = vmatprep.subr.mxu0 0.0
        %10192 = vmatpush2.msra.mxu0 0.0
        %10193 = vmatprep.subr.mxu0 0.0
        %10194 = vmatpush2.msra.mxu0 0.0
        %10195 = vmatprep.subr.mxu0 0.0
        %10196 = vmatpush2.msra.mxu0 0.0
        %10197 = vmatprep.subr.mxu0 0.0
        %10198 = vmatpush2.msra.mxu0 0.0
        %10199 = vmatprep.subr.mxu0 0.0
        %10200 = vmatpush2.msra.mxu0 0.0
        %10201 = vmatprep.subr.mxu0 0.0
        %10202 = vmatpush2.msra.mxu0 0.0
        %10203 = vmatprep.subr.mxu0 0.0
        %10204 = vmatpush2.msra.mxu0 0.0
        %10205 = vmatprep.subr.mxu0 0.0
        %10206 = vmatpush2.msra.mxu0 0.0
        %10207 = vmatprep.subr.mxu0 0.0
        %10208 = vmatpush2.msra.mxu0 0.0
        %10209 = vmatprep.subr.mxu0 0.0
        %10210 = vmatpush2.msra.mxu0 0.0
        %10211 = vmatprep.subr.mxu0 0.0
        %10212 = vmatpush2.msra.mxu0 0.0
        %10213 = vmatprep.subr.mxu0 0.0
        %10214 = vmatpush2.msra.mxu0 0.0
        %10215 = vmatprep.mubr.f32.mxu0 0.0
        %10216 = vmatmul.mubr.f32.gmra.mxu0 %v6930
        %v10217 = vpop.f32.mrf.mxu0
        %v10218 = vadd.f32 0.0, %v10217
        %v10219 = vpop.f32.mrf.mxu0
        %10220 = vdwg.mxu0
        %10221 = vmatprep.subr.mxu0 0.0
        %10222 = vmatpush1.msra.mxu0 %v6673
        %10223 = vmatprep.subr.mxu0 0.0
        %10224 = vmatpush1.msra.mxu0 %v6672
        %10225 = vmatprep.subr.mxu0 0.0
        %10226 = vmatpush1.msra.mxu0 %v6671
        %10227 = vmatprep.subr.mxu0 0.0
        %10228 = vmatpush1.msra.mxu0 %v6670
        %10229 = vmatprep.subr.mxu0 0.0
        %10230 = vmatpush1.msra.mxu0 %v6669
        %10231 = vmatprep.subr.mxu0 0.0
        %10232 = vmatpush1.msra.mxu0 %v6668
        %10233 = vmatprep.subr.mxu0 0.0
        %10234 = vmatpush1.msra.mxu0 %v6667
        %10235 = vmatprep.subr.mxu0 0.0
        %10236 = vmatpush1.msra.mxu0 %v6666
        %10237 = vmatprep.subr.mxu0 0.0
        %10238 = vmatpush1.msra.mxu0 %v6665
        %10239 = vmatprep.subr.mxu0 0.0
        %10240 = vmatpush1.msra.mxu0 %v6664
        %10241 = vmatprep.subr.mxu0 0.0
        %10242 = vmatpush1.msra.mxu0 %v6663
        %10243 = vmatprep.subr.mxu0 0.0
        %10244 = vmatpush1.msra.mxu0 %v6662
        %10245 = vmatprep.subr.mxu0 0.0
        %10246 = vmatpush1.msra.mxu0 %v6661
        %10247 = vmatprep.subr.mxu0 0.0
        %10248 = vmatpush1.msra.mxu0 %v6660
        %10249 = vmatprep.subr.mxu0 0.0
        %10250 = vmatpush1.msra.mxu0 %v6659
        %10251 = vmatprep.subr.mxu0 0.0
        %10252 = vmatpush1.msra.mxu0 %v6658
        %10253 = vmatprep.subr.mxu0 0.0
        %10254 = vmatpush2.msra.mxu0 0.0
        %10255 = vmatprep.subr.mxu0 0.0
        %10256 = vmatpush2.msra.mxu0 0.0
        %10257 = vmatprep.subr.mxu0 0.0
        %10258 = vmatpush2.msra.mxu0 0.0
        %10259 = vmatprep.subr.mxu0 0.0
        %10260 = vmatpush2.msra.mxu0 0.0
        %10261 = vmatprep.subr.mxu0 0.0
        %10262 = vmatpush2.msra.mxu0 0.0
        %10263 = vmatprep.subr.mxu0 0.0
        %10264 = vmatpush2.msra.mxu0 0.0
        %10265 = vmatprep.subr.mxu0 0.0
        %10266 = vmatpush2.msra.mxu0 0.0
        %10267 = vmatprep.subr.mxu0 0.0
        %10268 = vmatpush2.msra.mxu0 0.0
        %10269 = vmatprep.subr.mxu0 0.0
        %10270 = vmatpush2.msra.mxu0 0.0
        %10271 = vmatprep.subr.mxu0 0.0
        %10272 = vmatpush2.msra.mxu0 0.0
        %10273 = vmatprep.subr.mxu0 0.0
        %10274 = vmatpush2.msra.mxu0 0.0
        %10275 = vmatprep.subr.mxu0 0.0
        %10276 = vmatpush2.msra.mxu0 0.0
        %10277 = vmatprep.subr.mxu0 0.0
        %10278 = vmatpush2.msra.mxu0 0.0
        %10279 = vmatprep.subr.mxu0 0.0
        %10280 = vmatpush2.msra.mxu0 0.0
        %10281 = vmatprep.subr.mxu0 0.0
        %10282 = vmatpush2.msra.mxu0 0.0
        %10283 = vmatprep.subr.mxu0 0.0
        %10284 = vmatpush2.msra.mxu0 0.0
        %10285 = vmatprep.mubr.f32.mxu0 0.0
        %10286 = vmatmul.mubr.f32.gmra.mxu0 %v6930
        %v10287 = vpop.f32.mrf.mxu0
        %v10288 = vadd.f32 0.0, %v10287
        %v10289 = vpop.f32.mrf.mxu0
        %10290 = vdwg.mxu0
        %10291 = vmatprep.subr.mxu0 0.0
        %10292 = vmatpush1.msra.mxu0 %v6689
        %10293 = vmatprep.subr.mxu0 0.0
        %10294 = vmatpush1.msra.mxu0 %v6688
        %10295 = vmatprep.subr.mxu0 0.0
        %10296 = vmatpush1.msra.mxu0 %v6687
        %10297 = vmatprep.subr.mxu0 0.0
        %10298 = vmatpush1.msra.mxu0 %v6686
        %10299 = vmatprep.subr.mxu0 0.0
        %10300 = vmatpush1.msra.mxu0 %v6685
        %10301 = vmatprep.subr.mxu0 0.0
        %10302 = vmatpush1.msra.mxu0 %v6684
        %10303 = vmatprep.subr.mxu0 0.0
        %10304 = vmatpush1.msra.mxu0 %v6683
        %10305 = vmatprep.subr.mxu0 0.0
        %10306 = vmatpush1.msra.mxu0 %v6682
        %10307 = vmatprep.subr.mxu0 0.0
        %10308 = vmatpush1.msra.mxu0 %v6681
        %10309 = vmatprep.subr.mxu0 0.0
        %10310 = vmatpush1.msra.mxu0 %v6680
        %10311 = vmatprep.subr.mxu0 0.0
        %10312 = vmatpush1.msra.mxu0 %v6679
        %10313 = vmatprep.subr.mxu0 0.0
        %10314 = vmatpush1.msra.mxu0 %v6678
        %10315 = vmatprep.subr.mxu0 0.0
        %10316 = vmatpush1.msra.mxu0 %v6677
        %10317 = vmatprep.subr.mxu0 0.0
        %10318 = vmatpush1.msra.mxu0 %v6676
        %10319 = vmatprep.subr.mxu0 0.0
        %10320 = vmatpush1.msra.mxu0 %v6675
        %10321 = vmatprep.subr.mxu0 0.0
        %10322 = vmatpush1.msra.mxu0 %v6674
        %10323 = vmatprep.subr.mxu0 0.0
        %10324 = vmatpush2.msra.mxu0 0.0
        %10325 = vmatprep.subr.mxu0 0.0
        %10326 = vmatpush2.msra.mxu0 0.0
        %10327 = vmatprep.subr.mxu0 0.0
        %10328 = vmatpush2.msra.mxu0 0.0
        %10329 = vmatprep.subr.mxu0 0.0
        %10330 = vmatpush2.msra.mxu0 0.0
        %10331 = vmatprep.subr.mxu0 0.0
        %10332 = vmatpush2.msra.mxu0 0.0
        %10333 = vmatprep.subr.mxu0 0.0
        %10334 = vmatpush2.msra.mxu0 0.0
        %10335 = vmatprep.subr.mxu0 0.0
        %10336 = vmatpush2.msra.mxu0 0.0
        %10337 = vmatprep.subr.mxu0 0.0
        %10338 = vmatpush2.msra.mxu0 0.0
        %10339 = vmatprep.subr.mxu0 0.0
        %10340 = vmatpush2.msra.mxu0 0.0
        %10341 = vmatprep.subr.mxu0 0.0
        %10342 = vmatpush2.msra.mxu0 0.0
        %10343 = vmatprep.subr.mxu0 0.0
        %10344 = vmatpush2.msra.mxu0 0.0
        %10345 = vmatprep.subr.mxu0 0.0
        %10346 = vmatpush2.msra.mxu0 0.0
        %10347 = vmatprep.subr.mxu0 0.0
        %10348 = vmatpush2.msra.mxu0 0.0
        %10349 = vmatprep.subr.mxu0 0.0
        %10350 = vmatpush2.msra.mxu0 0.0
        %10351 = vmatprep.subr.mxu0 0.0
        %10352 = vmatpush2.msra.mxu0 0.0
        %10353 = vmatprep.subr.mxu0 0.0
        %10354 = vmatpush2.msra.mxu0 0.0
        %10355 = vmatprep.mubr.f32.mxu0 0.0
        %10356 = vmatmul.mubr.f32.gmra.mxu0 %v6930
        %v10357 = vpop.f32.mrf.mxu0
        %v10358 = vadd.f32 0.0, %v10357
        %v10359 = vpop.f32.mrf.mxu0
        %10360 = vdwg.mxu0
        %10361 = vmatprep.subr.mxu0 0.0
        %10362 = vmatpush1.msra.mxu0 %v6705
        %10363 = vmatprep.subr.mxu0 0.0
        %10364 = vmatpush1.msra.mxu0 %v6704
        %10365 = vmatprep.subr.mxu0 0.0
        %10366 = vmatpush1.msra.mxu0 %v6703
        %10367 = vmatprep.subr.mxu0 0.0
        %10368 = vmatpush1.msra.mxu0 %v6702
        %10369 = vmatprep.subr.mxu0 0.0
        %10370 = vmatpush1.msra.mxu0 %v6701
        %10371 = vmatprep.subr.mxu0 0.0
        %10372 = vmatpush1.msra.mxu0 %v6700
        %10373 = vmatprep.subr.mxu0 0.0
        %10374 = vmatpush1.msra.mxu0 %v6699
        %10375 = vmatprep.subr.mxu0 0.0
        %10376 = vmatpush1.msra.mxu0 %v6698
        %10377 = vmatprep.subr.mxu0 0.0
        %10378 = vmatpush1.msra.mxu0 %v6697
        %10379 = vmatprep.subr.mxu0 0.0
        %10380 = vmatpush1.msra.mxu0 %v6696
        %10381 = vmatprep.subr.mxu0 0.0
        %10382 = vmatpush1.msra.mxu0 %v6695
        %10383 = vmatprep.subr.mxu0 0.0
        %10384 = vmatpush1.msra.mxu0 %v6694
        %10385 = vmatprep.subr.mxu0 0.0
        %10386 = vmatpush1.msra.mxu0 %v6693
        %10387 = vmatprep.subr.mxu0 0.0
        %10388 = vmatpush1.msra.mxu0 %v6692
        %10389 = vmatprep.subr.mxu0 0.0
        %10390 = vmatpush1.msra.mxu0 %v6691
        %10391 = vmatprep.subr.mxu0 0.0
        %10392 = vmatpush1.msra.mxu0 %v6690
        %10393 = vmatprep.subr.mxu0 0.0
        %10394 = vmatpush2.msra.mxu0 0.0
        %10395 = vmatprep.subr.mxu0 0.0
        %10396 = vmatpush2.msra.mxu0 0.0
        %10397 = vmatprep.subr.mxu0 0.0
        %10398 = vmatpush2.msra.mxu0 0.0
        %10399 = vmatprep.subr.mxu0 0.0
        %10400 = vmatpush2.msra.mxu0 0.0
        %10401 = vmatprep.subr.mxu0 0.0
        %10402 = vmatpush2.msra.mxu0 0.0
        %10403 = vmatprep.subr.mxu0 0.0
        %10404 = vmatpush2.msra.mxu0 0.0
        %10405 = vmatprep.subr.mxu0 0.0
        %10406 = vmatpush2.msra.mxu0 0.0
        %10407 = vmatprep.subr.mxu0 0.0
        %10408 = vmatpush2.msra.mxu0 0.0
        %10409 = vmatprep.subr.mxu0 0.0
        %10410 = vmatpush2.msra.mxu0 0.0
        %10411 = vmatprep.subr.mxu0 0.0
        %10412 = vmatpush2.msra.mxu0 0.0
        %10413 = vmatprep.subr.mxu0 0.0
        %10414 = vmatpush2.msra.mxu0 0.0
        %10415 = vmatprep.subr.mxu0 0.0
        %10416 = vmatpush2.msra.mxu0 0.0
        %10417 = vmatprep.subr.mxu0 0.0
        %10418 = vmatpush2.msra.mxu0 0.0
        %10419 = vmatprep.subr.mxu0 0.0
        %10420 = vmatpush2.msra.mxu0 0.0
        %10421 = vmatprep.subr.mxu0 0.0
        %10422 = vmatpush2.msra.mxu0 0.0
        %10423 = vmatprep.subr.mxu0 0.0
        %10424 = vmatpush2.msra.mxu0 0.0
        %10425 = vmatprep.mubr.f32.mxu0 0.0
        %10426 = vmatmul.mubr.f32.gmra.mxu0 %v6930
        %v10427 = vpop.f32.mrf.mxu0
        %v10428 = vadd.f32 0.0, %v10427
        %v10429 = vpop.f32.mrf.mxu0
        %10430 = vdwg.mxu0
        %10431 = vmatprep.subr.mxu0 0.0
        %10432 = vmatpush1.msra.mxu0 %v6721
        %10433 = vmatprep.subr.mxu0 0.0
        %10434 = vmatpush1.msra.mxu0 %v6720
        %10435 = vmatprep.subr.mxu0 0.0
        %10436 = vmatpush1.msra.mxu0 %v6719
        %10437 = vmatprep.subr.mxu0 0.0
        %10438 = vmatpush1.msra.mxu0 %v6718
        %10439 = vmatprep.subr.mxu0 0.0
        %10440 = vmatpush1.msra.mxu0 %v6717
        %10441 = vmatprep.subr.mxu0 0.0
        %10442 = vmatpush1.msra.mxu0 %v6716
        %10443 = vmatprep.subr.mxu0 0.0
        %10444 = vmatpush1.msra.mxu0 %v6715
        %10445 = vmatprep.subr.mxu0 0.0
        %10446 = vmatpush1.msra.mxu0 %v6714
        %10447 = vmatprep.subr.mxu0 0.0
        %10448 = vmatpush1.msra.mxu0 %v6713
        %10449 = vmatprep.subr.mxu0 0.0
        %10450 = vmatpush1.msra.mxu0 %v6712
        %10451 = vmatprep.subr.mxu0 0.0
        %10452 = vmatpush1.msra.mxu0 %v6711
        %10453 = vmatprep.subr.mxu0 0.0
        %10454 = vmatpush1.msra.mxu0 %v6710
        %10455 = vmatprep.subr.mxu0 0.0
        %10456 = vmatpush1.msra.mxu0 %v6709
        %10457 = vmatprep.subr.mxu0 0.0
        %10458 = vmatpush1.msra.mxu0 %v6708
        %10459 = vmatprep.subr.mxu0 0.0
        %10460 = vmatpush1.msra.mxu0 %v6707
        %10461 = vmatprep.subr.mxu0 0.0
        %10462 = vmatpush1.msra.mxu0 %v6706
        %10463 = vmatprep.subr.mxu0 0.0
        %10464 = vmatpush2.msra.mxu0 0.0
        %10465 = vmatprep.subr.mxu0 0.0
        %10466 = vmatpush2.msra.mxu0 0.0
        %10467 = vmatprep.subr.mxu0 0.0
        %10468 = vmatpush2.msra.mxu0 0.0
        %10469 = vmatprep.subr.mxu0 0.0
        %10470 = vmatpush2.msra.mxu0 0.0
        %10471 = vmatprep.subr.mxu0 0.0
        %10472 = vmatpush2.msra.mxu0 0.0
        %10473 = vmatprep.subr.mxu0 0.0
        %10474 = vmatpush2.msra.mxu0 0.0
        %10475 = vmatprep.subr.mxu0 0.0
        %10476 = vmatpush2.msra.mxu0 0.0
        %10477 = vmatprep.subr.mxu0 0.0
        %10478 = vmatpush2.msra.mxu0 0.0
        %10479 = vmatprep.subr.mxu0 0.0
        %10480 = vmatpush2.msra.mxu0 0.0
        %10481 = vmatprep.subr.mxu0 0.0
        %10482 = vmatpush2.msra.mxu0 0.0
        %10483 = vmatprep.subr.mxu0 0.0
        %10484 = vmatpush2.msra.mxu0 0.0
        %10485 = vmatprep.subr.mxu0 0.0
        %10486 = vmatpush2.msra.mxu0 0.0
        %10487 = vmatprep.subr.mxu0 0.0
        %10488 = vmatpush2.msra.mxu0 0.0
        %10489 = vmatprep.subr.mxu0 0.0
        %10490 = vmatpush2.msra.mxu0 0.0
        %10491 = vmatprep.subr.mxu0 0.0
        %10492 = vmatpush2.msra.mxu0 0.0
        %10493 = vmatprep.subr.mxu0 0.0
        %10494 = vmatpush2.msra.mxu0 0.0
        %10495 = vmatprep.mubr.f32.mxu0 0.0
        %10496 = vmatmul.mubr.f32.gmra.mxu0 %v6930
        %v10497 = vpop.f32.mrf.mxu0
        %v10498 = vadd.f32 0.0, %v10497
        %v10499 = vpop.f32.mrf.mxu0
        %10500 = vdwg.mxu0
        %10501 = vmatprep.subr.mxu0 0.0
        %10502 = vmatpush1.msra.mxu0 %v6737
        %10503 = vmatprep.subr.mxu0 0.0
        %10504 = vmatpush1.msra.mxu0 %v6736
        %10505 = vmatprep.subr.mxu0 0.0
        %10506 = vmatpush1.msra.mxu0 %v6735
        %10507 = vmatprep.subr.mxu0 0.0
        %10508 = vmatpush1.msra.mxu0 %v6734
        %10509 = vmatprep.subr.mxu0 0.0
        %10510 = vmatpush1.msra.mxu0 %v6733
        %10511 = vmatprep.subr.mxu0 0.0
        %10512 = vmatpush1.msra.mxu0 %v6732
        %10513 = vmatprep.subr.mxu0 0.0
        %10514 = vmatpush1.msra.mxu0 %v6731
        %10515 = vmatprep.subr.mxu0 0.0
        %10516 = vmatpush1.msra.mxu0 %v6730
        %10517 = vmatprep.subr.mxu0 0.0
        %10518 = vmatpush1.msra.mxu0 %v6729
        %10519 = vmatprep.subr.mxu0 0.0
        %10520 = vmatpush1.msra.mxu0 %v6728
        %10521 = vmatprep.subr.mxu0 0.0
        %10522 = vmatpush1.msra.mxu0 %v6727
        %10523 = vmatprep.subr.mxu0 0.0
        %10524 = vmatpush1.msra.mxu0 %v6726
        %10525 = vmatprep.subr.mxu0 0.0
        %10526 = vmatpush1.msra.mxu0 %v6725
        %10527 = vmatprep.subr.mxu0 0.0
        %10528 = vmatpush1.msra.mxu0 %v6724
        %10529 = vmatprep.subr.mxu0 0.0
        %10530 = vmatpush1.msra.mxu0 %v6723
        %10531 = vmatprep.subr.mxu0 0.0
        %10532 = vmatpush1.msra.mxu0 %v6722
        %10533 = vmatprep.subr.mxu0 0.0
        %10534 = vmatpush2.msra.mxu0 0.0
        %10535 = vmatprep.subr.mxu0 0.0
        %10536 = vmatpush2.msra.mxu0 0.0
        %10537 = vmatprep.subr.mxu0 0.0
        %10538 = vmatpush2.msra.mxu0 0.0
        %10539 = vmatprep.subr.mxu0 0.0
        %10540 = vmatpush2.msra.mxu0 0.0
        %10541 = vmatprep.subr.mxu0 0.0
        %10542 = vmatpush2.msra.mxu0 0.0
        %10543 = vmatprep.subr.mxu0 0.0
        %10544 = vmatpush2.msra.mxu0 0.0
        %10545 = vmatprep.subr.mxu0 0.0
        %10546 = vmatpush2.msra.mxu0 0.0
        %10547 = vmatprep.subr.mxu0 0.0
        %10548 = vmatpush2.msra.mxu0 0.0
        %10549 = vmatprep.subr.mxu0 0.0
        %10550 = vmatpush2.msra.mxu0 0.0
        %10551 = vmatprep.subr.mxu0 0.0
        %10552 = vmatpush2.msra.mxu0 0.0
        %10553 = vmatprep.subr.mxu0 0.0
        %10554 = vmatpush2.msra.mxu0 0.0
        %10555 = vmatprep.subr.mxu0 0.0
        %10556 = vmatpush2.msra.mxu0 0.0
        %10557 = vmatprep.subr.mxu0 0.0
        %10558 = vmatpush2.msra.mxu0 0.0
        %10559 = vmatprep.subr.mxu0 0.0
        %10560 = vmatpush2.msra.mxu0 0.0
        %10561 = vmatprep.subr.mxu0 0.0
        %10562 = vmatpush2.msra.mxu0 0.0
        %10563 = vmatprep.subr.mxu0 0.0
        %10564 = vmatpush2.msra.mxu0 0.0
        %10565 = vmatprep.mubr.f32.mxu0 0.0
        %10566 = vmatmul.mubr.f32.gmra.mxu0 %v6930
        %v10567 = vpop.f32.mrf.mxu0
        %v10568 = vadd.f32 0.0, %v10567
        %v10569 = vpop.f32.mrf.mxu0
        %10570 = vdwg.mxu0
        %10571 = vmatprep.subr.mxu0 0.0
        %10572 = vmatpush1.msra.mxu0 %v6753
        %10573 = vmatprep.subr.mxu0 0.0
        %10574 = vmatpush1.msra.mxu0 %v6752
        %10575 = vmatprep.subr.mxu0 0.0
        %10576 = vmatpush1.msra.mxu0 %v6751
        %10577 = vmatprep.subr.mxu0 0.0
        %10578 = vmatpush1.msra.mxu0 %v6750
        %10579 = vmatprep.subr.mxu0 0.0
        %10580 = vmatpush1.msra.mxu0 %v6749
        %10581 = vmatprep.subr.mxu0 0.0
        %10582 = vmatpush1.msra.mxu0 %v6748
        %10583 = vmatprep.subr.mxu0 0.0
        %10584 = vmatpush1.msra.mxu0 %v6747
        %10585 = vmatprep.subr.mxu0 0.0
        %10586 = vmatpush1.msra.mxu0 %v6746
        %10587 = vmatprep.subr.mxu0 0.0
        %10588 = vmatpush1.msra.mxu0 %v6745
        %10589 = vmatprep.subr.mxu0 0.0
        %10590 = vmatpush1.msra.mxu0 %v6744
        %10591 = vmatprep.subr.mxu0 0.0
        %10592 = vmatpush1.msra.mxu0 %v6743
        %10593 = vmatprep.subr.mxu0 0.0
        %10594 = vmatpush1.msra.mxu0 %v6742
        %10595 = vmatprep.subr.mxu0 0.0
        %10596 = vmatpush1.msra.mxu0 %v6741
        %10597 = vmatprep.subr.mxu0 0.0
        %10598 = vmatpush1.msra.mxu0 %v6740
        %10599 = vmatprep.subr.mxu0 0.0
        %10600 = vmatpush1.msra.mxu0 %v6739
        %10601 = vmatprep.subr.mxu0 0.0
        %10602 = vmatpush1.msra.mxu0 %v6738
        %10603 = vmatprep.subr.mxu0 0.0
        %10604 = vmatpush2.msra.mxu0 0.0
        %10605 = vmatprep.subr.mxu0 0.0
        %10606 = vmatpush2.msra.mxu0 0.0
        %10607 = vmatprep.subr.mxu0 0.0
        %10608 = vmatpush2.msra.mxu0 0.0
        %10609 = vmatprep.subr.mxu0 0.0
        %10610 = vmatpush2.msra.mxu0 0.0
        %10611 = vmatprep.subr.mxu0 0.0
        %10612 = vmatpush2.msra.mxu0 0.0
        %10613 = vmatprep.subr.mxu0 0.0
        %10614 = vmatpush2.msra.mxu0 0.0
        %10615 = vmatprep.subr.mxu0 0.0
        %10616 = vmatpush2.msra.mxu0 0.0
        %10617 = vmatprep.subr.mxu0 0.0
        %10618 = vmatpush2.msra.mxu0 0.0
        %10619 = vmatprep.subr.mxu0 0.0
        %10620 = vmatpush2.msra.mxu0 0.0
        %10621 = vmatprep.subr.mxu0 0.0
        %10622 = vmatpush2.msra.mxu0 0.0
        %10623 = vmatprep.subr.mxu0 0.0
        %10624 = vmatpush2.msra.mxu0 0.0
        %10625 = vmatprep.subr.mxu0 0.0
        %10626 = vmatpush2.msra.mxu0 0.0
        %10627 = vmatprep.subr.mxu0 0.0
        %10628 = vmatpush2.msra.mxu0 0.0
        %10629 = vmatprep.subr.mxu0 0.0
        %10630 = vmatpush2.msra.mxu0 0.0
        %10631 = vmatprep.subr.mxu0 0.0
        %10632 = vmatpush2.msra.mxu0 0.0
        %10633 = vmatprep.subr.mxu0 0.0
        %10634 = vmatpush2.msra.mxu0 0.0
        %10635 = vmatprep.mubr.f32.mxu0 0.0
        %10636 = vmatmul.mubr.f32.gmra.mxu0 %v6930
        %v10637 = vpop.f32.mrf.mxu0
        %v10638 = vadd.f32 0.0, %v10637
        %v10639 = vpop.f32.mrf.mxu0
        %10640 = vdwg.mxu0
        %10641 = vmatprep.subr.mxu0 0.0
        %10642 = vmatpush1.msra.mxu0 %v6769
        %10643 = vmatprep.subr.mxu0 0.0
        %10644 = vmatpush1.msra.mxu0 %v6768
        %10645 = vmatprep.subr.mxu0 0.0
        %10646 = vmatpush1.msra.mxu0 %v6767
        %10647 = vmatprep.subr.mxu0 0.0
        %10648 = vmatpush1.msra.mxu0 %v6766
        %10649 = vmatprep.subr.mxu0 0.0
        %10650 = vmatpush1.msra.mxu0 %v6765
        %10651 = vmatprep.subr.mxu0 0.0
        %10652 = vmatpush1.msra.mxu0 %v6764
        %10653 = vmatprep.subr.mxu0 0.0
        %10654 = vmatpush1.msra.mxu0 %v6763
        %10655 = vmatprep.subr.mxu0 0.0
        %10656 = vmatpush1.msra.mxu0 %v6762
        %10657 = vmatprep.subr.mxu0 0.0
        %10658 = vmatpush1.msra.mxu0 %v6761
        %10659 = vmatprep.subr.mxu0 0.0
        %10660 = vmatpush1.msra.mxu0 %v6760
        %10661 = vmatprep.subr.mxu0 0.0
        %10662 = vmatpush1.msra.mxu0 %v6759
        %10663 = vmatprep.subr.mxu0 0.0
        %10664 = vmatpush1.msra.mxu0 %v6758
        %10665 = vmatprep.subr.mxu0 0.0
        %10666 = vmatpush1.msra.mxu0 %v6757
        %10667 = vmatprep.subr.mxu0 0.0
        %10668 = vmatpush1.msra.mxu0 %v6756
        %10669 = vmatprep.subr.mxu0 0.0
        %10670 = vmatpush1.msra.mxu0 %v6755
        %10671 = vmatprep.subr.mxu0 0.0
        %10672 = vmatpush1.msra.mxu0 %v6754
        %10673 = vmatprep.subr.mxu0 0.0
        %10674 = vmatpush2.msra.mxu0 0.0
        %10675 = vmatprep.subr.mxu0 0.0
        %10676 = vmatpush2.msra.mxu0 0.0
        %10677 = vmatprep.subr.mxu0 0.0
        %10678 = vmatpush2.msra.mxu0 0.0
        %10679 = vmatprep.subr.mxu0 0.0
        %10680 = vmatpush2.msra.mxu0 0.0
        %10681 = vmatprep.subr.mxu0 0.0
        %10682 = vmatpush2.msra.mxu0 0.0
        %10683 = vmatprep.subr.mxu0 0.0
        %10684 = vmatpush2.msra.mxu0 0.0
        %10685 = vmatprep.subr.mxu0 0.0
        %10686 = vmatpush2.msra.mxu0 0.0
        %10687 = vmatprep.subr.mxu0 0.0
        %10688 = vmatpush2.msra.mxu0 0.0
        %10689 = vmatprep.subr.mxu0 0.0
        %10690 = vmatpush2.msra.mxu0 0.0
        %10691 = vmatprep.subr.mxu0 0.0
        %10692 = vmatpush2.msra.mxu0 0.0
        %10693 = vmatprep.subr.mxu0 0.0
        %10694 = vmatpush2.msra.mxu0 0.0
        %10695 = vmatprep.subr.mxu0 0.0
        %10696 = vmatpush2.msra.mxu0 0.0
        %10697 = vmatprep.subr.mxu0 0.0
        %10698 = vmatpush2.msra.mxu0 0.0
        %10699 = vmatprep.subr.mxu0 0.0
        %10700 = vmatpush2.msra.mxu0 0.0
        %10701 = vmatprep.subr.mxu0 0.0
        %10702 = vmatpush2.msra.mxu0 0.0
        %10703 = vmatprep.subr.mxu0 0.0
        %10704 = vmatpush2.msra.mxu0 0.0
        %10705 = vmatprep.mubr.f32.mxu0 0.0
        %10706 = vmatmul.mubr.f32.gmra.mxu0 %v6930
        %v10707 = vpop.f32.mrf.mxu0
        %v10708 = vadd.f32 0.0, %v10707
        %v10709 = vpop.f32.mrf.mxu0
        %10710 = vdwg.mxu0
        %10711 = vmatprep.subr.mxu0 0.0
        %10712 = vmatpush1.msra.mxu0 %v6785
        %10713 = vmatprep.subr.mxu0 0.0
        %10714 = vmatpush1.msra.mxu0 %v6784
        %10715 = vmatprep.subr.mxu0 0.0
        %10716 = vmatpush1.msra.mxu0 %v6783
        %10717 = vmatprep.subr.mxu0 0.0
        %10718 = vmatpush1.msra.mxu0 %v6782
        %10719 = vmatprep.subr.mxu0 0.0
        %10720 = vmatpush1.msra.mxu0 %v6781
        %10721 = vmatprep.subr.mxu0 0.0
        %10722 = vmatpush1.msra.mxu0 %v6780
        %10723 = vmatprep.subr.mxu0 0.0
        %10724 = vmatpush1.msra.mxu0 %v6779
        %10725 = vmatprep.subr.mxu0 0.0
        %10726 = vmatpush1.msra.mxu0 %v6778
        %10727 = vmatprep.subr.mxu0 0.0
        %10728 = vmatpush1.msra.mxu0 %v6777
        %10729 = vmatprep.subr.mxu0 0.0
        %10730 = vmatpush1.msra.mxu0 %v6776
        %10731 = vmatprep.subr.mxu0 0.0
        %10732 = vmatpush1.msra.mxu0 %v6775
        %10733 = vmatprep.subr.mxu0 0.0
        %10734 = vmatpush1.msra.mxu0 %v6774
        %10735 = vmatprep.subr.mxu0 0.0
        %10736 = vmatpush1.msra.mxu0 %v6773
        %10737 = vmatprep.subr.mxu0 0.0
        %10738 = vmatpush1.msra.mxu0 %v6772
        %10739 = vmatprep.subr.mxu0 0.0
        %10740 = vmatpush1.msra.mxu0 %v6771
        %10741 = vmatprep.subr.mxu0 0.0
        %10742 = vmatpush1.msra.mxu0 %v6770
        %10743 = vmatprep.subr.mxu0 0.0
        %10744 = vmatpush2.msra.mxu0 0.0
        %10745 = vmatprep.subr.mxu0 0.0
        %10746 = vmatpush2.msra.mxu0 0.0
        %10747 = vmatprep.subr.mxu0 0.0
        %10748 = vmatpush2.msra.mxu0 0.0
        %10749 = vmatprep.subr.mxu0 0.0
        %10750 = vmatpush2.msra.mxu0 0.0
        %10751 = vmatprep.subr.mxu0 0.0
        %10752 = vmatpush2.msra.mxu0 0.0
        %10753 = vmatprep.subr.mxu0 0.0
        %10754 = vmatpush2.msra.mxu0 0.0
        %10755 = vmatprep.subr.mxu0 0.0
        %10756 = vmatpush2.msra.mxu0 0.0
        %10757 = vmatprep.subr.mxu0 0.0
        %10758 = vmatpush2.msra.mxu0 0.0
        %10759 = vmatprep.subr.mxu0 0.0
        %10760 = vmatpush2.msra.mxu0 0.0
        %10761 = vmatprep.subr.mxu0 0.0
        %10762 = vmatpush2.msra.mxu0 0.0
        %10763 = vmatprep.subr.mxu0 0.0
        %10764 = vmatpush2.msra.mxu0 0.0
        %10765 = vmatprep.subr.mxu0 0.0
        %10766 = vmatpush2.msra.mxu0 0.0
        %10767 = vmatprep.subr.mxu0 0.0
        %10768 = vmatpush2.msra.mxu0 0.0
        %10769 = vmatprep.subr.mxu0 0.0
        %10770 = vmatpush2.msra.mxu0 0.0
        %10771 = vmatprep.subr.mxu0 0.0
        %10772 = vmatpush2.msra.mxu0 0.0
        %10773 = vmatprep.subr.mxu0 0.0
        %10774 = vmatpush2.msra.mxu0 0.0
        %10775 = vmatprep.mubr.f32.mxu0 0.0
        %10776 = vmatmul.mubr.f32.gmra.mxu0 %v6930
        %v10777 = vpop.f32.mrf.mxu0
        %v10778 = vadd.f32 0.0, %v10777
        %v10779 = vpop.f32.mrf.mxu0
        %10780 = vdwg.mxu0
        %10781 = vmatprep.subr.mxu0 0.0
        %10782 = vmatpush1.msra.mxu0 %v6801
        %10783 = vmatprep.subr.mxu0 0.0
        %10784 = vmatpush1.msra.mxu0 %v6800
        %10785 = vmatprep.subr.mxu0 0.0
        %10786 = vmatpush1.msra.mxu0 %v6799
        %10787 = vmatprep.subr.mxu0 0.0
        %10788 = vmatpush1.msra.mxu0 %v6798
        %10789 = vmatprep.subr.mxu0 0.0
        %10790 = vmatpush1.msra.mxu0 %v6797
        %10791 = vmatprep.subr.mxu0 0.0
        %10792 = vmatpush1.msra.mxu0 %v6796
        %10793 = vmatprep.subr.mxu0 0.0
        %10794 = vmatpush1.msra.mxu0 %v6795
        %10795 = vmatprep.subr.mxu0 0.0
        %10796 = vmatpush1.msra.mxu0 %v6794
        %10797 = vmatprep.subr.mxu0 0.0
        %10798 = vmatpush1.msra.mxu0 %v6793
        %10799 = vmatprep.subr.mxu0 0.0
        %10800 = vmatpush1.msra.mxu0 %v6792
        %10801 = vmatprep.subr.mxu0 0.0
        %10802 = vmatpush1.msra.mxu0 %v6791
        %10803 = vmatprep.subr.mxu0 0.0
        %10804 = vmatpush1.msra.mxu0 %v6790
        %10805 = vmatprep.subr.mxu0 0.0
        %10806 = vmatpush1.msra.mxu0 %v6789
        %10807 = vmatprep.subr.mxu0 0.0
        %10808 = vmatpush1.msra.mxu0 %v6788
        %10809 = vmatprep.subr.mxu0 0.0
        %10810 = vmatpush1.msra.mxu0 %v6787
        %10811 = vmatprep.subr.mxu0 0.0
        %10812 = vmatpush1.msra.mxu0 %v6786
        %10813 = vmatprep.subr.mxu0 0.0
        %10814 = vmatpush2.msra.mxu0 0.0
        %10815 = vmatprep.subr.mxu0 0.0
        %10816 = vmatpush2.msra.mxu0 0.0
        %10817 = vmatprep.subr.mxu0 0.0
        %10818 = vmatpush2.msra.mxu0 0.0
        %10819 = vmatprep.subr.mxu0 0.0
        %10820 = vmatpush2.msra.mxu0 0.0
        %10821 = vmatprep.subr.mxu0 0.0
        %10822 = vmatpush2.msra.mxu0 0.0
        %10823 = vmatprep.subr.mxu0 0.0
        %10824 = vmatpush2.msra.mxu0 0.0
        %10825 = vmatprep.subr.mxu0 0.0
        %10826 = vmatpush2.msra.mxu0 0.0
        %10827 = vmatprep.subr.mxu0 0.0
        %10828 = vmatpush2.msra.mxu0 0.0
        %10829 = vmatprep.subr.mxu0 0.0
        %10830 = vmatpush2.msra.mxu0 0.0
        %10831 = vmatprep.subr.mxu0 0.0
        %10832 = vmatpush2.msra.mxu0 0.0
        %10833 = vmatprep.subr.mxu0 0.0
        %10834 = vmatpush2.msra.mxu0 0.0
        %10835 = vmatprep.subr.mxu0 0.0
        %10836 = vmatpush2.msra.mxu0 0.0
        %10837 = vmatprep.subr.mxu0 0.0
        %10838 = vmatpush2.msra.mxu0 0.0
        %10839 = vmatprep.subr.mxu0 0.0
        %10840 = vmatpush2.msra.mxu0 0.0
        %10841 = vmatprep.subr.mxu0 0.0
        %10842 = vmatpush2.msra.mxu0 0.0
        %10843 = vmatprep.subr.mxu0 0.0
        %10844 = vmatpush2.msra.mxu0 0.0
        %10845 = vmatprep.mubr.f32.mxu0 0.0
        %10846 = vmatmul.mubr.f32.gmra.mxu0 %v6930
        %v10847 = vpop.f32.mrf.mxu0
        %v10848 = vadd.f32 0.0, %v10847
        %v10849 = vpop.f32.mrf.mxu0
        %10850 = vdwg.mxu0
        %10851 = vmatprep.subr.mxu0 0.0
        %10852 = vmatpush1.msra.mxu0 %v6817
        %10853 = vmatprep.subr.mxu0 0.0
        %10854 = vmatpush1.msra.mxu0 %v6816
        %10855 = vmatprep.subr.mxu0 0.0
        %10856 = vmatpush1.msra.mxu0 %v6815
        %10857 = vmatprep.subr.mxu0 0.0
        %10858 = vmatpush1.msra.mxu0 %v6814
        %10859 = vmatprep.subr.mxu0 0.0
        %10860 = vmatpush1.msra.mxu0 %v6813
        %10861 = vmatprep.subr.mxu0 0.0
        %10862 = vmatpush1.msra.mxu0 %v6812
        %10863 = vmatprep.subr.mxu0 0.0
        %10864 = vmatpush1.msra.mxu0 %v6811
        %10865 = vmatprep.subr.mxu0 0.0
        %10866 = vmatpush1.msra.mxu0 %v6810
        %10867 = vmatprep.subr.mxu0 0.0
        %10868 = vmatpush1.msra.mxu0 %v6809
        %10869 = vmatprep.subr.mxu0 0.0
        %10870 = vmatpush1.msra.mxu0 %v6808
        %10871 = vmatprep.subr.mxu0 0.0
        %10872 = vmatpush1.msra.mxu0 %v6807
        %10873 = vmatprep.subr.mxu0 0.0
        %10874 = vmatpush1.msra.mxu0 %v6806
        %10875 = vmatprep.subr.mxu0 0.0
        %10876 = vmatpush1.msra.mxu0 %v6805
        %10877 = vmatprep.subr.mxu0 0.0
        %10878 = vmatpush1.msra.mxu0 %v6804
        %10879 = vmatprep.subr.mxu0 0.0
        %10880 = vmatpush1.msra.mxu0 %v6803
        %10881 = vmatprep.subr.mxu0 0.0
        %10882 = vmatpush1.msra.mxu0 %v6802
        %10883 = vmatprep.subr.mxu0 0.0
        %10884 = vmatpush2.msra.mxu0 0.0
        %10885 = vmatprep.subr.mxu0 0.0
        %10886 = vmatpush2.msra.mxu0 0.0
        %10887 = vmatprep.subr.mxu0 0.0
        %10888 = vmatpush2.msra.mxu0 0.0
        %10889 = vmatprep.subr.mxu0 0.0
        %10890 = vmatpush2.msra.mxu0 0.0
        %10891 = vmatprep.subr.mxu0 0.0
        %10892 = vmatpush2.msra.mxu0 0.0
        %10893 = vmatprep.subr.mxu0 0.0
        %10894 = vmatpush2.msra.mxu0 0.0
        %10895 = vmatprep.subr.mxu0 0.0
        %10896 = vmatpush2.msra.mxu0 0.0
        %10897 = vmatprep.subr.mxu0 0.0
        %10898 = vmatpush2.msra.mxu0 0.0
        %10899 = vmatprep.subr.mxu0 0.0
        %10900 = vmatpush2.msra.mxu0 0.0
        %10901 = vmatprep.subr.mxu0 0.0
        %10902 = vmatpush2.msra.mxu0 0.0
        %10903 = vmatprep.subr.mxu0 0.0
        %10904 = vmatpush2.msra.mxu0 0.0
        %10905 = vmatprep.subr.mxu0 0.0
        %10906 = vmatpush2.msra.mxu0 0.0
        %10907 = vmatprep.subr.mxu0 0.0
        %10908 = vmatpush2.msra.mxu0 0.0
        %10909 = vmatprep.subr.mxu0 0.0
        %10910 = vmatpush2.msra.mxu0 0.0
        %10911 = vmatprep.subr.mxu0 0.0
        %10912 = vmatpush2.msra.mxu0 0.0
        %10913 = vmatprep.subr.mxu0 0.0
        %10914 = vmatpush2.msra.mxu0 0.0
        %10915 = vmatprep.mubr.f32.mxu0 0.0
        %10916 = vmatmul.mubr.f32.gmra.mxu0 %v6930
        %v10917 = vpop.f32.mrf.mxu0
        %v10918 = vadd.f32 0.0, %v10917
        %v10919 = vpop.f32.mrf.mxu0
        %10920 = vdwg.mxu0
        %10921 = vmatprep.subr.mxu0 0.0
        %10922 = vmatpush1.msra.mxu0 %v6833
        %10923 = vmatprep.subr.mxu0 0.0
        %10924 = vmatpush1.msra.mxu0 %v6832
        %10925 = vmatprep.subr.mxu0 0.0
        %10926 = vmatpush1.msra.mxu0 %v6831
        %10927 = vmatprep.subr.mxu0 0.0
        %10928 = vmatpush1.msra.mxu0 %v6830
        %10929 = vmatprep.subr.mxu0 0.0
        %10930 = vmatpush1.msra.mxu0 %v6829
        %10931 = vmatprep.subr.mxu0 0.0
        %10932 = vmatpush1.msra.mxu0 %v6828
        %10933 = vmatprep.subr.mxu0 0.0
        %10934 = vmatpush1.msra.mxu0 %v6827
        %10935 = vmatprep.subr.mxu0 0.0
        %10936 = vmatpush1.msra.mxu0 %v6826
        %10937 = vmatprep.subr.mxu0 0.0
        %10938 = vmatpush1.msra.mxu0 %v6825
        %10939 = vmatprep.subr.mxu0 0.0
        %10940 = vmatpush1.msra.mxu0 %v6824
        %10941 = vmatprep.subr.mxu0 0.0
        %10942 = vmatpush1.msra.mxu0 %v6823
        %10943 = vmatprep.subr.mxu0 0.0
        %10944 = vmatpush1.msra.mxu0 %v6822
        %10945 = vmatprep.subr.mxu0 0.0
        %10946 = vmatpush1.msra.mxu0 %v6821
        %10947 = vmatprep.subr.mxu0 0.0
        %10948 = vmatpush1.msra.mxu0 %v6820
        %10949 = vmatprep.subr.mxu0 0.0
        %10950 = vmatpush1.msra.mxu0 %v6819
        %10951 = vmatprep.subr.mxu0 0.0
        %10952 = vmatpush1.msra.mxu0 %v6818
        %10953 = vmatprep.subr.mxu0 0.0
        %10954 = vmatpush2.msra.mxu0 0.0
        %10955 = vmatprep.subr.mxu0 0.0
        %10956 = vmatpush2.msra.mxu0 0.0
        %10957 = vmatprep.subr.mxu0 0.0
        %10958 = vmatpush2.msra.mxu0 0.0
        %10959 = vmatprep.subr.mxu0 0.0
        %10960 = vmatpush2.msra.mxu0 0.0
        %10961 = vmatprep.subr.mxu0 0.0
        %10962 = vmatpush2.msra.mxu0 0.0
        %10963 = vmatprep.subr.mxu0 0.0
        %10964 = vmatpush2.msra.mxu0 0.0
        %10965 = vmatprep.subr.mxu0 0.0
        %10966 = vmatpush2.msra.mxu0 0.0
        %10967 = vmatprep.subr.mxu0 0.0
        %10968 = vmatpush2.msra.mxu0 0.0
        %10969 = vmatprep.subr.mxu0 0.0
        %10970 = vmatpush2.msra.mxu0 0.0
        %10971 = vmatprep.subr.mxu0 0.0
        %10972 = vmatpush2.msra.mxu0 0.0
        %10973 = vmatprep.subr.mxu0 0.0
        %10974 = vmatpush2.msra.mxu0 0.0
        %10975 = vmatprep.subr.mxu0 0.0
        %10976 = vmatpush2.msra.mxu0 0.0
        %10977 = vmatprep.subr.mxu0 0.0
        %10978 = vmatpush2.msra.mxu0 0.0
        %10979 = vmatprep.subr.mxu0 0.0
        %10980 = vmatpush2.msra.mxu0 0.0
        %10981 = vmatprep.subr.mxu0 0.0
        %10982 = vmatpush2.msra.mxu0 0.0
        %10983 = vmatprep.subr.mxu0 0.0
        %10984 = vmatpush2.msra.mxu0 0.0
        %10985 = vmatprep.mubr.f32.mxu0 0.0
        %10986 = vmatmul.mubr.f32.gmra.mxu0 %v6930
        %v10987 = vpop.f32.mrf.mxu0
        %v10988 = vadd.f32 0.0, %v10987
        %v10989 = vpop.f32.mrf.mxu0
        %10990 = vdwg.mxu0
        %10991 = vmatprep.subr.mxu0 0.0
        %10992 = vmatpush1.msra.mxu0 %v6849
        %10993 = vmatprep.subr.mxu0 0.0
        %10994 = vmatpush1.msra.mxu0 %v6848
        %10995 = vmatprep.subr.mxu0 0.0
        %10996 = vmatpush1.msra.mxu0 %v6847
        %10997 = vmatprep.subr.mxu0 0.0
        %10998 = vmatpush1.msra.mxu0 %v6846
        %10999 = vmatprep.subr.mxu0 0.0
        %11000 = vmatpush1.msra.mxu0 %v6845
        %11001 = vmatprep.subr.mxu0 0.0
        %11002 = vmatpush1.msra.mxu0 %v6844
        %11003 = vmatprep.subr.mxu0 0.0
        %11004 = vmatpush1.msra.mxu0 %v6843
        %11005 = vmatprep.subr.mxu0 0.0
        %11006 = vmatpush1.msra.mxu0 %v6842
        %11007 = vmatprep.subr.mxu0 0.0
        %11008 = vmatpush1.msra.mxu0 %v6841
        %11009 = vmatprep.subr.mxu0 0.0
        %11010 = vmatpush1.msra.mxu0 %v6840
        %11011 = vmatprep.subr.mxu0 0.0
        %11012 = vmatpush1.msra.mxu0 %v6839
        %11013 = vmatprep.subr.mxu0 0.0
        %11014 = vmatpush1.msra.mxu0 %v6838
        %11015 = vmatprep.subr.mxu0 0.0
        %11016 = vmatpush1.msra.mxu0 %v6837
        %11017 = vmatprep.subr.mxu0 0.0
        %11018 = vmatpush1.msra.mxu0 %v6836
        %11019 = vmatprep.subr.mxu0 0.0
        %11020 = vmatpush1.msra.mxu0 %v6835
        %11021 = vmatprep.subr.mxu0 0.0
        %11022 = vmatpush1.msra.mxu0 %v6834
        %11023 = vmatprep.subr.mxu0 0.0
        %11024 = vmatpush2.msra.mxu0 0.0
        %11025 = vmatprep.subr.mxu0 0.0
        %11026 = vmatpush2.msra.mxu0 0.0
        %11027 = vmatprep.subr.mxu0 0.0
        %11028 = vmatpush2.msra.mxu0 0.0
        %11029 = vmatprep.subr.mxu0 0.0
        %11030 = vmatpush2.msra.mxu0 0.0
        %11031 = vmatprep.subr.mxu0 0.0
        %11032 = vmatpush2.msra.mxu0 0.0
        %11033 = vmatprep.subr.mxu0 0.0
        %11034 = vmatpush2.msra.mxu0 0.0
        %11035 = vmatprep.subr.mxu0 0.0
        %11036 = vmatpush2.msra.mxu0 0.0
        %11037 = vmatprep.subr.mxu0 0.0
        %11038 = vmatpush2.msra.mxu0 0.0
        %11039 = vmatprep.subr.mxu0 0.0
        %11040 = vmatpush2.msra.mxu0 0.0
        %11041 = vmatprep.subr.mxu0 0.0
        %11042 = vmatpush2.msra.mxu0 0.0
        %11043 = vmatprep.subr.mxu0 0.0
        %11044 = vmatpush2.msra.mxu0 0.0
        %11045 = vmatprep.subr.mxu0 0.0
        %11046 = vmatpush2.msra.mxu0 0.0
        %11047 = vmatprep.subr.mxu0 0.0
        %11048 = vmatpush2.msra.mxu0 0.0
        %11049 = vmatprep.subr.mxu0 0.0
        %11050 = vmatpush2.msra.mxu0 0.0
        %11051 = vmatprep.subr.mxu0 0.0
        %11052 = vmatpush2.msra.mxu0 0.0
        %11053 = vmatprep.subr.mxu0 0.0
        %11054 = vmatpush2.msra.mxu0 0.0
        %11055 = vmatprep.mubr.f32.mxu0 0.0
        %11056 = vmatmul.mubr.f32.gmra.mxu0 %v6930
        %v11057 = vpop.f32.mrf.mxu0
        %v11058 = vadd.f32 0.0, %v11057
        %v11059 = vpop.f32.mrf.mxu0
        %11060 = vdwg.mxu0
        %11061 = vmatprep.subr.mxu0 0.0
        %11062 = vmatpush1.msra.mxu0 %v6865
        %11063 = vmatprep.subr.mxu0 0.0
        %11064 = vmatpush1.msra.mxu0 %v6864
        %11065 = vmatprep.subr.mxu0 0.0
        %11066 = vmatpush1.msra.mxu0 %v6863
        %11067 = vmatprep.subr.mxu0 0.0
        %11068 = vmatpush1.msra.mxu0 %v6862
        %11069 = vmatprep.subr.mxu0 0.0
        %11070 = vmatpush1.msra.mxu0 %v6861
        %11071 = vmatprep.subr.mxu0 0.0
        %11072 = vmatpush1.msra.mxu0 %v6860
        %11073 = vmatprep.subr.mxu0 0.0
        %11074 = vmatpush1.msra.mxu0 %v6859
        %11075 = vmatprep.subr.mxu0 0.0
        %11076 = vmatpush1.msra.mxu0 %v6858
        %11077 = vmatprep.subr.mxu0 0.0
        %11078 = vmatpush1.msra.mxu0 %v6857
        %11079 = vmatprep.subr.mxu0 0.0
        %11080 = vmatpush1.msra.mxu0 %v6856
        %11081 = vmatprep.subr.mxu0 0.0
        %11082 = vmatpush1.msra.mxu0 %v6855
        %11083 = vmatprep.subr.mxu0 0.0
        %11084 = vmatpush1.msra.mxu0 %v6854
        %11085 = vmatprep.subr.mxu0 0.0
        %11086 = vmatpush1.msra.mxu0 %v6853
        %11087 = vmatprep.subr.mxu0 0.0
        %11088 = vmatpush1.msra.mxu0 %v6852
        %11089 = vmatprep.subr.mxu0 0.0
        %11090 = vmatpush1.msra.mxu0 %v6851
        %11091 = vmatprep.subr.mxu0 0.0
        %11092 = vmatpush1.msra.mxu0 %v6850
        %11093 = vmatprep.subr.mxu0 0.0
        %11094 = vmatpush2.msra.mxu0 0.0
        %11095 = vmatprep.subr.mxu0 0.0
        %11096 = vmatpush2.msra.mxu0 0.0
        %11097 = vmatprep.subr.mxu0 0.0
        %11098 = vmatpush2.msra.mxu0 0.0
        %11099 = vmatprep.subr.mxu0 0.0
        %11100 = vmatpush2.msra.mxu0 0.0
        %11101 = vmatprep.subr.mxu0 0.0
        %11102 = vmatpush2.msra.mxu0 0.0
        %11103 = vmatprep.subr.mxu0 0.0
        %11104 = vmatpush2.msra.mxu0 0.0
        %11105 = vmatprep.subr.mxu0 0.0
        %11106 = vmatpush2.msra.mxu0 0.0
        %11107 = vmatprep.subr.mxu0 0.0
        %11108 = vmatpush2.msra.mxu0 0.0
        %11109 = vmatprep.subr.mxu0 0.0
        %11110 = vmatpush2.msra.mxu0 0.0
        %11111 = vmatprep.subr.mxu0 0.0
        %11112 = vmatpush2.msra.mxu0 0.0
        %11113 = vmatprep.subr.mxu0 0.0
        %11114 = vmatpush2.msra.mxu0 0.0
        %11115 = vmatprep.subr.mxu0 0.0
        %11116 = vmatpush2.msra.mxu0 0.0
        %11117 = vmatprep.subr.mxu0 0.0
        %11118 = vmatpush2.msra.mxu0 0.0
        %11119 = vmatprep.subr.mxu0 0.0
        %11120 = vmatpush2.msra.mxu0 0.0
        %11121 = vmatprep.subr.mxu0 0.0
        %11122 = vmatpush2.msra.mxu0 0.0
        %11123 = vmatprep.subr.mxu0 0.0
        %11124 = vmatpush2.msra.mxu0 0.0
        %11125 = vmatprep.mubr.f32.mxu0 0.0
        %11126 = vmatmul.mubr.f32.gmra.mxu0 %v6930
        %v11127 = vpop.f32.mrf.mxu0
        %v11128 = vadd.f32 0.0, %v11127
        %v11129 = vpop.f32.mrf.mxu0
        %11130 = vdwg.mxu0
        %11131 = vmatprep.subr.mxu0 0.0
        %11132 = vmatpush1.msra.mxu0 %v6881
        %11133 = vmatprep.subr.mxu0 0.0
        %11134 = vmatpush1.msra.mxu0 %v6880
        %11135 = vmatprep.subr.mxu0 0.0
        %11136 = vmatpush1.msra.mxu0 %v6879
        %11137 = vmatprep.subr.mxu0 0.0
        %11138 = vmatpush1.msra.mxu0 %v6878
        %11139 = vmatprep.subr.mxu0 0.0
        %11140 = vmatpush1.msra.mxu0 %v6877
        %11141 = vmatprep.subr.mxu0 0.0
        %11142 = vmatpush1.msra.mxu0 %v6876
        %11143 = vmatprep.subr.mxu0 0.0
        %11144 = vmatpush1.msra.mxu0 %v6875
        %11145 = vmatprep.subr.mxu0 0.0
        %11146 = vmatpush1.msra.mxu0 %v6874
        %11147 = vmatprep.subr.mxu0 0.0
        %11148 = vmatpush1.msra.mxu0 %v6873
        %11149 = vmatprep.subr.mxu0 0.0
        %11150 = vmatpush1.msra.mxu0 %v6872
        %11151 = vmatprep.subr.mxu0 0.0
        %11152 = vmatpush1.msra.mxu0 %v6871
        %11153 = vmatprep.subr.mxu0 0.0
        %11154 = vmatpush1.msra.mxu0 %v6870
        %11155 = vmatprep.subr.mxu0 0.0
        %11156 = vmatpush1.msra.mxu0 %v6869
        %11157 = vmatprep.subr.mxu0 0.0
        %11158 = vmatpush1.msra.mxu0 %v6868
        %11159 = vmatprep.subr.mxu0 0.0
        %11160 = vmatpush1.msra.mxu0 %v6867
        %11161 = vmatprep.subr.mxu0 0.0
        %11162 = vmatpush1.msra.mxu0 %v6866
        %11163 = vmatprep.subr.mxu0 0.0
        %11164 = vmatpush2.msra.mxu0 0.0
        %11165 = vmatprep.subr.mxu0 0.0
        %11166 = vmatpush2.msra.mxu0 0.0
        %11167 = vmatprep.subr.mxu0 0.0
        %11168 = vmatpush2.msra.mxu0 0.0
        %11169 = vmatprep.subr.mxu0 0.0
        %11170 = vmatpush2.msra.mxu0 0.0
        %11171 = vmatprep.subr.mxu0 0.0
        %11172 = vmatpush2.msra.mxu0 0.0
        %11173 = vmatprep.subr.mxu0 0.0
        %11174 = vmatpush2.msra.mxu0 0.0
        %11175 = vmatprep.subr.mxu0 0.0
        %11176 = vmatpush2.msra.mxu0 0.0
        %11177 = vmatprep.subr.mxu0 0.0
        %11178 = vmatpush2.msra.mxu0 0.0
        %11179 = vmatprep.subr.mxu0 0.0
        %11180 = vmatpush2.msra.mxu0 0.0
        %11181 = vmatprep.subr.mxu0 0.0
        %11182 = vmatpush2.msra.mxu0 0.0
        %11183 = vmatprep.subr.mxu0 0.0
        %11184 = vmatpush2.msra.mxu0 0.0
        %11185 = vmatprep.subr.mxu0 0.0
        %11186 = vmatpush2.msra.mxu0 0.0
        %11187 = vmatprep.subr.mxu0 0.0
        %11188 = vmatpush2.msra.mxu0 0.0
        %11189 = vmatprep.subr.mxu0 0.0
        %11190 = vmatpush2.msra.mxu0 0.0
        %11191 = vmatprep.subr.mxu0 0.0
        %11192 = vmatpush2.msra.mxu0 0.0
        %11193 = vmatprep.subr.mxu0 0.0
        %11194 = vmatpush2.msra.mxu0 0.0
        %11195 = vmatprep.mubr.f32.mxu0 0.0
        %11196 = vmatmul.mubr.f32.gmra.mxu0 %v6930
        %v11197 = vpop.f32.mrf.mxu0
        %v11198 = vadd.f32 0.0, %v11197
        %v11199 = vpop.f32.mrf.mxu0
        %11200 = vdwg.mxu0
        %11201 = vmatprep.subr.mxu0 0.0
        %11202 = vmatpush1.msra.mxu0 %v6897
        %11203 = vmatprep.subr.mxu0 0.0
        %11204 = vmatpush1.msra.mxu0 %v6896
        %11205 = vmatprep.subr.mxu0 0.0
        %11206 = vmatpush1.msra.mxu0 %v6895
        %11207 = vmatprep.subr.mxu0 0.0
        %11208 = vmatpush1.msra.mxu0 %v6894
        %11209 = vmatprep.subr.mxu0 0.0
        %11210 = vmatpush1.msra.mxu0 %v6893
        %11211 = vmatprep.subr.mxu0 0.0
        %11212 = vmatpush1.msra.mxu0 %v6892
        %11213 = vmatprep.subr.mxu0 0.0
        %11214 = vmatpush1.msra.mxu0 %v6891
        %11215 = vmatprep.subr.mxu0 0.0
        %11216 = vmatpush1.msra.mxu0 %v6890
        %11217 = vmatprep.subr.mxu0 0.0
        %11218 = vmatpush1.msra.mxu0 %v6889
        %11219 = vmatprep.subr.mxu0 0.0
        %11220 = vmatpush1.msra.mxu0 %v6888
        %11221 = vmatprep.subr.mxu0 0.0
        %11222 = vmatpush1.msra.mxu0 %v6887
        %11223 = vmatprep.subr.mxu0 0.0
        %11224 = vmatpush1.msra.mxu0 %v6886
        %11225 = vmatprep.subr.mxu0 0.0
        %11226 = vmatpush1.msra.mxu0 %v6885
        %11227 = vmatprep.subr.mxu0 0.0
        %11228 = vmatpush1.msra.mxu0 %v6884
        %11229 = vmatprep.subr.mxu0 0.0
        %11230 = vmatpush1.msra.mxu0 %v6883
        %11231 = vmatprep.subr.mxu0 0.0
        %11232 = vmatpush1.msra.mxu0 %v6882
        %11233 = vmatprep.subr.mxu0 0.0
        %11234 = vmatpush2.msra.mxu0 0.0
        %11235 = vmatprep.subr.mxu0 0.0
        %11236 = vmatpush2.msra.mxu0 0.0
        %11237 = vmatprep.subr.mxu0 0.0
        %11238 = vmatpush2.msra.mxu0 0.0
        %11239 = vmatprep.subr.mxu0 0.0
        %11240 = vmatpush2.msra.mxu0 0.0
        %11241 = vmatprep.subr.mxu0 0.0
        %11242 = vmatpush2.msra.mxu0 0.0
        %11243 = vmatprep.subr.mxu0 0.0
        %11244 = vmatpush2.msra.mxu0 0.0
        %11245 = vmatprep.subr.mxu0 0.0
        %11246 = vmatpush2.msra.mxu0 0.0
        %11247 = vmatprep.subr.mxu0 0.0
        %11248 = vmatpush2.msra.mxu0 0.0
        %11249 = vmatprep.subr.mxu0 0.0
        %11250 = vmatpush2.msra.mxu0 0.0
        %11251 = vmatprep.subr.mxu0 0.0
        %11252 = vmatpush2.msra.mxu0 0.0
        %11253 = vmatprep.subr.mxu0 0.0
        %11254 = vmatpush2.msra.mxu0 0.0
        %11255 = vmatprep.subr.mxu0 0.0
        %11256 = vmatpush2.msra.mxu0 0.0
        %11257 = vmatprep.subr.mxu0 0.0
        %11258 = vmatpush2.msra.mxu0 0.0
        %11259 = vmatprep.subr.mxu0 0.0
        %11260 = vmatpush2.msra.mxu0 0.0
        %11261 = vmatprep.subr.mxu0 0.0
        %11262 = vmatpush2.msra.mxu0 0.0
        %11263 = vmatprep.subr.mxu0 0.0
        %11264 = vmatpush2.msra.mxu0 0.0
        %11265 = vmatprep.mubr.f32.mxu0 0.0
        %11266 = vmatmul.mubr.f32.gmra.mxu0 %v6930
        %v11267 = vpop.f32.mrf.mxu0
        %v11268 = vadd.f32 0.0, %v11267
        %v11269 = vpop.f32.mrf.mxu0
        %11270 = vdwg.mxu0
        %11271 = vmatprep.subr.mxu0 0.0
        %11272 = vmatpush1.msra.mxu0 %v6913
        %11273 = vmatprep.subr.mxu0 0.0
        %11274 = vmatpush1.msra.mxu0 %v6912
        %11275 = vmatprep.subr.mxu0 0.0
        %11276 = vmatpush1.msra.mxu0 %v6911
        %11277 = vmatprep.subr.mxu0 0.0
        %11278 = vmatpush1.msra.mxu0 %v6910
        %11279 = vmatprep.subr.mxu0 0.0
        %11280 = vmatpush1.msra.mxu0 %v6909
        %11281 = vmatprep.subr.mxu0 0.0
        %11282 = vmatpush1.msra.mxu0 %v6908
        %11283 = vmatprep.subr.mxu0 0.0
        %11284 = vmatpush1.msra.mxu0 %v6907
        %11285 = vmatprep.subr.mxu0 0.0
        %11286 = vmatpush1.msra.mxu0 %v6906
        %11287 = vmatprep.subr.mxu0 0.0
        %11288 = vmatpush1.msra.mxu0 %v6905
        %11289 = vmatprep.subr.mxu0 0.0
        %11290 = vmatpush1.msra.mxu0 %v6904
        %11291 = vmatprep.subr.mxu0 0.0
        %11292 = vmatpush1.msra.mxu0 %v6903
        %11293 = vmatprep.subr.mxu0 0.0
        %11294 = vmatpush1.msra.mxu0 %v6902
        %11295 = vmatprep.subr.mxu0 0.0
        %11296 = vmatpush1.msra.mxu0 %v6901
        %11297 = vmatprep.subr.mxu0 0.0
        %11298 = vmatpush1.msra.mxu0 %v6900
        %11299 = vmatprep.subr.mxu0 0.0
        %11300 = vmatpush1.msra.mxu0 %v6899
        %11301 = vmatprep.subr.mxu0 0.0
        %11302 = vmatpush1.msra.mxu0 %v6898
        %11303 = vmatprep.subr.mxu0 0.0
        %11304 = vmatpush2.msra.mxu0 0.0
        %11305 = vmatprep.subr.mxu0 0.0
        %11306 = vmatpush2.msra.mxu0 0.0
        %11307 = vmatprep.subr.mxu0 0.0
        %11308 = vmatpush2.msra.mxu0 0.0
        %11309 = vmatprep.subr.mxu0 0.0
        %11310 = vmatpush2.msra.mxu0 0.0
        %11311 = vmatprep.subr.mxu0 0.0
        %11312 = vmatpush2.msra.mxu0 0.0
        %11313 = vmatprep.subr.mxu0 0.0
        %11314 = vmatpush2.msra.mxu0 0.0
        %11315 = vmatprep.subr.mxu0 0.0
        %11316 = vmatpush2.msra.mxu0 0.0
        %11317 = vmatprep.subr.mxu0 0.0
        %11318 = vmatpush2.msra.mxu0 0.0
        %11319 = vmatprep.subr.mxu0 0.0
        %11320 = vmatpush2.msra.mxu0 0.0
        %11321 = vmatprep.subr.mxu0 0.0
        %11322 = vmatpush2.msra.mxu0 0.0
        %11323 = vmatprep.subr.mxu0 0.0
        %11324 = vmatpush2.msra.mxu0 0.0
        %11325 = vmatprep.subr.mxu0 0.0
        %11326 = vmatpush2.msra.mxu0 0.0
        %11327 = vmatprep.subr.mxu0 0.0
        %11328 = vmatpush2.msra.mxu0 0.0
        %11329 = vmatprep.subr.mxu0 0.0
        %11330 = vmatpush2.msra.mxu0 0.0
        %11331 = vmatprep.subr.mxu0 0.0
        %11332 = vmatpush2.msra.mxu0 0.0
        %11333 = vmatprep.subr.mxu0 0.0
        %11334 = vmatpush2.msra.mxu0 0.0
        %11335 = vmatprep.mubr.f32.mxu0 0.0
        %11336 = vmatmul.mubr.f32.gmra.mxu0 %v6930
        %v11337 = vpop.f32.mrf.mxu0
        %v11338 = vadd.f32 0.0, %v11337
        %v11339 = vpop.f32.mrf.mxu0
        %11340 = vdwg.mxu0
        %11341 = vmatprep.subr.mxu0 0.0
        %11342 = vmatpush1.msra.mxu0 %v6929
        %11343 = vmatprep.subr.mxu0 0.0
        %11344 = vmatpush1.msra.mxu0 %v6928
        %11345 = vmatprep.subr.mxu0 0.0
        %11346 = vmatpush1.msra.mxu0 %v6927
        %11347 = vmatprep.subr.mxu0 0.0
        %11348 = vmatpush1.msra.mxu0 %v6926
        %11349 = vmatprep.subr.mxu0 0.0
        %11350 = vmatpush1.msra.mxu0 %v6925
        %11351 = vmatprep.subr.mxu0 0.0
        %11352 = vmatpush1.msra.mxu0 %v6924
        %11353 = vmatprep.subr.mxu0 0.0
        %11354 = vmatpush1.msra.mxu0 %v6923
        %11355 = vmatprep.subr.mxu0 0.0
        %11356 = vmatpush1.msra.mxu0 %v6922
        %11357 = vmatprep.subr.mxu0 0.0
        %11358 = vmatpush1.msra.mxu0 %v6921
        %11359 = vmatprep.subr.mxu0 0.0
        %11360 = vmatpush1.msra.mxu0 %v6920
        %11361 = vmatprep.subr.mxu0 0.0
        %11362 = vmatpush1.msra.mxu0 %v6919
        %11363 = vmatprep.subr.mxu0 0.0
        %11364 = vmatpush1.msra.mxu0 %v6918
        %11365 = vmatprep.subr.mxu0 0.0
        %11366 = vmatpush1.msra.mxu0 %v6917
        %11367 = vmatprep.subr.mxu0 0.0
        %11368 = vmatpush1.msra.mxu0 %v6916
        %11369 = vmatprep.subr.mxu0 0.0
        %11370 = vmatpush1.msra.mxu0 %v6915
        %11371 = vmatprep.subr.mxu0 0.0
        %11372 = vmatpush1.msra.mxu0 %v6914
        %11373 = vmatprep.subr.mxu0 0.0
        %11374 = vmatpush2.msra.mxu0 0.0
        %11375 = vmatprep.subr.mxu0 0.0
        %11376 = vmatpush2.msra.mxu0 0.0
        %11377 = vmatprep.subr.mxu0 0.0
        %11378 = vmatpush2.msra.mxu0 0.0
        %11379 = vmatprep.subr.mxu0 0.0
        %11380 = vmatpush2.msra.mxu0 0.0
        %11381 = vmatprep.subr.mxu0 0.0
        %11382 = vmatpush2.msra.mxu0 0.0
        %11383 = vmatprep.subr.mxu0 0.0
        %11384 = vmatpush2.msra.mxu0 0.0
        %11385 = vmatprep.subr.mxu0 0.0
        %11386 = vmatpush2.msra.mxu0 0.0
        %11387 = vmatprep.subr.mxu0 0.0
        %11388 = vmatpush2.msra.mxu0 0.0
        %11389 = vmatprep.subr.mxu0 0.0
        %11390 = vmatpush2.msra.mxu0 0.0
        %11391 = vmatprep.subr.mxu0 0.0
        %11392 = vmatpush2.msra.mxu0 0.0
        %11393 = vmatprep.subr.mxu0 0.0
        %11394 = vmatpush2.msra.mxu0 0.0
        %11395 = vmatprep.subr.mxu0 0.0
        %11396 = vmatpush2.msra.mxu0 0.0
        %11397 = vmatprep.subr.mxu0 0.0
        %11398 = vmatpush2.msra.mxu0 0.0
        %11399 = vmatprep.subr.mxu0 0.0
        %11400 = vmatpush2.msra.mxu0 0.0
        %11401 = vmatprep.subr.mxu0 0.0
        %11402 = vmatpush2.msra.mxu0 0.0
        %11403 = vmatprep.subr.mxu0 0.0
        %11404 = vmatpush2.msra.mxu0 0.0
        %11405 = vmatprep.mubr.f32.mxu0 0.0
        %11406 = vmatmul.mubr.f32.gmra.mxu0 %v6930
        %v11407 = vpop.f32.mrf.mxu0
        %v11408 = vadd.f32 0.0, %v11407
        %v11409 = vpop.f32.mrf.mxu0
        %11410 = vdwg.mxu0
        %v11411 = vld [vmem:[#allocation3] sm:$0xff]
        %v11412 = vld [vmem:[#allocation3 + $0x8] sm:$0xff]
        %v11413 = vld [vmem:[#allocation3 + $0x10] sm:$0xff]
        %v11414 = vld [vmem:[#allocation3 + $0x18] sm:$0xff]
        %v11415 = vld [vmem:[#allocation3 + $0x20] sm:$0xff]
        %v11416 = vld [vmem:[#allocation3 + $0x28] sm:$0xff]
        %v11417 = vld [vmem:[#allocation3 + $0x30] sm:$0xff]
        %v11418 = vld [vmem:[#allocation3 + $0x38] sm:$0xff]
        %v11483 = vrot.slane %v7068, 7
        %vm11484 = vcmask 1041409
        %v11485 = vsel %vm11484, %v11483, %v6998
        %v11486 = vrot.slane %v7138, 6
        %vm11487 = vcmask 1042434
        %v11488 = vsel %vm11487, %v11486, %v11485
        %v11489 = vrot.slane %v7208, 5
        %vm11490 = vcmask 1043459
        %v11491 = vsel %vm11490, %v11489, %v11488
        %v11492 = vrot.slane %v7278, 4
        %vm11493 = vcmask 1044484
        %v11494 = vsel %vm11493, %v11492, %v11491
        %v11495 = vrot.slane %v7348, 3
        %vm11496 = vcmask 1045509
        %v11497 = vsel %vm11496, %v11495, %v11494
        %v11498 = vrot.slane %v7418, 2
        %vm11499 = vcmask 1046534
        %v11500 = vsel %vm11499, %v11498, %v11497
        %v11501 = vrot.slane %v7488, 1
        %vm11502 = vcmask 1047559
        %v11503 = vsel %vm11502, %v11501, %v11500
        %v11504 = vrot.slane %v7628, 7
        %v11505 = vsel %vm11484, %v11504, %v7558
        %v11506 = vrot.slane %v7698, 6
        %v11507 = vsel %vm11487, %v11506, %v11505
        %v11508 = vrot.slane %v7768, 5
        %v11509 = vsel %vm11490, %v11508, %v11507
        %v11510 = vrot.slane %v7838, 4
        %v11511 = vsel %vm11493, %v11510, %v11509
        %v11512 = vrot.slane %v7908, 3
        %v11513 = vsel %vm11496, %v11512, %v11511
        %v11514 = vrot.slane %v7978, 2
        %v11515 = vsel %vm11499, %v11514, %v11513
        %v11516 = vrot.slane %v8048, 1
        %v11517 = vsel %vm11502, %v11516, %v11515
        %v11518 = vrot.slane %v8188, 7
        %v11519 = vsel %vm11484, %v11518, %v8118
        %v11520 = vrot.slane %v8258, 6
        %v11521 = vsel %vm11487, %v11520, %v11519
        %v11522 = vrot.slane %v8328, 5
        %v11523 = vsel %vm11490, %v11522, %v11521
        %v11524 = vrot.slane %v8398, 4
        %v11525 = vsel %vm11493, %v11524, %v11523
        %v11526 = vrot.slane %v8468, 3
        %v11527 = vsel %vm11496, %v11526, %v11525
        %v11528 = vrot.slane %v8538, 2
        %v11529 = vsel %vm11499, %v11528, %v11527
        %v11530 = vrot.slane %v8608, 1
        %v11531 = vsel %vm11502, %v11530, %v11529
        %v11532 = vrot.slane %v8748, 7
        %v11533 = vsel %vm11484, %v11532, %v8678
        %v11534 = vrot.slane %v8818, 6
        %v11535 = vsel %vm11487, %v11534, %v11533
        %v11536 = vrot.slane %v8888, 5
        %v11537 = vsel %vm11490, %v11536, %v11535
        %v11538 = vrot.slane %v8958, 4
        %v11539 = vsel %vm11493, %v11538, %v11537
        %v11540 = vrot.slane %v9028, 3
        %v11541 = vsel %vm11496, %v11540, %v11539
        %v11542 = vrot.slane %v9098, 2
        %v11543 = vsel %vm11499, %v11542, %v11541
        %v11544 = vrot.slane %v9168, 1
        %v11545 = vsel %vm11502, %v11544, %v11543
        %v11546 = vrot.slane %v9308, 7
        %v11547 = vsel %vm11484, %v11546, %v9238
        %v11548 = vrot.slane %v9378, 6
        %v11549 = vsel %vm11487, %v11548, %v11547
        %v11550 = vrot.slane %v9448, 5
        %v11551 = vsel %vm11490, %v11550, %v11549
        %v11552 = vrot.slane %v9518, 4
        %v11553 = vsel %vm11493, %v11552, %v11551
        %v11554 = vrot.slane %v9588, 3
        %v11555 = vsel %vm11496, %v11554, %v11553
        %v11556 = vrot.slane %v9658, 2
        %v11557 = vsel %vm11499, %v11556, %v11555
        %v11558 = vrot.slane %v9728, 1
        %v11559 = vsel %vm11502, %v11558, %v11557
        %v11560 = vrot.slane %v9868, 7
        %v11561 = vsel %vm11484, %v11560, %v9798
        %v11562 = vrot.slane %v9938, 6
        %v11563 = vsel %vm11487, %v11562, %v11561
        %v11564 = vrot.slane %v10008, 5
        %v11565 = vsel %vm11490, %v11564, %v11563
        %v11566 = vrot.slane %v10078, 4
        %v11567 = vsel %vm11493, %v11566, %v11565
        %v11568 = vrot.slane %v10148, 3
        %v11569 = vsel %vm11496, %v11568, %v11567
        %v11570 = vrot.slane %v10218, 2
        %v11571 = vsel %vm11499, %v11570, %v11569
        %v11572 = vrot.slane %v10288, 1
        %v11573 = vsel %vm11502, %v11572, %v11571
        %v11574 = vrot.slane %v10428, 7
        %v11575 = vsel %vm11484, %v11574, %v10358
        %v11576 = vrot.slane %v10498, 6
        %v11577 = vsel %vm11487, %v11576, %v11575
        %v11578 = vrot.slane %v10568, 5
        %v11579 = vsel %vm11490, %v11578, %v11577
        %v11580 = vrot.slane %v10638, 4
        %v11581 = vsel %vm11493, %v11580, %v11579
        %v11582 = vrot.slane %v10708, 3
        %v11583 = vsel %vm11496, %v11582, %v11581
        %v11584 = vrot.slane %v10778, 2
        %v11585 = vsel %vm11499, %v11584, %v11583
        %v11586 = vrot.slane %v10848, 1
        %v11587 = vsel %vm11502, %v11586, %v11585
        %v11588 = vrot.slane %v10988, 7
        %v11589 = vsel %vm11484, %v11588, %v10918
        %v11590 = vrot.slane %v11058, 6
        %v11591 = vsel %vm11487, %v11590, %v11589
        %v11592 = vrot.slane %v11128, 5
        %v11593 = vsel %vm11490, %v11592, %v11591
        %v11594 = vrot.slane %v11198, 4
        %v11595 = vsel %vm11493, %v11594, %v11593
        %v11596 = vrot.slane %v11268, 3
        %v11597 = vsel %vm11496, %v11596, %v11595
        %v11598 = vrot.slane %v11338, 2
        %v11599 = vsel %vm11499, %v11598, %v11597
        %v11600 = vrot.slane %v11408, 1
        %v11601 = vsel %vm11502, %v11600, %v11599
        %11610 = vmax.xlane.f32.xlu0 %v11503
        %v11611 = vpop.xlane.xlu0 %11610
        %11612 = vmax.xlane.f32.xlu0 %v11517
        %v11613 = vpop.xlane.xlu0 %11612
        %11614 = vmax.xlane.f32.xlu0 %v11531
        %v11615 = vpop.xlane.xlu0 %11614
        %11616 = vmax.xlane.f32.xlu0 %v11545
        %v11617 = vpop.xlane.xlu0 %11616
        %11618 = vmax.xlane.f32.xlu0 %v11559
        %v11619 = vpop.xlane.xlu0 %11618
        %11620 = vmax.xlane.f32.xlu0 %v11573
        %v11621 = vpop.xlane.xlu0 %11620
        %11622 = vmax.xlane.f32.xlu0 %v11587
        %v11623 = vpop.xlane.xlu0 %11622
        %11624 = vmax.xlane.f32.xlu0 %v11601
        %v11625 = vpop.xlane.xlu0 %11624
        %v11626 = vmax.f32 %v11411, %v11611
        %v11627 = vmax.f32 %v11412, %v11613
        %v11628 = vmax.f32 %v11413, %v11615
        %v11629 = vmax.f32 %v11414, %v11617
        %v11630 = vmax.f32 %v11415, %v11619
        %v11631 = vmax.f32 %v11416, %v11621
        %v11632 = vmax.f32 %v11417, %v11623
        %v11633 = vmax.f32 %v11418, %v11625
        %v11634 = vsub.f32 %v11411, %v11626
        %v11635 = vsub.f32 %v11412, %v11627
        %v11636 = vsub.f32 %v11413, %v11628
        %v11637 = vsub.f32 %v11414, %v11629
        %v11638 = vsub.f32 %v11415, %v11630
        %v11639 = vsub.f32 %v11416, %v11631
        %v11640 = vsub.f32 %v11417, %v11632
        %v11641 = vsub.f32 %v11418, %v11633
        %v11642 = vmul.f32 %v11634, 1.442695
        %v11643 = vpow.pop %v11642
        %v11644 = vmul.f32 %v11635, 1.442695
        %v11645 = vpow.pop %v11644
        %v11646 = vmul.f32 %v11636, 1.442695
        %v11647 = vpow.pop %v11646
        %v11648 = vmul.f32 %v11637, 1.442695
        %v11649 = vpow.pop %v11648
        %v11650 = vmul.f32 %v11638, 1.442695
        %v11651 = vpow.pop %v11650
        %v11652 = vmul.f32 %v11639, 1.442695
        %v11653 = vpow.pop %v11652
        %v11654 = vmul.f32 %v11640, 1.442695
        %v11655 = vpow.pop %v11654
        %v11656 = vmul.f32 %v11641, 1.442695
        %v11657 = vpow.pop %v11656
        %11659 = vset.pattern.permute.xlu0 0
        %11660 = vperm.xlu0 %11659, %v11626
        %v11661 = vpop.permute.xlu0 %11660
        %11663 = vset.pattern.permute.xlu0 0
        %11664 = vperm.xlu0 %11663, %v11627
        %v11665 = vpop.permute.xlu0 %11664
        %11667 = vset.pattern.permute.xlu0 0
        %11668 = vperm.xlu0 %11667, %v11628
        %v11669 = vpop.permute.xlu0 %11668
        %11671 = vset.pattern.permute.xlu0 0
        %11672 = vperm.xlu0 %11671, %v11629
        %v11673 = vpop.permute.xlu0 %11672
        %11675 = vset.pattern.permute.xlu0 0
        %11676 = vperm.xlu0 %11675, %v11630
        %v11677 = vpop.permute.xlu0 %11676
        %11679 = vset.pattern.permute.xlu0 0
        %11680 = vperm.xlu0 %11679, %v11631
        %v11681 = vpop.permute.xlu0 %11680
        %11683 = vset.pattern.permute.xlu0 0
        %11684 = vperm.xlu0 %11683, %v11632
        %v11685 = vpop.permute.xlu0 %11684
        %11687 = vset.pattern.permute.xlu0 0
        %11688 = vperm.xlu0 %11687, %v11633
        %v11689 = vpop.permute.xlu0 %11688
        %v11690 = vrot.slane %v11661, 1
        %v11691 = vrot.slane %v11661, 2
        %v11692 = vrot.slane %v11661, 3
        %v11693 = vrot.slane %v11661, 4
        %v11694 = vrot.slane %v11661, 5
        %v11695 = vrot.slane %v11661, 6
        %v11696 = vrot.slane %v11661, 7
        %v11697 = vrot.slane %v11665, 1
        %v11698 = vrot.slane %v11665, 2
        %v11699 = vrot.slane %v11665, 3
        %v11700 = vrot.slane %v11665, 4
        %v11701 = vrot.slane %v11665, 5
        %v11702 = vrot.slane %v11665, 6
        %v11703 = vrot.slane %v11665, 7
        %v11704 = vrot.slane %v11669, 1
        %v11705 = vrot.slane %v11669, 2
        %v11706 = vrot.slane %v11669, 3
        %v11707 = vrot.slane %v11669, 4
        %v11708 = vrot.slane %v11669, 5
        %v11709 = vrot.slane %v11669, 6
        %v11710 = vrot.slane %v11669, 7
        %v11711 = vrot.slane %v11673, 1
        %v11712 = vrot.slane %v11673, 2
        %v11713 = vrot.slane %v11673, 3
        %v11714 = vrot.slane %v11673, 4
        %v11715 = vrot.slane %v11673, 5
        %v11716 = vrot.slane %v11673, 6
        %v11717 = vrot.slane %v11673, 7
        %v11718 = vrot.slane %v11677, 1
        %v11719 = vrot.slane %v11677, 2
        %v11720 = vrot.slane %v11677, 3
        %v11721 = vrot.slane %v11677, 4
        %v11722 = vrot.slane %v11677, 5
        %v11723 = vrot.slane %v11677, 6
        %v11724 = vrot.slane %v11677, 7
        %v11725 = vrot.slane %v11681, 1
        %v11726 = vrot.slane %v11681, 2
        %v11727 = vrot.slane %v11681, 3
        %v11728 = vrot.slane %v11681, 4
        %v11729 = vrot.slane %v11681, 5
        %v11730 = vrot.slane %v11681, 6
        %v11731 = vrot.slane %v11681, 7
        %v11732 = vrot.slane %v11685, 1
        %v11733 = vrot.slane %v11685, 2
        %v11734 = vrot.slane %v11685, 3
        %v11735 = vrot.slane %v11685, 4
        %v11736 = vrot.slane %v11685, 5
        %v11737 = vrot.slane %v11685, 6
        %v11738 = vrot.slane %v11685, 7
        %v11739 = vrot.slane %v11689, 1
        %v11740 = vrot.slane %v11689, 2
        %v11741 = vrot.slane %v11689, 3
        %v11742 = vrot.slane %v11689, 4
        %v11743 = vrot.slane %v11689, 5
        %v11744 = vrot.slane %v11689, 6
        %v11745 = vrot.slane %v11689, 7
        %v11810 = vsub.f32 %v6998, %v11661
        %v11811 = vsub.f32 %v7068, %v11690
        %v11812 = vsub.f32 %v7138, %v11691
        %v11813 = vsub.f32 %v7208, %v11692
        %v11814 = vsub.f32 %v7278, %v11693
        %v11815 = vsub.f32 %v7348, %v11694
        %v11816 = vsub.f32 %v7418, %v11695
        %v11817 = vsub.f32 %v7488, %v11696
        %v11818 = vsub.f32 %v7558, %v11665
        %v11819 = vsub.f32 %v7628, %v11697
        %v11820 = vsub.f32 %v7698, %v11698
        %v11821 = vsub.f32 %v7768, %v11699
        %v11822 = vsub.f32 %v7838, %v11700
        %v11823 = vsub.f32 %v7908, %v11701
        %v11824 = vsub.f32 %v7978, %v11702
        %v11825 = vsub.f32 %v8048, %v11703
        %v11826 = vsub.f32 %v8118, %v11669
        %v11827 = vsub.f32 %v8188, %v11704
        %v11828 = vsub.f32 %v8258, %v11705
        %v11829 = vsub.f32 %v8328, %v11706
        %v11830 = vsub.f32 %v8398, %v11707
        %v11831 = vsub.f32 %v8468, %v11708
        %v11832 = vsub.f32 %v8538, %v11709
        %v11833 = vsub.f32 %v8608, %v11710
        %v11834 = vsub.f32 %v8678, %v11673
        %v11835 = vsub.f32 %v8748, %v11711
        %v11836 = vsub.f32 %v8818, %v11712
        %v11837 = vsub.f32 %v8888, %v11713
        %v11838 = vsub.f32 %v8958, %v11714
        %v11839 = vsub.f32 %v9028, %v11715
        %v11840 = vsub.f32 %v9098, %v11716
        %v11841 = vsub.f32 %v9168, %v11717
        %v11842 = vsub.f32 %v9238, %v11677
        %v11843 = vsub.f32 %v9308, %v11718
        %v11844 = vsub.f32 %v9378, %v11719
        %v11845 = vsub.f32 %v9448, %v11720
        %v11846 = vsub.f32 %v9518, %v11721
        %v11847 = vsub.f32 %v9588, %v11722
        %v11848 = vsub.f32 %v9658, %v11723
        %v11849 = vsub.f32 %v9728, %v11724
        %v11850 = vsub.f32 %v9798, %v11681
        %v11851 = vsub.f32 %v9868, %v11725
        %v11852 = vsub.f32 %v9938, %v11726
        %v11853 = vsub.f32 %v10008, %v11727
        %v11854 = vsub.f32 %v10078, %v11728
        %v11855 = vsub.f32 %v10148, %v11729
        %v11856 = vsub.f32 %v10218, %v11730
        %v11857 = vsub.f32 %v10288, %v11731
        %v11858 = vsub.f32 %v10358, %v11685
        %v11859 = vsub.f32 %v10428, %v11732
        %v11860 = vsub.f32 %v10498, %v11733
        %v11861 = vsub.f32 %v10568, %v11734
        %v11862 = vsub.f32 %v10638, %v11735
        %v11863 = vsub.f32 %v10708, %v11736
        %v11864 = vsub.f32 %v10778, %v11737
        %v11865 = vsub.f32 %v10848, %v11738
        %v11866 = vsub.f32 %v10918, %v11689
        %v11867 = vsub.f32 %v10988, %v11739
        %v11868 = vsub.f32 %v11058, %v11740
        %v11869 = vsub.f32 %v11128, %v11741
        %v11870 = vsub.f32 %v11198, %v11742
        %v11871 = vsub.f32 %v11268, %v11743
        %v11872 = vsub.f32 %v11338, %v11744
        %v11873 = vsub.f32 %v11408, %v11745
        %v11874 = vmul.f32 %v11810, 1.442695
        %v11875 = vpow.pop %v11874
        %v11876 = vmul.f32 %v11811, 1.442695
        %v11877 = vpow.pop %v11876
        %v11878 = vmul.f32 %v11812, 1.442695
        %v11879 = vpow.pop %v11878
        %v11880 = vmul.f32 %v11813, 1.442695
        %v11881 = vpow.pop %v11880
        %v11882 = vmul.f32 %v11814, 1.442695
        %v11883 = vpow.pop %v11882
        %v11884 = vmul.f32 %v11815, 1.442695
        %v11885 = vpow.pop %v11884
        %v11886 = vmul.f32 %v11816, 1.442695
        %v11887 = vpow.pop %v11886
        %v11888 = vmul.f32 %v11817, 1.442695
        %v11889 = vpow.pop %v11888
        %v11890 = vmul.f32 %v11818, 1.442695
        %v11891 = vpow.pop %v11890
        %v11892 = vmul.f32 %v11819, 1.442695
        %v11893 = vpow.pop %v11892
        %v11894 = vmul.f32 %v11820, 1.442695
        %v11895 = vpow.pop %v11894
        %v11896 = vmul.f32 %v11821, 1.442695
        %v11897 = vpow.pop %v11896
        %v11898 = vmul.f32 %v11822, 1.442695
        %v11899 = vpow.pop %v11898
        %v11900 = vmul.f32 %v11823, 1.442695
        %v11901 = vpow.pop %v11900
        %v11902 = vmul.f32 %v11824, 1.442695
        %v11903 = vpow.pop %v11902
        %v11904 = vmul.f32 %v11825, 1.442695
        %v11905 = vpow.pop %v11904
        %v11906 = vmul.f32 %v11826, 1.442695
        %v11907 = vpow.pop %v11906
        %v11908 = vmul.f32 %v11827, 1.442695
        %v11909 = vpow.pop %v11908
        %v11910 = vmul.f32 %v11828, 1.442695
        %v11911 = vpow.pop %v11910
        %v11912 = vmul.f32 %v11829, 1.442695
        %v11913 = vpow.pop %v11912
        %v11914 = vmul.f32 %v11830, 1.442695
        %v11915 = vpow.pop %v11914
        %v11916 = vmul.f32 %v11831, 1.442695
        %v11917 = vpow.pop %v11916
        %v11918 = vmul.f32 %v11832, 1.442695
        %v11919 = vpow.pop %v11918
        %v11920 = vmul.f32 %v11833, 1.442695
        %v11921 = vpow.pop %v11920
        %v11922 = vmul.f32 %v11834, 1.442695
        %v11923 = vpow.pop %v11922
        %v11924 = vmul.f32 %v11835, 1.442695
        %v11925 = vpow.pop %v11924
        %v11926 = vmul.f32 %v11836, 1.442695
        %v11927 = vpow.pop %v11926
        %v11928 = vmul.f32 %v11837, 1.442695
        %v11929 = vpow.pop %v11928
        %v11930 = vmul.f32 %v11838, 1.442695
        %v11931 = vpow.pop %v11930
        %v11932 = vmul.f32 %v11839, 1.442695
        %v11933 = vpow.pop %v11932
        %v11934 = vmul.f32 %v11840, 1.442695
        %v11935 = vpow.pop %v11934
        %v11936 = vmul.f32 %v11841, 1.442695
        %v11937 = vpow.pop %v11936
        %v11938 = vmul.f32 %v11842, 1.442695
        %v11939 = vpow.pop %v11938
        %v11940 = vmul.f32 %v11843, 1.442695
        %v11941 = vpow.pop %v11940
        %v11942 = vmul.f32 %v11844, 1.442695
        %v11943 = vpow.pop %v11942
        %v11944 = vmul.f32 %v11845, 1.442695
        %v11945 = vpow.pop %v11944
        %v11946 = vmul.f32 %v11846, 1.442695
        %v11947 = vpow.pop %v11946
        %v11948 = vmul.f32 %v11847, 1.442695
        %v11949 = vpow.pop %v11948
        %v11950 = vmul.f32 %v11848, 1.442695
        %v11951 = vpow.pop %v11950
        %v11952 = vmul.f32 %v11849, 1.442695
        %v11953 = vpow.pop %v11952
        %v11954 = vmul.f32 %v11850, 1.442695
        %v11955 = vpow.pop %v11954
        %v11956 = vmul.f32 %v11851, 1.442695
        %v11957 = vpow.pop %v11956
        %v11958 = vmul.f32 %v11852, 1.442695
        %v11959 = vpow.pop %v11958
        %v11960 = vmul.f32 %v11853, 1.442695
        %v11961 = vpow.pop %v11960
        %v11962 = vmul.f32 %v11854, 1.442695
        %v11963 = vpow.pop %v11962
        %v11964 = vmul.f32 %v11855, 1.442695
        %v11965 = vpow.pop %v11964
        %v11966 = vmul.f32 %v11856, 1.442695
        %v11967 = vpow.pop %v11966
        %v11968 = vmul.f32 %v11857, 1.442695
        %v11969 = vpow.pop %v11968
        %v11970 = vmul.f32 %v11858, 1.442695
        %v11971 = vpow.pop %v11970
        %v11972 = vmul.f32 %v11859, 1.442695
        %v11973 = vpow.pop %v11972
        %v11974 = vmul.f32 %v11860, 1.442695
        %v11975 = vpow.pop %v11974
        %v11976 = vmul.f32 %v11861, 1.442695
        %v11977 = vpow.pop %v11976
        %v11978 = vmul.f32 %v11862, 1.442695
        %v11979 = vpow.pop %v11978
        %v11980 = vmul.f32 %v11863, 1.442695
        %v11981 = vpow.pop %v11980
        %v11982 = vmul.f32 %v11864, 1.442695
        %v11983 = vpow.pop %v11982
        %v11984 = vmul.f32 %v11865, 1.442695
        %v11985 = vpow.pop %v11984
        %v11986 = vmul.f32 %v11866, 1.442695
        %v11987 = vpow.pop %v11986
        %v11988 = vmul.f32 %v11867, 1.442695
        %v11989 = vpow.pop %v11988
        %v11990 = vmul.f32 %v11868, 1.442695
        %v11991 = vpow.pop %v11990
        %v11992 = vmul.f32 %v11869, 1.442695
        %v11993 = vpow.pop %v11992
        %v11994 = vmul.f32 %v11870, 1.442695
        %v11995 = vpow.pop %v11994
        %v11996 = vmul.f32 %v11871, 1.442695
        %v11997 = vpow.pop %v11996
        %v11998 = vmul.f32 %v11872, 1.442695
        %v11999 = vpow.pop %v11998
        %v12000 = vmul.f32 %v11873, 1.442695
        %v12001 = vpow.pop %v12000
        %v12002 = vld [vmem:[#allocation4] sm:$0xff]
        %v12003 = vld [vmem:[#allocation4 + $0x8] sm:$0xff]
        %v12004 = vld [vmem:[#allocation4 + $0x10] sm:$0xff]
        %v12005 = vld [vmem:[#allocation4 + $0x18] sm:$0xff]
        %v12006 = vld [vmem:[#allocation4 + $0x20] sm:$0xff]
        %v12007 = vld [vmem:[#allocation4 + $0x28] sm:$0xff]
        %v12008 = vld [vmem:[#allocation4 + $0x30] sm:$0xff]
        %v12009 = vld [vmem:[#allocation4 + $0x38] sm:$0xff]
        %v12010 = vmul.f32 %v11643, %v12002
        %v12011 = vmul.f32 %v11645, %v12003
        %v12012 = vmul.f32 %v11647, %v12004
        %v12013 = vmul.f32 %v11649, %v12005
        %v12014 = vmul.f32 %v11651, %v12006
        %v12015 = vmul.f32 %v11653, %v12007
        %v12016 = vmul.f32 %v11655, %v12008
        %v12017 = vmul.f32 %v11657, %v12009
        %v12082 = vrot.slane %v11877, 7
        %v12083 = vsel %vm11484, %v12082, %v11875
        %v12084 = vrot.slane %v11879, 6
        %v12085 = vsel %vm11487, %v12084, %v12083
        %v12086 = vrot.slane %v11881, 5
        %v12087 = vsel %vm11490, %v12086, %v12085
        %v12088 = vrot.slane %v11883, 4
        %v12089 = vsel %vm11493, %v12088, %v12087
        %v12090 = vrot.slane %v11885, 3
        %v12091 = vsel %vm11496, %v12090, %v12089
        %v12092 = vrot.slane %v11887, 2
        %v12093 = vsel %vm11499, %v12092, %v12091
        %v12094 = vrot.slane %v11889, 1
        %v12095 = vsel %vm11502, %v12094, %v12093
        %v12096 = vrot.slane %v11893, 7
        %v12097 = vsel %vm11484, %v12096, %v11891
        %v12098 = vrot.slane %v11895, 6
        %v12099 = vsel %vm11487, %v12098, %v12097
        %v12100 = vrot.slane %v11897, 5
        %v12101 = vsel %vm11490, %v12100, %v12099
        %v12102 = vrot.slane %v11899, 4
        %v12103 = vsel %vm11493, %v12102, %v12101
        %v12104 = vrot.slane %v11901, 3
        %v12105 = vsel %vm11496, %v12104, %v12103
        %v12106 = vrot.slane %v11903, 2
        %v12107 = vsel %vm11499, %v12106, %v12105
        %v12108 = vrot.slane %v11905, 1
        %v12109 = vsel %vm11502, %v12108, %v12107
        %v12110 = vrot.slane %v11909, 7
        %v12111 = vsel %vm11484, %v12110, %v11907
        %v12112 = vrot.slane %v11911, 6
        %v12113 = vsel %vm11487, %v12112, %v12111
        %v12114 = vrot.slane %v11913, 5
        %v12115 = vsel %vm11490, %v12114, %v12113
        %v12116 = vrot.slane %v11915, 4
        %v12117 = vsel %vm11493, %v12116, %v12115
        %v12118 = vrot.slane %v11917, 3
        %v12119 = vsel %vm11496, %v12118, %v12117
        %v12120 = vrot.slane %v11919, 2
        %v12121 = vsel %vm11499, %v12120, %v12119
        %v12122 = vrot.slane %v11921, 1
        %v12123 = vsel %vm11502, %v12122, %v12121
        %v12124 = vrot.slane %v11925, 7
        %v12125 = vsel %vm11484, %v12124, %v11923
        %v12126 = vrot.slane %v11927, 6
        %v12127 = vsel %vm11487, %v12126, %v12125
        %v12128 = vrot.slane %v11929, 5
        %v12129 = vsel %vm11490, %v12128, %v12127
        %v12130 = vrot.slane %v11931, 4
        %v12131 = vsel %vm11493, %v12130, %v12129
        %v12132 = vrot.slane %v11933, 3
        %v12133 = vsel %vm11496, %v12132, %v12131
        %v12134 = vrot.slane %v11935, 2
        %v12135 = vsel %vm11499, %v12134, %v12133
        %v12136 = vrot.slane %v11937, 1
        %v12137 = vsel %vm11502, %v12136, %v12135
        %v12138 = vrot.slane %v11941, 7
        %v12139 = vsel %vm11484, %v12138, %v11939
        %v12140 = vrot.slane %v11943, 6
        %v12141 = vsel %vm11487, %v12140, %v12139
        %v12142 = vrot.slane %v11945, 5
        %v12143 = vsel %vm11490, %v12142, %v12141
        %v12144 = vrot.slane %v11947, 4
        %v12145 = vsel %vm11493, %v12144, %v12143
        %v12146 = vrot.slane %v11949, 3
        %v12147 = vsel %vm11496, %v12146, %v12145
        %v12148 = vrot.slane %v11951, 2
        %v12149 = vsel %vm11499, %v12148, %v12147
        %v12150 = vrot.slane %v11953, 1
        %v12151 = vsel %vm11502, %v12150, %v12149
        %v12152 = vrot.slane %v11957, 7
        %v12153 = vsel %vm11484, %v12152, %v11955
        %v12154 = vrot.slane %v11959, 6
        %v12155 = vsel %vm11487, %v12154, %v12153
        %v12156 = vrot.slane %v11961, 5
        %v12157 = vsel %vm11490, %v12156, %v12155
        %v12158 = vrot.slane %v11963, 4
        %v12159 = vsel %vm11493, %v12158, %v12157
        %v12160 = vrot.slane %v11965, 3
        %v12161 = vsel %vm11496, %v12160, %v12159
        %v12162 = vrot.slane %v11967, 2
        %v12163 = vsel %vm11499, %v12162, %v12161
        %v12164 = vrot.slane %v11969, 1
        %v12165 = vsel %vm11502, %v12164, %v12163
        %v12166 = vrot.slane %v11973, 7
        %v12167 = vsel %vm11484, %v12166, %v11971
        %v12168 = vrot.slane %v11975, 6
        %v12169 = vsel %vm11487, %v12168, %v12167
        %v12170 = vrot.slane %v11977, 5
        %v12171 = vsel %vm11490, %v12170, %v12169
        %v12172 = vrot.slane %v11979, 4
        %v12173 = vsel %vm11493, %v12172, %v12171
        %v12174 = vrot.slane %v11981, 3
        %v12175 = vsel %vm11496, %v12174, %v12173
        %v12176 = vrot.slane %v11983, 2
        %v12177 = vsel %vm11499, %v12176, %v12175
        %v12178 = vrot.slane %v11985, 1
        %v12179 = vsel %vm11502, %v12178, %v12177
        %v12180 = vrot.slane %v11989, 7
        %v12181 = vsel %vm11484, %v12180, %v11987
        %v12182 = vrot.slane %v11991, 6
        %v12183 = vsel %vm11487, %v12182, %v12181
        %v12184 = vrot.slane %v11993, 5
        %v12185 = vsel %vm11490, %v12184, %v12183
        %v12186 = vrot.slane %v11995, 4
        %v12187 = vsel %vm11493, %v12186, %v12185
        %v12188 = vrot.slane %v11997, 3
        %v12189 = vsel %vm11496, %v12188, %v12187
        %v12190 = vrot.slane %v11999, 2
        %v12191 = vsel %vm11499, %v12190, %v12189
        %v12192 = vrot.slane %v12001, 1
        %v12193 = vsel %vm11502, %v12192, %v12191
        %12202 = vadd.xlane.f32.xlu0 %v12095
        %v12203 = vpop.xlane.xlu0 %12202
        %12204 = vadd.xlane.f32.xlu0 %v12109
        %v12205 = vpop.xlane.xlu0 %12204
        %12206 = vadd.xlane.f32.xlu0 %v12123
        %v12207 = vpop.xlane.xlu0 %12206
        %12208 = vadd.xlane.f32.xlu0 %v12137
        %v12209 = vpop.xlane.xlu0 %12208
        %12210 = vadd.xlane.f32.xlu0 %v12151
        %v12211 = vpop.xlane.xlu0 %12210
        %12212 = vadd.xlane.f32.xlu0 %v12165
        %v12213 = vpop.xlane.xlu0 %12212
        %12214 = vadd.xlane.f32.xlu0 %v12179
        %v12215 = vpop.xlane.xlu0 %12214
        %12216 = vadd.xlane.f32.xlu0 %v12193
        %v12217 = vpop.xlane.xlu0 %12216
        %v12218 = vadd.f32 %v12010, %v12203
        %v12219 = vadd.f32 %v12011, %v12205
        %v12220 = vadd.f32 %v12012, %v12207
        %v12221 = vadd.f32 %v12013, %v12209
        %v12222 = vadd.f32 %v12014, %v12211
        %v12223 = vadd.f32 %v12015, %v12213
        %v12224 = vadd.f32 %v12016, %v12215
        %v12225 = vadd.f32 %v12017, %v12217
        %vm12226 = vcmask 7168
        %12227 = vst.msk [vmem:[#allocation4] sm:$0xff] %vm12226, %v12218
        %12228 = vst.msk [vmem:[#allocation4 + $0x8] sm:$0xff] %vm12226, %v12219
        %12229 = vst.msk [vmem:[#allocation4 + $0x10] sm:$0xff] %vm12226, %v12220
        %12230 = vst.msk [vmem:[#allocation4 + $0x18] sm:$0xff] %vm12226, %v12221
        %12231 = vst.msk [vmem:[#allocation4 + $0x20] sm:$0xff] %vm12226, %v12222
        %12232 = vst.msk [vmem:[#allocation4 + $0x28] sm:$0xff] %vm12226, %v12223
        %12233 = vst.msk [vmem:[#allocation4 + $0x30] sm:$0xff] %vm12226, %v12224
        %12234 = vst.msk [vmem:[#allocation4 + $0x38] sm:$0xff] %vm12226, %v12225
        %v12235 = vld [vmem:[#allocation5] sm:$0xff]
        %v12236 = vld [vmem:[#allocation5 + $0x8] sm:$0xff]
        %v12237 = vld [vmem:[#allocation5 + $0x10] sm:$0xff]
        %v12238 = vld [vmem:[#allocation5 + $0x18] sm:$0xff]
        %v12239 = vld [vmem:[#allocation5 + $0x20] sm:$0xff]
        %v12240 = vld [vmem:[#allocation5 + $0x28] sm:$0xff]
        %v12241 = vld [vmem:[#allocation5 + $0x30] sm:$0xff]
        %v12242 = vld [vmem:[#allocation5 + $0x38] sm:$0xff]
        %12244 = vset.pattern.permute.xlu0 0
        %12245 = vperm.xlu0 %12244, %v11643
        %v12246 = vpop.permute.xlu0 %12245
        %12249 = vset.pattern.permute.xlu0 0
        %12250 = vperm.xlu0 %12249, %v11645
        %v12251 = vpop.permute.xlu0 %12250
        %12254 = vset.pattern.permute.xlu0 0
        %12255 = vperm.xlu0 %12254, %v11647
        %v12256 = vpop.permute.xlu0 %12255
        %12259 = vset.pattern.permute.xlu0 0
        %12260 = vperm.xlu0 %12259, %v11649
        %v12261 = vpop.permute.xlu0 %12260
        %12264 = vset.pattern.permute.xlu0 0
        %12265 = vperm.xlu0 %12264, %v11651
        %v12266 = vpop.permute.xlu0 %12265
        %12269 = vset.pattern.permute.xlu0 0
        %12270 = vperm.xlu0 %12269, %v11653
        %v12271 = vpop.permute.xlu0 %12270
        %12274 = vset.pattern.permute.xlu0 0
        %12275 = vperm.xlu0 %12274, %v11655
        %v12276 = vpop.permute.xlu0 %12275
        %12279 = vset.pattern.permute.xlu0 0
        %12280 = vperm.xlu0 %12279, %v11657
        %v12281 = vpop.permute.xlu0 %12280
        %v12283 = vmul.f32 %v12246, %v12235
        %v12284 = vmul.f32 %v12251, %v12236
        %v12285 = vmul.f32 %v12256, %v12237
        %v12286 = vmul.f32 %v12261, %v12238
        %v12287 = vmul.f32 %v12266, %v12239
        %v12288 = vmul.f32 %v12271, %v12240
        %v12289 = vmul.f32 %v12276, %v12241
        %v12290 = vmul.f32 %v12281, %v12242
        %v12291 = vld [vmem:[%s342] sm:$0xff]
        %v12292 = vld [vmem:[%s342 + $0x8] sm:$0xff]
        %v12293 = vld [vmem:[%s342 + $0x10] sm:$0xff]
        %v12294 = vld [vmem:[%s342 + $0x18] sm:$0xff]
        %v12295 = vld [vmem:[%s342 + $0x20] sm:$0xff]
        %v12296 = vld [vmem:[%s342 + $0x28] sm:$0xff]
        %v12297 = vld [vmem:[%s342 + $0x30] sm:$0xff]
        %v12298 = vld [vmem:[%s342 + $0x38] sm:$0xff]
        %v12299 = vld [vmem:[%s342 + $0x40] sm:$0xff]
        %v12300 = vld [vmem:[%s342 + $0x48] sm:$0xff]
        %v12301 = vld [vmem:[%s342 + $0x50] sm:$0xff]
        %v12302 = vld [vmem:[%s342 + $0x58] sm:$0xff]
        %v12303 = vld [vmem:[%s342 + $0x60] sm:$0xff]
        %v12304 = vld [vmem:[%s342 + $0x68] sm:$0xff]
        %v12305 = vld [vmem:[%s342 + $0x70] sm:$0xff]
        %v12306 = vld [vmem:[%s342 + $0x78] sm:$0xff]
        %12307 = vmatprep.subr.mxu0 0.0
        %12308 = vmatpush1.msra.mxu0 %v12306
        %12309 = vmatprep.subr.mxu0 0.0
        %12310 = vmatpush1.msra.mxu0 %v12305
        %12311 = vmatprep.subr.mxu0 0.0
        %12312 = vmatpush1.msra.mxu0 %v12304
        %12313 = vmatprep.subr.mxu0 0.0
        %12314 = vmatpush1.msra.mxu0 %v12303
        %12315 = vmatprep.subr.mxu0 0.0
        %12316 = vmatpush1.msra.mxu0 %v12302
        %12317 = vmatprep.subr.mxu0 0.0
        %12318 = vmatpush1.msra.mxu0 %v12301
        %12319 = vmatprep.subr.mxu0 0.0
        %12320 = vmatpush1.msra.mxu0 %v12300
        %12321 = vmatprep.subr.mxu0 0.0
        %12322 = vmatpush1.msra.mxu0 %v12299
        %12323 = vmatprep.subr.mxu0 0.0
        %12324 = vmatpush1.msra.mxu0 %v12298
        %12325 = vmatprep.subr.mxu0 0.0
        %12326 = vmatpush1.msra.mxu0 %v12297
        %12327 = vmatprep.subr.mxu0 0.0
        %12328 = vmatpush1.msra.mxu0 %v12296
        %12329 = vmatprep.subr.mxu0 0.0
        %12330 = vmatpush1.msra.mxu0 %v12295
        %12331 = vmatprep.subr.mxu0 0.0
        %12332 = vmatpush1.msra.mxu0 %v12294
        %12333 = vmatprep.subr.mxu0 0.0
        %12334 = vmatpush1.msra.mxu0 %v12293
        %12335 = vmatprep.subr.mxu0 0.0
        %12336 = vmatpush1.msra.mxu0 %v12292
        %12337 = vmatprep.subr.mxu0 0.0
        %12338 = vmatpush1.msra.mxu0 %v12291
        %12339 = vmatprep.subr.mxu0 0.0
        %12340 = vmatpush2.msra.mxu0 0.0
        %12341 = vmatprep.subr.mxu0 0.0
        %12342 = vmatpush2.msra.mxu0 0.0
        %12343 = vmatprep.subr.mxu0 0.0
        %12344 = vmatpush2.msra.mxu0 0.0
        %12345 = vmatprep.subr.mxu0 0.0
        %12346 = vmatpush2.msra.mxu0 0.0
        %12347 = vmatprep.subr.mxu0 0.0
        %12348 = vmatpush2.msra.mxu0 0.0
        %12349 = vmatprep.subr.mxu0 0.0
        %12350 = vmatpush2.msra.mxu0 0.0
        %12351 = vmatprep.subr.mxu0 0.0
        %12352 = vmatpush2.msra.mxu0 0.0
        %12353 = vmatprep.subr.mxu0 0.0
        %12354 = vmatpush2.msra.mxu0 0.0
        %12355 = vmatprep.subr.mxu0 0.0
        %12356 = vmatpush2.msra.mxu0 0.0
        %12357 = vmatprep.subr.mxu0 0.0
        %12358 = vmatpush2.msra.mxu0 0.0
        %12359 = vmatprep.subr.mxu0 0.0
        %12360 = vmatpush2.msra.mxu0 0.0
        %12361 = vmatprep.subr.mxu0 0.0
        %12362 = vmatpush2.msra.mxu0 0.0
        %12363 = vmatprep.subr.mxu0 0.0
        %12364 = vmatpush2.msra.mxu0 0.0
        %12365 = vmatprep.subr.mxu0 0.0
        %12366 = vmatpush2.msra.mxu0 0.0
        %12367 = vmatprep.subr.mxu0 0.0
        %12368 = vmatpush2.msra.mxu0 0.0
        %12369 = vmatprep.subr.mxu0 0.0
        %12370 = vmatpush2.msra.mxu0 0.0
        %12371 = vmatprep.mubr.f32.mxu0 0.0
        %12372 = vmatmul.mubr.f32.gmra.mxu0 %v12095
        %v12373 = vpop.f32.mrf.mxu0
        %v12374 = vadd.f32 0.0, %v12373
        %v12375 = vpop.f32.mrf.mxu0
        %12376 = vmatprep.mubr.f32.mxu0 0.0
        %12377 = vmatmul.mubr.f32.gmra.mxu0 %v12109
        %v12378 = vpop.f32.mrf.mxu0
        %v12379 = vadd.f32 0.0, %v12378
        %v12380 = vpop.f32.mrf.mxu0
        %12381 = vmatprep.mubr.f32.mxu0 0.0
        %12382 = vmatmul.mubr.f32.gmra.mxu0 %v12123
        %v12383 = vpop.f32.mrf.mxu0
        %v12384 = vadd.f32 0.0, %v12383
        %v12385 = vpop.f32.mrf.mxu0
        %12386 = vmatprep.mubr.f32.mxu0 0.0
        %12387 = vmatmul.mubr.f32.gmra.mxu0 %v12137
        %v12388 = vpop.f32.mrf.mxu0
        %v12389 = vadd.f32 0.0, %v12388
        %v12390 = vpop.f32.mrf.mxu0
        %12391 = vmatprep.mubr.f32.mxu0 0.0
        %12392 = vmatmul.mubr.f32.gmra.mxu0 %v12151
        %v12393 = vpop.f32.mrf.mxu0
        %v12394 = vadd.f32 0.0, %v12393
        %v12395 = vpop.f32.mrf.mxu0
        %12396 = vmatprep.mubr.f32.mxu0 0.0
        %12397 = vmatmul.mubr.f32.gmra.mxu0 %v12165
        %v12398 = vpop.f32.mrf.mxu0
        %v12399 = vadd.f32 0.0, %v12398
        %v12400 = vpop.f32.mrf.mxu0
        %12401 = vmatprep.mubr.f32.mxu0 0.0
        %12402 = vmatmul.mubr.f32.gmra.mxu0 %v12179
        %v12403 = vpop.f32.mrf.mxu0
        %v12404 = vadd.f32 0.0, %v12403
        %v12405 = vpop.f32.mrf.mxu0
        %12406 = vmatprep.mubr.f32.mxu0 0.0
        %12407 = vmatmul.mubr.f32.gmra.mxu0 %v12193
        %v12408 = vpop.f32.mrf.mxu0
        %v12409 = vadd.f32 0.0, %v12408
        %v12410 = vpop.f32.mrf.mxu0
        %12411 = vdwg.mxu0
        %v12412 = vadd.f32 %v12283, %v12374
        %v12413 = vadd.f32 %v12284, %v12379
        %v12414 = vadd.f32 %v12285, %v12384
        %v12415 = vadd.f32 %v12286, %v12389
        %v12416 = vadd.f32 %v12287, %v12394
        %v12417 = vadd.f32 %v12288, %v12399
        %v12418 = vadd.f32 %v12289, %v12404
        %v12419 = vadd.f32 %v12290, %v12409
        %12420 = vst [vmem:[#allocation5] sm:$0xff] %v12412
        %12421 = vst [vmem:[#allocation5 + $0x8] sm:$0xff] %v12413
        %12422 = vst [vmem:[#allocation5 + $0x10] sm:$0xff] %v12414
        %12423 = vst [vmem:[#allocation5 + $0x18] sm:$0xff] %v12415
        %12424 = vst [vmem:[#allocation5 + $0x20] sm:$0xff] %v12416
        %12425 = vst [vmem:[#allocation5 + $0x28] sm:$0xff] %v12417
        %12426 = vst [vmem:[#allocation5 + $0x30] sm:$0xff] %v12418
        %12427 = vst [vmem:[#allocation5 + $0x38] sm:$0xff] %v12419
        %12428 = vst.msk [vmem:[#allocation3] sm:$0xff] %vm12226, %v11626
        %12429 = vst.msk [vmem:[#allocation3 + $0x8] sm:$0xff] %vm12226, %v11627
        %12430 = vst.msk [vmem:[#allocation3 + $0x10] sm:$0xff] %vm12226, %v11628
        %12431 = vst.msk [vmem:[#allocation3 + $0x18] sm:$0xff] %vm12226, %v11629
        %12432 = vst.msk [vmem:[#allocation3 + $0x20] sm:$0xff] %vm12226, %v11630
        %12433 = vst.msk [vmem:[#allocation3 + $0x28] sm:$0xff] %vm12226, %v11631
        %12434 = vst.msk [vmem:[#allocation3 + $0x30] sm:$0xff] %vm12226, %v11632
        %12435 = vst.msk [vmem:[#allocation3 + $0x38] sm:$0xff] %vm12226, %v11633
        %p12436 = scmp.eq.s32.totalorder %s34, 1
        // Predicated region
        $region65: #{tpu_custom_call.1} parent=43 // pred_check
          %p12437 = pneg %p12436
        $region66: #{tpu_custom_call.1} parent=43 // pred_check_branch
          %12439 = sbr.rel (%p12437) target = $region68
        $region67: #{tpu_custom_call.1} parent=43 // pred_region
          %v12440 = vld [vmem:[#allocation4] sm:$0xff]
          %v12441 = vld [vmem:[#allocation4 + $0x8] sm:$0xff]
          %v12442 = vld [vmem:[#allocation4 + $0x10] sm:$0xff]
          %v12443 = vld [vmem:[#allocation4 + $0x18] sm:$0xff]
          %v12444 = vld [vmem:[#allocation4 + $0x20] sm:$0xff]
          %v12445 = vld [vmem:[#allocation4 + $0x28] sm:$0xff]
          %v12446 = vld [vmem:[#allocation4 + $0x30] sm:$0xff]
          %v12447 = vld [vmem:[#allocation4 + $0x38] sm:$0xff]
          %v12448 = vrcp.pop %v12440
          %v12449 = vrcp.pop %v12441
          %v12450 = vrcp.pop %v12442
          %v12451 = vrcp.pop %v12443
          %v12452 = vrcp.pop %v12444
          %v12453 = vrcp.pop %v12445
          %v12454 = vrcp.pop %v12446
          %v12455 = vrcp.pop %v12447
          %v12456 = vld [vmem:[#allocation5] sm:$0xff]
          %v12457 = vld [vmem:[#allocation5 + $0x8] sm:$0xff]
          %v12458 = vld [vmem:[#allocation5 + $0x10] sm:$0xff]
          %v12459 = vld [vmem:[#allocation5 + $0x18] sm:$0xff]
          %v12460 = vld [vmem:[#allocation5 + $0x20] sm:$0xff]
          %v12461 = vld [vmem:[#allocation5 + $0x28] sm:$0xff]
          %v12462 = vld [vmem:[#allocation5 + $0x30] sm:$0xff]
          %v12463 = vld [vmem:[#allocation5 + $0x38] sm:$0xff]
          %12465 = vset.pattern.permute.xlu0 0
          %12466 = vperm.xlu0 %12465, %v12448
          %v12467 = vpop.permute.xlu0 %12466
          %12470 = vset.pattern.permute.xlu0 0
          %12471 = vperm.xlu0 %12470, %v12449
          %v12472 = vpop.permute.xlu0 %12471
          %12475 = vset.pattern.permute.xlu0 0
          %12476 = vperm.xlu0 %12475, %v12450
          %v12477 = vpop.permute.xlu0 %12476
          %12480 = vset.pattern.permute.xlu0 0
          %12481 = vperm.xlu0 %12480, %v12451
          %v12482 = vpop.permute.xlu0 %12481
          %12485 = vset.pattern.permute.xlu0 0
          %12486 = vperm.xlu0 %12485, %v12452
          %v12487 = vpop.permute.xlu0 %12486
          %12490 = vset.pattern.permute.xlu0 0
          %12491 = vperm.xlu0 %12490, %v12453
          %v12492 = vpop.permute.xlu0 %12491
          %12495 = vset.pattern.permute.xlu0 0
          %12496 = vperm.xlu0 %12495, %v12454
          %v12497 = vpop.permute.xlu0 %12496
          %12500 = vset.pattern.permute.xlu0 0
          %12501 = vperm.xlu0 %12500, %v12455
          %v12502 = vpop.permute.xlu0 %12501
          %v12504 = vmul.f32 %v12456, %v12467
          %v12505 = vmul.f32 %v12457, %v12472
          %v12506 = vmul.f32 %v12458, %v12477
          %v12507 = vmul.f32 %v12459, %v12482
          %v12508 = vmul.f32 %v12460, %v12487
          %v12509 = vmul.f32 %v12461, %v12492
          %v12510 = vmul.f32 %v12462, %v12497
          %v12511 = vmul.f32 %v12463, %v12502
          %12512 = vst [vmem:[%s393] sm:$0xff] %v12504
          %12513 = vst [vmem:[%s393 + $0x8] sm:$0xff] %v12505
          %12514 = vst [vmem:[%s393 + $0x10] sm:$0xff] %v12506
          %12515 = vst [vmem:[%s393 + $0x18] sm:$0xff] %v12507
          %12516 = vst [vmem:[%s393 + $0x20] sm:$0xff] %v12508
          %12517 = vst [vmem:[%s393 + $0x28] sm:$0xff] %v12509
          %12518 = vst [vmem:[%s393 + $0x30] sm:$0xff] %v12510
          %12519 = vst [vmem:[%s393 + $0x38] sm:$0xff] %v12511
        $region68: #{tpu_custom_call.1} parent=43 // pred_fallthru
          _
        %s12520 = sand.u32 %s203, 1
        %s12521 = scalar_lea.sflag [#allocation8], %s12520
        %s12522 = sand.u32 %s203, 1
        %s12523 = smul.addr %s12522, 64
        %s12524 = scalar_lea.vmem [#allocation14], %s12523
        // Predicated region
        $region69: #{tpu_custom_call.1} parent=43 // pred_check
          %p12525 = pneg %p213
        $region70: #{tpu_custom_call.1} parent=43 // pred_check_branch
          %12527 = sbr.rel (%p12525) target = $region72
        $region71: #{tpu_custom_call.1} parent=43 // pred_region
          %s12528 = smul.u32 8, %s33
          %s12530 = ssub.s32 1024, 1024
          %12531 = vsyncadd %s12521, %s12530
          %s12532 = smul.addr %s32, 32
          %s12533 = sadd.s32 %s12528, %s12532
          %s12534 = smul.addr %s12533, 128
          %s12535 = scalar_lea.hbm %s6, %s12534
          %s12536 = sshll.u32 %s12524, 4
          %s12537 = int_to_ptr.vmem [resolvable:$true] %s12536
          %12542 = dma.vmem_to_hbm [thread:$0]  %s12537, 1024, %s12535, %s12521, 128, 128, 8
        $region72: #{tpu_custom_call.1} parent=43 // pred_fallthru
          _
      $region44: #{tpu_custom_call.1} parent=5 // pred_fallthru
        _
      %p12543 = scmp.le.s32.totalorder 2, %s22
      // Predicated region
      $region73: #{tpu_custom_call.1} parent=5 // pred_check
        %p12544 = pneg %p12543
      $region74: #{tpu_custom_call.1} parent=5 // pred_check_branch
        %12546 = sbr.rel (%p12544) target = $region76
      $region75: #{tpu_custom_call.1} parent=5 // pred_region
        %s12547 = ssub.s32 %s22, 2
        // Predicated region
        $region77: #{tpu_custom_call.1} parent=75 // pred_check
          %p12548 = pneg %p219
        $region78: #{tpu_custom_call.1} parent=75 // pred_check_branch
          %12550 = sbr.rel (%p12548) target = $region80
        $region79: #{tpu_custom_call.1} parent=75 // pred_region
          %s12551 = sand.u32 %s204, 1
          %s12552 = scalar_lea.sflag [#allocation8], %s12551
          %s12553 = sand.u32 %s204, 1
          %s12554 = smul.addr %s12553, 64
          %s12555 = scalar_lea.vmem [#allocation14], %s12554
          %12556 = dma.done %s12552, 1024
        $region80: #{tpu_custom_call.1} parent=75 // pred_fallthru
          _
      $region76: #{tpu_custom_call.1} parent=5 // pred_fallthru
        _
    $region6: #{tpu_custom_call.1} parent=1 // loop_footer
      %s26 = sadd.s32 1, %s22
    $region7: #{tpu_custom_call.1} parent=1 // loop_footer_branch
      %21 = sbr.rel target = $region3
    $region8: #{tpu_custom_call.1} parent=1 // loop_exit
      _
    %12557 = vsyncpa [#allocation7], 1
    %s12558 = scalar_lea.sflag [#allocation7], 1
    %12559 = vsyncpa %s12558, 1
    %12560 = vsyncpa [#allocation10], 1
    %s12561 = scalar_lea.sflag [#allocation10], 1
    %12562 = vsyncpa %s12561, 1
    %12563 = vsyncpa [#allocation13], 1
    %12564 = vsyncpa [#allocation8], 1
    %s12565 = scalar_lea.sflag [#allocation8], 1
    %12566 = vsyncpa %s12565, 1

</llo_original>
